<compile_context>
chip_gen: v5e
topology: v5e:2x2
jax: 0.10.0
libtpu: 0.0.40
codegen_flags: <defaults>
</compile_context>

<pallas_src>
import math

import jax
import jax.numpy as jnp
from jax import lax
from jax.experimental import pallas as pl


_PER_BLOCK_REFS = 16          # refs consumed per ASTGCN block inside the kernel


def _astgcn_fused_kernel(*refs):
    """Entire ASTGCN forward (nb_block blocks + final conv) in ONE kernel.

    Ref layout:
      refs[0]  x      (B, T*N, F_in)   rows ordered (t, n), features on lanes
      refs[1]  that   (N, N)           dense scaled Laplacian  -D^-1/2 A D^-1/2
      per block (16 refs):
        u1 (N,1), u2 (F,N), u3 (1,F), be (T,T), ve (T,T),
        w1 (1,T), w2 (F,T), w3 (1,F), bs (N,N), vs (N,N),
        chebw (K,F,Fc), chebb (1,Fc),
        w_fused (3*Fc+F, Ft)  [1x3 temporal-conv taps + 1x1 residual conv stacked],
        b_fused (1,Ft), ln_g (1,Ft), ln_b (1,Ft)
      tail: w_big (Ft, T*C), mask (T,1,T*C), sel (T*C,C), final_b (1,C)
      refs[-1] out    (B, N, C)        with C = horizon * output_dim
    """
    f32 = jnp.float32
    nb_block = (len(refs) - 7) // _PER_BLOCK_REFS
    x_ref, that_ref = refs[0], refs[1]
    blk_refs = refs[2:2 + nb_block * _PER_BLOCK_REFS]
    wbig_ref, mask_ref, sel_ref, fb_ref = refs[-5:-1]
    o_ref = refs[-1]

    B, TN, _ = x_ref.shape
    N = that_ref.shape[0]
    T = TN // N

    that = that_ref[...]
    ri = lax.broadcasted_iota(jnp.int32, (N, N), 0)
    ci = lax.broadcasted_iota(jnp.int32, (N, N), 1)
    eye = (ri == ci).astype(f32)

    def dot(a, b):
        return jnp.dot(a, b, preferred_element_type=f32)

    def dot_nt(a, b):   # contract the LAST dim of both operands: (M,K)x(P,K)->(M,P)
        return lax.dot_general(a, b, (((1,), (1,)), ((), ())),
                               preferred_element_type=f32)

    x_all = x_ref[...]                                   # (B, T*N, F)

    for blk in range(nb_block):
        (u1_ref, u2_ref, u3_ref, be_ref, ve_ref,
         w1_ref, w2_ref, w3_ref, bs_ref, vs_ref,
         chebw_ref, chebb_ref, wf_ref, bf_ref, lng_ref, lnb_ref) = \
            blk_refs[blk * _PER_BLOCK_REFS:(blk + 1) * _PER_BLOCK_REFS]

        F = u2_ref.shape[0]
        K, _, Fc = chebw_ref.shape

        U1 = u1_ref[...].reshape(1, N, 1)
        U2 = u2_ref[...]
        U3 = u3_ref[...].reshape(1, 1, F)
        be = be_ref[...]
        Ve = ve_ref[...]
        W1 = w1_ref[...]                                 # (1, T)
        W2 = w2_ref[...]
        W3 = w3_ref[...].reshape(1, 1, F)
        bs = bs_ref[...]
        Vs = vs_ref[...]
        chebw = chebw_ref[...]                           # (K, F, Fc)
        cheb_b = chebb_ref[...]                          # (1, Fc)
        w_fused = wf_ref[...]                            # (3*Fc+F, Ft)
        b_fused = bf_ref[...]                            # (1, Ft)
        ln_g = lng_ref[...]
        ln_b = lnb_ref[...]

        # ---- Chebyshev feature matmuls hoisted over batch AND time:
        #      K pushes on (B*T*N, F) operands instead of B*K smaller ones. ----
        x_flat = x_all.reshape(B * T * N, F)
        zstack = jnp.concatenate(
            [dot(x_flat, chebw[k]).reshape(B, T, N, Fc) for k in range(K)],
            axis=2)                                      # (B, T, K*N, Fc)

        outs = []
        for b in range(B):                               # B tiny: fully unrolled
            x2 = x_all[b]                                # (T*N, F)
            x3 = x2.reshape(T, N, F)                     # (T, N, F)

            # ---------- temporal attention E (T,T), softmax over rows ----------
            t1 = jnp.sum(x3 * U1, axis=1)                # (T, F)
            lhs_t = dot(t1, U2)                          # (T, N)
            rhs_t = jnp.sum(x3 * U3, axis=2)             # (T, N) == RHS^T
            e = dot(Ve, jax.nn.sigmoid(dot_nt(lhs_t, rhs_t) + be))
            e = jnp.exp(e - jnp.max(e, axis=0, keepdims=True))
            e = e * pl.reciprocal(jnp.sum(e, axis=0, keepdims=True), approx=True)

            # --------- spatial attention S (N,N); X_tilde folded in, never
            #           materialized (all its uses reduce to small matmuls) ---------
            c1 = jnp.sum(e * W1, axis=1, keepdims=True)  # (T, 1) = E @ W1
            s1 = jnp.sum(x3 * c1[:, :, None], axis=0)    # (N, F)   (vectorized)
            lhs_s = dot(s1, W2)                          # (N, T)
            q = jnp.sum(x3 * W3, axis=2)                 # (T, N)
            # LHS @ (E^T @ q) computed as (LHS @ E^T) @ q: only lane-contractions.
            prod_s = dot(dot_nt(lhs_s, e), q)            # (N, N)
            s = dot(Vs, jax.nn.sigmoid(prod_s + bs))
            s = jnp.exp(s - jnp.max(s, axis=0, keepdims=True))
            s = s * pl.reciprocal(jnp.sum(s, axis=0, keepdims=True), approx=True)

            # -------- dense attention-modulated Chebyshev operators --------
            diag_row = jnp.sum(s * eye, axis=0, keepdims=True)   # (1, N): S_ii
            gs = [eye * diag_row]                        # G_0 = diag(S_ii)
            if K > 1:
                # G_1 = (T_hat ⊙ S^T) @ diag(S_ii)  (attention indexed (src, dst))
                gs.append(that * jnp.transpose(s) * diag_row)
            for _ in range(2, K):
                # k>=2 recursion uses the plain (un-attended) scaled Laplacian
                gs.append(2.0 * dot(that, gs[-1]) - gs[-2])
            gcat = gs[0] if K == 1 else jnp.concatenate(gs, axis=1)   # (N, K*N)

            # -------- graph conv: ONE (N,K*N)@(K*N,Fc) matmul per timestep --------
            xh_rows = [jnp.maximum(dot(gcat, zstack[b, t]) + cheb_b, 0.0)
                       for t in range(T)]
            xh = jnp.concatenate(xh_rows, axis=0)        # (T*N, Fc), ReLU'd X_hat

            # ----- fused 1x3 temporal conv + 1x1 residual conv: ONE matmul -----
            zero = jnp.zeros((N, Fc), f32)
            xh_prev = jnp.concatenate([zero, xh[:(T - 1) * N]], axis=0)
            xh_next = jnp.concatenate([xh[N:], zero], axis=0)
            xcat = jnp.concatenate([xh_prev, xh, xh_next, x2], axis=1)
            zz = jnp.maximum(dot(xcat, w_fused) + b_fused, 0.0)      # (T*N, Ft)

            # -------- LayerNorm over the feature (lane) axis --------
            mu = jnp.mean(zz, axis=1, keepdims=True)
            zc = zz - mu
            var = jnp.mean(zc * zc, axis=1, keepdims=True)
            outs.append(zc * lax.rsqrt(var + 1e-5) * ln_g + ln_b)

        x_all = jnp.stack(outs, axis=0)                  # (B, T*N, Ft)

    # ---- final Conv2d(T -> H*Fout, kernel (1, Ft)): 2 wide matmuls total ----
    w_big = wbig_ref[...]                                # (Ft, T*C)
    mask = mask_ref[...]                                 # (T, 1, T*C) block-diag mask
    sel = sel_ref[...]                                   # (T*C, C)
    fb = fb_ref[...]                                     # (1, C)
    Ft = w_big.shape[0]
    TC = w_big.shape[1]
    C = sel.shape[1]

    y = dot(x_all.reshape(B * T * N, Ft), w_big)         # (B*T*N, T*C), one push
    y = y.reshape(B, T, N, TC) * mask                    # keep only the t'==t block
    r = jnp.sum(y, axis=1)                               # (B, N, T*C)
    out = dot(r.reshape(B * N, TC), sel) + fb            # (B*N, C), one push
    o_ref[...] = out.reshape(B, N, C)                    # single wide store


# ----------------------------- wrapper -----------------------------

def astgcn_forward(params, x, cfg):
    """x: (B, N, F_in, T)  ->  (horizon, B, N, output_dim)."""
    B, N, F_in, T = x.shape
    H, Fout = cfg["horizon"], cfg["output_dim"]
    C = H * Fout
    # activation layout used inside the kernel: rows (t, n), features on lanes
    x_act = jnp.transpose(x, (0, 3, 1, 2)).reshape(B, T * N, F_in)

    args = [x_act, params["that"]]
    for blk in params["blocks"]:
        args += [blk["u1"], blk["u2"], blk["u3"], blk["be"], blk["ve"],
                 blk["w1"], blk["w2"], blk["w3"], blk["bs"], blk["vs"],
                 blk["cheb_w"], blk["cheb_b"], blk["w_fused"], blk["b_fused"],
                 blk["ln_g"], blk["ln_b"]]
    args += [params["final_wbig"], params["final_mask"], params["final_sel"],
             params["final_b"]]

    # No grid: single invocation, every operand fully VMEM-resident (total << 1 MiB).
    # (On v7x a grid=(B,) "parallel" axis could shard the two TensorCores.)
    out = pl.pallas_call(
        _astgcn_fused_kernel,
        out_shape=jax.ShapeDtypeStruct((B, N, C), jnp.float32),
    )(*args)
    # (B, N, H*Fout) -> (horizon, B, N, output_dim)
    return jnp.transpose(out.reshape(B, N, H, Fout), (2, 0, 1, 3))


# ----------------------------- params / graph -----------------------------

def init_params(key, cfg):
    N, T, K = cfg["node_num"], cfg["seq_len"], cfg["max_view"]
    Fc, Ft = cfg["nb_chev_filter"], cfg["nb_time_filter"]
    H, Fout = cfg["horizon"], cfg["output_dim"]
    C = H * Fout
    keys = iter(jax.random.split(key, 256))

    def xavier(shape, fan_in, fan_out):
        bound = math.sqrt(6.0 / (fan_in + fan_out))
        return jax.random.uniform(next(keys), shape, jnp.float32, -bound, bound)

    def unif(shape):  # torch _reset_parameters: uniform_(0,1) for params with dim<=1
        return jax.random.uniform(next(keys), shape, jnp.float32, 0.0, 1.0)

    blocks = []
    for i in range(cfg["nb_block"]):
        F = cfg["input_dim"] if i == 0 else Ft
        tconv_t = xavier((Ft, Fc, 1, 3), Fc * 3, Ft * 3)       # Conv2d(Fc->Ft,(1,3))
        rconv_t = xavier((Ft, F, 1, 1), F, Ft)                 # Conv2d(F ->Ft,(1,1))
        tcw = jnp.transpose(tconv_t[:, :, 0, :], (2, 1, 0))    # (3, Fc, Ft) taps t-1,t,t+1
        rcw = jnp.transpose(rconv_t[:, :, 0, 0], (1, 0))       # (F, Ft)
        blocks.append(dict(
            u1=unif((N, 1)), u2=xavier((F, N), F, N), u3=unif((1, F)),
            be=xavier((T, T), T, T), ve=xavier((T, T), T, T),
            w1=unif((1, T)), w2=xavier((F, T), F, T), w3=unif((1, F)),
            bs=xavier((N, N), N, N), vs=xavier((N, N), N, N),
            cheb_w=xavier((K, F, Fc), F * Fc, K * Fc), cheb_b=unif((1, Fc)),
            # 1x3 temporal conv + 1x1 residual conv fused into one weight / bias
            w_fused=jnp.concatenate([tcw[0], tcw[1], tcw[2], rcw], axis=0),
            b_fused=unif((1, Ft)) + unif((1, Ft)),
            ln_g=unif((1, Ft)), ln_b=unif((1, Ft)),
        ))

    final_t = xavier((C, T, 1, Ft), T * Ft, C * Ft)            # Conv2d(T->C,(1,Ft))
    final_w = jnp.transpose(final_t[:, :, 0, :], (1, 2, 0))    # (T, Ft, C)
    final_wbig = jnp.transpose(final_w, (1, 0, 2)).reshape(Ft, T * C)   # (Ft, T*C)
    final_b = unif((1, C))
    # block-diagonal time mask and column selector for the 2-matmul final conv
    final_mask = jnp.repeat(jnp.eye(T, dtype=jnp.float32), C, axis=1).reshape(T, 1, T * C)
    final_sel = jnp.tile(jnp.eye(C, dtype=jnp.float32), (T, 1))         # (T*C, C)

    # synthetic undirected ring graph (each node linked to i±1, i±2), no self loops
    src, dst = [], []
    for i in range(N):
        for d in (1, 2):
            j = (i + d) % N
            src += [i, j]
            dst += [j, i]
    rows = jnp.array(src, dtype=jnp.int32)
    cols = jnp.array(dst, dtype=jnp.int32)
    a = jnp.minimum(jnp.zeros((N, N), jnp.float32).at[rows, cols].add(1.0), 1.0)
    deg = jnp.sum(a, axis=1)
    dinv = jnp.where(deg > 0, 1.0 / jnp.sqrt(deg), 0.0)
    # 'sym' normalization with lambda_max = 2.0  =>  T_hat = L_sym - I = -D^-1/2 A D^-1/2
    # TODO(synk): normalization None / 'rw' needs LaplacianLambdaMax (eigendecomposition).
    that = -(a * dinv[:, None] * dinv[None, :])

    return dict(blocks=blocks, final_wbig=final_wbig, final_mask=final_mask,
                final_sel=final_sel, final_b=final_b, that=that)


# ----------------------------- main -----------------------------

if __name__ == "__main__":
    cfg = dict(
        nb_block=2, input_dim=4, output_dim=2, max_view=3,
        nb_chev_filter=16, nb_time_filter=16, time_strides=1,
        horizon=4, seq_len=8, node_num=16, batch=2,
    )
    # TODO(synk): time_strides > 1 (strided temporal conv) not implemented.
    assert cfg["time_strides"] == 1

    key = jax.random.PRNGKey(0)
    params = init_params(key, cfg)
    x = jax.random.normal(
        jax.random.fold_in(key, 1),
        (cfg["batch"], cfg["node_num"], cfg["input_dim"], cfg["seq_len"]),
        jnp.float32,
    )

    fwd = jax.jit(lambda p, xx: astgcn_forward(p, xx, cfg))
    out = jax.block_until_ready(fwd(params, x))

    assert out.shape == (cfg["horizon"], cfg["batch"], cfg["node_num"],
                         cfg["output_dim"]), out.shape
    assert bool(jnp.all(jnp.isfinite(out)))
    print("KERNEL_OK")
</pallas_src>

<mosaic_0001>
module attributes {stable_mosaic.version = 11 : i64} {
  func.func @_astgcn_fused_kernel(%arg0: memref<2x128x4xf32, #tpu.memory_space<vmem>>, %arg1: memref<16x16xf32, #tpu.memory_space<vmem>>, %arg2: memref<16x1xf32, #tpu.memory_space<vmem>>, %arg3: memref<4x16xf32, #tpu.memory_space<vmem>>, %arg4: memref<1x4xf32, #tpu.memory_space<vmem>>, %arg5: memref<8x8xf32, #tpu.memory_space<vmem>>, %arg6: memref<8x8xf32, #tpu.memory_space<vmem>>, %arg7: memref<1x8xf32, #tpu.memory_space<vmem>>, %arg8: memref<4x8xf32, #tpu.memory_space<vmem>>, %arg9: memref<1x4xf32, #tpu.memory_space<vmem>>, %arg10: memref<16x16xf32, #tpu.memory_space<vmem>>, %arg11: memref<16x16xf32, #tpu.memory_space<vmem>>, %arg12: memref<3x4x16xf32, #tpu.memory_space<vmem>>, %arg13: memref<1x16xf32, #tpu.memory_space<vmem>>, %arg14: memref<52x16xf32, #tpu.memory_space<vmem>>, %arg15: memref<1x16xf32, #tpu.memory_space<vmem>>, %arg16: memref<1x16xf32, #tpu.memory_space<vmem>>, %arg17: memref<1x16xf32, #tpu.memory_space<vmem>>, %arg18: memref<16x1xf32, #tpu.memory_space<vmem>>, %arg19: memref<16x16xf32, #tpu.memory_space<vmem>>, %arg20: memref<1x16xf32, #tpu.memory_space<vmem>>, %arg21: memref<8x8xf32, #tpu.memory_space<vmem>>, %arg22: memref<8x8xf32, #tpu.memory_space<vmem>>, %arg23: memref<1x8xf32, #tpu.memory_space<vmem>>, %arg24: memref<16x8xf32, #tpu.memory_space<vmem>>, %arg25: memref<1x16xf32, #tpu.memory_space<vmem>>, %arg26: memref<16x16xf32, #tpu.memory_space<vmem>>, %arg27: memref<16x16xf32, #tpu.memory_space<vmem>>, %arg28: memref<3x16x16xf32, #tpu.memory_space<vmem>>, %arg29: memref<1x16xf32, #tpu.memory_space<vmem>>, %arg30: memref<64x16xf32, #tpu.memory_space<vmem>>, %arg31: memref<1x16xf32, #tpu.memory_space<vmem>>, %arg32: memref<1x16xf32, #tpu.memory_space<vmem>>, %arg33: memref<1x16xf32, #tpu.memory_space<vmem>>, %arg34: memref<16x64xf32, #tpu.memory_space<vmem>>, %arg35: memref<8x1x64xf32, #tpu.memory_space<vmem>>, %arg36: memref<64x8xf32, #tpu.memory_space<vmem>>, %arg37: memref<1x8xf32, #tpu.memory_space<vmem>>, %arg38: memref<2x16x8xf32, #tpu.memory_space<vmem>>) attributes {dimension_semantics = [], scalar_prefetch = 0 : i64, scratch_operands = 0 : i64, tpu.core_type = #tpu.core_type<tc>} {
    %c0 = arith.constant 0 : index
    %c0_0 = arith.constant 0 : index
    %0 = vector.load %arg1[%c0, %c0_0] : memref<16x16xf32, #tpu.memory_space<vmem>>, vector<16x16xf32>
    %1 = tpu.iota {dimensions = array<i32: 0>} : vector<16x16xi32>
    %2 = tpu.iota {dimensions = array<i32: 1>} : vector<16x16xi32>
    %3 = arith.cmpi eq, %1, %2 : vector<16x16xi32>
    %4 = arith.extui %3 : vector<16x16xi1> to vector<16x16xi32>
    %5 = arith.sitofp %4 : vector<16x16xi32> to vector<16x16xf32>
    %c0_1 = arith.constant 0 : index
    %c0_2 = arith.constant 0 : index
    %c0_3 = arith.constant 0 : index
    %6 = vector.load %arg0[%c0_1, %c0_2, %c0_3] : memref<2x128x4xf32, #tpu.memory_space<vmem>>, vector<2x128x4xf32>
    %c0_4 = arith.constant 0 : index
    %c0_5 = arith.constant 0 : index
    %7 = vector.load %arg2[%c0_4, %c0_5] : memref<16x1xf32, #tpu.memory_space<vmem>>, vector<16x1xf32>
    %8 = vector.shape_cast %7 : vector<16x1xf32> to vector<1x16x1xf32>
    %c0_6 = arith.constant 0 : index
    %c0_7 = arith.constant 0 : index
    %9 = vector.load %arg3[%c0_6, %c0_7] : memref<4x16xf32, #tpu.memory_space<vmem>>, vector<4x16xf32>
    %c0_8 = arith.constant 0 : index
    %c0_9 = arith.constant 0 : index
    %10 = vector.load %arg4[%c0_8, %c0_9] : memref<1x4xf32, #tpu.memory_space<vmem>>, vector<1x4xf32>
    %11 = vector.shape_cast %10 : vector<1x4xf32> to vector<1x1x4xf32>
    %c0_10 = arith.constant 0 : index
    %c0_11 = arith.constant 0 : index
    %12 = vector.load %arg5[%c0_10, %c0_11] : memref<8x8xf32, #tpu.memory_space<vmem>>, vector<8x8xf32>
    %c0_12 = arith.constant 0 : index
    %c0_13 = arith.constant 0 : index
    %13 = vector.load %arg6[%c0_12, %c0_13] : memref<8x8xf32, #tpu.memory_space<vmem>>, vector<8x8xf32>
    %c0_14 = arith.constant 0 : index
    %c0_15 = arith.constant 0 : index
    %14 = vector.load %arg7[%c0_14, %c0_15] : memref<1x8xf32, #tpu.memory_space<vmem>>, vector<1x8xf32>
    %c0_16 = arith.constant 0 : index
    %c0_17 = arith.constant 0 : index
    %15 = vector.load %arg8[%c0_16, %c0_17] : memref<4x8xf32, #tpu.memory_space<vmem>>, vector<4x8xf32>
    %c0_18 = arith.constant 0 : index
    %c0_19 = arith.constant 0 : index
    %16 = vector.load %arg9[%c0_18, %c0_19] : memref<1x4xf32, #tpu.memory_space<vmem>>, vector<1x4xf32>
    %17 = vector.shape_cast %16 : vector<1x4xf32> to vector<1x1x4xf32>
    %c0_20 = arith.constant 0 : index
    %c0_21 = arith.constant 0 : index
    %18 = vector.load %arg10[%c0_20, %c0_21] : memref<16x16xf32, #tpu.memory_space<vmem>>, vector<16x16xf32>
    %c0_22 = arith.constant 0 : index
    %c0_23 = arith.constant 0 : index
    %19 = vector.load %arg11[%c0_22, %c0_23] : memref<16x16xf32, #tpu.memory_space<vmem>>, vector<16x16xf32>
    %c0_24 = arith.constant 0 : index
    %c0_25 = arith.constant 0 : index
    %c0_26 = arith.constant 0 : index
    %20 = vector.load %arg12[%c0_24, %c0_25, %c0_26] : memref<3x4x16xf32, #tpu.memory_space<vmem>>, vector<3x4x16xf32>
    %c0_27 = arith.constant 0 : index
    %c0_28 = arith.constant 0 : index
    %21 = vector.load %arg13[%c0_27, %c0_28] : memref<1x16xf32, #tpu.memory_space<vmem>>, vector<1x16xf32>
    %c0_29 = arith.constant 0 : index
    %c0_30 = arith.constant 0 : index
    %22 = vector.load %arg14[%c0_29, %c0_30] : memref<52x16xf32, #tpu.memory_space<vmem>>, vector<52x16xf32>
    %c0_31 = arith.constant 0 : index
    %c0_32 = arith.constant 0 : index
    %23 = vector.load %arg15[%c0_31, %c0_32] : memref<1x16xf32, #tpu.memory_space<vmem>>, vector<1x16xf32>
    %c0_33 = arith.constant 0 : index
    %c0_34 = arith.constant 0 : index
    %24 = vector.load %arg16[%c0_33, %c0_34] : memref<1x16xf32, #tpu.memory_space<vmem>>, vector<1x16xf32>
    %c0_35 = arith.constant 0 : index
    %c0_36 = arith.constant 0 : index
    %25 = vector.load %arg17[%c0_35, %c0_36] : memref<1x16xf32, #tpu.memory_space<vmem>>, vector<1x16xf32>
    %26 = vector.shape_cast %6 : vector<2x128x4xf32> to vector<256x4xf32>
    %27 = vector.extract_strided_slice %20 {offsets = [0, 0, 0], sizes = [1, 4, 16], strides = [1, 1, 1]} : vector<3x4x16xf32> to vector<1x4x16xf32>
    %28 = vector.shape_cast %27 : vector<1x4x16xf32> to vector<4x16xf32>
    %cst = arith.constant dense<0.000000e+00> : vector<256x16xf32>
    %29 = tpu.matmul %26, %28, %cst {dimension_numbers = #tpu.dot_dimension_numbers<[1], [0], [0], [1], [0, 0, 1, 1], [], []>} : vector<256x4xf32>, vector<4x16xf32>, vector<256x16xf32> -> vector<256x16xf32>
    %30 = vector.shape_cast %29 : vector<256x16xf32> to vector<2x8x16x16xf32>
    %31 = vector.extract_strided_slice %20 {offsets = [1, 0, 0], sizes = [1, 4, 16], strides = [1, 1, 1]} : vector<3x4x16xf32> to vector<1x4x16xf32>
    %32 = vector.shape_cast %31 : vector<1x4x16xf32> to vector<4x16xf32>
    %cst_37 = arith.constant dense<0.000000e+00> : vector<256x16xf32>
    %33 = tpu.matmul %26, %32, %cst_37 {dimension_numbers = #tpu.dot_dimension_numbers<[1], [0], [0], [1], [0, 0, 1, 1], [], []>} : vector<256x4xf32>, vector<4x16xf32>, vector<256x16xf32> -> vector<256x16xf32>
    %34 = vector.shape_cast %33 : vector<256x16xf32> to vector<2x8x16x16xf32>
    %35 = vector.extract_strided_slice %20 {offsets = [2, 0, 0], sizes = [1, 4, 16], strides = [1, 1, 1]} : vector<3x4x16xf32> to vector<1x4x16xf32>
    %36 = vector.shape_cast %35 : vector<1x4x16xf32> to vector<4x16xf32>
    %cst_38 = arith.constant dense<0.000000e+00> : vector<256x16xf32>
    %37 = tpu.matmul %26, %36, %cst_38 {dimension_numbers = #tpu.dot_dimension_numbers<[1], [0], [0], [1], [0, 0, 1, 1], [], []>} : vector<256x4xf32>, vector<4x16xf32>, vector<256x16xf32> -> vector<256x16xf32>
    %38 = vector.shape_cast %37 : vector<256x16xf32> to vector<2x8x16x16xf32>
    %39 = tpu.concatenate %30, %34, %38 in 2 : vector<2x8x16x16xf32>, vector<2x8x16x16xf32>, vector<2x8x16x16xf32> -> vector<2x8x48x16xf32>
    %40 = vector.extract_strided_slice %6 {offsets = [0, 0, 0], sizes = [1, 128, 4], strides = [1, 1, 1]} : vector<2x128x4xf32> to vector<1x128x4xf32>
    %41 = vector.shape_cast %40 : vector<1x128x4xf32> to vector<128x4xf32>
    %42 = vector.shape_cast %41 : vector<128x4xf32> to vector<8x16x4xf32>
    %43 = vector.broadcast %8 : vector<1x16x1xf32> to vector<8x16x4xf32>
    %44 = arith.mulf %42, %43 : vector<8x16x4xf32>
    %cst_39 = arith.constant dense<0.000000e+00> : vector<8x4xf32>
    %45 = vector.multi_reduction <add>, %44, %cst_39 [1] : vector<8x16x4xf32> to vector<8x4xf32>
    %cst_40 = arith.constant dense<0.000000e+00> : vector<8x16xf32>
    %46 = tpu.matmul %45, %9, %cst_40 {dimension_numbers = #tpu.dot_dimension_numbers<[1], [0], [0], [1], [0, 0, 1, 1], [], []>} : vector<8x4xf32>, vector<4x16xf32>, vector<8x16xf32> -> vector<8x16xf32>
    %47 = vector.broadcast %11 : vector<1x1x4xf32> to vector<8x16x4xf32>
    %48 = arith.mulf %42, %47 : vector<8x16x4xf32>
    %cst_41 = arith.constant dense<0.000000e+00> : vector<8x16xf32>
    %49 = vector.multi_reduction <add>, %48, %cst_41 [2] : vector<8x16x4xf32> to vector<8x16xf32>
    %cst_42 = arith.constant dense<0.000000e+00> : vector<8x8xf32>
    %50 = tpu.matmul %46, %49, %cst_42 {dimension_numbers = #tpu.dot_dimension_numbers<[1], [1], [0], [0], [0, 0, 1, 0], [], []>} : vector<8x16xf32>, vector<8x16xf32>, vector<8x8xf32> -> vector<8x8xf32>
    %51 = arith.addf %50, %12 : vector<8x8xf32>
    %52 = arith.negf %51 : vector<8x8xf32>
    %53 = math.exp %52 : vector<8x8xf32>
    %cst_43 = arith.constant 1.000000e+00 : f32
    %54 = vector.broadcast %cst_43 : f32 to vector<8x8xf32>
    %55 = arith.addf %54, %53 : vector<8x8xf32>
    %56 = arith.divf %54, %55 : vector<8x8xf32>
    %cst_44 = arith.constant dense<0.000000e+00> : vector<8x8xf32>
    %57 = tpu.matmul %13, %56, %cst_44 {dimension_numbers = #tpu.dot_dimension_numbers<[1], [0], [0], [1], [0, 0, 1, 1], [], []>} : vector<8x8xf32>, vector<8x8xf32>, vector<8x8xf32> -> vector<8x8xf32>
    %cst_45 = arith.constant dense<0xFF800000> : vector<8xf32>
    %58 = vector.multi_reduction <maximumf>, %57, %cst_45 [0] : vector<8x8xf32> to vector<8xf32>
    %59 = vector.shape_cast %58 : vector<8xf32> to vector<1x8xf32>
    %60 = vector.broadcast %59 : vector<1x8xf32> to vector<8x8xf32>
    %61 = arith.subf %57, %60 : vector<8x8xf32>
    %62 = math.exp %61 : vector<8x8xf32>
    %cst_46 = arith.constant dense<0.000000e+00> : vector<8xf32>
    %63 = vector.multi_reduction <add>, %62, %cst_46 [0] : vector<8x8xf32> to vector<8xf32>
    %64 = vector.shape_cast %63 : vector<8xf32> to vector<1x8xf32>
    %65 = tpu.reciprocal %64 {approx = true} : vector<1x8xf32> -> vector<1x8xf32>
    %66 = vector.broadcast %65 : vector<1x8xf32> to vector<8x8xf32>
    %67 = arith.mulf %62, %66 : vector<8x8xf32>
    %68 = vector.broadcast %14 : vector<1x8xf32> to vector<8x8xf32>
    %69 = arith.mulf %67, %68 : vector<8x8xf32>
    %cst_47 = arith.constant dense<0.000000e+00> : vector<8xf32>
    %70 = vector.multi_reduction <add>, %69, %cst_47 [1] : vector<8x8xf32> to vector<8xf32>
    %71 = vector.shape_cast %70 : vector<8xf32> to vector<8x1xf32>
    %72 = vector.shape_cast %71 : vector<8x1xf32> to vector<8x1x1xf32>
    %73 = vector.broadcast %72 : vector<8x1x1xf32> to vector<8x16x4xf32>
    %74 = arith.mulf %42, %73 : vector<8x16x4xf32>
    %cst_48 = arith.constant dense<0.000000e+00> : vector<16x4xf32>
    %75 = vector.multi_reduction <add>, %74, %cst_48 [0] : vector<8x16x4xf32> to vector<16x4xf32>
    %cst_49 = arith.constant dense<0.000000e+00> : vector<16x8xf32>
    %76 = tpu.matmul %75, %15, %cst_49 {dimension_numbers = #tpu.dot_dimension_numbers<[1], [0], [0], [1], [0, 0, 1, 1], [], []>} : vector<16x4xf32>, vector<4x8xf32>, vector<16x8xf32> -> vector<16x8xf32>
    %77 = vector.broadcast %17 : vector<1x1x4xf32> to vector<8x16x4xf32>
    %78 = arith.mulf %42, %77 : vector<8x16x4xf32>
    %cst_50 = arith.constant dense<0.000000e+00> : vector<8x16xf32>
    %79 = vector.multi_reduction <add>, %78, %cst_50 [2] : vector<8x16x4xf32> to vector<8x16xf32>
    %cst_51 = arith.constant dense<0.000000e+00> : vector<16x8xf32>
    %80 = tpu.matmul %76, %67, %cst_51 {dimension_numbers = #tpu.dot_dimension_numbers<[1], [1], [0], [0], [0, 0, 1, 0], [], []>} : vector<16x8xf32>, vector<8x8xf32>, vector<16x8xf32> -> vector<16x8xf32>
    %cst_52 = arith.constant dense<0.000000e+00> : vector<16x16xf32>
    %81 = tpu.matmul %80, %79, %cst_52 {dimension_numbers = #tpu.dot_dimension_numbers<[1], [0], [0], [1], [0, 0, 1, 1], [], []>} : vector<16x8xf32>, vector<8x16xf32>, vector<16x16xf32> -> vector<16x16xf32>
    %82 = arith.addf %81, %18 : vector<16x16xf32>
    %83 = arith.negf %82 : vector<16x16xf32>
    %84 = math.exp %83 : vector<16x16xf32>
    %cst_53 = arith.constant 1.000000e+00 : f32
    %85 = vector.broadcast %cst_53 : f32 to vector<16x16xf32>
    %86 = arith.addf %85, %84 : vector<16x16xf32>
    %87 = arith.divf %85, %86 : vector<16x16xf32>
    %cst_54 = arith.constant dense<0.000000e+00> : vector<16x16xf32>
    %88 = tpu.matmul %19, %87, %cst_54 {dimension_numbers = #tpu.dot_dimension_numbers<[1], [0], [0], [1], [0, 0, 1, 1], [], []>} : vector<16x16xf32>, vector<16x16xf32>, vector<16x16xf32> -> vector<16x16xf32>
    %cst_55 = arith.constant dense<0xFF800000> : vector<16xf32>
    %89 = vector.multi_reduction <maximumf>, %88, %cst_55 [0] : vector<16x16xf32> to vector<16xf32>
    %90 = vector.shape_cast %89 : vector<16xf32> to vector<1x16xf32>
    %91 = vector.broadcast %90 : vector<1x16xf32> to vector<16x16xf32>
    %92 = arith.subf %88, %91 : vector<16x16xf32>
    %93 = math.exp %92 : vector<16x16xf32>
    %cst_56 = arith.constant dense<0.000000e+00> : vector<16xf32>
    %94 = vector.multi_reduction <add>, %93, %cst_56 [0] : vector<16x16xf32> to vector<16xf32>
    %95 = vector.shape_cast %94 : vector<16xf32> to vector<1x16xf32>
    %96 = tpu.reciprocal %95 {approx = true} : vector<1x16xf32> -> vector<1x16xf32>
    %97 = vector.broadcast %96 : vector<1x16xf32> to vector<16x16xf32>
    %98 = arith.mulf %93, %97 : vector<16x16xf32>
    %99 = arith.mulf %98, %5 : vector<16x16xf32>
    %cst_57 = arith.constant dense<0.000000e+00> : vector<16xf32>
    %100 = vector.multi_reduction <add>, %99, %cst_57 [0] : vector<16x16xf32> to vector<16xf32>
    %101 = vector.shape_cast %100 : vector<16xf32> to vector<1x16xf32>
    %102 = vector.broadcast %101 : vector<1x16xf32> to vector<16x16xf32>
    %103 = arith.mulf %5, %102 : vector<16x16xf32>
    %104 = tpu.transpose %98, [1, 0] : vector<16x16xf32> -> vector<16x16xf32>
    %105 = arith.mulf %0, %104 : vector<16x16xf32>
    %106 = vector.broadcast %101 : vector<1x16xf32> to vector<16x16xf32>
    %107 = arith.mulf %105, %106 : vector<16x16xf32>
    %cst_58 = arith.constant dense<0.000000e+00> : vector<16x16xf32>
    %108 = tpu.matmul %0, %107, %cst_58 {dimension_numbers = #tpu.dot_dimension_numbers<[1], [0], [0], [1], [0, 0, 1, 1], [], []>} : vector<16x16xf32>, vector<16x16xf32>, vector<16x16xf32> -> vector<16x16xf32>
    %cst_59 = arith.constant 2.000000e+00 : f32
    %109 = vector.broadcast %cst_59 : f32 to vector<16x16xf32>
    %110 = arith.mulf %109, %108 : vector<16x16xf32>
    %111 = arith.subf %110, %103 : vector<16x16xf32>
    %112 = tpu.concatenate %103, %107, %111 in 1 : vector<16x16xf32>, vector<16x16xf32>, vector<16x16xf32> -> vector<16x48xf32>
    %113 = vector.extract_strided_slice %39 {offsets = [0, 0, 0, 0], sizes = [1, 1, 48, 16], strides = [1, 1, 1, 1]} : vector<2x8x48x16xf32> to vector<1x1x48x16xf32>
    %114 = vector.shape_cast %113 : vector<1x1x48x16xf32> to vector<48x16xf32>
    %cst_60 = arith.constant dense<0.000000e+00> : vector<16x16xf32>
    %115 = tpu.matmul %112, %114, %cst_60 {dimension_numbers = #tpu.dot_dimension_numbers<[1], [0], [0], [1], [0, 0, 1, 1], [], []>} : vector<16x48xf32>, vector<48x16xf32>, vector<16x16xf32> -> vector<16x16xf32>
    %116 = vector.broadcast %21 : vector<1x16xf32> to vector<16x16xf32>
    %117 = arith.addf %115, %116 : vector<16x16xf32>
    %cst_61 = arith.constant 0.000000e+00 : f32
    %118 = vector.broadcast %cst_61 : f32 to vector<16x16xf32>
    %119 = arith.maximumf %117, %118 : vector<16x16xf32>
    %120 = vector.extract_strided_slice %39 {offsets = [0, 1, 0, 0], sizes = [1, 1, 48, 16], strides = [1, 1, 1, 1]} : vector<2x8x48x16xf32> to vector<1x1x48x16xf32>
    %121 = vector.shape_cast %120 : vector<1x1x48x16xf32> to vector<48x16xf32>
    %cst_62 = arith.constant dense<0.000000e+00> : vector<16x16xf32>
    %122 = tpu.matmul %112, %121, %cst_62 {dimension_numbers = #tpu.dot_dimension_numbers<[1], [0], [0], [1], [0, 0, 1, 1], [], []>} : vector<16x48xf32>, vector<48x16xf32>, vector<16x16xf32> -> vector<16x16xf32>
    %123 = vector.broadcast %21 : vector<1x16xf32> to vector<16x16xf32>
    %124 = arith.addf %122, %123 : vector<16x16xf32>
    %cst_63 = arith.constant 0.000000e+00 : f32
    %125 = vector.broadcast %cst_63 : f32 to vector<16x16xf32>
    %126 = arith.maximumf %124, %125 : vector<16x16xf32>
    %127 = vector.extract_strided_slice %39 {offsets = [0, 2, 0, 0], sizes = [1, 1, 48, 16], strides = [1, 1, 1, 1]} : vector<2x8x48x16xf32> to vector<1x1x48x16xf32>
    %128 = vector.shape_cast %127 : vector<1x1x48x16xf32> to vector<48x16xf32>
    %cst_64 = arith.constant dense<0.000000e+00> : vector<16x16xf32>
    %129 = tpu.matmul %112, %128, %cst_64 {dimension_numbers = #tpu.dot_dimension_numbers<[1], [0], [0], [1], [0, 0, 1, 1], [], []>} : vector<16x48xf32>, vector<48x16xf32>, vector<16x16xf32> -> vector<16x16xf32>
    %130 = vector.broadcast %21 : vector<1x16xf32> to vector<16x16xf32>
    %131 = arith.addf %129, %130 : vector<16x16xf32>
    %cst_65 = arith.constant 0.000000e+00 : f32
    %132 = vector.broadcast %cst_65 : f32 to vector<16x16xf32>
    %133 = arith.maximumf %131, %132 : vector<16x16xf32>
    %134 = vector.extract_strided_slice %39 {offsets = [0, 3, 0, 0], sizes = [1, 1, 48, 16], strides = [1, 1, 1, 1]} : vector<2x8x48x16xf32> to vector<1x1x48x16xf32>
    %135 = vector.shape_cast %134 : vector<1x1x48x16xf32> to vector<48x16xf32>
    %cst_66 = arith.constant dense<0.000000e+00> : vector<16x16xf32>
    %136 = tpu.matmul %112, %135, %cst_66 {dimension_numbers = #tpu.dot_dimension_numbers<[1], [0], [0], [1], [0, 0, 1, 1], [], []>} : vector<16x48xf32>, vector<48x16xf32>, vector<16x16xf32> -> vector<16x16xf32>
    %137 = vector.broadcast %21 : vector<1x16xf32> to vector<16x16xf32>
    %138 = arith.addf %136, %137 : vector<16x16xf32>
    %cst_67 = arith.constant 0.000000e+00 : f32
    %139 = vector.broadcast %cst_67 : f32 to vector<16x16xf32>
    %140 = arith.maximumf %138, %139 : vector<16x16xf32>
    %141 = vector.extract_strided_slice %39 {offsets = [0, 4, 0, 0], sizes = [1, 1, 48, 16], strides = [1, 1, 1, 1]} : vector<2x8x48x16xf32> to vector<1x1x48x16xf32>
    %142 = vector.shape_cast %141 : vector<1x1x48x16xf32> to vector<48x16xf32>
    %cst_68 = arith.constant dense<0.000000e+00> : vector<16x16xf32>
    %143 = tpu.matmul %112, %142, %cst_68 {dimension_numbers = #tpu.dot_dimension_numbers<[1], [0], [0], [1], [0, 0, 1, 1], [], []>} : vector<16x48xf32>, vector<48x16xf32>, vector<16x16xf32> -> vector<16x16xf32>
    %144 = vector.broadcast %21 : vector<1x16xf32> to vector<16x16xf32>
    %145 = arith.addf %143, %144 : vector<16x16xf32>
    %cst_69 = arith.constant 0.000000e+00 : f32
    %146 = vector.broadcast %cst_69 : f32 to vector<16x16xf32>
    %147 = arith.maximumf %145, %146 : vector<16x16xf32>
    %148 = vector.extract_strided_slice %39 {offsets = [0, 5, 0, 0], sizes = [1, 1, 48, 16], strides = [1, 1, 1, 1]} : vector<2x8x48x16xf32> to vector<1x1x48x16xf32>
    %149 = vector.shape_cast %148 : vector<1x1x48x16xf32> to vector<48x16xf32>
    %cst_70 = arith.constant dense<0.000000e+00> : vector<16x16xf32>
    %150 = tpu.matmul %112, %149, %cst_70 {dimension_numbers = #tpu.dot_dimension_numbers<[1], [0], [0], [1], [0, 0, 1, 1], [], []>} : vector<16x48xf32>, vector<48x16xf32>, vector<16x16xf32> -> vector<16x16xf32>
    %151 = vector.broadcast %21 : vector<1x16xf32> to vector<16x16xf32>
    %152 = arith.addf %150, %151 : vector<16x16xf32>
    %cst_71 = arith.constant 0.000000e+00 : f32
    %153 = vector.broadcast %cst_71 : f32 to vector<16x16xf32>
    %154 = arith.maximumf %152, %153 : vector<16x16xf32>
    %155 = vector.extract_strided_slice %39 {offsets = [0, 6, 0, 0], sizes = [1, 1, 48, 16], strides = [1, 1, 1, 1]} : vector<2x8x48x16xf32> to vector<1x1x48x16xf32>
    %156 = vector.shape_cast %155 : vector<1x1x48x16xf32> to vector<48x16xf32>
    %cst_72 = arith.constant dense<0.000000e+00> : vector<16x16xf32>
    %157 = tpu.matmul %112, %156, %cst_72 {dimension_numbers = #tpu.dot_dimension_numbers<[1], [0], [0], [1], [0, 0, 1, 1], [], []>} : vector<16x48xf32>, vector<48x16xf32>, vector<16x16xf32> -> vector<16x16xf32>
    %158 = vector.broadcast %21 : vector<1x16xf32> to vector<16x16xf32>
    %159 = arith.addf %157, %158 : vector<16x16xf32>
    %cst_73 = arith.constant 0.000000e+00 : f32
    %160 = vector.broadcast %cst_73 : f32 to vector<16x16xf32>
    %161 = arith.maximumf %159, %160 : vector<16x16xf32>
    %162 = vector.extract_strided_slice %39 {offsets = [0, 7, 0, 0], sizes = [1, 1, 48, 16], strides = [1, 1, 1, 1]} : vector<2x8x48x16xf32> to vector<1x1x48x16xf32>
    %163 = vector.shape_cast %162 : vector<1x1x48x16xf32> to vector<48x16xf32>
    %cst_74 = arith.constant dense<0.000000e+00> : vector<16x16xf32>
    %164 = tpu.matmul %112, %163, %cst_74 {dimension_numbers = #tpu.dot_dimension_numbers<[1], [0], [0], [1], [0, 0, 1, 1], [], []>} : vector<16x48xf32>, vector<48x16xf32>, vector<16x16xf32> -> vector<16x16xf32>
    %165 = vector.broadcast %21 : vector<1x16xf32> to vector<16x16xf32>
    %166 = arith.addf %164, %165 : vector<16x16xf32>
    %cst_75 = arith.constant 0.000000e+00 : f32
    %167 = vector.broadcast %cst_75 : f32 to vector<16x16xf32>
    %168 = arith.maximumf %166, %167 : vector<16x16xf32>
    %169 = tpu.concatenate %119, %126, %133, %140, %147, %154, %161, %168 in 0 : vector<16x16xf32>, vector<16x16xf32>, vector<16x16xf32>, vector<16x16xf32>, vector<16x16xf32>, vector<16x16xf32>, vector<16x16xf32>, vector<16x16xf32> -> vector<128x16xf32>
    %cst_76 = arith.constant 0.000000e+00 : f32
    %170 = vector.broadcast %cst_76 : f32 to vector<16x16xf32>
    %171 = vector.extract_strided_slice %169 {offsets = [0, 0], sizes = [112, 16], strides = [1, 1]} : vector<128x16xf32> to vector<112x16xf32>
    %172 = tpu.concatenate %170, %171 in 0 : vector<16x16xf32>, vector<112x16xf32> -> vector<128x16xf32>
    %173 = vector.extract_strided_slice %169 {offsets = [16, 0], sizes = [112, 16], strides = [1, 1]} : vector<128x16xf32> to vector<112x16xf32>
    %174 = tpu.concatenate %173, %170 in 0 : vector<112x16xf32>, vector<16x16xf32> -> vector<128x16xf32>
    %175 = tpu.concatenate %172, %169, %174, %41 in 1 : vector<128x16xf32>, vector<128x16xf32>, vector<128x16xf32>, vector<128x4xf32> -> vector<128x52xf32>
    %cst_77 = arith.constant dense<0.000000e+00> : vector<128x16xf32>
    %176 = tpu.matmul %175, %22, %cst_77 {dimension_numbers = #tpu.dot_dimension_numbers<[1], [0], [0], [1], [0, 0, 1, 1], [], []>} : vector<128x52xf32>, vector<52x16xf32>, vector<128x16xf32> -> vector<128x16xf32>
    %177 = vector.broadcast %23 : vector<1x16xf32> to vector<128x16xf32>
    %178 = arith.addf %176, %177 : vector<128x16xf32>
    %cst_78 = arith.constant 0.000000e+00 : f32
    %179 = vector.broadcast %cst_78 : f32 to vector<128x16xf32>
    %180 = arith.maximumf %178, %179 : vector<128x16xf32>
    %cst_79 = arith.constant dense<0.000000e+00> : vector<128xf32>
    %181 = vector.multi_reduction <add>, %180, %cst_79 [1] : vector<128x16xf32> to vector<128xf32>
    %182 = vector.shape_cast %181 : vector<128xf32> to vector<128x1xf32>
    %cst_80 = arith.constant 1.600000e+01 : f32
    %183 = vector.broadcast %cst_80 : f32 to vector<128x1xf32>
    %184 = arith.divf %182, %183 : vector<128x1xf32>
    %185 = vector.broadcast %184 : vector<128x1xf32> to vector<128x16xf32>
    %186 = arith.subf %180, %185 : vector<128x16xf32>
    %187 = arith.mulf %186, %186 : vector<128x16xf32>
    %cst_81 = arith.constant dense<0.000000e+00> : vector<128xf32>
    %188 = vector.multi_reduction <add>, %187, %cst_81 [1] : vector<128x16xf32> to vector<128xf32>
    %189 = vector.shape_cast %188 : vector<128xf32> to vector<128x1xf32>
    %cst_82 = arith.constant 1.600000e+01 : f32
    %190 = vector.broadcast %cst_82 : f32 to vector<128x1xf32>
    %191 = arith.divf %189, %190 : vector<128x1xf32>
    %cst_83 = arith.constant 9.99999974E-6 : f32
    %192 = vector.broadcast %cst_83 : f32 to vector<128x1xf32>
    %193 = arith.addf %191, %192 : vector<128x1xf32>
    %194 = math.rsqrt %193 : vector<128x1xf32>
    %195 = vector.broadcast %194 : vector<128x1xf32> to vector<128x16xf32>
    %196 = arith.mulf %186, %195 : vector<128x16xf32>
    %197 = vector.broadcast %24 : vector<1x16xf32> to vector<128x16xf32>
    %198 = arith.mulf %196, %197 : vector<128x16xf32>
    %199 = vector.broadcast %25 : vector<1x16xf32> to vector<128x16xf32>
    %200 = arith.addf %198, %199 : vector<128x16xf32>
    %201 = vector.extract_strided_slice %6 {offsets = [1, 0, 0], sizes = [1, 128, 4], strides = [1, 1, 1]} : vector<2x128x4xf32> to vector<1x128x4xf32>
    %202 = vector.shape_cast %201 : vector<1x128x4xf32> to vector<128x4xf32>
    %203 = vector.shape_cast %202 : vector<128x4xf32> to vector<8x16x4xf32>
    %204 = vector.broadcast %8 : vector<1x16x1xf32> to vector<8x16x4xf32>
    %205 = arith.mulf %203, %204 : vector<8x16x4xf32>
    %cst_84 = arith.constant dense<0.000000e+00> : vector<8x4xf32>
    %206 = vector.multi_reduction <add>, %205, %cst_84 [1] : vector<8x16x4xf32> to vector<8x4xf32>
    %cst_85 = arith.constant dense<0.000000e+00> : vector<8x16xf32>
    %207 = tpu.matmul %206, %9, %cst_85 {dimension_numbers = #tpu.dot_dimension_numbers<[1], [0], [0], [1], [0, 0, 1, 1], [], []>} : vector<8x4xf32>, vector<4x16xf32>, vector<8x16xf32> -> vector<8x16xf32>
    %208 = vector.broadcast %11 : vector<1x1x4xf32> to vector<8x16x4xf32>
    %209 = arith.mulf %203, %208 : vector<8x16x4xf32>
    %cst_86 = arith.constant dense<0.000000e+00> : vector<8x16xf32>
    %210 = vector.multi_reduction <add>, %209, %cst_86 [2] : vector<8x16x4xf32> to vector<8x16xf32>
    %cst_87 = arith.constant dense<0.000000e+00> : vector<8x8xf32>
    %211 = tpu.matmul %207, %210, %cst_87 {dimension_numbers = #tpu.dot_dimension_numbers<[1], [1], [0], [0], [0, 0, 1, 0], [], []>} : vector<8x16xf32>, vector<8x16xf32>, vector<8x8xf32> -> vector<8x8xf32>
    %212 = arith.addf %211, %12 : vector<8x8xf32>
    %213 = arith.negf %212 : vector<8x8xf32>
    %214 = math.exp %213 : vector<8x8xf32>
    %cst_88 = arith.constant 1.000000e+00 : f32
    %215 = vector.broadcast %cst_88 : f32 to vector<8x8xf32>
    %216 = arith.addf %215, %214 : vector<8x8xf32>
    %217 = arith.divf %215, %216 : vector<8x8xf32>
    %cst_89 = arith.constant dense<0.000000e+00> : vector<8x8xf32>
    %218 = tpu.matmul %13, %217, %cst_89 {dimension_numbers = #tpu.dot_dimension_numbers<[1], [0], [0], [1], [0, 0, 1, 1], [], []>} : vector<8x8xf32>, vector<8x8xf32>, vector<8x8xf32> -> vector<8x8xf32>
    %cst_90 = arith.constant dense<0xFF800000> : vector<8xf32>
    %219 = vector.multi_reduction <maximumf>, %218, %cst_90 [0] : vector<8x8xf32> to vector<8xf32>
    %220 = vector.shape_cast %219 : vector<8xf32> to vector<1x8xf32>
    %221 = vector.broadcast %220 : vector<1x8xf32> to vector<8x8xf32>
    %222 = arith.subf %218, %221 : vector<8x8xf32>
    %223 = math.exp %222 : vector<8x8xf32>
    %cst_91 = arith.constant dense<0.000000e+00> : vector<8xf32>
    %224 = vector.multi_reduction <add>, %223, %cst_91 [0] : vector<8x8xf32> to vector<8xf32>
    %225 = vector.shape_cast %224 : vector<8xf32> to vector<1x8xf32>
    %226 = tpu.reciprocal %225 {approx = true} : vector<1x8xf32> -> vector<1x8xf32>
    %227 = vector.broadcast %226 : vector<1x8xf32> to vector<8x8xf32>
    %228 = arith.mulf %223, %227 : vector<8x8xf32>
    %229 = vector.broadcast %14 : vector<1x8xf32> to vector<8x8xf32>
    %230 = arith.mulf %228, %229 : vector<8x8xf32>
    %cst_92 = arith.constant dense<0.000000e+00> : vector<8xf32>
    %231 = vector.multi_reduction <add>, %230, %cst_92 [1] : vector<8x8xf32> to vector<8xf32>
    %232 = vector.shape_cast %231 : vector<8xf32> to vector<8x1xf32>
    %233 = vector.shape_cast %232 : vector<8x1xf32> to vector<8x1x1xf32>
    %234 = vector.broadcast %233 : vector<8x1x1xf32> to vector<8x16x4xf32>
    %235 = arith.mulf %203, %234 : vector<8x16x4xf32>
    %cst_93 = arith.constant dense<0.000000e+00> : vector<16x4xf32>
    %236 = vector.multi_reduction <add>, %235, %cst_93 [0] : vector<8x16x4xf32> to vector<16x4xf32>
    %cst_94 = arith.constant dense<0.000000e+00> : vector<16x8xf32>
    %237 = tpu.matmul %236, %15, %cst_94 {dimension_numbers = #tpu.dot_dimension_numbers<[1], [0], [0], [1], [0, 0, 1, 1], [], []>} : vector<16x4xf32>, vector<4x8xf32>, vector<16x8xf32> -> vector<16x8xf32>
    %238 = vector.broadcast %17 : vector<1x1x4xf32> to vector<8x16x4xf32>
    %239 = arith.mulf %203, %238 : vector<8x16x4xf32>
    %cst_95 = arith.constant dense<0.000000e+00> : vector<8x16xf32>
    %240 = vector.multi_reduction <add>, %239, %cst_95 [2] : vector<8x16x4xf32> to vector<8x16xf32>
    %cst_96 = arith.constant dense<0.000000e+00> : vector<16x8xf32>
    %241 = tpu.matmul %237, %228, %cst_96 {dimension_numbers = #tpu.dot_dimension_numbers<[1], [1], [0], [0], [0, 0, 1, 0], [], []>} : vector<16x8xf32>, vector<8x8xf32>, vector<16x8xf32> -> vector<16x8xf32>
    %cst_97 = arith.constant dense<0.000000e+00> : vector<16x16xf32>
    %242 = tpu.matmul %241, %240, %cst_97 {dimension_numbers = #tpu.dot_dimension_numbers<[1], [0], [0], [1], [0, 0, 1, 1], [], []>} : vector<16x8xf32>, vector<8x16xf32>, vector<16x16xf32> -> vector<16x16xf32>
    %243 = arith.addf %242, %18 : vector<16x16xf32>
    %244 = arith.negf %243 : vector<16x16xf32>
    %245 = math.exp %244 : vector<16x16xf32>
    %cst_98 = arith.constant 1.000000e+00 : f32
    %246 = vector.broadcast %cst_98 : f32 to vector<16x16xf32>
    %247 = arith.addf %246, %245 : vector<16x16xf32>
    %248 = arith.divf %246, %247 : vector<16x16xf32>
    %cst_99 = arith.constant dense<0.000000e+00> : vector<16x16xf32>
    %249 = tpu.matmul %19, %248, %cst_99 {dimension_numbers = #tpu.dot_dimension_numbers<[1], [0], [0], [1], [0, 0, 1, 1], [], []>} : vector<16x16xf32>, vector<16x16xf32>, vector<16x16xf32> -> vector<16x16xf32>
    %cst_100 = arith.constant dense<0xFF800000> : vector<16xf32>
    %250 = vector.multi_reduction <maximumf>, %249, %cst_100 [0] : vector<16x16xf32> to vector<16xf32>
    %251 = vector.shape_cast %250 : vector<16xf32> to vector<1x16xf32>
    %252 = vector.broadcast %251 : vector<1x16xf32> to vector<16x16xf32>
    %253 = arith.subf %249, %252 : vector<16x16xf32>
    %254 = math.exp %253 : vector<16x16xf32>
    %cst_101 = arith.constant dense<0.000000e+00> : vector<16xf32>
    %255 = vector.multi_reduction <add>, %254, %cst_101 [0] : vector<16x16xf32> to vector<16xf32>
    %256 = vector.shape_cast %255 : vector<16xf32> to vector<1x16xf32>
    %257 = tpu.reciprocal %256 {approx = true} : vector<1x16xf32> -> vector<1x16xf32>
    %258 = vector.broadcast %257 : vector<1x16xf32> to vector<16x16xf32>
    %259 = arith.mulf %254, %258 : vector<16x16xf32>
    %260 = arith.mulf %259, %5 : vector<16x16xf32>
    %cst_102 = arith.constant dense<0.000000e+00> : vector<16xf32>
    %261 = vector.multi_reduction <add>, %260, %cst_102 [0] : vector<16x16xf32> to vector<16xf32>
    %262 = vector.shape_cast %261 : vector<16xf32> to vector<1x16xf32>
    %263 = vector.broadcast %262 : vector<1x16xf32> to vector<16x16xf32>
    %264 = arith.mulf %5, %263 : vector<16x16xf32>
    %265 = tpu.transpose %259, [1, 0] : vector<16x16xf32> -> vector<16x16xf32>
    %266 = arith.mulf %0, %265 : vector<16x16xf32>
    %267 = vector.broadcast %262 : vector<1x16xf32> to vector<16x16xf32>
    %268 = arith.mulf %266, %267 : vector<16x16xf32>
    %cst_103 = arith.constant dense<0.000000e+00> : vector<16x16xf32>
    %269 = tpu.matmul %0, %268, %cst_103 {dimension_numbers = #tpu.dot_dimension_numbers<[1], [0], [0], [1], [0, 0, 1, 1], [], []>} : vector<16x16xf32>, vector<16x16xf32>, vector<16x16xf32> -> vector<16x16xf32>
    %cst_104 = arith.constant 2.000000e+00 : f32
    %270 = vector.broadcast %cst_104 : f32 to vector<16x16xf32>
    %271 = arith.mulf %270, %269 : vector<16x16xf32>
    %272 = arith.subf %271, %264 : vector<16x16xf32>
    %273 = tpu.concatenate %264, %268, %272 in 1 : vector<16x16xf32>, vector<16x16xf32>, vector<16x16xf32> -> vector<16x48xf32>
    %274 = vector.extract_strided_slice %39 {offsets = [1, 0, 0, 0], sizes = [1, 1, 48, 16], strides = [1, 1, 1, 1]} : vector<2x8x48x16xf32> to vector<1x1x48x16xf32>
    %275 = vector.shape_cast %274 : vector<1x1x48x16xf32> to vector<48x16xf32>
    %cst_105 = arith.constant dense<0.000000e+00> : vector<16x16xf32>
    %276 = tpu.matmul %273, %275, %cst_105 {dimension_numbers = #tpu.dot_dimension_numbers<[1], [0], [0], [1], [0, 0, 1, 1], [], []>} : vector<16x48xf32>, vector<48x16xf32>, vector<16x16xf32> -> vector<16x16xf32>
    %277 = vector.broadcast %21 : vector<1x16xf32> to vector<16x16xf32>
    %278 = arith.addf %276, %277 : vector<16x16xf32>
    %cst_106 = arith.constant 0.000000e+00 : f32
    %279 = vector.broadcast %cst_106 : f32 to vector<16x16xf32>
    %280 = arith.maximumf %278, %279 : vector<16x16xf32>
    %281 = vector.extract_strided_slice %39 {offsets = [1, 1, 0, 0], sizes = [1, 1, 48, 16], strides = [1, 1, 1, 1]} : vector<2x8x48x16xf32> to vector<1x1x48x16xf32>
    %282 = vector.shape_cast %281 : vector<1x1x48x16xf32> to vector<48x16xf32>
    %cst_107 = arith.constant dense<0.000000e+00> : vector<16x16xf32>
    %283 = tpu.matmul %273, %282, %cst_107 {dimension_numbers = #tpu.dot_dimension_numbers<[1], [0], [0], [1], [0, 0, 1, 1], [], []>} : vector<16x48xf32>, vector<48x16xf32>, vector<16x16xf32> -> vector<16x16xf32>
    %284 = vector.broadcast %21 : vector<1x16xf32> to vector<16x16xf32>
    %285 = arith.addf %283, %284 : vector<16x16xf32>
    %cst_108 = arith.constant 0.000000e+00 : f32
    %286 = vector.broadcast %cst_108 : f32 to vector<16x16xf32>
    %287 = arith.maximumf %285, %286 : vector<16x16xf32>
    %288 = vector.extract_strided_slice %39 {offsets = [1, 2, 0, 0], sizes = [1, 1, 48, 16], strides = [1, 1, 1, 1]} : vector<2x8x48x16xf32> to vector<1x1x48x16xf32>
    %289 = vector.shape_cast %288 : vector<1x1x48x16xf32> to vector<48x16xf32>
    %cst_109 = arith.constant dense<0.000000e+00> : vector<16x16xf32>
    %290 = tpu.matmul %273, %289, %cst_109 {dimension_numbers = #tpu.dot_dimension_numbers<[1], [0], [0], [1], [0, 0, 1, 1], [], []>} : vector<16x48xf32>, vector<48x16xf32>, vector<16x16xf32> -> vector<16x16xf32>
    %291 = vector.broadcast %21 : vector<1x16xf32> to vector<16x16xf32>
    %292 = arith.addf %290, %291 : vector<16x16xf32>
    %cst_110 = arith.constant 0.000000e+00 : f32
    %293 = vector.broadcast %cst_110 : f32 to vector<16x16xf32>
    %294 = arith.maximumf %292, %293 : vector<16x16xf32>
    %295 = vector.extract_strided_slice %39 {offsets = [1, 3, 0, 0], sizes = [1, 1, 48, 16], strides = [1, 1, 1, 1]} : vector<2x8x48x16xf32> to vector<1x1x48x16xf32>
    %296 = vector.shape_cast %295 : vector<1x1x48x16xf32> to vector<48x16xf32>
    %cst_111 = arith.constant dense<0.000000e+00> : vector<16x16xf32>
    %297 = tpu.matmul %273, %296, %cst_111 {dimension_numbers = #tpu.dot_dimension_numbers<[1], [0], [0], [1], [0, 0, 1, 1], [], []>} : vector<16x48xf32>, vector<48x16xf32>, vector<16x16xf32> -> vector<16x16xf32>
    %298 = vector.broadcast %21 : vector<1x16xf32> to vector<16x16xf32>
    %299 = arith.addf %297, %298 : vector<16x16xf32>
    %cst_112 = arith.constant 0.000000e+00 : f32
    %300 = vector.broadcast %cst_112 : f32 to vector<16x16xf32>
    %301 = arith.maximumf %299, %300 : vector<16x16xf32>
    %302 = vector.extract_strided_slice %39 {offsets = [1, 4, 0, 0], sizes = [1, 1, 48, 16], strides = [1, 1, 1, 1]} : vector<2x8x48x16xf32> to vector<1x1x48x16xf32>
    %303 = vector.shape_cast %302 : vector<1x1x48x16xf32> to vector<48x16xf32>
    %cst_113 = arith.constant dense<0.000000e+00> : vector<16x16xf32>
    %304 = tpu.matmul %273, %303, %cst_113 {dimension_numbers = #tpu.dot_dimension_numbers<[1], [0], [0], [1], [0, 0, 1, 1], [], []>} : vector<16x48xf32>, vector<48x16xf32>, vector<16x16xf32> -> vector<16x16xf32>
    %305 = vector.broadcast %21 : vector<1x16xf32> to vector<16x16xf32>
    %306 = arith.addf %304, %305 : vector<16x16xf32>
    %cst_114 = arith.constant 0.000000e+00 : f32
    %307 = vector.broadcast %cst_114 : f32 to vector<16x16xf32>
    %308 = arith.maximumf %306, %307 : vector<16x16xf32>
    %309 = vector.extract_strided_slice %39 {offsets = [1, 5, 0, 0], sizes = [1, 1, 48, 16], strides = [1, 1, 1, 1]} : vector<2x8x48x16xf32> to vector<1x1x48x16xf32>
    %310 = vector.shape_cast %309 : vector<1x1x48x16xf32> to vector<48x16xf32>
    %cst_115 = arith.constant dense<0.000000e+00> : vector<16x16xf32>
    %311 = tpu.matmul %273, %310, %cst_115 {dimension_numbers = #tpu.dot_dimension_numbers<[1], [0], [0], [1], [0, 0, 1, 1], [], []>} : vector<16x48xf32>, vector<48x16xf32>, vector<16x16xf32> -> vector<16x16xf32>
    %312 = vector.broadcast %21 : vector<1x16xf32> to vector<16x16xf32>
    %313 = arith.addf %311, %312 : vector<16x16xf32>
    %cst_116 = arith.constant 0.000000e+00 : f32
    %314 = vector.broadcast %cst_116 : f32 to vector<16x16xf32>
    %315 = arith.maximumf %313, %314 : vector<16x16xf32>
    %316 = vector.extract_strided_slice %39 {offsets = [1, 6, 0, 0], sizes = [1, 1, 48, 16], strides = [1, 1, 1, 1]} : vector<2x8x48x16xf32> to vector<1x1x48x16xf32>
    %317 = vector.shape_cast %316 : vector<1x1x48x16xf32> to vector<48x16xf32>
    %cst_117 = arith.constant dense<0.000000e+00> : vector<16x16xf32>
    %318 = tpu.matmul %273, %317, %cst_117 {dimension_numbers = #tpu.dot_dimension_numbers<[1], [0], [0], [1], [0, 0, 1, 1], [], []>} : vector<16x48xf32>, vector<48x16xf32>, vector<16x16xf32> -> vector<16x16xf32>
    %319 = vector.broadcast %21 : vector<1x16xf32> to vector<16x16xf32>
    %320 = arith.addf %318, %319 : vector<16x16xf32>
    %cst_118 = arith.constant 0.000000e+00 : f32
    %321 = vector.broadcast %cst_118 : f32 to vector<16x16xf32>
    %322 = arith.maximumf %320, %321 : vector<16x16xf32>
    %323 = vector.extract_strided_slice %39 {offsets = [1, 7, 0, 0], sizes = [1, 1, 48, 16], strides = [1, 1, 1, 1]} : vector<2x8x48x16xf32> to vector<1x1x48x16xf32>
    %324 = vector.shape_cast %323 : vector<1x1x48x16xf32> to vector<48x16xf32>
    %cst_119 = arith.constant dense<0.000000e+00> : vector<16x16xf32>
    %325 = tpu.matmul %273, %324, %cst_119 {dimension_numbers = #tpu.dot_dimension_numbers<[1], [0], [0], [1], [0, 0, 1, 1], [], []>} : vector<16x48xf32>, vector<48x16xf32>, vector<16x16xf32> -> vector<16x16xf32>
    %326 = vector.broadcast %21 : vector<1x16xf32> to vector<16x16xf32>
    %327 = arith.addf %325, %326 : vector<16x16xf32>
    %cst_120 = arith.constant 0.000000e+00 : f32
    %328 = vector.broadcast %cst_120 : f32 to vector<16x16xf32>
    %329 = arith.maximumf %327, %328 : vector<16x16xf32>
    %330 = tpu.concatenate %280, %287, %294, %301, %308, %315, %322, %329 in 0 : vector<16x16xf32>, vector<16x16xf32>, vector<16x16xf32>, vector<16x16xf32>, vector<16x16xf32>, vector<16x16xf32>, vector<16x16xf32>, vector<16x16xf32> -> vector<128x16xf32>
    %cst_121 = arith.constant 0.000000e+00 : f32
    %331 = vector.broadcast %cst_121 : f32 to vector<16x16xf32>
    %332 = vector.extract_strided_slice %330 {offsets = [0, 0], sizes = [112, 16], strides = [1, 1]} : vector<128x16xf32> to vector<112x16xf32>
    %333 = tpu.concatenate %331, %332 in 0 : vector<16x16xf32>, vector<112x16xf32> -> vector<128x16xf32>
    %334 = vector.extract_strided_slice %330 {offsets = [16, 0], sizes = [112, 16], strides = [1, 1]} : vector<128x16xf32> to vector<112x16xf32>
    %335 = tpu.concatenate %334, %331 in 0 : vector<112x16xf32>, vector<16x16xf32> -> vector<128x16xf32>
    %336 = tpu.concatenate %333, %330, %335, %202 in 1 : vector<128x16xf32>, vector<128x16xf32>, vector<128x16xf32>, vector<128x4xf32> -> vector<128x52xf32>
    %cst_122 = arith.constant dense<0.000000e+00> : vector<128x16xf32>
    %337 = tpu.matmul %336, %22, %cst_122 {dimension_numbers = #tpu.dot_dimension_numbers<[1], [0], [0], [1], [0, 0, 1, 1], [], []>} : vector<128x52xf32>, vector<52x16xf32>, vector<128x16xf32> -> vector<128x16xf32>
    %338 = vector.broadcast %23 : vector<1x16xf32> to vector<128x16xf32>
    %339 = arith.addf %337, %338 : vector<128x16xf32>
    %cst_123 = arith.constant 0.000000e+00 : f32
    %340 = vector.broadcast %cst_123 : f32 to vector<128x16xf32>
    %341 = arith.maximumf %339, %340 : vector<128x16xf32>
    %cst_124 = arith.constant dense<0.000000e+00> : vector<128xf32>
    %342 = vector.multi_reduction <add>, %341, %cst_124 [1] : vector<128x16xf32> to vector<128xf32>
    %343 = vector.shape_cast %342 : vector<128xf32> to vector<128x1xf32>
    %cst_125 = arith.constant 1.600000e+01 : f32
    %344 = vector.broadcast %cst_125 : f32 to vector<128x1xf32>
    %345 = arith.divf %343, %344 : vector<128x1xf32>
    %346 = vector.broadcast %345 : vector<128x1xf32> to vector<128x16xf32>
    %347 = arith.subf %341, %346 : vector<128x16xf32>
    %348 = arith.mulf %347, %347 : vector<128x16xf32>
    %cst_126 = arith.constant dense<0.000000e+00> : vector<128xf32>
    %349 = vector.multi_reduction <add>, %348, %cst_126 [1] : vector<128x16xf32> to vector<128xf32>
    %350 = vector.shape_cast %349 : vector<128xf32> to vector<128x1xf32>
    %cst_127 = arith.constant 1.600000e+01 : f32
    %351 = vector.broadcast %cst_127 : f32 to vector<128x1xf32>
    %352 = arith.divf %350, %351 : vector<128x1xf32>
    %cst_128 = arith.constant 9.99999974E-6 : f32
    %353 = vector.broadcast %cst_128 : f32 to vector<128x1xf32>
    %354 = arith.addf %352, %353 : vector<128x1xf32>
    %355 = math.rsqrt %354 : vector<128x1xf32>
    %356 = vector.broadcast %355 : vector<128x1xf32> to vector<128x16xf32>
    %357 = arith.mulf %347, %356 : vector<128x16xf32>
    %358 = vector.broadcast %24 : vector<1x16xf32> to vector<128x16xf32>
    %359 = arith.mulf %357, %358 : vector<128x16xf32>
    %360 = vector.broadcast %25 : vector<1x16xf32> to vector<128x16xf32>
    %361 = arith.addf %359, %360 : vector<128x16xf32>
    %362 = vector.shape_cast %200 : vector<128x16xf32> to vector<1x128x16xf32>
    %363 = vector.shape_cast %361 : vector<128x16xf32> to vector<1x128x16xf32>
    %364 = tpu.concatenate %362, %363 in 0 : vector<1x128x16xf32>, vector<1x128x16xf32> -> vector<2x128x16xf32>
    %c0_129 = arith.constant 0 : index
    %c0_130 = arith.constant 0 : index
    %365 = vector.load %arg18[%c0_129, %c0_130] : memref<16x1xf32, #tpu.memory_space<vmem>>, vector<16x1xf32>
    %366 = vector.shape_cast %365 : vector<16x1xf32> to vector<1x16x1xf32>
    %c0_131 = arith.constant 0 : index
    %c0_132 = arith.constant 0 : index
    %367 = vector.load %arg19[%c0_131, %c0_132] : memref<16x16xf32, #tpu.memory_space<vmem>>, vector<16x16xf32>
    %c0_133 = arith.constant 0 : index
    %c0_134 = arith.constant 0 : index
    %368 = vector.load %arg20[%c0_133, %c0_134] : memref<1x16xf32, #tpu.memory_space<vmem>>, vector<1x16xf32>
    %369 = vector.shape_cast %368 : vector<1x16xf32> to vector<1x1x16xf32>
    %c0_135 = arith.constant 0 : index
    %c0_136 = arith.constant 0 : index
    %370 = vector.load %arg21[%c0_135, %c0_136] : memref<8x8xf32, #tpu.memory_space<vmem>>, vector<8x8xf32>
    %c0_137 = arith.constant 0 : index
    %c0_138 = arith.constant 0 : index
    %371 = vector.load %arg22[%c0_137, %c0_138] : memref<8x8xf32, #tpu.memory_space<vmem>>, vector<8x8xf32>
    %c0_139 = arith.constant 0 : index
    %c0_140 = arith.constant 0 : index
    %372 = vector.load %arg23[%c0_139, %c0_140] : memref<1x8xf32, #tpu.memory_space<vmem>>, vector<1x8xf32>
    %c0_141 = arith.constant 0 : index
    %c0_142 = arith.constant 0 : index
    %373 = vector.load %arg24[%c0_141, %c0_142] : memref<16x8xf32, #tpu.memory_space<vmem>>, vector<16x8xf32>
    %c0_143 = arith.constant 0 : index
    %c0_144 = arith.constant 0 : index
    %374 = vector.load %arg25[%c0_143, %c0_144] : memref<1x16xf32, #tpu.memory_space<vmem>>, vector<1x16xf32>
    %375 = vector.shape_cast %374 : vector<1x16xf32> to vector<1x1x16xf32>
    %c0_145 = arith.constant 0 : index
    %c0_146 = arith.constant 0 : index
    %376 = vector.load %arg26[%c0_145, %c0_146] : memref<16x16xf32, #tpu.memory_space<vmem>>, vector<16x16xf32>
    %c0_147 = arith.constant 0 : index
    %c0_148 = arith.constant 0 : index
    %377 = vector.load %arg27[%c0_147, %c0_148] : memref<16x16xf32, #tpu.memory_space<vmem>>, vector<16x16xf32>
    %c0_149 = arith.constant 0 : index
    %c0_150 = arith.constant 0 : index
    %c0_151 = arith.constant 0 : index
    %378 = vector.load %arg28[%c0_149, %c0_150, %c0_151] : memref<3x16x16xf32, #tpu.memory_space<vmem>>, vector<3x16x16xf32>
    %c0_152 = arith.constant 0 : index
    %c0_153 = arith.constant 0 : index
    %379 = vector.load %arg29[%c0_152, %c0_153] : memref<1x16xf32, #tpu.memory_space<vmem>>, vector<1x16xf32>
    %c0_154 = arith.constant 0 : index
    %c0_155 = arith.constant 0 : index
    %380 = vector.load %arg30[%c0_154, %c0_155] : memref<64x16xf32, #tpu.memory_space<vmem>>, vector<64x16xf32>
    %c0_156 = arith.constant 0 : index
    %c0_157 = arith.constant 0 : index
    %381 = vector.load %arg31[%c0_156, %c0_157] : memref<1x16xf32, #tpu.memory_space<vmem>>, vector<1x16xf32>
    %c0_158 = arith.constant 0 : index
    %c0_159 = arith.constant 0 : index
    %382 = vector.load %arg32[%c0_158, %c0_159] : memref<1x16xf32, #tpu.memory_space<vmem>>, vector<1x16xf32>
    %c0_160 = arith.constant 0 : index
    %c0_161 = arith.constant 0 : index
    %383 = vector.load %arg33[%c0_160, %c0_161] : memref<1x16xf32, #tpu.memory_space<vmem>>, vector<1x16xf32>
    %384 = vector.shape_cast %364 : vector<2x128x16xf32> to vector<256x16xf32>
    %385 = vector.extract_strided_slice %378 {offsets = [0, 0, 0], sizes = [1, 16, 16], strides = [1, 1, 1]} : vector<3x16x16xf32> to vector<1x16x16xf32>
    %386 = vector.shape_cast %385 : vector<1x16x16xf32> to vector<16x16xf32>
    %cst_162 = arith.constant dense<0.000000e+00> : vector<256x16xf32>
    %387 = tpu.matmul %384, %386, %cst_162 {dimension_numbers = #tpu.dot_dimension_numbers<[1], [0], [0], [1], [0, 0, 1, 1], [], []>} : vector<256x16xf32>, vector<16x16xf32>, vector<256x16xf32> -> vector<256x16xf32>
    %388 = vector.shape_cast %387 : vector<256x16xf32> to vector<2x8x16x16xf32>
    %389 = vector.extract_strided_slice %378 {offsets = [1, 0, 0], sizes = [1, 16, 16], strides = [1, 1, 1]} : vector<3x16x16xf32> to vector<1x16x16xf32>
    %390 = vector.shape_cast %389 : vector<1x16x16xf32> to vector<16x16xf32>
    %cst_163 = arith.constant dense<0.000000e+00> : vector<256x16xf32>
    %391 = tpu.matmul %384, %390, %cst_163 {dimension_numbers = #tpu.dot_dimension_numbers<[1], [0], [0], [1], [0, 0, 1, 1], [], []>} : vector<256x16xf32>, vector<16x16xf32>, vector<256x16xf32> -> vector<256x16xf32>
    %392 = vector.shape_cast %391 : vector<256x16xf32> to vector<2x8x16x16xf32>
    %393 = vector.extract_strided_slice %378 {offsets = [2, 0, 0], sizes = [1, 16, 16], strides = [1, 1, 1]} : vector<3x16x16xf32> to vector<1x16x16xf32>
    %394 = vector.shape_cast %393 : vector<1x16x16xf32> to vector<16x16xf32>
    %cst_164 = arith.constant dense<0.000000e+00> : vector<256x16xf32>
    %395 = tpu.matmul %384, %394, %cst_164 {dimension_numbers = #tpu.dot_dimension_numbers<[1], [0], [0], [1], [0, 0, 1, 1], [], []>} : vector<256x16xf32>, vector<16x16xf32>, vector<256x16xf32> -> vector<256x16xf32>
    %396 = vector.shape_cast %395 : vector<256x16xf32> to vector<2x8x16x16xf32>
    %397 = tpu.concatenate %388, %392, %396 in 2 : vector<2x8x16x16xf32>, vector<2x8x16x16xf32>, vector<2x8x16x16xf32> -> vector<2x8x48x16xf32>
    %398 = vector.extract_strided_slice %364 {offsets = [0, 0, 0], sizes = [1, 128, 16], strides = [1, 1, 1]} : vector<2x128x16xf32> to vector<1x128x16xf32>
    %399 = vector.shape_cast %398 : vector<1x128x16xf32> to vector<128x16xf32>
    %400 = vector.shape_cast %399 : vector<128x16xf32> to vector<8x16x16xf32>
    %401 = vector.broadcast %366 : vector<1x16x1xf32> to vector<8x16x16xf32>
    %402 = arith.mulf %400, %401 : vector<8x16x16xf32>
    %cst_165 = arith.constant dense<0.000000e+00> : vector<8x16xf32>
    %403 = vector.multi_reduction <add>, %402, %cst_165 [1] : vector<8x16x16xf32> to vector<8x16xf32>
    %cst_166 = arith.constant dense<0.000000e+00> : vector<8x16xf32>
    %404 = tpu.matmul %403, %367, %cst_166 {dimension_numbers = #tpu.dot_dimension_numbers<[1], [0], [0], [1], [0, 0, 1, 1], [], []>} : vector<8x16xf32>, vector<16x16xf32>, vector<8x16xf32> -> vector<8x16xf32>
    %405 = vector.broadcast %369 : vector<1x1x16xf32> to vector<8x16x16xf32>
    %406 = arith.mulf %400, %405 : vector<8x16x16xf32>
    %cst_167 = arith.constant dense<0.000000e+00> : vector<8x16xf32>
    %407 = vector.multi_reduction <add>, %406, %cst_167 [2] : vector<8x16x16xf32> to vector<8x16xf32>
    %cst_168 = arith.constant dense<0.000000e+00> : vector<8x8xf32>
    %408 = tpu.matmul %404, %407, %cst_168 {dimension_numbers = #tpu.dot_dimension_numbers<[1], [1], [0], [0], [0, 0, 1, 0], [], []>} : vector<8x16xf32>, vector<8x16xf32>, vector<8x8xf32> -> vector<8x8xf32>
    %409 = arith.addf %408, %370 : vector<8x8xf32>
    %410 = arith.negf %409 : vector<8x8xf32>
    %411 = math.exp %410 : vector<8x8xf32>
    %cst_169 = arith.constant 1.000000e+00 : f32
    %412 = vector.broadcast %cst_169 : f32 to vector<8x8xf32>
    %413 = arith.addf %412, %411 : vector<8x8xf32>
    %414 = arith.divf %412, %413 : vector<8x8xf32>
    %cst_170 = arith.constant dense<0.000000e+00> : vector<8x8xf32>
    %415 = tpu.matmul %371, %414, %cst_170 {dimension_numbers = #tpu.dot_dimension_numbers<[1], [0], [0], [1], [0, 0, 1, 1], [], []>} : vector<8x8xf32>, vector<8x8xf32>, vector<8x8xf32> -> vector<8x8xf32>
    %cst_171 = arith.constant dense<0xFF800000> : vector<8xf32>
    %416 = vector.multi_reduction <maximumf>, %415, %cst_171 [0] : vector<8x8xf32> to vector<8xf32>
    %417 = vector.shape_cast %416 : vector<8xf32> to vector<1x8xf32>
    %418 = vector.broadcast %417 : vector<1x8xf32> to vector<8x8xf32>
    %419 = arith.subf %415, %418 : vector<8x8xf32>
    %420 = math.exp %419 : vector<8x8xf32>
    %cst_172 = arith.constant dense<0.000000e+00> : vector<8xf32>
    %421 = vector.multi_reduction <add>, %420, %cst_172 [0] : vector<8x8xf32> to vector<8xf32>
    %422 = vector.shape_cast %421 : vector<8xf32> to vector<1x8xf32>
    %423 = tpu.reciprocal %422 {approx = true} : vector<1x8xf32> -> vector<1x8xf32>
    %424 = vector.broadcast %423 : vector<1x8xf32> to vector<8x8xf32>
    %425 = arith.mulf %420, %424 : vector<8x8xf32>
    %426 = vector.broadcast %372 : vector<1x8xf32> to vector<8x8xf32>
    %427 = arith.mulf %425, %426 : vector<8x8xf32>
    %cst_173 = arith.constant dense<0.000000e+00> : vector<8xf32>
    %428 = vector.multi_reduction <add>, %427, %cst_173 [1] : vector<8x8xf32> to vector<8xf32>
    %429 = vector.shape_cast %428 : vector<8xf32> to vector<8x1xf32>
    %430 = vector.shape_cast %429 : vector<8x1xf32> to vector<8x1x1xf32>
    %431 = vector.broadcast %430 : vector<8x1x1xf32> to vector<8x16x16xf32>
    %432 = arith.mulf %400, %431 : vector<8x16x16xf32>
    %cst_174 = arith.constant dense<0.000000e+00> : vector<16x16xf32>
    %433 = vector.multi_reduction <add>, %432, %cst_174 [0] : vector<8x16x16xf32> to vector<16x16xf32>
    %cst_175 = arith.constant dense<0.000000e+00> : vector<16x8xf32>
    %434 = tpu.matmul %433, %373, %cst_175 {dimension_numbers = #tpu.dot_dimension_numbers<[1], [0], [0], [1], [0, 0, 1, 1], [], []>} : vector<16x16xf32>, vector<16x8xf32>, vector<16x8xf32> -> vector<16x8xf32>
    %435 = vector.broadcast %375 : vector<1x1x16xf32> to vector<8x16x16xf32>
    %436 = arith.mulf %400, %435 : vector<8x16x16xf32>
    %cst_176 = arith.constant dense<0.000000e+00> : vector<8x16xf32>
    %437 = vector.multi_reduction <add>, %436, %cst_176 [2] : vector<8x16x16xf32> to vector<8x16xf32>
    %cst_177 = arith.constant dense<0.000000e+00> : vector<16x8xf32>
    %438 = tpu.matmul %434, %425, %cst_177 {dimension_numbers = #tpu.dot_dimension_numbers<[1], [1], [0], [0], [0, 0, 1, 0], [], []>} : vector<16x8xf32>, vector<8x8xf32>, vector<16x8xf32> -> vector<16x8xf32>
    %cst_178 = arith.constant dense<0.000000e+00> : vector<16x16xf32>
    %439 = tpu.matmul %438, %437, %cst_178 {dimension_numbers = #tpu.dot_dimension_numbers<[1], [0], [0], [1], [0, 0, 1, 1], [], []>} : vector<16x8xf32>, vector<8x16xf32>, vector<16x16xf32> -> vector<16x16xf32>
    %440 = arith.addf %439, %376 : vector<16x16xf32>
    %441 = arith.negf %440 : vector<16x16xf32>
    %442 = math.exp %441 : vector<16x16xf32>
    %cst_179 = arith.constant 1.000000e+00 : f32
    %443 = vector.broadcast %cst_179 : f32 to vector<16x16xf32>
    %444 = arith.addf %443, %442 : vector<16x16xf32>
    %445 = arith.divf %443, %444 : vector<16x16xf32>
    %cst_180 = arith.constant dense<0.000000e+00> : vector<16x16xf32>
    %446 = tpu.matmul %377, %445, %cst_180 {dimension_numbers = #tpu.dot_dimension_numbers<[1], [0], [0], [1], [0, 0, 1, 1], [], []>} : vector<16x16xf32>, vector<16x16xf32>, vector<16x16xf32> -> vector<16x16xf32>
    %cst_181 = arith.constant dense<0xFF800000> : vector<16xf32>
    %447 = vector.multi_reduction <maximumf>, %446, %cst_181 [0] : vector<16x16xf32> to vector<16xf32>
    %448 = vector.shape_cast %447 : vector<16xf32> to vector<1x16xf32>
    %449 = vector.broadcast %448 : vector<1x16xf32> to vector<16x16xf32>
    %450 = arith.subf %446, %449 : vector<16x16xf32>
    %451 = math.exp %450 : vector<16x16xf32>
    %cst_182 = arith.constant dense<0.000000e+00> : vector<16xf32>
    %452 = vector.multi_reduction <add>, %451, %cst_182 [0] : vector<16x16xf32> to vector<16xf32>
    %453 = vector.shape_cast %452 : vector<16xf32> to vector<1x16xf32>
    %454 = tpu.reciprocal %453 {approx = true} : vector<1x16xf32> -> vector<1x16xf32>
    %455 = vector.broadcast %454 : vector<1x16xf32> to vector<16x16xf32>
    %456 = arith.mulf %451, %455 : vector<16x16xf32>
    %457 = arith.mulf %456, %5 : vector<16x16xf32>
    %cst_183 = arith.constant dense<0.000000e+00> : vector<16xf32>
    %458 = vector.multi_reduction <add>, %457, %cst_183 [0] : vector<16x16xf32> to vector<16xf32>
    %459 = vector.shape_cast %458 : vector<16xf32> to vector<1x16xf32>
    %460 = vector.broadcast %459 : vector<1x16xf32> to vector<16x16xf32>
    %461 = arith.mulf %5, %460 : vector<16x16xf32>
    %462 = tpu.transpose %456, [1, 0] : vector<16x16xf32> -> vector<16x16xf32>
    %463 = arith.mulf %0, %462 : vector<16x16xf32>
    %464 = vector.broadcast %459 : vector<1x16xf32> to vector<16x16xf32>
    %465 = arith.mulf %463, %464 : vector<16x16xf32>
    %cst_184 = arith.constant dense<0.000000e+00> : vector<16x16xf32>
    %466 = tpu.matmul %0, %465, %cst_184 {dimension_numbers = #tpu.dot_dimension_numbers<[1], [0], [0], [1], [0, 0, 1, 1], [], []>} : vector<16x16xf32>, vector<16x16xf32>, vector<16x16xf32> -> vector<16x16xf32>
    %cst_185 = arith.constant 2.000000e+00 : f32
    %467 = vector.broadcast %cst_185 : f32 to vector<16x16xf32>
    %468 = arith.mulf %467, %466 : vector<16x16xf32>
    %469 = arith.subf %468, %461 : vector<16x16xf32>
    %470 = tpu.concatenate %461, %465, %469 in 1 : vector<16x16xf32>, vector<16x16xf32>, vector<16x16xf32> -> vector<16x48xf32>
    %471 = vector.extract_strided_slice %397 {offsets = [0, 0, 0, 0], sizes = [1, 1, 48, 16], strides = [1, 1, 1, 1]} : vector<2x8x48x16xf32> to vector<1x1x48x16xf32>
    %472 = vector.shape_cast %471 : vector<1x1x48x16xf32> to vector<48x16xf32>
    %cst_186 = arith.constant dense<0.000000e+00> : vector<16x16xf32>
    %473 = tpu.matmul %470, %472, %cst_186 {dimension_numbers = #tpu.dot_dimension_numbers<[1], [0], [0], [1], [0, 0, 1, 1], [], []>} : vector<16x48xf32>, vector<48x16xf32>, vector<16x16xf32> -> vector<16x16xf32>
    %474 = vector.broadcast %379 : vector<1x16xf32> to vector<16x16xf32>
    %475 = arith.addf %473, %474 : vector<16x16xf32>
    %cst_187 = arith.constant 0.000000e+00 : f32
    %476 = vector.broadcast %cst_187 : f32 to vector<16x16xf32>
    %477 = arith.maximumf %475, %476 : vector<16x16xf32>
    %478 = vector.extract_strided_slice %397 {offsets = [0, 1, 0, 0], sizes = [1, 1, 48, 16], strides = [1, 1, 1, 1]} : vector<2x8x48x16xf32> to vector<1x1x48x16xf32>
    %479 = vector.shape_cast %478 : vector<1x1x48x16xf32> to vector<48x16xf32>
    %cst_188 = arith.constant dense<0.000000e+00> : vector<16x16xf32>
    %480 = tpu.matmul %470, %479, %cst_188 {dimension_numbers = #tpu.dot_dimension_numbers<[1], [0], [0], [1], [0, 0, 1, 1], [], []>} : vector<16x48xf32>, vector<48x16xf32>, vector<16x16xf32> -> vector<16x16xf32>
    %481 = vector.broadcast %379 : vector<1x16xf32> to vector<16x16xf32>
    %482 = arith.addf %480, %481 : vector<16x16xf32>
    %cst_189 = arith.constant 0.000000e+00 : f32
    %483 = vector.broadcast %cst_189 : f32 to vector<16x16xf32>
    %484 = arith.maximumf %482, %483 : vector<16x16xf32>
    %485 = vector.extract_strided_slice %397 {offsets = [0, 2, 0, 0], sizes = [1, 1, 48, 16], strides = [1, 1, 1, 1]} : vector<2x8x48x16xf32> to vector<1x1x48x16xf32>
    %486 = vector.shape_cast %485 : vector<1x1x48x16xf32> to vector<48x16xf32>
    %cst_190 = arith.constant dense<0.000000e+00> : vector<16x16xf32>
    %487 = tpu.matmul %470, %486, %cst_190 {dimension_numbers = #tpu.dot_dimension_numbers<[1], [0], [0], [1], [0, 0, 1, 1], [], []>} : vector<16x48xf32>, vector<48x16xf32>, vector<16x16xf32> -> vector<16x16xf32>
    %488 = vector.broadcast %379 : vector<1x16xf32> to vector<16x16xf32>
    %489 = arith.addf %487, %488 : vector<16x16xf32>
    %cst_191 = arith.constant 0.000000e+00 : f32
    %490 = vector.broadcast %cst_191 : f32 to vector<16x16xf32>
    %491 = arith.maximumf %489, %490 : vector<16x16xf32>
    %492 = vector.extract_strided_slice %397 {offsets = [0, 3, 0, 0], sizes = [1, 1, 48, 16], strides = [1, 1, 1, 1]} : vector<2x8x48x16xf32> to vector<1x1x48x16xf32>
    %493 = vector.shape_cast %492 : vector<1x1x48x16xf32> to vector<48x16xf32>
    %cst_192 = arith.constant dense<0.000000e+00> : vector<16x16xf32>
    %494 = tpu.matmul %470, %493, %cst_192 {dimension_numbers = #tpu.dot_dimension_numbers<[1], [0], [0], [1], [0, 0, 1, 1], [], []>} : vector<16x48xf32>, vector<48x16xf32>, vector<16x16xf32> -> vector<16x16xf32>
    %495 = vector.broadcast %379 : vector<1x16xf32> to vector<16x16xf32>
    %496 = arith.addf %494, %495 : vector<16x16xf32>
    %cst_193 = arith.constant 0.000000e+00 : f32
    %497 = vector.broadcast %cst_193 : f32 to vector<16x16xf32>
    %498 = arith.maximumf %496, %497 : vector<16x16xf32>
    %499 = vector.extract_strided_slice %397 {offsets = [0, 4, 0, 0], sizes = [1, 1, 48, 16], strides = [1, 1, 1, 1]} : vector<2x8x48x16xf32> to vector<1x1x48x16xf32>
    %500 = vector.shape_cast %499 : vector<1x1x48x16xf32> to vector<48x16xf32>
    %cst_194 = arith.constant dense<0.000000e+00> : vector<16x16xf32>
    %501 = tpu.matmul %470, %500, %cst_194 {dimension_numbers = #tpu.dot_dimension_numbers<[1], [0], [0], [1], [0, 0, 1, 1], [], []>} : vector<16x48xf32>, vector<48x16xf32>, vector<16x16xf32> -> vector<16x16xf32>
    %502 = vector.broadcast %379 : vector<1x16xf32> to vector<16x16xf32>
    %503 = arith.addf %501, %502 : vector<16x16xf32>
    %cst_195 = arith.constant 0.000000e+00 : f32
    %504 = vector.broadcast %cst_195 : f32 to vector<16x16xf32>
    %505 = arith.maximumf %503, %504 : vector<16x16xf32>
    %506 = vector.extract_strided_slice %397 {offsets = [0, 5, 0, 0], sizes = [1, 1, 48, 16], strides = [1, 1, 1, 1]} : vector<2x8x48x16xf32> to vector<1x1x48x16xf32>
    %507 = vector.shape_cast %506 : vector<1x1x48x16xf32> to vector<48x16xf32>
    %cst_196 = arith.constant dense<0.000000e+00> : vector<16x16xf32>
    %508 = tpu.matmul %470, %507, %cst_196 {dimension_numbers = #tpu.dot_dimension_numbers<[1], [0], [0], [1], [0, 0, 1, 1], [], []>} : vector<16x48xf32>, vector<48x16xf32>, vector<16x16xf32> -> vector<16x16xf32>
    %509 = vector.broadcast %379 : vector<1x16xf32> to vector<16x16xf32>
    %510 = arith.addf %508, %509 : vector<16x16xf32>
    %cst_197 = arith.constant 0.000000e+00 : f32
    %511 = vector.broadcast %cst_197 : f32 to vector<16x16xf32>
    %512 = arith.maximumf %510, %511 : vector<16x16xf32>
    %513 = vector.extract_strided_slice %397 {offsets = [0, 6, 0, 0], sizes = [1, 1, 48, 16], strides = [1, 1, 1, 1]} : vector<2x8x48x16xf32> to vector<1x1x48x16xf32>
    %514 = vector.shape_cast %513 : vector<1x1x48x16xf32> to vector<48x16xf32>
    %cst_198 = arith.constant dense<0.000000e+00> : vector<16x16xf32>
    %515 = tpu.matmul %470, %514, %cst_198 {dimension_numbers = #tpu.dot_dimension_numbers<[1], [0], [0], [1], [0, 0, 1, 1], [], []>} : vector<16x48xf32>, vector<48x16xf32>, vector<16x16xf32> -> vector<16x16xf32>
    %516 = vector.broadcast %379 : vector<1x16xf32> to vector<16x16xf32>
    %517 = arith.addf %515, %516 : vector<16x16xf32>
    %cst_199 = arith.constant 0.000000e+00 : f32
    %518 = vector.broadcast %cst_199 : f32 to vector<16x16xf32>
    %519 = arith.maximumf %517, %518 : vector<16x16xf32>
    %520 = vector.extract_strided_slice %397 {offsets = [0, 7, 0, 0], sizes = [1, 1, 48, 16], strides = [1, 1, 1, 1]} : vector<2x8x48x16xf32> to vector<1x1x48x16xf32>
    %521 = vector.shape_cast %520 : vector<1x1x48x16xf32> to vector<48x16xf32>
    %cst_200 = arith.constant dense<0.000000e+00> : vector<16x16xf32>
    %522 = tpu.matmul %470, %521, %cst_200 {dimension_numbers = #tpu.dot_dimension_numbers<[1], [0], [0], [1], [0, 0, 1, 1], [], []>} : vector<16x48xf32>, vector<48x16xf32>, vector<16x16xf32> -> vector<16x16xf32>
    %523 = vector.broadcast %379 : vector<1x16xf32> to vector<16x16xf32>
    %524 = arith.addf %522, %523 : vector<16x16xf32>
    %cst_201 = arith.constant 0.000000e+00 : f32
    %525 = vector.broadcast %cst_201 : f32 to vector<16x16xf32>
    %526 = arith.maximumf %524, %525 : vector<16x16xf32>
    %527 = tpu.concatenate %477, %484, %491, %498, %505, %512, %519, %526 in 0 : vector<16x16xf32>, vector<16x16xf32>, vector<16x16xf32>, vector<16x16xf32>, vector<16x16xf32>, vector<16x16xf32>, vector<16x16xf32>, vector<16x16xf32> -> vector<128x16xf32>
    %cst_202 = arith.constant 0.000000e+00 : f32
    %528 = vector.broadcast %cst_202 : f32 to vector<16x16xf32>
    %529 = vector.extract_strided_slice %527 {offsets = [0, 0], sizes = [112, 16], strides = [1, 1]} : vector<128x16xf32> to vector<112x16xf32>
    %530 = tpu.concatenate %528, %529 in 0 : vector<16x16xf32>, vector<112x16xf32> -> vector<128x16xf32>
    %531 = vector.extract_strided_slice %527 {offsets = [16, 0], sizes = [112, 16], strides = [1, 1]} : vector<128x16xf32> to vector<112x16xf32>
    %532 = tpu.concatenate %531, %528 in 0 : vector<112x16xf32>, vector<16x16xf32> -> vector<128x16xf32>
    %533 = tpu.concatenate %530, %527, %532, %399 in 1 : vector<128x16xf32>, vector<128x16xf32>, vector<128x16xf32>, vector<128x16xf32> -> vector<128x64xf32>
    %cst_203 = arith.constant dense<0.000000e+00> : vector<128x16xf32>
    %534 = tpu.matmul %533, %380, %cst_203 {dimension_numbers = #tpu.dot_dimension_numbers<[1], [0], [0], [1], [0, 0, 1, 1], [], []>} : vector<128x64xf32>, vector<64x16xf32>, vector<128x16xf32> -> vector<128x16xf32>
    %535 = vector.broadcast %381 : vector<1x16xf32> to vector<128x16xf32>
    %536 = arith.addf %534, %535 : vector<128x16xf32>
    %cst_204 = arith.constant 0.000000e+00 : f32
    %537 = vector.broadcast %cst_204 : f32 to vector<128x16xf32>
    %538 = arith.maximumf %536, %537 : vector<128x16xf32>
    %cst_205 = arith.constant dense<0.000000e+00> : vector<128xf32>
    %539 = vector.multi_reduction <add>, %538, %cst_205 [1] : vector<128x16xf32> to vector<128xf32>
    %540 = vector.shape_cast %539 : vector<128xf32> to vector<128x1xf32>
    %cst_206 = arith.constant 1.600000e+01 : f32
    %541 = vector.broadcast %cst_206 : f32 to vector<128x1xf32>
    %542 = arith.divf %540, %541 : vector<128x1xf32>
    %543 = vector.broadcast %542 : vector<128x1xf32> to vector<128x16xf32>
    %544 = arith.subf %538, %543 : vector<128x16xf32>
    %545 = arith.mulf %544, %544 : vector<128x16xf32>
    %cst_207 = arith.constant dense<0.000000e+00> : vector<128xf32>
    %546 = vector.multi_reduction <add>, %545, %cst_207 [1] : vector<128x16xf32> to vector<128xf32>
    %547 = vector.shape_cast %546 : vector<128xf32> to vector<128x1xf32>
    %cst_208 = arith.constant 1.600000e+01 : f32
    %548 = vector.broadcast %cst_208 : f32 to vector<128x1xf32>
    %549 = arith.divf %547, %548 : vector<128x1xf32>
    %cst_209 = arith.constant 9.99999974E-6 : f32
    %550 = vector.broadcast %cst_209 : f32 to vector<128x1xf32>
    %551 = arith.addf %549, %550 : vector<128x1xf32>
    %552 = math.rsqrt %551 : vector<128x1xf32>
    %553 = vector.broadcast %552 : vector<128x1xf32> to vector<128x16xf32>
    %554 = arith.mulf %544, %553 : vector<128x16xf32>
    %555 = vector.broadcast %382 : vector<1x16xf32> to vector<128x16xf32>
    %556 = arith.mulf %554, %555 : vector<128x16xf32>
    %557 = vector.broadcast %383 : vector<1x16xf32> to vector<128x16xf32>
    %558 = arith.addf %556, %557 : vector<128x16xf32>
    %559 = vector.extract_strided_slice %364 {offsets = [1, 0, 0], sizes = [1, 128, 16], strides = [1, 1, 1]} : vector<2x128x16xf32> to vector<1x128x16xf32>
    %560 = vector.shape_cast %559 : vector<1x128x16xf32> to vector<128x16xf32>
    %561 = vector.shape_cast %560 : vector<128x16xf32> to vector<8x16x16xf32>
    %562 = vector.broadcast %366 : vector<1x16x1xf32> to vector<8x16x16xf32>
    %563 = arith.mulf %561, %562 : vector<8x16x16xf32>
    %cst_210 = arith.constant dense<0.000000e+00> : vector<8x16xf32>
    %564 = vector.multi_reduction <add>, %563, %cst_210 [1] : vector<8x16x16xf32> to vector<8x16xf32>
    %cst_211 = arith.constant dense<0.000000e+00> : vector<8x16xf32>
    %565 = tpu.matmul %564, %367, %cst_211 {dimension_numbers = #tpu.dot_dimension_numbers<[1], [0], [0], [1], [0, 0, 1, 1], [], []>} : vector<8x16xf32>, vector<16x16xf32>, vector<8x16xf32> -> vector<8x16xf32>
    %566 = vector.broadcast %369 : vector<1x1x16xf32> to vector<8x16x16xf32>
    %567 = arith.mulf %561, %566 : vector<8x16x16xf32>
    %cst_212 = arith.constant dense<0.000000e+00> : vector<8x16xf32>
    %568 = vector.multi_reduction <add>, %567, %cst_212 [2] : vector<8x16x16xf32> to vector<8x16xf32>
    %cst_213 = arith.constant dense<0.000000e+00> : vector<8x8xf32>
    %569 = tpu.matmul %565, %568, %cst_213 {dimension_numbers = #tpu.dot_dimension_numbers<[1], [1], [0], [0], [0, 0, 1, 0], [], []>} : vector<8x16xf32>, vector<8x16xf32>, vector<8x8xf32> -> vector<8x8xf32>
    %570 = arith.addf %569, %370 : vector<8x8xf32>
    %571 = arith.negf %570 : vector<8x8xf32>
    %572 = math.exp %571 : vector<8x8xf32>
    %cst_214 = arith.constant 1.000000e+00 : f32
    %573 = vector.broadcast %cst_214 : f32 to vector<8x8xf32>
    %574 = arith.addf %573, %572 : vector<8x8xf32>
    %575 = arith.divf %573, %574 : vector<8x8xf32>
    %cst_215 = arith.constant dense<0.000000e+00> : vector<8x8xf32>
    %576 = tpu.matmul %371, %575, %cst_215 {dimension_numbers = #tpu.dot_dimension_numbers<[1], [0], [0], [1], [0, 0, 1, 1], [], []>} : vector<8x8xf32>, vector<8x8xf32>, vector<8x8xf32> -> vector<8x8xf32>
    %cst_216 = arith.constant dense<0xFF800000> : vector<8xf32>
    %577 = vector.multi_reduction <maximumf>, %576, %cst_216 [0] : vector<8x8xf32> to vector<8xf32>
    %578 = vector.shape_cast %577 : vector<8xf32> to vector<1x8xf32>
    %579 = vector.broadcast %578 : vector<1x8xf32> to vector<8x8xf32>
    %580 = arith.subf %576, %579 : vector<8x8xf32>
    %581 = math.exp %580 : vector<8x8xf32>
    %cst_217 = arith.constant dense<0.000000e+00> : vector<8xf32>
    %582 = vector.multi_reduction <add>, %581, %cst_217 [0] : vector<8x8xf32> to vector<8xf32>
    %583 = vector.shape_cast %582 : vector<8xf32> to vector<1x8xf32>
    %584 = tpu.reciprocal %583 {approx = true} : vector<1x8xf32> -> vector<1x8xf32>
    %585 = vector.broadcast %584 : vector<1x8xf32> to vector<8x8xf32>
    %586 = arith.mulf %581, %585 : vector<8x8xf32>
    %587 = vector.broadcast %372 : vector<1x8xf32> to vector<8x8xf32>
    %588 = arith.mulf %586, %587 : vector<8x8xf32>
    %cst_218 = arith.constant dense<0.000000e+00> : vector<8xf32>
    %589 = vector.multi_reduction <add>, %588, %cst_218 [1] : vector<8x8xf32> to vector<8xf32>
    %590 = vector.shape_cast %589 : vector<8xf32> to vector<8x1xf32>
    %591 = vector.shape_cast %590 : vector<8x1xf32> to vector<8x1x1xf32>
    %592 = vector.broadcast %591 : vector<8x1x1xf32> to vector<8x16x16xf32>
    %593 = arith.mulf %561, %592 : vector<8x16x16xf32>
    %cst_219 = arith.constant dense<0.000000e+00> : vector<16x16xf32>
    %594 = vector.multi_reduction <add>, %593, %cst_219 [0] : vector<8x16x16xf32> to vector<16x16xf32>
    %cst_220 = arith.constant dense<0.000000e+00> : vector<16x8xf32>
    %595 = tpu.matmul %594, %373, %cst_220 {dimension_numbers = #tpu.dot_dimension_numbers<[1], [0], [0], [1], [0, 0, 1, 1], [], []>} : vector<16x16xf32>, vector<16x8xf32>, vector<16x8xf32> -> vector<16x8xf32>
    %596 = vector.broadcast %375 : vector<1x1x16xf32> to vector<8x16x16xf32>
    %597 = arith.mulf %561, %596 : vector<8x16x16xf32>
    %cst_221 = arith.constant dense<0.000000e+00> : vector<8x16xf32>
    %598 = vector.multi_reduction <add>, %597, %cst_221 [2] : vector<8x16x16xf32> to vector<8x16xf32>
    %cst_222 = arith.constant dense<0.000000e+00> : vector<16x8xf32>
    %599 = tpu.matmul %595, %586, %cst_222 {dimension_numbers = #tpu.dot_dimension_numbers<[1], [1], [0], [0], [0, 0, 1, 0], [], []>} : vector<16x8xf32>, vector<8x8xf32>, vector<16x8xf32> -> vector<16x8xf32>
    %cst_223 = arith.constant dense<0.000000e+00> : vector<16x16xf32>
    %600 = tpu.matmul %599, %598, %cst_223 {dimension_numbers = #tpu.dot_dimension_numbers<[1], [0], [0], [1], [0, 0, 1, 1], [], []>} : vector<16x8xf32>, vector<8x16xf32>, vector<16x16xf32> -> vector<16x16xf32>
    %601 = arith.addf %600, %376 : vector<16x16xf32>
    %602 = arith.negf %601 : vector<16x16xf32>
    %603 = math.exp %602 : vector<16x16xf32>
    %cst_224 = arith.constant 1.000000e+00 : f32
    %604 = vector.broadcast %cst_224 : f32 to vector<16x16xf32>
    %605 = arith.addf %604, %603 : vector<16x16xf32>
    %606 = arith.divf %604, %605 : vector<16x16xf32>
    %cst_225 = arith.constant dense<0.000000e+00> : vector<16x16xf32>
    %607 = tpu.matmul %377, %606, %cst_225 {dimension_numbers = #tpu.dot_dimension_numbers<[1], [0], [0], [1], [0, 0, 1, 1], [], []>} : vector<16x16xf32>, vector<16x16xf32>, vector<16x16xf32> -> vector<16x16xf32>
    %cst_226 = arith.constant dense<0xFF800000> : vector<16xf32>
    %608 = vector.multi_reduction <maximumf>, %607, %cst_226 [0] : vector<16x16xf32> to vector<16xf32>
    %609 = vector.shape_cast %608 : vector<16xf32> to vector<1x16xf32>
    %610 = vector.broadcast %609 : vector<1x16xf32> to vector<16x16xf32>
    %611 = arith.subf %607, %610 : vector<16x16xf32>
    %612 = math.exp %611 : vector<16x16xf32>
    %cst_227 = arith.constant dense<0.000000e+00> : vector<16xf32>
    %613 = vector.multi_reduction <add>, %612, %cst_227 [0] : vector<16x16xf32> to vector<16xf32>
    %614 = vector.shape_cast %613 : vector<16xf32> to vector<1x16xf32>
    %615 = tpu.reciprocal %614 {approx = true} : vector<1x16xf32> -> vector<1x16xf32>
    %616 = vector.broadcast %615 : vector<1x16xf32> to vector<16x16xf32>
    %617 = arith.mulf %612, %616 : vector<16x16xf32>
    %618 = arith.mulf %617, %5 : vector<16x16xf32>
    %cst_228 = arith.constant dense<0.000000e+00> : vector<16xf32>
    %619 = vector.multi_reduction <add>, %618, %cst_228 [0] : vector<16x16xf32> to vector<16xf32>
    %620 = vector.shape_cast %619 : vector<16xf32> to vector<1x16xf32>
    %621 = vector.broadcast %620 : vector<1x16xf32> to vector<16x16xf32>
    %622 = arith.mulf %5, %621 : vector<16x16xf32>
    %623 = tpu.transpose %617, [1, 0] : vector<16x16xf32> -> vector<16x16xf32>
    %624 = arith.mulf %0, %623 : vector<16x16xf32>
    %625 = vector.broadcast %620 : vector<1x16xf32> to vector<16x16xf32>
    %626 = arith.mulf %624, %625 : vector<16x16xf32>
    %cst_229 = arith.constant dense<0.000000e+00> : vector<16x16xf32>
    %627 = tpu.matmul %0, %626, %cst_229 {dimension_numbers = #tpu.dot_dimension_numbers<[1], [0], [0], [1], [0, 0, 1, 1], [], []>} : vector<16x16xf32>, vector<16x16xf32>, vector<16x16xf32> -> vector<16x16xf32>
    %cst_230 = arith.constant 2.000000e+00 : f32
    %628 = vector.broadcast %cst_230 : f32 to vector<16x16xf32>
    %629 = arith.mulf %628, %627 : vector<16x16xf32>
    %630 = arith.subf %629, %622 : vector<16x16xf32>
    %631 = tpu.concatenate %622, %626, %630 in 1 : vector<16x16xf32>, vector<16x16xf32>, vector<16x16xf32> -> vector<16x48xf32>
    %632 = vector.extract_strided_slice %397 {offsets = [1, 0, 0, 0], sizes = [1, 1, 48, 16], strides = [1, 1, 1, 1]} : vector<2x8x48x16xf32> to vector<1x1x48x16xf32>
    %633 = vector.shape_cast %632 : vector<1x1x48x16xf32> to vector<48x16xf32>
    %cst_231 = arith.constant dense<0.000000e+00> : vector<16x16xf32>
    %634 = tpu.matmul %631, %633, %cst_231 {dimension_numbers = #tpu.dot_dimension_numbers<[1], [0], [0], [1], [0, 0, 1, 1], [], []>} : vector<16x48xf32>, vector<48x16xf32>, vector<16x16xf32> -> vector<16x16xf32>
    %635 = vector.broadcast %379 : vector<1x16xf32> to vector<16x16xf32>
    %636 = arith.addf %634, %635 : vector<16x16xf32>
    %cst_232 = arith.constant 0.000000e+00 : f32
    %637 = vector.broadcast %cst_232 : f32 to vector<16x16xf32>
    %638 = arith.maximumf %636, %637 : vector<16x16xf32>
    %639 = vector.extract_strided_slice %397 {offsets = [1, 1, 0, 0], sizes = [1, 1, 48, 16], strides = [1, 1, 1, 1]} : vector<2x8x48x16xf32> to vector<1x1x48x16xf32>
    %640 = vector.shape_cast %639 : vector<1x1x48x16xf32> to vector<48x16xf32>
    %cst_233 = arith.constant dense<0.000000e+00> : vector<16x16xf32>
    %641 = tpu.matmul %631, %640, %cst_233 {dimension_numbers = #tpu.dot_dimension_numbers<[1], [0], [0], [1], [0, 0, 1, 1], [], []>} : vector<16x48xf32>, vector<48x16xf32>, vector<16x16xf32> -> vector<16x16xf32>
    %642 = vector.broadcast %379 : vector<1x16xf32> to vector<16x16xf32>
    %643 = arith.addf %641, %642 : vector<16x16xf32>
    %cst_234 = arith.constant 0.000000e+00 : f32
    %644 = vector.broadcast %cst_234 : f32 to vector<16x16xf32>
    %645 = arith.maximumf %643, %644 : vector<16x16xf32>
    %646 = vector.extract_strided_slice %397 {offsets = [1, 2, 0, 0], sizes = [1, 1, 48, 16], strides = [1, 1, 1, 1]} : vector<2x8x48x16xf32> to vector<1x1x48x16xf32>
    %647 = vector.shape_cast %646 : vector<1x1x48x16xf32> to vector<48x16xf32>
    %cst_235 = arith.constant dense<0.000000e+00> : vector<16x16xf32>
    %648 = tpu.matmul %631, %647, %cst_235 {dimension_numbers = #tpu.dot_dimension_numbers<[1], [0], [0], [1], [0, 0, 1, 1], [], []>} : vector<16x48xf32>, vector<48x16xf32>, vector<16x16xf32> -> vector<16x16xf32>
    %649 = vector.broadcast %379 : vector<1x16xf32> to vector<16x16xf32>
    %650 = arith.addf %648, %649 : vector<16x16xf32>
    %cst_236 = arith.constant 0.000000e+00 : f32
    %651 = vector.broadcast %cst_236 : f32 to vector<16x16xf32>
    %652 = arith.maximumf %650, %651 : vector<16x16xf32>
    %653 = vector.extract_strided_slice %397 {offsets = [1, 3, 0, 0], sizes = [1, 1, 48, 16], strides = [1, 1, 1, 1]} : vector<2x8x48x16xf32> to vector<1x1x48x16xf32>
    %654 = vector.shape_cast %653 : vector<1x1x48x16xf32> to vector<48x16xf32>
    %cst_237 = arith.constant dense<0.000000e+00> : vector<16x16xf32>
    %655 = tpu.matmul %631, %654, %cst_237 {dimension_numbers = #tpu.dot_dimension_numbers<[1], [0], [0], [1], [0, 0, 1, 1], [], []>} : vector<16x48xf32>, vector<48x16xf32>, vector<16x16xf32> -> vector<16x16xf32>
    %656 = vector.broadcast %379 : vector<1x16xf32> to vector<16x16xf32>
    %657 = arith.addf %655, %656 : vector<16x16xf32>
    %cst_238 = arith.constant 0.000000e+00 : f32
    %658 = vector.broadcast %cst_238 : f32 to vector<16x16xf32>
    %659 = arith.maximumf %657, %658 : vector<16x16xf32>
    %660 = vector.extract_strided_slice %397 {offsets = [1, 4, 0, 0], sizes = [1, 1, 48, 16], strides = [1, 1, 1, 1]} : vector<2x8x48x16xf32> to vector<1x1x48x16xf32>
    %661 = vector.shape_cast %660 : vector<1x1x48x16xf32> to vector<48x16xf32>
    %cst_239 = arith.constant dense<0.000000e+00> : vector<16x16xf32>
    %662 = tpu.matmul %631, %661, %cst_239 {dimension_numbers = #tpu.dot_dimension_numbers<[1], [0], [0], [1], [0, 0, 1, 1], [], []>} : vector<16x48xf32>, vector<48x16xf32>, vector<16x16xf32> -> vector<16x16xf32>
    %663 = vector.broadcast %379 : vector<1x16xf32> to vector<16x16xf32>
    %664 = arith.addf %662, %663 : vector<16x16xf32>
    %cst_240 = arith.constant 0.000000e+00 : f32
    %665 = vector.broadcast %cst_240 : f32 to vector<16x16xf32>
    %666 = arith.maximumf %664, %665 : vector<16x16xf32>
    %667 = vector.extract_strided_slice %397 {offsets = [1, 5, 0, 0], sizes = [1, 1, 48, 16], strides = [1, 1, 1, 1]} : vector<2x8x48x16xf32> to vector<1x1x48x16xf32>
    %668 = vector.shape_cast %667 : vector<1x1x48x16xf32> to vector<48x16xf32>
    %cst_241 = arith.constant dense<0.000000e+00> : vector<16x16xf32>
    %669 = tpu.matmul %631, %668, %cst_241 {dimension_numbers = #tpu.dot_dimension_numbers<[1], [0], [0], [1], [0, 0, 1, 1], [], []>} : vector<16x48xf32>, vector<48x16xf32>, vector<16x16xf32> -> vector<16x16xf32>
    %670 = vector.broadcast %379 : vector<1x16xf32> to vector<16x16xf32>
    %671 = arith.addf %669, %670 : vector<16x16xf32>
    %cst_242 = arith.constant 0.000000e+00 : f32
    %672 = vector.broadcast %cst_242 : f32 to vector<16x16xf32>
    %673 = arith.maximumf %671, %672 : vector<16x16xf32>
    %674 = vector.extract_strided_slice %397 {offsets = [1, 6, 0, 0], sizes = [1, 1, 48, 16], strides = [1, 1, 1, 1]} : vector<2x8x48x16xf32> to vector<1x1x48x16xf32>
    %675 = vector.shape_cast %674 : vector<1x1x48x16xf32> to vector<48x16xf32>
    %cst_243 = arith.constant dense<0.000000e+00> : vector<16x16xf32>
    %676 = tpu.matmul %631, %675, %cst_243 {dimension_numbers = #tpu.dot_dimension_numbers<[1], [0], [0], [1], [0, 0, 1, 1], [], []>} : vector<16x48xf32>, vector<48x16xf32>, vector<16x16xf32> -> vector<16x16xf32>
    %677 = vector.broadcast %379 : vector<1x16xf32> to vector<16x16xf32>
    %678 = arith.addf %676, %677 : vector<16x16xf32>
    %cst_244 = arith.constant 0.000000e+00 : f32
    %679 = vector.broadcast %cst_244 : f32 to vector<16x16xf32>
    %680 = arith.maximumf %678, %679 : vector<16x16xf32>
    %681 = vector.extract_strided_slice %397 {offsets = [1, 7, 0, 0], sizes = [1, 1, 48, 16], strides = [1, 1, 1, 1]} : vector<2x8x48x16xf32> to vector<1x1x48x16xf32>
    %682 = vector.shape_cast %681 : vector<1x1x48x16xf32> to vector<48x16xf32>
    %cst_245 = arith.constant dense<0.000000e+00> : vector<16x16xf32>
    %683 = tpu.matmul %631, %682, %cst_245 {dimension_numbers = #tpu.dot_dimension_numbers<[1], [0], [0], [1], [0, 0, 1, 1], [], []>} : vector<16x48xf32>, vector<48x16xf32>, vector<16x16xf32> -> vector<16x16xf32>
    %684 = vector.broadcast %379 : vector<1x16xf32> to vector<16x16xf32>
    %685 = arith.addf %683, %684 : vector<16x16xf32>
    %cst_246 = arith.constant 0.000000e+00 : f32
    %686 = vector.broadcast %cst_246 : f32 to vector<16x16xf32>
    %687 = arith.maximumf %685, %686 : vector<16x16xf32>
    %688 = tpu.concatenate %638, %645, %652, %659, %666, %673, %680, %687 in 0 : vector<16x16xf32>, vector<16x16xf32>, vector<16x16xf32>, vector<16x16xf32>, vector<16x16xf32>, vector<16x16xf32>, vector<16x16xf32>, vector<16x16xf32> -> vector<128x16xf32>
    %cst_247 = arith.constant 0.000000e+00 : f32
    %689 = vector.broadcast %cst_247 : f32 to vector<16x16xf32>
    %690 = vector.extract_strided_slice %688 {offsets = [0, 0], sizes = [112, 16], strides = [1, 1]} : vector<128x16xf32> to vector<112x16xf32>
    %691 = tpu.concatenate %689, %690 in 0 : vector<16x16xf32>, vector<112x16xf32> -> vector<128x16xf32>
    %692 = vector.extract_strided_slice %688 {offsets = [16, 0], sizes = [112, 16], strides = [1, 1]} : vector<128x16xf32> to vector<112x16xf32>
    %693 = tpu.concatenate %692, %689 in 0 : vector<112x16xf32>, vector<16x16xf32> -> vector<128x16xf32>
    %694 = tpu.concatenate %691, %688, %693, %560 in 1 : vector<128x16xf32>, vector<128x16xf32>, vector<128x16xf32>, vector<128x16xf32> -> vector<128x64xf32>
    %cst_248 = arith.constant dense<0.000000e+00> : vector<128x16xf32>
    %695 = tpu.matmul %694, %380, %cst_248 {dimension_numbers = #tpu.dot_dimension_numbers<[1], [0], [0], [1], [0, 0, 1, 1], [], []>} : vector<128x64xf32>, vector<64x16xf32>, vector<128x16xf32> -> vector<128x16xf32>
    %696 = vector.broadcast %381 : vector<1x16xf32> to vector<128x16xf32>
    %697 = arith.addf %695, %696 : vector<128x16xf32>
    %cst_249 = arith.constant 0.000000e+00 : f32
    %698 = vector.broadcast %cst_249 : f32 to vector<128x16xf32>
    %699 = arith.maximumf %697, %698 : vector<128x16xf32>
    %cst_250 = arith.constant dense<0.000000e+00> : vector<128xf32>
    %700 = vector.multi_reduction <add>, %699, %cst_250 [1] : vector<128x16xf32> to vector<128xf32>
    %701 = vector.shape_cast %700 : vector<128xf32> to vector<128x1xf32>
    %cst_251 = arith.constant 1.600000e+01 : f32
    %702 = vector.broadcast %cst_251 : f32 to vector<128x1xf32>
    %703 = arith.divf %701, %702 : vector<128x1xf32>
    %704 = vector.broadcast %703 : vector<128x1xf32> to vector<128x16xf32>
    %705 = arith.subf %699, %704 : vector<128x16xf32>
    %706 = arith.mulf %705, %705 : vector<128x16xf32>
    %cst_252 = arith.constant dense<0.000000e+00> : vector<128xf32>
    %707 = vector.multi_reduction <add>, %706, %cst_252 [1] : vector<128x16xf32> to vector<128xf32>
    %708 = vector.shape_cast %707 : vector<128xf32> to vector<128x1xf32>
    %cst_253 = arith.constant 1.600000e+01 : f32
    %709 = vector.broadcast %cst_253 : f32 to vector<128x1xf32>
    %710 = arith.divf %708, %709 : vector<128x1xf32>
    %cst_254 = arith.constant 9.99999974E-6 : f32
    %711 = vector.broadcast %cst_254 : f32 to vector<128x1xf32>
    %712 = arith.addf %710, %711 : vector<128x1xf32>
    %713 = math.rsqrt %712 : vector<128x1xf32>
    %714 = vector.broadcast %713 : vector<128x1xf32> to vector<128x16xf32>
    %715 = arith.mulf %705, %714 : vector<128x16xf32>
    %716 = vector.broadcast %382 : vector<1x16xf32> to vector<128x16xf32>
    %717 = arith.mulf %715, %716 : vector<128x16xf32>
    %718 = vector.broadcast %383 : vector<1x16xf32> to vector<128x16xf32>
    %719 = arith.addf %717, %718 : vector<128x16xf32>
    %720 = vector.shape_cast %558 : vector<128x16xf32> to vector<1x128x16xf32>
    %721 = vector.shape_cast %719 : vector<128x16xf32> to vector<1x128x16xf32>
    %722 = tpu.concatenate %720, %721 in 0 : vector<1x128x16xf32>, vector<1x128x16xf32> -> vector<2x128x16xf32>
    %c0_255 = arith.constant 0 : index
    %c0_256 = arith.constant 0 : index
    %723 = vector.load %arg34[%c0_255, %c0_256] : memref<16x64xf32, #tpu.memory_space<vmem>>, vector<16x64xf32>
    %c0_257 = arith.constant 0 : index
    %c0_258 = arith.constant 0 : index
    %c0_259 = arith.constant 0 : index
    %724 = vector.load %arg35[%c0_257, %c0_258, %c0_259] : memref<8x1x64xf32, #tpu.memory_space<vmem>>, vector<8x1x64xf32>
    %c0_260 = arith.constant 0 : index
    %c0_261 = arith.constant 0 : index
    %725 = vector.load %arg36[%c0_260, %c0_261] : memref<64x8xf32, #tpu.memory_space<vmem>>, vector<64x8xf32>
    %c0_262 = arith.constant 0 : index
    %c0_263 = arith.constant 0 : index
    %726 = vector.load %arg37[%c0_262, %c0_263] : memref<1x8xf32, #tpu.memory_space<vmem>>, vector<1x8xf32>
    %727 = vector.shape_cast %722 : vector<2x128x16xf32> to vector<256x16xf32>
    %cst_264 = arith.constant dense<0.000000e+00> : vector<256x64xf32>
    %728 = tpu.matmul %727, %723, %cst_264 {dimension_numbers = #tpu.dot_dimension_numbers<[1], [0], [0], [1], [0, 0, 1, 1], [], []>} : vector<256x16xf32>, vector<16x64xf32>, vector<256x64xf32> -> vector<256x64xf32>
    %729 = vector.shape_cast %728 : vector<256x64xf32> to vector<2x8x16x64xf32>
    %730 = vector.shape_cast %724 : vector<8x1x64xf32> to vector<1x8x1x64xf32>
    %731 = vector.broadcast %730 : vector<1x8x1x64xf32> to vector<2x8x16x64xf32>
    %732 = arith.mulf %729, %731 : vector<2x8x16x64xf32>
    %cst_265 = arith.constant dense<0.000000e+00> : vector<2x16x64xf32>
    %733 = vector.multi_reduction <add>, %732, %cst_265 [1] : vector<2x8x16x64xf32> to vector<2x16x64xf32>
    %734 = vector.shape_cast %733 : vector<2x16x64xf32> to vector<32x64xf32>
    %cst_266 = arith.constant dense<0.000000e+00> : vector<32x8xf32>
    %735 = tpu.matmul %734, %725, %cst_266 {dimension_numbers = #tpu.dot_dimension_numbers<[1], [0], [0], [1], [0, 0, 1, 1], [], []>} : vector<32x64xf32>, vector<64x8xf32>, vector<32x8xf32> -> vector<32x8xf32>
    %736 = vector.broadcast %726 : vector<1x8xf32> to vector<32x8xf32>
    %737 = arith.addf %735, %736 : vector<32x8xf32>
    %738 = vector.shape_cast %737 : vector<32x8xf32> to vector<2x16x8xf32>
    %c0_267 = arith.constant 0 : index
    %c0_268 = arith.constant 0 : index
    %c0_269 = arith.constant 0 : index
    %739 = vector.load %arg38[%c0_267, %c0_268, %c0_269] : memref<2x16x8xf32, #tpu.memory_space<vmem>>, vector<2x16x8xf32>
    tpu.vector_store %arg38[%c0_267, %c0_268, %c0_269], %738 {strides = array<i32>} : memref<2x16x8xf32, #tpu.memory_space<vmem>>, vector<2x16x8xf32>,
    return
  }
}

</mosaic_0001>

<llo_original>
// kernel: _lambda_.1
$region0: #{_lambda_.1}
  #allocation0 [shape = 'u32[]', space=smem, size = 0x4, offset = 0x4, fixed_abs, tag = 'smem constant byte address 0x4 - core index']
  #allocation1 [shape = 'u32[72,128]{1,0:T(1,128)}', space=vmem, size = 0x9000, scoped, tag = 'internal scratch']
  %s0 = inlined_call_operand.smem [shape: u32[39], index: -1, kind: input, shape index: {}]
  %s1 = sld [smem:[%s0]]
  %s2 = scalar_lea.smem %s0, 1
  %s3 = sld [smem:[%s2]]
  %s4 = scalar_lea.smem %s0, 2
  %s5 = sld [smem:[%s4]]
  %s6 = scalar_lea.smem %s0, 3
  %s7 = sld [smem:[%s6]]
  %s8 = scalar_lea.smem %s0, 4
  %s9 = sld [smem:[%s8]]
  %s10 = scalar_lea.smem %s0, 5
  %s11 = sld [smem:[%s10]]
  %s12 = scalar_lea.smem %s0, 6
  %s13 = sld [smem:[%s12]]
  %s14 = scalar_lea.smem %s0, 7
  %s15 = sld [smem:[%s14]]
  %s16 = scalar_lea.smem %s0, 8
  %s17 = sld [smem:[%s16]]
  %s18 = scalar_lea.smem %s0, 9
  %s19 = sld [smem:[%s18]]
  %s20 = scalar_lea.smem %s0, 10
  %s21 = sld [smem:[%s20]]
  %s22 = scalar_lea.smem %s0, 11
  %s23 = sld [smem:[%s22]]
  %s24 = scalar_lea.smem %s0, 12
  %s25 = sld [smem:[%s24]]
  %s26 = scalar_lea.smem %s0, 13
  %s27 = sld [smem:[%s26]]
  %s28 = scalar_lea.smem %s0, 14
  %s29 = sld [smem:[%s28]]
  %s30 = scalar_lea.smem %s0, 15
  %s31 = sld [smem:[%s30]]
  %s32 = scalar_lea.smem %s0, 16
  %s33 = sld [smem:[%s32]]
  %s34 = scalar_lea.smem %s0, 17
  %s35 = sld [smem:[%s34]]
  %s36 = scalar_lea.smem %s0, 18
  %s37 = sld [smem:[%s36]]
  %s38 = scalar_lea.smem %s0, 19
  %s39 = sld [smem:[%s38]]
  %s40 = scalar_lea.smem %s0, 20
  %s41 = sld [smem:[%s40]]
  %s42 = scalar_lea.smem %s0, 21
  %s43 = sld [smem:[%s42]]
  %s44 = scalar_lea.smem %s0, 22
  %s45 = sld [smem:[%s44]]
  %s46 = scalar_lea.smem %s0, 23
  %s47 = sld [smem:[%s46]]
  %s48 = scalar_lea.smem %s0, 24
  %s49 = sld [smem:[%s48]]
  %s50 = scalar_lea.smem %s0, 25
  %s51 = sld [smem:[%s50]]
  %s52 = scalar_lea.smem %s0, 26
  %s53 = sld [smem:[%s52]]
  %s54 = scalar_lea.smem %s0, 27
  %s55 = sld [smem:[%s54]]
  %s56 = scalar_lea.smem %s0, 28
  %s57 = sld [smem:[%s56]]
  %s58 = scalar_lea.smem %s0, 29
  %s59 = sld [smem:[%s58]]
  %s60 = scalar_lea.smem %s0, 30
  %s61 = sld [smem:[%s60]]
  %s62 = scalar_lea.smem %s0, 31
  %s63 = sld [smem:[%s62]]
  %s64 = scalar_lea.smem %s0, 32
  %s65 = sld [smem:[%s64]]
  %s66 = scalar_lea.smem %s0, 33
  %s67 = sld [smem:[%s66]]
  %s68 = scalar_lea.smem %s0, 34
  %s69 = sld [smem:[%s68]]
  %s70 = scalar_lea.smem %s0, 35
  %s71 = sld [smem:[%s70]]
  %s72 = scalar_lea.smem %s0, 36
  %s73 = sld [smem:[%s72]]
  %s74 = scalar_lea.smem %s0, 37
  %s75 = sld [smem:[%s74]]
  %s76 = scalar_lea.smem %s0, 38
  %s77 = sld [smem:[%s76]]
  %s78 = sld [smem:[#allocation0]]
  $region162: #{_lambda_.1} parent=0
    _
  %s80 = ssub.s32 1, %s78
  %s81 = scalar_select 0, %s80, %s78
  // Predicated region
  $region2: #{_lambda_.1} parent=0 // pred_check
    _
  $region3: #{_lambda_.1} parent=0 // pred_check_branch
    %83 = sbr.rel (0) target = $region5
  $region4: #{_lambda_.1} parent=0 // pred_region
    _
  $region5: #{_lambda_.1} parent=0 // pred_fallthru
    _
  // Predicated region
  $region6: #{_lambda_.1} parent=0 // pred_check
    _
  $region7: #{_lambda_.1} parent=0 // pred_check_branch
    %85 = sbr.rel (0) target = $region9
  $region8: #{_lambda_.1} parent=0 // pred_region
    _
  $region9: #{_lambda_.1} parent=0 // pred_fallthru
    _
  // Predicated region
  $region10: #{_lambda_.1} parent=0 // pred_check
    _
  $region11: #{_lambda_.1} parent=0 // pred_check_branch
    %87 = sbr.rel (0) target = $region13
  $region12: #{_lambda_.1} parent=0 // pred_region
    _
  $region13: #{_lambda_.1} parent=0 // pred_fallthru
    _
  // Predicated region
  $region14: #{_lambda_.1} parent=0 // pred_check
    _
  $region15: #{_lambda_.1} parent=0 // pred_check_branch
    %89 = sbr.rel (0) target = $region17
  $region16: #{_lambda_.1} parent=0 // pred_region
    _
  $region17: #{_lambda_.1} parent=0 // pred_fallthru
    _
  // Predicated region
  $region18: #{_lambda_.1} parent=0 // pred_check
    _
  $region19: #{_lambda_.1} parent=0 // pred_check_branch
    %91 = sbr.rel (0) target = $region21
  $region20: #{_lambda_.1} parent=0 // pred_region
    _
  $region21: #{_lambda_.1} parent=0 // pred_fallthru
    _
  // Predicated region
  $region22: #{_lambda_.1} parent=0 // pred_check
    _
  $region23: #{_lambda_.1} parent=0 // pred_check_branch
    %93 = sbr.rel (0) target = $region25
  $region24: #{_lambda_.1} parent=0 // pred_region
    _
  $region25: #{_lambda_.1} parent=0 // pred_fallthru
    _
  // Predicated region
  $region26: #{_lambda_.1} parent=0 // pred_check
    _
  $region27: #{_lambda_.1} parent=0 // pred_check_branch
    %95 = sbr.rel (0) target = $region29
  $region28: #{_lambda_.1} parent=0 // pred_region
    _
  $region29: #{_lambda_.1} parent=0 // pred_fallthru
    _
  // Predicated region
  $region30: #{_lambda_.1} parent=0 // pred_check
    _
  $region31: #{_lambda_.1} parent=0 // pred_check_branch
    %97 = sbr.rel (0) target = $region33
  $region32: #{_lambda_.1} parent=0 // pred_region
    _
  $region33: #{_lambda_.1} parent=0 // pred_fallthru
    _
  // Predicated region
  $region34: #{_lambda_.1} parent=0 // pred_check
    _
  $region35: #{_lambda_.1} parent=0 // pred_check_branch
    %99 = sbr.rel (0) target = $region37
  $region36: #{_lambda_.1} parent=0 // pred_region
    _
  $region37: #{_lambda_.1} parent=0 // pred_fallthru
    _
  // Predicated region
  $region38: #{_lambda_.1} parent=0 // pred_check
    _
  $region39: #{_lambda_.1} parent=0 // pred_check_branch
    %101 = sbr.rel (0) target = $region41
  $region40: #{_lambda_.1} parent=0 // pred_region
    _
  $region41: #{_lambda_.1} parent=0 // pred_fallthru
    _
  // Predicated region
  $region42: #{_lambda_.1} parent=0 // pred_check
    _
  $region43: #{_lambda_.1} parent=0 // pred_check_branch
    %103 = sbr.rel (0) target = $region45
  $region44: #{_lambda_.1} parent=0 // pred_region
    _
  $region45: #{_lambda_.1} parent=0 // pred_fallthru
    _
  // Predicated region
  $region46: #{_lambda_.1} parent=0 // pred_check
    _
  $region47: #{_lambda_.1} parent=0 // pred_check_branch
    %105 = sbr.rel (0) target = $region49
  $region48: #{_lambda_.1} parent=0 // pred_region
    _
  $region49: #{_lambda_.1} parent=0 // pred_fallthru
    _
  // Predicated region
  $region50: #{_lambda_.1} parent=0 // pred_check
    _
  $region51: #{_lambda_.1} parent=0 // pred_check_branch
    %107 = sbr.rel (0) target = $region53
  $region52: #{_lambda_.1} parent=0 // pred_region
    _
  $region53: #{_lambda_.1} parent=0 // pred_fallthru
    _
  // Predicated region
  $region54: #{_lambda_.1} parent=0 // pred_check
    _
  $region55: #{_lambda_.1} parent=0 // pred_check_branch
    %109 = sbr.rel (0) target = $region57
  $region56: #{_lambda_.1} parent=0 // pred_region
    _
  $region57: #{_lambda_.1} parent=0 // pred_fallthru
    _
  // Predicated region
  $region58: #{_lambda_.1} parent=0 // pred_check
    _
  $region59: #{_lambda_.1} parent=0 // pred_check_branch
    %111 = sbr.rel (0) target = $region61
  $region60: #{_lambda_.1} parent=0 // pred_region
    _
  $region61: #{_lambda_.1} parent=0 // pred_fallthru
    _
  // Predicated region
  $region62: #{_lambda_.1} parent=0 // pred_check
    _
  $region63: #{_lambda_.1} parent=0 // pred_check_branch
    %113 = sbr.rel (0) target = $region65
  $region64: #{_lambda_.1} parent=0 // pred_region
    _
  $region65: #{_lambda_.1} parent=0 // pred_fallthru
    _
  // Predicated region
  $region66: #{_lambda_.1} parent=0 // pred_check
    _
  $region67: #{_lambda_.1} parent=0 // pred_check_branch
    %115 = sbr.rel (0) target = $region69
  $region68: #{_lambda_.1} parent=0 // pred_region
    _
  $region69: #{_lambda_.1} parent=0 // pred_fallthru
    _
  // Predicated region
  $region70: #{_lambda_.1} parent=0 // pred_check
    _
  $region71: #{_lambda_.1} parent=0 // pred_check_branch
    %117 = sbr.rel (0) target = $region73
  $region72: #{_lambda_.1} parent=0 // pred_region
    _
  $region73: #{_lambda_.1} parent=0 // pred_fallthru
    _
  // Predicated region
  $region74: #{_lambda_.1} parent=0 // pred_check
    _
  $region75: #{_lambda_.1} parent=0 // pred_check_branch
    %119 = sbr.rel (0) target = $region77
  $region76: #{_lambda_.1} parent=0 // pred_region
    _
  $region77: #{_lambda_.1} parent=0 // pred_fallthru
    _
  // Predicated region
  $region78: #{_lambda_.1} parent=0 // pred_check
    _
  $region79: #{_lambda_.1} parent=0 // pred_check_branch
    %121 = sbr.rel (0) target = $region81
  $region80: #{_lambda_.1} parent=0 // pred_region
    _
  $region81: #{_lambda_.1} parent=0 // pred_fallthru
    _
  // Predicated region
  $region82: #{_lambda_.1} parent=0 // pred_check
    _
  $region83: #{_lambda_.1} parent=0 // pred_check_branch
    %123 = sbr.rel (0) target = $region85
  $region84: #{_lambda_.1} parent=0 // pred_region
    _
  $region85: #{_lambda_.1} parent=0 // pred_fallthru
    _
  // Predicated region
  $region86: #{_lambda_.1} parent=0 // pred_check
    _
  $region87: #{_lambda_.1} parent=0 // pred_check_branch
    %125 = sbr.rel (0) target = $region89
  $region88: #{_lambda_.1} parent=0 // pred_region
    _
  $region89: #{_lambda_.1} parent=0 // pred_fallthru
    _
  // Predicated region
  $region90: #{_lambda_.1} parent=0 // pred_check
    _
  $region91: #{_lambda_.1} parent=0 // pred_check_branch
    %127 = sbr.rel (0) target = $region93
  $region92: #{_lambda_.1} parent=0 // pred_region
    _
  $region93: #{_lambda_.1} parent=0 // pred_fallthru
    _
  // Predicated region
  $region94: #{_lambda_.1} parent=0 // pred_check
    _
  $region95: #{_lambda_.1} parent=0 // pred_check_branch
    %129 = sbr.rel (0) target = $region97
  $region96: #{_lambda_.1} parent=0 // pred_region
    _
  $region97: #{_lambda_.1} parent=0 // pred_fallthru
    _
  // Predicated region
  $region98: #{_lambda_.1} parent=0 // pred_check
    _
  $region99: #{_lambda_.1} parent=0 // pred_check_branch
    %131 = sbr.rel (0) target = $region101
  $region100: #{_lambda_.1} parent=0 // pred_region
    _
  $region101: #{_lambda_.1} parent=0 // pred_fallthru
    _
  // Predicated region
  $region102: #{_lambda_.1} parent=0 // pred_check
    _
  $region103: #{_lambda_.1} parent=0 // pred_check_branch
    %133 = sbr.rel (0) target = $region105
  $region104: #{_lambda_.1} parent=0 // pred_region
    _
  $region105: #{_lambda_.1} parent=0 // pred_fallthru
    _
  // Predicated region
  $region106: #{_lambda_.1} parent=0 // pred_check
    _
  $region107: #{_lambda_.1} parent=0 // pred_check_branch
    %135 = sbr.rel (0) target = $region109
  $region108: #{_lambda_.1} parent=0 // pred_region
    _
  $region109: #{_lambda_.1} parent=0 // pred_fallthru
    _
  // Predicated region
  $region110: #{_lambda_.1} parent=0 // pred_check
    _
  $region111: #{_lambda_.1} parent=0 // pred_check_branch
    %137 = sbr.rel (0) target = $region113
  $region112: #{_lambda_.1} parent=0 // pred_region
    _
  $region113: #{_lambda_.1} parent=0 // pred_fallthru
    _
  // Predicated region
  $region114: #{_lambda_.1} parent=0 // pred_check
    _
  $region115: #{_lambda_.1} parent=0 // pred_check_branch
    %139 = sbr.rel (0) target = $region117
  $region116: #{_lambda_.1} parent=0 // pred_region
    _
  $region117: #{_lambda_.1} parent=0 // pred_fallthru
    _
  // Predicated region
  $region118: #{_lambda_.1} parent=0 // pred_check
    _
  $region119: #{_lambda_.1} parent=0 // pred_check_branch
    %141 = sbr.rel (0) target = $region121
  $region120: #{_lambda_.1} parent=0 // pred_region
    _
  $region121: #{_lambda_.1} parent=0 // pred_fallthru
    _
  // Predicated region
  $region122: #{_lambda_.1} parent=0 // pred_check
    _
  $region123: #{_lambda_.1} parent=0 // pred_check_branch
    %143 = sbr.rel (0) target = $region125
  $region124: #{_lambda_.1} parent=0 // pred_region
    _
  $region125: #{_lambda_.1} parent=0 // pred_fallthru
    _
  // Predicated region
  $region126: #{_lambda_.1} parent=0 // pred_check
    _
  $region127: #{_lambda_.1} parent=0 // pred_check_branch
    %145 = sbr.rel (0) target = $region129
  $region128: #{_lambda_.1} parent=0 // pred_region
    _
  $region129: #{_lambda_.1} parent=0 // pred_fallthru
    _
  // Predicated region
  $region130: #{_lambda_.1} parent=0 // pred_check
    _
  $region131: #{_lambda_.1} parent=0 // pred_check_branch
    %147 = sbr.rel (0) target = $region133
  $region132: #{_lambda_.1} parent=0 // pred_region
    _
  $region133: #{_lambda_.1} parent=0 // pred_fallthru
    _
  // Predicated region
  $region134: #{_lambda_.1} parent=0 // pred_check
    _
  $region135: #{_lambda_.1} parent=0 // pred_check_branch
    %149 = sbr.rel (0) target = $region137
  $region136: #{_lambda_.1} parent=0 // pred_region
    _
  $region137: #{_lambda_.1} parent=0 // pred_fallthru
    _
  // Predicated region
  $region138: #{_lambda_.1} parent=0 // pred_check
    _
  $region139: #{_lambda_.1} parent=0 // pred_check_branch
    %151 = sbr.rel (0) target = $region141
  $region140: #{_lambda_.1} parent=0 // pred_region
    _
  $region141: #{_lambda_.1} parent=0 // pred_fallthru
    _
  // Predicated region
  $region142: #{_lambda_.1} parent=0 // pred_check
    _
  $region143: #{_lambda_.1} parent=0 // pred_check_branch
    %153 = sbr.rel (0) target = $region145
  $region144: #{_lambda_.1} parent=0 // pred_region
    _
  $region145: #{_lambda_.1} parent=0 // pred_fallthru
    _
  // Predicated region
  $region146: #{_lambda_.1} parent=0 // pred_check
    _
  $region147: #{_lambda_.1} parent=0 // pred_check_branch
    %155 = sbr.rel (0) target = $region149
  $region148: #{_lambda_.1} parent=0 // pred_region
    _
  $region149: #{_lambda_.1} parent=0 // pred_fallthru
    _
  // Predicated region
  $region150: #{_lambda_.1} parent=0 // pred_check
    _
  $region151: #{_lambda_.1} parent=0 // pred_check_branch
    %157 = sbr.rel (0) target = $region153
  $region152: #{_lambda_.1} parent=0 // pred_region
    _
  $region153: #{_lambda_.1} parent=0 // pred_fallthru
    _
  %v158 = vld [vmem:[%s3] sm:$0xff]
  %v159 = vld [vmem:[%s3 + $0x8] sm:$0xff]
  %v160 = vlaneseq
  %v161 = vshrl.u32 %v160, 7
  %v162 = vadd.s32 %v161, 8
  %v163 = vlaneseq
  %v164 = vand.u32 %v163, 127
  %vm165 = vcmp.eq.s32.totalorder %v161, %v164
  %vm166 = vcmp.eq.s32.totalorder %v162, %v164
  %v167 = vsel %vm165, 1, 0
  %v168 = vsel %vm166, 1, 0
  %v169 = vcvt.s32.f32 %v167
  %v170 = vcvt.s32.f32 %v168
  %v171 = vld [vmem:[%s1] sm:$0xff]
  %v172 = vld [vmem:[%s1 + $0x8] sm:$0xff]
  %v173 = vld [vmem:[%s1 + $0x10] sm:$0xff]
  %v174 = vld [vmem:[%s1 + $0x18] sm:$0xff]
  %v175 = vld [vmem:[%s1 + $0x20] sm:$0xff]
  %v176 = vld [vmem:[%s1 + $0x28] sm:$0xff]
  %v177 = vld [vmem:[%s1 + $0x30] sm:$0xff]
  %v178 = vld [vmem:[%s1 + $0x38] sm:$0xff]
  %v179 = vld [vmem:[%s1 + $0x40] sm:$0xff]
  %v180 = vld [vmem:[%s1 + $0x48] sm:$0xff]
  %v181 = vld [vmem:[%s1 + $0x50] sm:$0xff]
  %v182 = vld [vmem:[%s1 + $0x58] sm:$0xff]
  %v183 = vld [vmem:[%s1 + $0x60] sm:$0xff]
  %v184 = vld [vmem:[%s1 + $0x68] sm:$0xff]
  %v185 = vld [vmem:[%s1 + $0x70] sm:$0xff]
  %v186 = vld [vmem:[%s1 + $0x78] sm:$0xff]
  %v187 = vld [vmem:[%s1 + $0x80] sm:$0xff]
  %v188 = vld [vmem:[%s1 + $0x88] sm:$0xff]
  %v189 = vld [vmem:[%s1 + $0x90] sm:$0xff]
  %v190 = vld [vmem:[%s1 + $0x98] sm:$0xff]
  %v191 = vld [vmem:[%s1 + $0xa0] sm:$0xff]
  %v192 = vld [vmem:[%s1 + $0xa8] sm:$0xff]
  %v193 = vld [vmem:[%s1 + $0xb0] sm:$0xff]
  %v194 = vld [vmem:[%s1 + $0xb8] sm:$0xff]
  %v195 = vld [vmem:[%s1 + $0xc0] sm:$0xff]
  %v196 = vld [vmem:[%s1 + $0xc8] sm:$0xff]
  %v197 = vld [vmem:[%s1 + $0xd0] sm:$0xff]
  %v198 = vld [vmem:[%s1 + $0xd8] sm:$0xff]
  %v199 = vld [vmem:[%s1 + $0xe0] sm:$0xff]
  %v200 = vld [vmem:[%s1 + $0xe8] sm:$0xff]
  %v201 = vld [vmem:[%s1 + $0xf0] sm:$0xff]
  %v202 = vld [vmem:[%s1 + $0xf8] sm:$0xff]
  %v203 = vld [vmem:[%s5] sm:$0xff]
  %v204 = vld [vmem:[%s5 + $0x8] sm:$0xff]
  %v205 = vld [vmem:[%s7] sm:$0xf]
  %v206 = vld [vmem:[%s9] sm:$0x1]
  %v207 = vld [vmem:[%s11] sm:$0xff]
  %v208 = vld [vmem:[%s13] sm:$0xff]
  %v209 = vld [vmem:[%s15] sm:$0x1]
  %v210 = vld [vmem:[%s17] sm:$0xf]
  %v211 = vld [vmem:[%s19] sm:$0x1]
  %v212 = vld [vmem:[%s21] sm:$0xff]
  %v213 = vld [vmem:[%s21 + $0x8] sm:$0xff]
  %v214 = vld [vmem:[%s23] sm:$0xff]
  %v215 = vld [vmem:[%s23 + $0x8] sm:$0xff]
  %v216 = vld [vmem:[%s25] sm:$0xf]
  %v217 = vld [vmem:[%s25 + $0x4] sm:$0xf]
  %v218 = vld [vmem:[%s25 + $0x8] sm:$0xf]
  %v219 = vld [vmem:[%s27] sm:$0x1]
  %v220 = vld [vmem:[%s29] sm:$0xff]
  %v221 = vld [vmem:[%s29 + $0x8] sm:$0xff]
  %v222 = vld [vmem:[%s29 + $0x10] sm:$0xff]
  %v223 = vld [vmem:[%s29 + $0x18] sm:$0xff]
  %v224 = vld [vmem:[%s29 + $0x20] sm:$0xff]
  %v225 = vld [vmem:[%s29 + $0x28] sm:$0xff]
  %v226 = vld [vmem:[%s29 + $0x30] sm:$0xf]
  %v227 = vld [vmem:[%s31] sm:$0x1]
  %v228 = vld [vmem:[%s33] sm:$0x1]
  %v229 = vld [vmem:[%s35] sm:$0x1]
  %vm230 = vcmask 31744
  %v232 = vsel %vm230, %v171, 0
  %v235 = vsel %vm230, %v172, 0
  %v238 = vsel %vm230, %v173, 0
  %v241 = vsel %vm230, %v174, 0
  %v244 = vsel %vm230, %v175, 0
  %v247 = vsel %vm230, %v176, 0
  %v250 = vsel %vm230, %v177, 0
  %v253 = vsel %vm230, %v178, 0
  %v256 = vsel %vm230, %v179, 0
  %v259 = vsel %vm230, %v180, 0
  %v262 = vsel %vm230, %v181, 0
  %v265 = vsel %vm230, %v182, 0
  %v268 = vsel %vm230, %v183, 0
  %v271 = vsel %vm230, %v184, 0
  %v274 = vsel %vm230, %v185, 0
  %v277 = vsel %vm230, %v186, 0
  %v280 = vsel %vm230, %v187, 0
  %v283 = vsel %vm230, %v188, 0
  %v286 = vsel %vm230, %v189, 0
  %v289 = vsel %vm230, %v190, 0
  %v292 = vsel %vm230, %v191, 0
  %v295 = vsel %vm230, %v192, 0
  %v298 = vsel %vm230, %v193, 0
  %v301 = vsel %vm230, %v194, 0
  %v304 = vsel %vm230, %v195, 0
  %v307 = vsel %vm230, %v196, 0
  %v310 = vsel %vm230, %v197, 0
  %v313 = vsel %vm230, %v198, 0
  %v316 = vsel %vm230, %v199, 0
  %v319 = vsel %vm230, %v200, 0
  %v322 = vsel %vm230, %v201, 0
  %v325 = vsel %vm230, %v202, 0
  %vm327 = vcmask 1043456
  %v329 = vsel %vm327, %v216, 0
  %331 = vmatpush.msra.mxu0 0.0
  %332 = vmatpush.msra.mxu0 0.0
  %333 = vmatpush.msra.mxu0 0.0
  %334 = vmatpush.msra.mxu0 0.0
  %335 = vmatpush.msra.mxu0 0.0
  %336 = vmatpush.msra.mxu0 0.0
  %337 = vmatpush.msra.mxu0 0.0
  %338 = vmatpush.msra.mxu0 0.0
  %339 = vmatpush.msra.mxu0 0.0
  %340 = vmatpush.msra.mxu0 0.0
  %341 = vmatpush.msra.mxu0 0.0
  %342 = vmatpush.msra.mxu0 0.0
  %343 = vmatpush.msra.mxu0 0.0
  %344 = vmatpush.msra.mxu0 0.0
  %345 = vmatpush.msra.mxu0 0.0
  %346 = vmatpush.msra.mxu0 %v329
  %347 = vmatmul.f32.gmra.mxu0 %v232
  %v348 = vpop.f32.mrf.mxu0
  %v349 = vadd.f32 0.0, %v348
  %350 = vmatmul.f32.gmra.mxu0 %v235
  %v351 = vpop.f32.mrf.mxu0
  %v352 = vadd.f32 0.0, %v351
  %353 = vmatmul.f32.gmra.mxu0 %v238
  %v354 = vpop.f32.mrf.mxu0
  %v355 = vadd.f32 0.0, %v354
  %356 = vmatmul.f32.gmra.mxu0 %v241
  %v357 = vpop.f32.mrf.mxu0
  %v358 = vadd.f32 0.0, %v357
  %359 = vmatmul.f32.gmra.mxu0 %v244
  %v360 = vpop.f32.mrf.mxu0
  %v361 = vadd.f32 0.0, %v360
  %362 = vmatmul.f32.gmra.mxu0 %v247
  %v363 = vpop.f32.mrf.mxu0
  %v364 = vadd.f32 0.0, %v363
  %365 = vmatmul.f32.gmra.mxu0 %v250
  %v366 = vpop.f32.mrf.mxu0
  %v367 = vadd.f32 0.0, %v366
  %368 = vmatmul.f32.gmra.mxu0 %v253
  %v369 = vpop.f32.mrf.mxu0
  %v370 = vadd.f32 0.0, %v369
  %371 = vmatmul.f32.gmra.mxu0 %v256
  %v372 = vpop.f32.mrf.mxu0
  %v373 = vadd.f32 0.0, %v372
  %374 = vmatmul.f32.gmra.mxu0 %v259
  %v375 = vpop.f32.mrf.mxu0
  %v376 = vadd.f32 0.0, %v375
  %377 = vmatmul.f32.gmra.mxu0 %v262
  %v378 = vpop.f32.mrf.mxu0
  %v379 = vadd.f32 0.0, %v378
  %380 = vmatmul.f32.gmra.mxu0 %v265
  %v381 = vpop.f32.mrf.mxu0
  %v382 = vadd.f32 0.0, %v381
  %383 = vmatmul.f32.gmra.mxu0 %v268
  %v384 = vpop.f32.mrf.mxu0
  %v385 = vadd.f32 0.0, %v384
  %386 = vmatmul.f32.gmra.mxu0 %v271
  %v387 = vpop.f32.mrf.mxu0
  %v388 = vadd.f32 0.0, %v387
  %389 = vmatmul.f32.gmra.mxu0 %v274
  %v390 = vpop.f32.mrf.mxu0
  %v391 = vadd.f32 0.0, %v390
  %392 = vmatmul.f32.gmra.mxu0 %v277
  %v393 = vpop.f32.mrf.mxu0
  %v394 = vadd.f32 0.0, %v393
  %395 = vmatmul.f32.gmra.mxu0 %v280
  %v396 = vpop.f32.mrf.mxu0
  %v397 = vadd.f32 0.0, %v396
  %398 = vmatmul.f32.gmra.mxu0 %v283
  %v399 = vpop.f32.mrf.mxu0
  %v400 = vadd.f32 0.0, %v399
  %401 = vmatmul.f32.gmra.mxu0 %v286
  %v402 = vpop.f32.mrf.mxu0
  %v403 = vadd.f32 0.0, %v402
  %404 = vmatmul.f32.gmra.mxu0 %v289
  %v405 = vpop.f32.mrf.mxu0
  %v406 = vadd.f32 0.0, %v405
  %407 = vmatmul.f32.gmra.mxu0 %v292
  %v408 = vpop.f32.mrf.mxu0
  %v409 = vadd.f32 0.0, %v408
  %410 = vmatmul.f32.gmra.mxu0 %v295
  %v411 = vpop.f32.mrf.mxu0
  %v412 = vadd.f32 0.0, %v411
  %413 = vmatmul.f32.gmra.mxu0 %v298
  %v414 = vpop.f32.mrf.mxu0
  %v415 = vadd.f32 0.0, %v414
  %416 = vmatmul.f32.gmra.mxu0 %v301
  %v417 = vpop.f32.mrf.mxu0
  %v418 = vadd.f32 0.0, %v417
  %419 = vmatmul.f32.gmra.mxu0 %v304
  %v420 = vpop.f32.mrf.mxu0
  %v421 = vadd.f32 0.0, %v420
  %422 = vmatmul.f32.gmra.mxu0 %v307
  %v423 = vpop.f32.mrf.mxu0
  %v424 = vadd.f32 0.0, %v423
  %425 = vmatmul.f32.gmra.mxu0 %v310
  %v426 = vpop.f32.mrf.mxu0
  %v427 = vadd.f32 0.0, %v426
  %428 = vmatmul.f32.gmra.mxu0 %v313
  %v429 = vpop.f32.mrf.mxu0
  %v430 = vadd.f32 0.0, %v429
  %431 = vmatmul.f32.gmra.mxu0 %v316
  %v432 = vpop.f32.mrf.mxu0
  %v433 = vadd.f32 0.0, %v432
  %434 = vmatmul.f32.gmra.mxu0 %v319
  %v435 = vpop.f32.mrf.mxu0
  %v436 = vadd.f32 0.0, %v435
  %437 = vmatmul.f32.gmra.mxu0 %v322
  %v438 = vpop.f32.mrf.mxu0
  %v439 = vadd.f32 0.0, %v438
  %440 = vmatmul.f32.gmra.mxu0 %v325
  %v441 = vpop.f32.mrf.mxu0
  %v442 = vadd.f32 0.0, %v441
  %443 = vdwg.mxu0
  %v445 = vsel %vm327, %v217, 0
  %447 = vmatpush.msra.mxu0 0.0
  %448 = vmatpush.msra.mxu0 0.0
  %449 = vmatpush.msra.mxu0 0.0
  %450 = vmatpush.msra.mxu0 0.0
  %451 = vmatpush.msra.mxu0 0.0
  %452 = vmatpush.msra.mxu0 0.0
  %453 = vmatpush.msra.mxu0 0.0
  %454 = vmatpush.msra.mxu0 0.0
  %455 = vmatpush.msra.mxu0 0.0
  %456 = vmatpush.msra.mxu0 0.0
  %457 = vmatpush.msra.mxu0 0.0
  %458 = vmatpush.msra.mxu0 0.0
  %459 = vmatpush.msra.mxu0 0.0
  %460 = vmatpush.msra.mxu0 0.0
  %461 = vmatpush.msra.mxu0 0.0
  %462 = vmatpush.msra.mxu0 %v445
  %463 = vmatmul.f32.gmra.mxu0 %v232
  %v464 = vpop.f32.mrf.mxu0
  %v465 = vadd.f32 0.0, %v464
  %466 = vmatmul.f32.gmra.mxu0 %v235
  %v467 = vpop.f32.mrf.mxu0
  %v468 = vadd.f32 0.0, %v467
  %469 = vmatmul.f32.gmra.mxu0 %v238
  %v470 = vpop.f32.mrf.mxu0
  %v471 = vadd.f32 0.0, %v470
  %472 = vmatmul.f32.gmra.mxu0 %v241
  %v473 = vpop.f32.mrf.mxu0
  %v474 = vadd.f32 0.0, %v473
  %475 = vmatmul.f32.gmra.mxu0 %v244
  %v476 = vpop.f32.mrf.mxu0
  %v477 = vadd.f32 0.0, %v476
  %478 = vmatmul.f32.gmra.mxu0 %v247
  %v479 = vpop.f32.mrf.mxu0
  %v480 = vadd.f32 0.0, %v479
  %481 = vmatmul.f32.gmra.mxu0 %v250
  %v482 = vpop.f32.mrf.mxu0
  %v483 = vadd.f32 0.0, %v482
  %484 = vmatmul.f32.gmra.mxu0 %v253
  %v485 = vpop.f32.mrf.mxu0
  %v486 = vadd.f32 0.0, %v485
  %487 = vmatmul.f32.gmra.mxu0 %v256
  %v488 = vpop.f32.mrf.mxu0
  %v489 = vadd.f32 0.0, %v488
  %490 = vmatmul.f32.gmra.mxu0 %v259
  %v491 = vpop.f32.mrf.mxu0
  %v492 = vadd.f32 0.0, %v491
  %493 = vmatmul.f32.gmra.mxu0 %v262
  %v494 = vpop.f32.mrf.mxu0
  %v495 = vadd.f32 0.0, %v494
  %496 = vmatmul.f32.gmra.mxu0 %v265
  %v497 = vpop.f32.mrf.mxu0
  %v498 = vadd.f32 0.0, %v497
  %499 = vmatmul.f32.gmra.mxu0 %v268
  %v500 = vpop.f32.mrf.mxu0
  %v501 = vadd.f32 0.0, %v500
  %502 = vmatmul.f32.gmra.mxu0 %v271
  %v503 = vpop.f32.mrf.mxu0
  %v504 = vadd.f32 0.0, %v503
  %505 = vmatmul.f32.gmra.mxu0 %v274
  %v506 = vpop.f32.mrf.mxu0
  %v507 = vadd.f32 0.0, %v506
  %508 = vmatmul.f32.gmra.mxu0 %v277
  %v509 = vpop.f32.mrf.mxu0
  %v510 = vadd.f32 0.0, %v509
  %511 = vmatmul.f32.gmra.mxu0 %v280
  %v512 = vpop.f32.mrf.mxu0
  %v513 = vadd.f32 0.0, %v512
  %514 = vmatmul.f32.gmra.mxu0 %v283
  %v515 = vpop.f32.mrf.mxu0
  %v516 = vadd.f32 0.0, %v515
  %517 = vmatmul.f32.gmra.mxu0 %v286
  %v518 = vpop.f32.mrf.mxu0
  %v519 = vadd.f32 0.0, %v518
  %520 = vmatmul.f32.gmra.mxu0 %v289
  %v521 = vpop.f32.mrf.mxu0
  %v522 = vadd.f32 0.0, %v521
  %523 = vmatmul.f32.gmra.mxu0 %v292
  %v524 = vpop.f32.mrf.mxu0
  %v525 = vadd.f32 0.0, %v524
  %526 = vmatmul.f32.gmra.mxu0 %v295
  %v527 = vpop.f32.mrf.mxu0
  %v528 = vadd.f32 0.0, %v527
  %529 = vmatmul.f32.gmra.mxu0 %v298
  %v530 = vpop.f32.mrf.mxu0
  %v531 = vadd.f32 0.0, %v530
  %532 = vmatmul.f32.gmra.mxu0 %v301
  %v533 = vpop.f32.mrf.mxu0
  %v534 = vadd.f32 0.0, %v533
  %535 = vmatmul.f32.gmra.mxu0 %v304
  %v536 = vpop.f32.mrf.mxu0
  %v537 = vadd.f32 0.0, %v536
  %538 = vmatmul.f32.gmra.mxu0 %v307
  %v539 = vpop.f32.mrf.mxu0
  %v540 = vadd.f32 0.0, %v539
  %541 = vmatmul.f32.gmra.mxu0 %v310
  %v542 = vpop.f32.mrf.mxu0
  %v543 = vadd.f32 0.0, %v542
  %544 = vmatmul.f32.gmra.mxu0 %v313
  %v545 = vpop.f32.mrf.mxu0
  %v546 = vadd.f32 0.0, %v545
  %547 = vmatmul.f32.gmra.mxu0 %v316
  %v548 = vpop.f32.mrf.mxu0
  %v549 = vadd.f32 0.0, %v548
  %550 = vmatmul.f32.gmra.mxu0 %v319
  %v551 = vpop.f32.mrf.mxu0
  %v552 = vadd.f32 0.0, %v551
  %553 = vmatmul.f32.gmra.mxu0 %v322
  %v554 = vpop.f32.mrf.mxu0
  %v555 = vadd.f32 0.0, %v554
  %556 = vmatmul.f32.gmra.mxu0 %v325
  %v557 = vpop.f32.mrf.mxu0
  %v558 = vadd.f32 0.0, %v557
  %559 = vdwg.mxu0
  %v561 = vsel %vm327, %v218, 0
  %563 = vmatpush.msra.mxu0 0.0
  %564 = vmatpush.msra.mxu0 0.0
  %565 = vmatpush.msra.mxu0 0.0
  %566 = vmatpush.msra.mxu0 0.0
  %567 = vmatpush.msra.mxu0 0.0
  %568 = vmatpush.msra.mxu0 0.0
  %569 = vmatpush.msra.mxu0 0.0
  %570 = vmatpush.msra.mxu0 0.0
  %571 = vmatpush.msra.mxu0 0.0
  %572 = vmatpush.msra.mxu0 0.0
  %573 = vmatpush.msra.mxu0 0.0
  %574 = vmatpush.msra.mxu0 0.0
  %575 = vmatpush.msra.mxu0 0.0
  %576 = vmatpush.msra.mxu0 0.0
  %577 = vmatpush.msra.mxu0 0.0
  %578 = vmatpush.msra.mxu0 %v561
  %579 = vmatmul.f32.gmra.mxu0 %v232
  %v580 = vpop.f32.mrf.mxu0
  %v581 = vadd.f32 0.0, %v580
  %582 = vmatmul.f32.gmra.mxu0 %v235
  %v583 = vpop.f32.mrf.mxu0
  %v584 = vadd.f32 0.0, %v583
  %585 = vmatmul.f32.gmra.mxu0 %v238
  %v586 = vpop.f32.mrf.mxu0
  %v587 = vadd.f32 0.0, %v586
  %588 = vmatmul.f32.gmra.mxu0 %v241
  %v589 = vpop.f32.mrf.mxu0
  %v590 = vadd.f32 0.0, %v589
  %591 = vmatmul.f32.gmra.mxu0 %v244
  %v592 = vpop.f32.mrf.mxu0
  %v593 = vadd.f32 0.0, %v592
  %594 = vmatmul.f32.gmra.mxu0 %v247
  %v595 = vpop.f32.mrf.mxu0
  %v596 = vadd.f32 0.0, %v595
  %597 = vmatmul.f32.gmra.mxu0 %v250
  %v598 = vpop.f32.mrf.mxu0
  %v599 = vadd.f32 0.0, %v598
  %600 = vmatmul.f32.gmra.mxu0 %v253
  %v601 = vpop.f32.mrf.mxu0
  %v602 = vadd.f32 0.0, %v601
  %603 = vmatmul.f32.gmra.mxu0 %v256
  %v604 = vpop.f32.mrf.mxu0
  %v605 = vadd.f32 0.0, %v604
  %606 = vmatmul.f32.gmra.mxu0 %v259
  %v607 = vpop.f32.mrf.mxu0
  %v608 = vadd.f32 0.0, %v607
  %609 = vmatmul.f32.gmra.mxu0 %v262
  %v610 = vpop.f32.mrf.mxu0
  %v611 = vadd.f32 0.0, %v610
  %612 = vmatmul.f32.gmra.mxu0 %v265
  %v613 = vpop.f32.mrf.mxu0
  %v614 = vadd.f32 0.0, %v613
  %615 = vmatmul.f32.gmra.mxu0 %v268
  %v616 = vpop.f32.mrf.mxu0
  %v617 = vadd.f32 0.0, %v616
  %618 = vmatmul.f32.gmra.mxu0 %v271
  %v619 = vpop.f32.mrf.mxu0
  %v620 = vadd.f32 0.0, %v619
  %621 = vmatmul.f32.gmra.mxu0 %v274
  %v622 = vpop.f32.mrf.mxu0
  %v623 = vadd.f32 0.0, %v622
  %624 = vmatmul.f32.gmra.mxu0 %v277
  %v625 = vpop.f32.mrf.mxu0
  %v626 = vadd.f32 0.0, %v625
  %627 = vmatmul.f32.gmra.mxu0 %v280
  %v628 = vpop.f32.mrf.mxu0
  %v629 = vadd.f32 0.0, %v628
  %630 = vmatmul.f32.gmra.mxu0 %v283
  %v631 = vpop.f32.mrf.mxu0
  %v632 = vadd.f32 0.0, %v631
  %633 = vmatmul.f32.gmra.mxu0 %v286
  %v634 = vpop.f32.mrf.mxu0
  %v635 = vadd.f32 0.0, %v634
  %636 = vmatmul.f32.gmra.mxu0 %v289
  %v637 = vpop.f32.mrf.mxu0
  %v638 = vadd.f32 0.0, %v637
  %639 = vmatmul.f32.gmra.mxu0 %v292
  %v640 = vpop.f32.mrf.mxu0
  %v641 = vadd.f32 0.0, %v640
  %642 = vmatmul.f32.gmra.mxu0 %v295
  %v643 = vpop.f32.mrf.mxu0
  %v644 = vadd.f32 0.0, %v643
  %645 = vmatmul.f32.gmra.mxu0 %v298
  %v646 = vpop.f32.mrf.mxu0
  %v647 = vadd.f32 0.0, %v646
  %648 = vmatmul.f32.gmra.mxu0 %v301
  %v649 = vpop.f32.mrf.mxu0
  %v650 = vadd.f32 0.0, %v649
  %651 = vmatmul.f32.gmra.mxu0 %v304
  %v652 = vpop.f32.mrf.mxu0
  %v653 = vadd.f32 0.0, %v652
  %654 = vmatmul.f32.gmra.mxu0 %v307
  %v655 = vpop.f32.mrf.mxu0
  %v656 = vadd.f32 0.0, %v655
  %657 = vmatmul.f32.gmra.mxu0 %v310
  %v658 = vpop.f32.mrf.mxu0
  %v659 = vadd.f32 0.0, %v658
  %660 = vmatmul.f32.gmra.mxu0 %v313
  %v661 = vpop.f32.mrf.mxu0
  %v662 = vadd.f32 0.0, %v661
  %663 = vmatmul.f32.gmra.mxu0 %v316
  %v664 = vpop.f32.mrf.mxu0
  %v665 = vadd.f32 0.0, %v664
  %666 = vmatmul.f32.gmra.mxu0 %v319
  %v667 = vpop.f32.mrf.mxu0
  %v668 = vadd.f32 0.0, %v667
  %669 = vmatmul.f32.gmra.mxu0 %v322
  %v670 = vpop.f32.mrf.mxu0
  %v671 = vadd.f32 0.0, %v670
  %672 = vmatmul.f32.gmra.mxu0 %v325
  %v673 = vpop.f32.mrf.mxu0
  %v674 = vadd.f32 0.0, %v673
  %675 = vdwg.mxu0
  %677 = vset.pattern.permute.xlu0 0
  %678 = vperm.xlu0 %677, %v203
  %v679 = vpop.permute.xlu0 %678
  %682 = vset.pattern.permute.xlu0 0
  %683 = vperm.xlu0 %682, %v204
  %v684 = vpop.permute.xlu0 %683
  %v686 = vmul.f32 %v171, %v679
  %v687 = vmul.f32 %v172, %v684
  %v688 = vmul.f32 %v173, %v679
  %v689 = vmul.f32 %v174, %v684
  %v690 = vmul.f32 %v175, %v679
  %v691 = vmul.f32 %v176, %v684
  %v692 = vmul.f32 %v177, %v679
  %v693 = vmul.f32 %v178, %v684
  %v694 = vmul.f32 %v179, %v679
  %v695 = vmul.f32 %v180, %v684
  %v696 = vmul.f32 %v181, %v679
  %v697 = vmul.f32 %v182, %v684
  %v698 = vmul.f32 %v183, %v679
  %v699 = vmul.f32 %v184, %v684
  %v700 = vmul.f32 %v185, %v679
  %v701 = vmul.f32 %v186, %v684
  %v702 = vsel %vm230, %v686, 0.0
  %v703 = vsel %vm230, %v687, 0.0
  %v704 = vadd.f32 %v702, %v703
  %v705 = vrot.slane %v704, 4
  %v706 = vadd.f32 %v704, %v705
  %v707 = vrot.slane %v706, 2
  %v708 = vadd.f32 %v706, %v707
  %v709 = vrot.slane %v708, 1
  %v710 = vadd.f32 %v708, %v709
  %v711 = vsel %vm230, %v688, 0.0
  %v712 = vsel %vm230, %v689, 0.0
  %v713 = vadd.f32 %v711, %v712
  %v714 = vrot.slane %v713, 4
  %v715 = vadd.f32 %v713, %v714
  %v716 = vrot.slane %v715, 2
  %v717 = vadd.f32 %v715, %v716
  %v718 = vrot.slane %v717, 1
  %v719 = vadd.f32 %v717, %v718
  %v720 = vsel %vm230, %v690, 0.0
  %v721 = vsel %vm230, %v691, 0.0
  %v722 = vadd.f32 %v720, %v721
  %v723 = vrot.slane %v722, 4
  %v724 = vadd.f32 %v722, %v723
  %v725 = vrot.slane %v724, 2
  %v726 = vadd.f32 %v724, %v725
  %v727 = vrot.slane %v726, 1
  %v728 = vadd.f32 %v726, %v727
  %v729 = vsel %vm230, %v692, 0.0
  %v730 = vsel %vm230, %v693, 0.0
  %v731 = vadd.f32 %v729, %v730
  %v732 = vrot.slane %v731, 4
  %v733 = vadd.f32 %v731, %v732
  %v734 = vrot.slane %v733, 2
  %v735 = vadd.f32 %v733, %v734
  %v736 = vrot.slane %v735, 1
  %v737 = vadd.f32 %v735, %v736
  %v738 = vsel %vm230, %v694, 0.0
  %v739 = vsel %vm230, %v695, 0.0
  %v740 = vadd.f32 %v738, %v739
  %v741 = vrot.slane %v740, 4
  %v742 = vadd.f32 %v740, %v741
  %v743 = vrot.slane %v742, 2
  %v744 = vadd.f32 %v742, %v743
  %v745 = vrot.slane %v744, 1
  %v746 = vadd.f32 %v744, %v745
  %v747 = vsel %vm230, %v696, 0.0
  %v748 = vsel %vm230, %v697, 0.0
  %v749 = vadd.f32 %v747, %v748
  %v750 = vrot.slane %v749, 4
  %v751 = vadd.f32 %v749, %v750
  %v752 = vrot.slane %v751, 2
  %v753 = vadd.f32 %v751, %v752
  %v754 = vrot.slane %v753, 1
  %v755 = vadd.f32 %v753, %v754
  %v756 = vsel %vm230, %v698, 0.0
  %v757 = vsel %vm230, %v699, 0.0
  %v758 = vadd.f32 %v756, %v757
  %v759 = vrot.slane %v758, 4
  %v760 = vadd.f32 %v758, %v759
  %v761 = vrot.slane %v760, 2
  %v762 = vadd.f32 %v760, %v761
  %v763 = vrot.slane %v762, 1
  %v764 = vadd.f32 %v762, %v763
  %v765 = vsel %vm230, %v700, 0.0
  %v766 = vsel %vm230, %v701, 0.0
  %v767 = vadd.f32 %v765, %v766
  %v768 = vrot.slane %v767, 4
  %v769 = vadd.f32 %v767, %v768
  %v770 = vrot.slane %v769, 2
  %v771 = vadd.f32 %v769, %v770
  %v772 = vrot.slane %v771, 1
  %v773 = vadd.f32 %v771, %v772
  %vm782 = vcmask 1041409
  %v783 = vsel %vm782, %v719, %v710
  %vm784 = vcmask 1042434
  %v785 = vsel %vm784, %v728, %v783
  %vm786 = vcmask 1043459
  %v787 = vsel %vm786, %v737, %v785
  %vm788 = vcmask 1044484
  %v789 = vsel %vm788, %v746, %v787
  %vm790 = vcmask 1045509
  %v791 = vsel %vm790, %v755, %v789
  %vm792 = vcmask 1046534
  %v793 = vsel %vm792, %v764, %v791
  %vm794 = vcmask 1047559
  %v795 = vsel %vm794, %v773, %v793
  %v796 = vsel %vm230, %v795, 0
  %v799 = vsel %vm327, %v205, 0
  %801 = vmatpush.msra.mxu0 0.0
  %802 = vmatpush.msra.mxu0 0.0
  %803 = vmatpush.msra.mxu0 0.0
  %804 = vmatpush.msra.mxu0 0.0
  %805 = vmatpush.msra.mxu0 0.0
  %806 = vmatpush.msra.mxu0 0.0
  %807 = vmatpush.msra.mxu0 0.0
  %808 = vmatpush.msra.mxu0 0.0
  %809 = vmatpush.msra.mxu0 0.0
  %810 = vmatpush.msra.mxu0 0.0
  %811 = vmatpush.msra.mxu0 0.0
  %812 = vmatpush.msra.mxu0 0.0
  %813 = vmatpush.msra.mxu0 0.0
  %814 = vmatpush.msra.mxu0 0.0
  %815 = vmatpush.msra.mxu0 0.0
  %816 = vmatpush.msra.mxu0 %v799
  %817 = vmatmul.f32.gmra.mxu0 %v796
  %v818 = vpop.f32.mrf.mxu0
  %v819 = vadd.f32 0.0, %v818
  %820 = vdwg.mxu0
  %v822 = vperm.slane %v206, 0
  %v824 = vmul.f32 %v171, %v822
  %v825 = vmul.f32 %v172, %v822
  %v826 = vmul.f32 %v173, %v822
  %v827 = vmul.f32 %v174, %v822
  %v828 = vmul.f32 %v175, %v822
  %v829 = vmul.f32 %v176, %v822
  %v830 = vmul.f32 %v177, %v822
  %v831 = vmul.f32 %v178, %v822
  %v832 = vmul.f32 %v179, %v822
  %v833 = vmul.f32 %v180, %v822
  %v834 = vmul.f32 %v181, %v822
  %v835 = vmul.f32 %v182, %v822
  %v836 = vmul.f32 %v183, %v822
  %v837 = vmul.f32 %v184, %v822
  %v838 = vmul.f32 %v185, %v822
  %v839 = vmul.f32 %v186, %v822
  %v840 = vsel %vm230, %v824, 0.0
  %841 = vadd.xlane.f32.xlu0 %v840
  %v842 = vpop.xlane.xlu0 %841
  %v843 = vsel %vm230, %v825, 0.0
  %844 = vadd.xlane.f32.xlu0 %v843
  %v845 = vpop.xlane.xlu0 %844
  %v846 = vsel %vm230, %v826, 0.0
  %847 = vadd.xlane.f32.xlu0 %v846
  %v848 = vpop.xlane.xlu0 %847
  %v849 = vsel %vm230, %v827, 0.0
  %850 = vadd.xlane.f32.xlu0 %v849
  %v851 = vpop.xlane.xlu0 %850
  %v852 = vsel %vm230, %v828, 0.0
  %853 = vadd.xlane.f32.xlu0 %v852
  %v854 = vpop.xlane.xlu0 %853
  %v855 = vsel %vm230, %v829, 0.0
  %856 = vadd.xlane.f32.xlu0 %v855
  %v857 = vpop.xlane.xlu0 %856
  %v858 = vsel %vm230, %v830, 0.0
  %859 = vadd.xlane.f32.xlu0 %v858
  %v860 = vpop.xlane.xlu0 %859
  %v861 = vsel %vm230, %v831, 0.0
  %862 = vadd.xlane.f32.xlu0 %v861
  %v863 = vpop.xlane.xlu0 %862
  %v864 = vsel %vm230, %v832, 0.0
  %865 = vadd.xlane.f32.xlu0 %v864
  %v866 = vpop.xlane.xlu0 %865
  %v867 = vsel %vm230, %v833, 0.0
  %868 = vadd.xlane.f32.xlu0 %v867
  %v869 = vpop.xlane.xlu0 %868
  %v870 = vsel %vm230, %v834, 0.0
  %871 = vadd.xlane.f32.xlu0 %v870
  %v872 = vpop.xlane.xlu0 %871
  %v873 = vsel %vm230, %v835, 0.0
  %874 = vadd.xlane.f32.xlu0 %v873
  %v875 = vpop.xlane.xlu0 %874
  %v876 = vsel %vm230, %v836, 0.0
  %877 = vadd.xlane.f32.xlu0 %v876
  %v878 = vpop.xlane.xlu0 %877
  %v879 = vsel %vm230, %v837, 0.0
  %880 = vadd.xlane.f32.xlu0 %v879
  %v881 = vpop.xlane.xlu0 %880
  %v882 = vsel %vm230, %v838, 0.0
  %883 = vadd.xlane.f32.xlu0 %v882
  %v884 = vpop.xlane.xlu0 %883
  %v885 = vsel %vm230, %v839, 0.0
  %886 = vadd.xlane.f32.xlu0 %v885
  %v887 = vpop.xlane.xlu0 %886
  %v904 = vperm.slane %v842, %v164
  %v905 = vadd.s32 %v164, 4294967288
  %v906 = vperm.slane %v845, %v905
  %vm907 = vcmask 130112
  %v908 = vsel %vm907, %v906, %v904
  %v909 = vperm.slane %v848, %v164
  %v910 = vperm.slane %v851, %v905
  %v911 = vsel %vm907, %v910, %v909
  %v912 = vperm.slane %v854, %v164
  %v913 = vperm.slane %v857, %v905
  %v914 = vsel %vm907, %v913, %v912
  %v915 = vperm.slane %v860, %v164
  %v916 = vperm.slane %v863, %v905
  %v917 = vsel %vm907, %v916, %v915
  %v918 = vperm.slane %v866, %v164
  %v919 = vperm.slane %v869, %v905
  %v920 = vsel %vm907, %v919, %v918
  %v921 = vperm.slane %v872, %v164
  %v922 = vperm.slane %v875, %v905
  %v923 = vsel %vm907, %v922, %v921
  %v924 = vperm.slane %v878, %v164
  %v925 = vperm.slane %v881, %v905
  %v926 = vsel %vm907, %v925, %v924
  %v927 = vperm.slane %v884, %v164
  %v928 = vperm.slane %v887, %v905
  %v929 = vsel %vm907, %v928, %v927
  %v930 = vsel %vm782, %v911, %v908
  %v931 = vsel %vm784, %v914, %v930
  %v932 = vsel %vm786, %v917, %v931
  %v933 = vsel %vm788, %v920, %v932
  %v934 = vsel %vm790, %v923, %v933
  %v935 = vsel %vm792, %v926, %v934
  %v936 = vsel %vm794, %v929, %v935
  %vm937 = vcmask 130048
  %v939 = vsel %vm937, %v819, 0
  %v941 = vsel %vm937, %v936, 0
  %943 = vmatpush.xpose.msra.mxu0 0.0
  %944 = vmatpush.xpose.msra.mxu0 0.0
  %945 = vmatpush.xpose.msra.mxu0 0.0
  %946 = vmatpush.xpose.msra.mxu0 0.0
  %947 = vmatpush.xpose.msra.mxu0 0.0
  %948 = vmatpush.xpose.msra.mxu0 0.0
  %949 = vmatpush.xpose.msra.mxu0 0.0
  %950 = vmatpush.xpose.msra.mxu0 0.0
  %951 = vmatpush.xpose.msra.mxu0 0.0
  %952 = vmatpush.xpose.msra.mxu0 0.0
  %953 = vmatpush.xpose.msra.mxu0 0.0
  %954 = vmatpush.xpose.msra.mxu0 0.0
  %955 = vmatpush.xpose.msra.mxu0 0.0
  %956 = vmatpush.xpose.msra.mxu0 0.0
  %957 = vmatpush.xpose.msra.mxu0 0.0
  %958 = vmatpush.xpose.msra.mxu0 %v941
  %959 = vmatmul.f32.gmra.mxu0 %v939
  %v960 = vpop.f32.mrf.mxu0
  %v961 = vadd.f32 %v207, %v960
  %962 = vdwg.mxu0
  %v963 = vxor.u32 %v961, 2147483648
  %v964 = vmul.f32 %v963, 1.442695
  %v965 = vpow.pop %v964
  %v966 = vadd.f32 %v965, 1.0
  %v967 = vrcp.pop %v966
  %v968 = vmul.f32 %v966, %v967
  %v969 = vsub.f32 1.0, %v968
  %v970 = vmul.f32 %v967, %v969
  %v971 = vadd.f32 %v967, %v970
  %vm972 = vweird.f32 %v966
  %vm973 = vweird.f32 %v967
  %vm974 = vmor %vm972, %vm973
  %v975 = vsel %vm974, %v967, %v971
  %v976 = vand.u32 2147483647, %v966
  %vm977 = vcmp.eq.f32.partialorder %v976, 8.507059e+37
  %v978 = vand.u32 %v966, 2147483648
  %v979 = vor.u32 1.1754944e-38, %v978
  %v980 = vsel %vm977, %v979, %v975
  %v981 = vmul.f32 1.0, %v980
  %vm982 = vcmask 64512
  %v984 = vsel %vm982, %v208, 0
  %986 = vmatpush.msra.mxu0 0.0
  %987 = vmatpush.msra.mxu0 0.0
  %988 = vmatpush.msra.mxu0 0.0
  %989 = vmatpush.msra.mxu0 0.0
  %990 = vmatpush.msra.mxu0 0.0
  %991 = vmatpush.msra.mxu0 0.0
  %992 = vmatpush.msra.mxu0 0.0
  %993 = vmatpush.msra.mxu0 0.0
  %994 = vmatpush.msra.mxu0 0.0
  %995 = vmatpush.msra.mxu0 0.0
  %996 = vmatpush.msra.mxu0 0.0
  %997 = vmatpush.msra.mxu0 0.0
  %998 = vmatpush.msra.mxu0 0.0
  %999 = vmatpush.msra.mxu0 0.0
  %1000 = vmatpush.msra.mxu0 0.0
  %1001 = vmatpush.msra.mxu0 %v981
  %1002 = vmatmul.f32.gmra.mxu0 %v984
  %v1003 = vpop.f32.mrf.mxu0
  %v1004 = vadd.f32 0.0, %v1003
  %1005 = vdwg.mxu0
  %v1006 = vsel %vm982, %v1004, -inf
  %v1007 = vrot.slane %v1006, 4
  %v1008 = vmax.f32 %v1006, %v1007
  %v1009 = vrot.slane %v1008, 2
  %v1010 = vmax.f32 %v1008, %v1009
  %v1011 = vrot.slane %v1010, 1
  %v1012 = vmax.f32 %v1010, %v1011
  %v1013 = vsub.f32 %v1004, %v1012
  %v1014 = vmul.f32 %v1013, 1.442695
  %v1015 = vpow.pop %v1014
  %v1016 = vsel %vm982, %v1015, 0.0
  %v1017 = vrot.slane %v1016, 4
  %v1018 = vadd.f32 %v1016, %v1017
  %v1019 = vrot.slane %v1018, 2
  %v1020 = vadd.f32 %v1018, %v1019
  %v1021 = vrot.slane %v1020, 1
  %v1022 = vadd.f32 %v1020, %v1021
  %v1023 = vrcp.pop %v1022
  %v1024 = vmul.f32 %v1015, %v1023
  %v1026 = vperm.slane %v209, 0
  %v1028 = vmul.f32 %v1024, %v1026
  %v1029 = vsel %vm982, %v1028, 0.0
  %1030 = vadd.xlane.f32.xlu0 %v1029
  %v1031 = vpop.xlane.xlu0 %1030
  %v1033 = vperm.slane %v1031, 0
  %v1034 = vperm.slane %v1031, 1
  %v1035 = vperm.slane %v1031, 2
  %v1036 = vperm.slane %v1031, 3
  %v1037 = vperm.slane %v1031, 4
  %v1038 = vperm.slane %v1031, 5
  %v1039 = vperm.slane %v1031, 6
  %v1040 = vperm.slane %v1031, 7
  %v1049 = vmul.f32 %v171, %v1033
  %v1050 = vmul.f32 %v172, %v1033
  %v1051 = vmul.f32 %v173, %v1034
  %v1052 = vmul.f32 %v174, %v1034
  %v1053 = vmul.f32 %v175, %v1035
  %v1054 = vmul.f32 %v176, %v1035
  %v1055 = vmul.f32 %v177, %v1036
  %v1056 = vmul.f32 %v178, %v1036
  %v1057 = vmul.f32 %v179, %v1037
  %v1058 = vmul.f32 %v180, %v1037
  %v1059 = vmul.f32 %v181, %v1038
  %v1060 = vmul.f32 %v182, %v1038
  %v1061 = vmul.f32 %v183, %v1039
  %v1062 = vmul.f32 %v184, %v1039
  %v1063 = vmul.f32 %v185, %v1040
  %v1064 = vmul.f32 %v186, %v1040
  %v1065 = vsel %vm230, %v1049, 0.0
  %v1066 = vsel %vm230, %v1051, 0.0
  %v1067 = vadd.f32 %v1065, %v1066
  %v1068 = vsel %vm230, %v1053, 0.0
  %v1069 = vadd.f32 %v1067, %v1068
  %v1070 = vsel %vm230, %v1055, 0.0
  %v1071 = vadd.f32 %v1069, %v1070
  %v1072 = vsel %vm230, %v1057, 0.0
  %v1073 = vadd.f32 %v1071, %v1072
  %v1074 = vsel %vm230, %v1059, 0.0
  %v1075 = vadd.f32 %v1073, %v1074
  %v1076 = vsel %vm230, %v1061, 0.0
  %v1077 = vadd.f32 %v1075, %v1076
  %v1078 = vsel %vm230, %v1063, 0.0
  %v1079 = vadd.f32 %v1077, %v1078
  %v1080 = vsel %vm230, %v1050, 0.0
  %v1081 = vsel %vm230, %v1052, 0.0
  %v1082 = vadd.f32 %v1080, %v1081
  %v1083 = vsel %vm230, %v1054, 0.0
  %v1084 = vadd.f32 %v1082, %v1083
  %v1085 = vsel %vm230, %v1056, 0.0
  %v1086 = vadd.f32 %v1084, %v1085
  %v1087 = vsel %vm230, %v1058, 0.0
  %v1088 = vadd.f32 %v1086, %v1087
  %v1089 = vsel %vm230, %v1060, 0.0
  %v1090 = vadd.f32 %v1088, %v1089
  %v1091 = vsel %vm230, %v1062, 0.0
  %v1092 = vadd.f32 %v1090, %v1091
  %v1093 = vsel %vm230, %v1064, 0.0
  %v1094 = vadd.f32 %v1092, %v1093
  %v1096 = vsel %vm230, %v1079, 0
  %v1099 = vsel %vm230, %v1094, 0
  %v1102 = vsel %vm327, %v210, 0
  %1104 = vmatpush.msra.mxu0 0.0
  %1105 = vmatpush.msra.mxu0 0.0
  %1106 = vmatpush.msra.mxu0 0.0
  %1107 = vmatpush.msra.mxu0 0.0
  %1108 = vmatpush.msra.mxu0 0.0
  %1109 = vmatpush.msra.mxu0 0.0
  %1110 = vmatpush.msra.mxu0 0.0
  %1111 = vmatpush.msra.mxu0 0.0
  %1112 = vmatpush.msra.mxu0 0.0
  %1113 = vmatpush.msra.mxu0 0.0
  %1114 = vmatpush.msra.mxu0 0.0
  %1115 = vmatpush.msra.mxu0 0.0
  %1116 = vmatpush.msra.mxu0 0.0
  %1117 = vmatpush.msra.mxu0 0.0
  %1118 = vmatpush.msra.mxu0 0.0
  %1119 = vmatpush.msra.mxu0 %v1102
  %1120 = vmatmul.f32.gmra.mxu0 %v1096
  %v1121 = vpop.f32.mrf.mxu0
  %v1122 = vadd.f32 0.0, %v1121
  %1123 = vmatmul.f32.gmra.mxu0 %v1099
  %v1124 = vpop.f32.mrf.mxu0
  %v1125 = vadd.f32 0.0, %v1124
  %1126 = vdwg.mxu0
  %v1128 = vperm.slane %v211, 0
  %v1130 = vmul.f32 %v171, %v1128
  %v1131 = vmul.f32 %v172, %v1128
  %v1132 = vmul.f32 %v173, %v1128
  %v1133 = vmul.f32 %v174, %v1128
  %v1134 = vmul.f32 %v175, %v1128
  %v1135 = vmul.f32 %v176, %v1128
  %v1136 = vmul.f32 %v177, %v1128
  %v1137 = vmul.f32 %v178, %v1128
  %v1138 = vmul.f32 %v179, %v1128
  %v1139 = vmul.f32 %v180, %v1128
  %v1140 = vmul.f32 %v181, %v1128
  %v1141 = vmul.f32 %v182, %v1128
  %v1142 = vmul.f32 %v183, %v1128
  %v1143 = vmul.f32 %v184, %v1128
  %v1144 = vmul.f32 %v185, %v1128
  %v1145 = vmul.f32 %v186, %v1128
  %v1146 = vsel %vm230, %v1130, 0.0
  %1147 = vadd.xlane.f32.xlu0 %v1146
  %v1148 = vpop.xlane.xlu0 %1147
  %v1149 = vsel %vm230, %v1131, 0.0
  %1150 = vadd.xlane.f32.xlu0 %v1149
  %v1151 = vpop.xlane.xlu0 %1150
  %v1152 = vsel %vm230, %v1132, 0.0
  %1153 = vadd.xlane.f32.xlu0 %v1152
  %v1154 = vpop.xlane.xlu0 %1153
  %v1155 = vsel %vm230, %v1133, 0.0
  %1156 = vadd.xlane.f32.xlu0 %v1155
  %v1157 = vpop.xlane.xlu0 %1156
  %v1158 = vsel %vm230, %v1134, 0.0
  %1159 = vadd.xlane.f32.xlu0 %v1158
  %v1160 = vpop.xlane.xlu0 %1159
  %v1161 = vsel %vm230, %v1135, 0.0
  %1162 = vadd.xlane.f32.xlu0 %v1161
  %v1163 = vpop.xlane.xlu0 %1162
  %v1164 = vsel %vm230, %v1136, 0.0
  %1165 = vadd.xlane.f32.xlu0 %v1164
  %v1166 = vpop.xlane.xlu0 %1165
  %v1167 = vsel %vm230, %v1137, 0.0
  %1168 = vadd.xlane.f32.xlu0 %v1167
  %v1169 = vpop.xlane.xlu0 %1168
  %v1170 = vsel %vm230, %v1138, 0.0
  %1171 = vadd.xlane.f32.xlu0 %v1170
  %v1172 = vpop.xlane.xlu0 %1171
  %v1173 = vsel %vm230, %v1139, 0.0
  %1174 = vadd.xlane.f32.xlu0 %v1173
  %v1175 = vpop.xlane.xlu0 %1174
  %v1176 = vsel %vm230, %v1140, 0.0
  %1177 = vadd.xlane.f32.xlu0 %v1176
  %v1178 = vpop.xlane.xlu0 %1177
  %v1179 = vsel %vm230, %v1141, 0.0
  %1180 = vadd.xlane.f32.xlu0 %v1179
  %v1181 = vpop.xlane.xlu0 %1180
  %v1182 = vsel %vm230, %v1142, 0.0
  %1183 = vadd.xlane.f32.xlu0 %v1182
  %v1184 = vpop.xlane.xlu0 %1183
  %v1185 = vsel %vm230, %v1143, 0.0
  %1186 = vadd.xlane.f32.xlu0 %v1185
  %v1187 = vpop.xlane.xlu0 %1186
  %v1188 = vsel %vm230, %v1144, 0.0
  %1189 = vadd.xlane.f32.xlu0 %v1188
  %v1190 = vpop.xlane.xlu0 %1189
  %v1191 = vsel %vm230, %v1145, 0.0
  %1192 = vadd.xlane.f32.xlu0 %v1191
  %v1193 = vpop.xlane.xlu0 %1192
  %v1195 = vsel %vm982, %v1122, 0
  %v1198 = vsel %vm982, %v1125, 0
  %v1201 = vsel %vm982, %v1024, 0
  %1203 = vmatpush.xpose.msra.mxu0 0.0
  %1204 = vmatpush.xpose.msra.mxu0 0.0
  %1205 = vmatpush.xpose.msra.mxu0 0.0
  %1206 = vmatpush.xpose.msra.mxu0 0.0
  %1207 = vmatpush.xpose.msra.mxu0 0.0
  %1208 = vmatpush.xpose.msra.mxu0 0.0
  %1209 = vmatpush.xpose.msra.mxu0 0.0
  %1210 = vmatpush.xpose.msra.mxu0 0.0
  %1211 = vmatpush.xpose.msra.mxu0 0.0
  %1212 = vmatpush.xpose.msra.mxu0 0.0
  %1213 = vmatpush.xpose.msra.mxu0 0.0
  %1214 = vmatpush.xpose.msra.mxu0 0.0
  %1215 = vmatpush.xpose.msra.mxu0 0.0
  %1216 = vmatpush.xpose.msra.mxu0 0.0
  %1217 = vmatpush.xpose.msra.mxu0 0.0
  %1218 = vmatpush.xpose.msra.mxu0 %v1201
  %1219 = vmatmul.f32.gmra.mxu0 %v1195
  %v1220 = vpop.f32.mrf.mxu0
  %v1221 = vadd.f32 0.0, %v1220
  %1222 = vmatmul.f32.gmra.mxu0 %v1198
  %v1223 = vpop.f32.mrf.mxu0
  %v1224 = vadd.f32 0.0, %v1223
  %1225 = vdwg.mxu0
  %v1242 = vperm.slane %v1148, %v164
  %v1243 = vperm.slane %v1151, %v905
  %v1244 = vsel %vm907, %v1243, %v1242
  %v1245 = vperm.slane %v1154, %v164
  %v1246 = vperm.slane %v1157, %v905
  %v1247 = vsel %vm907, %v1246, %v1245
  %v1248 = vperm.slane %v1160, %v164
  %v1249 = vperm.slane %v1163, %v905
  %v1250 = vsel %vm907, %v1249, %v1248
  %v1251 = vperm.slane %v1166, %v164
  %v1252 = vperm.slane %v1169, %v905
  %v1253 = vsel %vm907, %v1252, %v1251
  %v1254 = vperm.slane %v1172, %v164
  %v1255 = vperm.slane %v1175, %v905
  %v1256 = vsel %vm907, %v1255, %v1254
  %v1257 = vperm.slane %v1178, %v164
  %v1258 = vperm.slane %v1181, %v905
  %v1259 = vsel %vm907, %v1258, %v1257
  %v1260 = vperm.slane %v1184, %v164
  %v1261 = vperm.slane %v1187, %v905
  %v1262 = vsel %vm907, %v1261, %v1260
  %v1263 = vperm.slane %v1190, %v164
  %v1264 = vperm.slane %v1193, %v905
  %v1265 = vsel %vm907, %v1264, %v1263
  %v1266 = vsel %vm782, %v1247, %v1244
  %v1267 = vsel %vm784, %v1250, %v1266
  %v1268 = vsel %vm786, %v1253, %v1267
  %v1269 = vsel %vm788, %v1256, %v1268
  %v1270 = vsel %vm790, %v1259, %v1269
  %v1271 = vsel %vm792, %v1262, %v1270
  %v1272 = vsel %vm794, %v1265, %v1271
  %v1275 = vsel %vm982, %v1221, 0
  %v1278 = vsel %vm982, %v1224, 0
  %1280 = vmatpush.msra.mxu0 0.0
  %1281 = vmatpush.msra.mxu0 0.0
  %1282 = vmatpush.msra.mxu0 0.0
  %1283 = vmatpush.msra.mxu0 0.0
  %1284 = vmatpush.msra.mxu0 0.0
  %1285 = vmatpush.msra.mxu0 0.0
  %1286 = vmatpush.msra.mxu0 0.0
  %1287 = vmatpush.msra.mxu0 0.0
  %1288 = vmatpush.msra.mxu0 0.0
  %1289 = vmatpush.msra.mxu0 0.0
  %1290 = vmatpush.msra.mxu0 0.0
  %1291 = vmatpush.msra.mxu0 0.0
  %1292 = vmatpush.msra.mxu0 0.0
  %1293 = vmatpush.msra.mxu0 0.0
  %1294 = vmatpush.msra.mxu0 0.0
  %1295 = vmatpush.msra.mxu0 %v1272
  %1296 = vmatmul.f32.gmra.mxu0 %v1275
  %v1297 = vpop.f32.mrf.mxu0
  %v1298 = vadd.f32 %v212, %v1297
  %1299 = vmatmul.f32.gmra.mxu0 %v1278
  %v1300 = vpop.f32.mrf.mxu0
  %v1301 = vadd.f32 %v213, %v1300
  %1302 = vdwg.mxu0
  %v1303 = vxor.u32 %v1298, 2147483648
  %v1304 = vxor.u32 %v1301, 2147483648
  %v1305 = vmul.f32 %v1303, 1.442695
  %v1306 = vpow.pop %v1305
  %v1307 = vmul.f32 %v1304, 1.442695
  %v1308 = vpow.pop %v1307
  %v1309 = vadd.f32 %v1306, 1.0
  %v1310 = vadd.f32 %v1308, 1.0
  %v1311 = vrcp.pop %v1309
  %v1312 = vmul.f32 %v1309, %v1311
  %v1313 = vsub.f32 1.0, %v1312
  %v1314 = vmul.f32 %v1311, %v1313
  %v1315 = vadd.f32 %v1311, %v1314
  %vm1316 = vweird.f32 %v1309
  %vm1317 = vweird.f32 %v1311
  %vm1318 = vmor %vm1316, %vm1317
  %v1319 = vsel %vm1318, %v1311, %v1315
  %v1320 = vand.u32 2147483647, %v1309
  %vm1321 = vcmp.eq.f32.partialorder %v1320, 8.507059e+37
  %v1322 = vand.u32 %v1309, 2147483648
  %v1323 = vor.u32 1.1754944e-38, %v1322
  %v1324 = vsel %vm1321, %v1323, %v1319
  %v1325 = vmul.f32 1.0, %v1324
  %v1326 = vrcp.pop %v1310
  %v1327 = vmul.f32 %v1310, %v1326
  %v1328 = vsub.f32 1.0, %v1327
  %v1329 = vmul.f32 %v1326, %v1328
  %v1330 = vadd.f32 %v1326, %v1329
  %vm1331 = vweird.f32 %v1310
  %vm1332 = vweird.f32 %v1326
  %vm1333 = vmor %vm1331, %vm1332
  %v1334 = vsel %vm1333, %v1326, %v1330
  %v1335 = vand.u32 2147483647, %v1310
  %vm1336 = vcmp.eq.f32.partialorder %v1335, 8.507059e+37
  %v1337 = vand.u32 %v1310, 2147483648
  %v1338 = vor.u32 1.1754944e-38, %v1337
  %v1339 = vsel %vm1336, %v1338, %v1334
  %v1340 = vmul.f32 1.0, %v1339
  %v1342 = vsel %vm937, %v214, 0
  %v1345 = vsel %vm937, %v215, 0
  %1347 = vmatpush.msra.mxu0 0.0
  %1348 = vmatpush.msra.mxu0 0.0
  %1349 = vmatpush.msra.mxu0 0.0
  %1350 = vmatpush.msra.mxu0 0.0
  %1351 = vmatpush.msra.mxu0 0.0
  %1352 = vmatpush.msra.mxu0 0.0
  %1353 = vmatpush.msra.mxu0 0.0
  %1354 = vmatpush.msra.mxu0 0.0
  %1355 = vmatpush.msra.mxu0 0.0
  %1356 = vmatpush.msra.mxu0 0.0
  %1357 = vmatpush.msra.mxu0 0.0
  %1358 = vmatpush.msra.mxu0 0.0
  %1359 = vmatpush.msra.mxu0 0.0
  %1360 = vmatpush.msra.mxu0 0.0
  %1361 = vmatpush.msra.mxu0 %v1340
  %1362 = vmatpush.msra.mxu0 %v1325
  %1363 = vmatmul.f32.gmra.mxu0 %v1342
  %v1364 = vpop.f32.mrf.mxu0
  %v1365 = vadd.f32 0.0, %v1364
  %1366 = vmatmul.f32.gmra.mxu0 %v1345
  %v1367 = vpop.f32.mrf.mxu0
  %v1368 = vadd.f32 0.0, %v1367
  %1369 = vdwg.mxu0
  %v1370 = vsel %vm937, %v1365, -inf
  %v1371 = vsel %vm937, %v1368, -inf
  %v1372 = vmax.f32 %v1370, %v1371
  %v1373 = vrot.slane %v1372, 4
  %v1374 = vmax.f32 %v1372, %v1373
  %v1375 = vrot.slane %v1374, 2
  %v1376 = vmax.f32 %v1374, %v1375
  %v1377 = vrot.slane %v1376, 1
  %v1378 = vmax.f32 %v1376, %v1377
  %v1379 = vsub.f32 %v1365, %v1378
  %v1380 = vsub.f32 %v1368, %v1378
  %v1381 = vmul.f32 %v1379, 1.442695
  %v1382 = vpow.pop %v1381
  %v1383 = vmul.f32 %v1380, 1.442695
  %v1384 = vpow.pop %v1383
  %v1385 = vsel %vm937, %v1382, 0.0
  %v1386 = vsel %vm937, %v1384, 0.0
  %v1387 = vadd.f32 %v1385, %v1386
  %v1388 = vrot.slane %v1387, 4
  %v1389 = vadd.f32 %v1387, %v1388
  %v1390 = vrot.slane %v1389, 2
  %v1391 = vadd.f32 %v1389, %v1390
  %v1392 = vrot.slane %v1391, 1
  %v1393 = vadd.f32 %v1391, %v1392
  %v1394 = vrcp.pop %v1393
  %v1395 = vmul.f32 %v1382, %v1394
  %v1396 = vmul.f32 %v1384, %v1394
  %v1397 = vmul.f32 %v1395, %v169
  %v1398 = vmul.f32 %v1396, %v170
  %v1399 = vsel %vm937, %v1397, 0.0
  %v1400 = vsel %vm937, %v1398, 0.0
  %v1401 = vadd.f32 %v1399, %v1400
  %v1402 = vrot.slane %v1401, 4
  %v1403 = vadd.f32 %v1401, %v1402
  %v1404 = vrot.slane %v1403, 2
  %v1405 = vadd.f32 %v1403, %v1404
  %v1406 = vrot.slane %v1405, 1
  %v1407 = vadd.f32 %v1405, %v1406
  %v1408 = vmul.f32 %v169, %v1407
  %v1409 = vmul.f32 %v170, %v1407
  %1410 = vxpose.xlu0.b32.start [1/16] %v1395, 128
  %1411 = vxpose.xlu0.b32.cont [2/16] %v1396, 128
  %1412 = vxpose.xlu0.b32.cont [3/16] 0.0, 128
  %1413 = vxpose.xlu0.b32.cont [4/16] 0.0, 128
  %1414 = vxpose.xlu0.b32.cont [5/16] 0.0, 128
  %1415 = vxpose.xlu0.b32.cont [6/16] 0.0, 128
  %1416 = vxpose.xlu0.b32.cont [7/16] 0.0, 128
  %1417 = vxpose.xlu0.b32.cont [8/16] 0.0, 128
  %1418 = vxpose.xlu0.b32.cont [9/16] 0.0, 128
  %1419 = vxpose.xlu0.b32.cont [10/16] 0.0, 128
  %1420 = vxpose.xlu0.b32.cont [11/16] 0.0, 128
  %1421 = vxpose.xlu0.b32.cont [12/16] 0.0, 128
  %1422 = vxpose.xlu0.b32.cont [13/16] 0.0, 128
  %1423 = vxpose.xlu0.b32.cont [14/16] 0.0, 128
  %1424 = vxpose.xlu0.b32.cont [15/16] 0.0, 128
  %1425 = vxpose.xlu0.b32.end [16/16] 0.0, 128
  %v1426 = vpop.trf.xlu0
  %v1427 = vpop.trf.xlu0
  %v1428 = vpop.trf.xlu0
  %v1429 = vpop.trf.xlu0
  %v1430 = vpop.trf.xlu0
  %v1431 = vpop.trf.xlu0
  %v1432 = vpop.trf.xlu0
  %v1433 = vpop.trf.xlu0
  %v1434 = vpop.trf.xlu0
  %v1435 = vpop.trf.xlu0
  %v1436 = vpop.trf.xlu0
  %v1437 = vpop.trf.xlu0
  %v1438 = vpop.trf.xlu0
  %v1439 = vpop.trf.xlu0
  %v1440 = vpop.trf.xlu0
  %v1441 = vpop.trf.xlu0
  %v1442 = vmul.f32 %v158, %v1426
  %v1443 = vmul.f32 %v159, %v1427
  %v1444 = vmul.f32 %v1442, %v1407
  %v1445 = vmul.f32 %v1443, %v1407
  %v1447 = vsel %vm937, %v158, 0
  %v1450 = vsel %vm937, %v159, 0
  %1452 = vmatpush.msra.mxu0 0.0
  %1453 = vmatpush.msra.mxu0 0.0
  %1454 = vmatpush.msra.mxu0 0.0
  %1455 = vmatpush.msra.mxu0 0.0
  %1456 = vmatpush.msra.mxu0 0.0
  %1457 = vmatpush.msra.mxu0 0.0
  %1458 = vmatpush.msra.mxu0 0.0
  %1459 = vmatpush.msra.mxu0 0.0
  %1460 = vmatpush.msra.mxu0 0.0
  %1461 = vmatpush.msra.mxu0 0.0
  %1462 = vmatpush.msra.mxu0 0.0
  %1463 = vmatpush.msra.mxu0 0.0
  %1464 = vmatpush.msra.mxu0 0.0
  %1465 = vmatpush.msra.mxu0 0.0
  %1466 = vmatpush.msra.mxu0 %v1445
  %1467 = vmatpush.msra.mxu0 %v1444
  %1468 = vmatmul.f32.gmra.mxu0 %v1447
  %v1469 = vpop.f32.mrf.mxu0
  %v1470 = vadd.f32 0.0, %v1469
  %1471 = vmatmul.f32.gmra.mxu0 %v1450
  %v1472 = vpop.f32.mrf.mxu0
  %v1473 = vadd.f32 0.0, %v1472
  %1474 = vdwg.mxu0
  %v1475 = vmul.f32 %v1470, 2.0
  %v1476 = vmul.f32 %v1473, 2.0
  %v1477 = vsub.f32 %v1475, %v1408
  %v1478 = vsub.f32 %v1476, %v1409
  %1481 = vrot.lane.b32.xlu0 %v1444, 16
  %v1482 = vpop.permute.xlu0 %1481
  %1483 = vrot.lane.b32.xlu0 %v1445, 16
  %v1484 = vpop.permute.xlu0 %1483
  %1489 = vrot.lane.b32.xlu0 %v1477, 32
  %v1490 = vpop.permute.xlu0 %1489
  %1491 = vrot.lane.b32.xlu0 %v1478, 32
  %v1492 = vpop.permute.xlu0 %1491
  %v1495 = vsel %vm937, %v1408, %v1482
  %v1496 = vsel %vm937, %v1409, %v1484
  %vm1497 = vcmask 261120
  %v1498 = vsel %vm1497, %v1495, %v1490
  %v1499 = vsel %vm1497, %v1496, %v1492
  %v1501 = vperm.slane %v219, 0
  %vm1503 = vcmask 392192
  %v1505 = vsel %vm1503, %v1498, 0
  %v1508 = vsel %vm1503, %v1499, 0
  %1510 = vmatpush.msra.mxu0 0.0
  %1511 = vmatpush.msra.mxu0 0.0
  %1512 = vmatpush.msra.mxu0 0.0
  %1513 = vmatpush.msra.mxu0 0.0
  %1514 = vmatpush.msra.mxu0 0.0
  %1515 = vmatpush.msra.mxu0 0.0
  %1516 = vmatpush.msra.mxu0 0.0
  %1517 = vmatpush.msra.mxu0 0.0
  %1518 = vmatpush.msra.mxu0 0.0
  %1519 = vmatpush.msra.mxu0 0.0
  %1520 = vmatpush.msra.mxu0 %v584
  %1521 = vmatpush.msra.mxu0 %v581
  %1522 = vmatpush.msra.mxu0 %v468
  %1523 = vmatpush.msra.mxu0 %v465
  %1524 = vmatpush.msra.mxu0 %v352
  %1525 = vmatpush.msra.mxu0 %v349
  %1526 = vmatmul.f32.gmra.mxu0 %v1505
  %v1527 = vpop.f32.mrf.mxu0
  %v1528 = vadd.f32 %v1501, %v1527
  %1529 = vmatmul.f32.gmra.mxu0 %v1508
  %v1530 = vpop.f32.mrf.mxu0
  %v1531 = vadd.f32 %v1501, %v1530
  %1532 = vdwg.mxu0
  %v1533 = vmax.f32 %v1528, 0.0
  %v1534 = vmax.f32 %v1531, 0.0
  %1535 = vmatpush.msra.mxu0 0.0
  %1536 = vmatpush.msra.mxu0 0.0
  %1537 = vmatpush.msra.mxu0 0.0
  %1538 = vmatpush.msra.mxu0 0.0
  %1539 = vmatpush.msra.mxu0 0.0
  %1540 = vmatpush.msra.mxu0 0.0
  %1541 = vmatpush.msra.mxu0 0.0
  %1542 = vmatpush.msra.mxu0 0.0
  %1543 = vmatpush.msra.mxu0 0.0
  %1544 = vmatpush.msra.mxu0 0.0
  %1545 = vmatpush.msra.mxu0 %v590
  %1546 = vmatpush.msra.mxu0 %v587
  %1547 = vmatpush.msra.mxu0 %v474
  %1548 = vmatpush.msra.mxu0 %v471
  %1549 = vmatpush.msra.mxu0 %v358
  %1550 = vmatpush.msra.mxu0 %v355
  %1551 = vmatmul.f32.gmra.mxu0 %v1505
  %v1552 = vpop.f32.mrf.mxu0
  %v1553 = vadd.f32 %v1501, %v1552
  %1554 = vmatmul.f32.gmra.mxu0 %v1508
  %v1555 = vpop.f32.mrf.mxu0
  %v1556 = vadd.f32 %v1501, %v1555
  %1557 = vdwg.mxu0
  %v1558 = vmax.f32 %v1553, 0.0
  %v1559 = vmax.f32 %v1556, 0.0
  %1560 = vmatpush.msra.mxu0 0.0
  %1561 = vmatpush.msra.mxu0 0.0
  %1562 = vmatpush.msra.mxu0 0.0
  %1563 = vmatpush.msra.mxu0 0.0
  %1564 = vmatpush.msra.mxu0 0.0
  %1565 = vmatpush.msra.mxu0 0.0
  %1566 = vmatpush.msra.mxu0 0.0
  %1567 = vmatpush.msra.mxu0 0.0
  %1568 = vmatpush.msra.mxu0 0.0
  %1569 = vmatpush.msra.mxu0 0.0
  %1570 = vmatpush.msra.mxu0 %v596
  %1571 = vmatpush.msra.mxu0 %v593
  %1572 = vmatpush.msra.mxu0 %v480
  %1573 = vmatpush.msra.mxu0 %v477
  %1574 = vmatpush.msra.mxu0 %v364
  %1575 = vmatpush.msra.mxu0 %v361
  %1576 = vmatmul.f32.gmra.mxu0 %v1505
  %v1577 = vpop.f32.mrf.mxu0
  %v1578 = vadd.f32 %v1501, %v1577
  %1579 = vmatmul.f32.gmra.mxu0 %v1508
  %v1580 = vpop.f32.mrf.mxu0
  %v1581 = vadd.f32 %v1501, %v1580
  %1582 = vdwg.mxu0
  %v1583 = vmax.f32 %v1578, 0.0
  %v1584 = vmax.f32 %v1581, 0.0
  %1585 = vmatpush.msra.mxu0 0.0
  %1586 = vmatpush.msra.mxu0 0.0
  %1587 = vmatpush.msra.mxu0 0.0
  %1588 = vmatpush.msra.mxu0 0.0
  %1589 = vmatpush.msra.mxu0 0.0
  %1590 = vmatpush.msra.mxu0 0.0
  %1591 = vmatpush.msra.mxu0 0.0
  %1592 = vmatpush.msra.mxu0 0.0
  %1593 = vmatpush.msra.mxu0 0.0
  %1594 = vmatpush.msra.mxu0 0.0
  %1595 = vmatpush.msra.mxu0 %v602
  %1596 = vmatpush.msra.mxu0 %v599
  %1597 = vmatpush.msra.mxu0 %v486
  %1598 = vmatpush.msra.mxu0 %v483
  %1599 = vmatpush.msra.mxu0 %v370
  %1600 = vmatpush.msra.mxu0 %v367
  %1601 = vmatmul.f32.gmra.mxu0 %v1505
  %v1602 = vpop.f32.mrf.mxu0
  %v1603 = vadd.f32 %v1501, %v1602
  %1604 = vmatmul.f32.gmra.mxu0 %v1508
  %v1605 = vpop.f32.mrf.mxu0
  %v1606 = vadd.f32 %v1501, %v1605
  %1607 = vdwg.mxu0
  %v1608 = vmax.f32 %v1603, 0.0
  %v1609 = vmax.f32 %v1606, 0.0
  %1610 = vmatpush.msra.mxu0 0.0
  %1611 = vmatpush.msra.mxu0 0.0
  %1612 = vmatpush.msra.mxu0 0.0
  %1613 = vmatpush.msra.mxu0 0.0
  %1614 = vmatpush.msra.mxu0 0.0
  %1615 = vmatpush.msra.mxu0 0.0
  %1616 = vmatpush.msra.mxu0 0.0
  %1617 = vmatpush.msra.mxu0 0.0
  %1618 = vmatpush.msra.mxu0 0.0
  %1619 = vmatpush.msra.mxu0 0.0
  %1620 = vmatpush.msra.mxu0 %v608
  %1621 = vmatpush.msra.mxu0 %v605
  %1622 = vmatpush.msra.mxu0 %v492
  %1623 = vmatpush.msra.mxu0 %v489
  %1624 = vmatpush.msra.mxu0 %v376
  %1625 = vmatpush.msra.mxu0 %v373
  %1626 = vmatmul.f32.gmra.mxu0 %v1505
  %v1627 = vpop.f32.mrf.mxu0
  %v1628 = vadd.f32 %v1501, %v1627
  %1629 = vmatmul.f32.gmra.mxu0 %v1508
  %v1630 = vpop.f32.mrf.mxu0
  %v1631 = vadd.f32 %v1501, %v1630
  %1632 = vdwg.mxu0
  %v1633 = vmax.f32 %v1628, 0.0
  %v1634 = vmax.f32 %v1631, 0.0
  %1635 = vmatpush.msra.mxu0 0.0
  %1636 = vmatpush.msra.mxu0 0.0
  %1637 = vmatpush.msra.mxu0 0.0
  %1638 = vmatpush.msra.mxu0 0.0
  %1639 = vmatpush.msra.mxu0 0.0
  %1640 = vmatpush.msra.mxu0 0.0
  %1641 = vmatpush.msra.mxu0 0.0
  %1642 = vmatpush.msra.mxu0 0.0
  %1643 = vmatpush.msra.mxu0 0.0
  %1644 = vmatpush.msra.mxu0 0.0
  %1645 = vmatpush.msra.mxu0 %v614
  %1646 = vmatpush.msra.mxu0 %v611
  %1647 = vmatpush.msra.mxu0 %v498
  %1648 = vmatpush.msra.mxu0 %v495
  %1649 = vmatpush.msra.mxu0 %v382
  %1650 = vmatpush.msra.mxu0 %v379
  %1651 = vmatmul.f32.gmra.mxu0 %v1505
  %v1652 = vpop.f32.mrf.mxu0
  %v1653 = vadd.f32 %v1501, %v1652
  %1654 = vmatmul.f32.gmra.mxu0 %v1508
  %v1655 = vpop.f32.mrf.mxu0
  %v1656 = vadd.f32 %v1501, %v1655
  %1657 = vdwg.mxu0
  %v1658 = vmax.f32 %v1653, 0.0
  %v1659 = vmax.f32 %v1656, 0.0
  %1660 = vmatpush.msra.mxu0 0.0
  %1661 = vmatpush.msra.mxu0 0.0
  %1662 = vmatpush.msra.mxu0 0.0
  %1663 = vmatpush.msra.mxu0 0.0
  %1664 = vmatpush.msra.mxu0 0.0
  %1665 = vmatpush.msra.mxu0 0.0
  %1666 = vmatpush.msra.mxu0 0.0
  %1667 = vmatpush.msra.mxu0 0.0
  %1668 = vmatpush.msra.mxu0 0.0
  %1669 = vmatpush.msra.mxu0 0.0
  %1670 = vmatpush.msra.mxu0 %v620
  %1671 = vmatpush.msra.mxu0 %v617
  %1672 = vmatpush.msra.mxu0 %v504
  %1673 = vmatpush.msra.mxu0 %v501
  %1674 = vmatpush.msra.mxu0 %v388
  %1675 = vmatpush.msra.mxu0 %v385
  %1676 = vmatmul.f32.gmra.mxu0 %v1505
  %v1677 = vpop.f32.mrf.mxu0
  %v1678 = vadd.f32 %v1501, %v1677
  %1679 = vmatmul.f32.gmra.mxu0 %v1508
  %v1680 = vpop.f32.mrf.mxu0
  %v1681 = vadd.f32 %v1501, %v1680
  %1682 = vdwg.mxu0
  %v1683 = vmax.f32 %v1678, 0.0
  %v1684 = vmax.f32 %v1681, 0.0
  %1685 = vmatpush.msra.mxu0 0.0
  %1686 = vmatpush.msra.mxu0 0.0
  %1687 = vmatpush.msra.mxu0 0.0
  %1688 = vmatpush.msra.mxu0 0.0
  %1689 = vmatpush.msra.mxu0 0.0
  %1690 = vmatpush.msra.mxu0 0.0
  %1691 = vmatpush.msra.mxu0 0.0
  %1692 = vmatpush.msra.mxu0 0.0
  %1693 = vmatpush.msra.mxu0 0.0
  %1694 = vmatpush.msra.mxu0 0.0
  %1695 = vmatpush.msra.mxu0 %v626
  %1696 = vmatpush.msra.mxu0 %v623
  %1697 = vmatpush.msra.mxu0 %v510
  %1698 = vmatpush.msra.mxu0 %v507
  %1699 = vmatpush.msra.mxu0 %v394
  %1700 = vmatpush.msra.mxu0 %v391
  %1701 = vmatmul.f32.gmra.mxu0 %v1505
  %v1702 = vpop.f32.mrf.mxu0
  %v1703 = vadd.f32 %v1501, %v1702
  %1704 = vmatmul.f32.gmra.mxu0 %v1508
  %v1705 = vpop.f32.mrf.mxu0
  %v1706 = vadd.f32 %v1501, %v1705
  %1707 = vdwg.mxu0
  %v1708 = vmax.f32 %v1703, 0.0
  %v1709 = vmax.f32 %v1706, 0.0
  %1726 = vrot.lane.b32.xlu0 %v1533, 16
  %v1727 = vpop.permute.xlu0 %1726
  %1728 = vrot.lane.b32.xlu0 %v1534, 16
  %v1729 = vpop.permute.xlu0 %1728
  %1730 = vrot.lane.b32.xlu0 %v1558, 16
  %v1731 = vpop.permute.xlu0 %1730
  %1732 = vrot.lane.b32.xlu0 %v1559, 16
  %v1733 = vpop.permute.xlu0 %1732
  %1734 = vrot.lane.b32.xlu0 %v1583, 16
  %v1735 = vpop.permute.xlu0 %1734
  %1736 = vrot.lane.b32.xlu0 %v1584, 16
  %v1737 = vpop.permute.xlu0 %1736
  %1738 = vrot.lane.b32.xlu0 %v1608, 16
  %v1739 = vpop.permute.xlu0 %1738
  %1740 = vrot.lane.b32.xlu0 %v1609, 16
  %v1741 = vpop.permute.xlu0 %1740
  %1742 = vrot.lane.b32.xlu0 %v1633, 16
  %v1743 = vpop.permute.xlu0 %1742
  %1744 = vrot.lane.b32.xlu0 %v1634, 16
  %v1745 = vpop.permute.xlu0 %1744
  %1746 = vrot.lane.b32.xlu0 %v1658, 16
  %v1747 = vpop.permute.xlu0 %1746
  %1748 = vrot.lane.b32.xlu0 %v1659, 16
  %v1749 = vpop.permute.xlu0 %1748
  %1750 = vrot.lane.b32.xlu0 %v1683, 16
  %v1751 = vpop.permute.xlu0 %1750
  %1752 = vrot.lane.b32.xlu0 %v1684, 16
  %v1753 = vpop.permute.xlu0 %1752
  %1754 = vrot.lane.b32.xlu0 %v1708, 16
  %v1755 = vpop.permute.xlu0 %1754
  %1756 = vrot.lane.b32.xlu0 %v1709, 16
  %v1757 = vpop.permute.xlu0 %1756
  %1775 = vrot.lane.b32.xlu0 %v1558, 32
  %v1776 = vpop.permute.xlu0 %1775
  %1777 = vrot.lane.b32.xlu0 %v1559, 32
  %v1778 = vpop.permute.xlu0 %1777
  %1779 = vrot.lane.b32.xlu0 %v1583, 32
  %v1780 = vpop.permute.xlu0 %1779
  %1781 = vrot.lane.b32.xlu0 %v1584, 32
  %v1782 = vpop.permute.xlu0 %1781
  %1783 = vrot.lane.b32.xlu0 %v1608, 32
  %v1784 = vpop.permute.xlu0 %1783
  %1785 = vrot.lane.b32.xlu0 %v1609, 32
  %v1786 = vpop.permute.xlu0 %1785
  %1787 = vrot.lane.b32.xlu0 %v1633, 32
  %v1788 = vpop.permute.xlu0 %1787
  %1789 = vrot.lane.b32.xlu0 %v1634, 32
  %v1790 = vpop.permute.xlu0 %1789
  %1791 = vrot.lane.b32.xlu0 %v1658, 32
  %v1792 = vpop.permute.xlu0 %1791
  %1793 = vrot.lane.b32.xlu0 %v1659, 32
  %v1794 = vpop.permute.xlu0 %1793
  %1795 = vrot.lane.b32.xlu0 %v1683, 32
  %v1796 = vpop.permute.xlu0 %1795
  %1797 = vrot.lane.b32.xlu0 %v1684, 32
  %v1798 = vpop.permute.xlu0 %1797
  %1799 = vrot.lane.b32.xlu0 %v1708, 32
  %v1800 = vpop.permute.xlu0 %1799
  %1801 = vrot.lane.b32.xlu0 %v1709, 32
  %v1802 = vpop.permute.xlu0 %1801
  %1803 = vrot.lane.b32.xlu0 0.0, 32
  %v1804 = vpop.permute.xlu0 %1803
  %1820 = vrot.lane.b32.xlu0 %v171, 48
  %v1821 = vpop.permute.xlu0 %1820
  %1822 = vrot.lane.b32.xlu0 %v172, 48
  %v1823 = vpop.permute.xlu0 %1822
  %1824 = vrot.lane.b32.xlu0 %v173, 48
  %v1825 = vpop.permute.xlu0 %1824
  %1826 = vrot.lane.b32.xlu0 %v174, 48
  %v1827 = vpop.permute.xlu0 %1826
  %1828 = vrot.lane.b32.xlu0 %v175, 48
  %v1829 = vpop.permute.xlu0 %1828
  %1830 = vrot.lane.b32.xlu0 %v176, 48
  %v1831 = vpop.permute.xlu0 %1830
  %1832 = vrot.lane.b32.xlu0 %v177, 48
  %v1833 = vpop.permute.xlu0 %1832
  %1834 = vrot.lane.b32.xlu0 %v178, 48
  %v1835 = vpop.permute.xlu0 %1834
  %1836 = vrot.lane.b32.xlu0 %v179, 48
  %v1837 = vpop.permute.xlu0 %1836
  %1838 = vrot.lane.b32.xlu0 %v180, 48
  %v1839 = vpop.permute.xlu0 %1838
  %1840 = vrot.lane.b32.xlu0 %v181, 48
  %v1841 = vpop.permute.xlu0 %1840
  %1842 = vrot.lane.b32.xlu0 %v182, 48
  %v1843 = vpop.permute.xlu0 %1842
  %1844 = vrot.lane.b32.xlu0 %v183, 48
  %v1845 = vpop.permute.xlu0 %1844
  %1846 = vrot.lane.b32.xlu0 %v184, 48
  %v1847 = vpop.permute.xlu0 %1846
  %1848 = vrot.lane.b32.xlu0 %v185, 48
  %v1849 = vpop.permute.xlu0 %1848
  %1850 = vrot.lane.b32.xlu0 %v186, 48
  %v1851 = vpop.permute.xlu0 %1850
  %v1868 = vsel %vm937, 0.0, %v1727
  %v1869 = vsel %vm937, 0.0, %v1729
  %v1870 = vsel %vm937, %v1533, %v1731
  %v1871 = vsel %vm937, %v1534, %v1733
  %v1872 = vsel %vm937, %v1558, %v1735
  %v1873 = vsel %vm937, %v1559, %v1737
  %v1874 = vsel %vm937, %v1583, %v1739
  %v1875 = vsel %vm937, %v1584, %v1741
  %v1876 = vsel %vm937, %v1608, %v1743
  %v1877 = vsel %vm937, %v1609, %v1745
  %v1878 = vsel %vm937, %v1633, %v1747
  %v1879 = vsel %vm937, %v1634, %v1749
  %v1880 = vsel %vm937, %v1658, %v1751
  %v1881 = vsel %vm937, %v1659, %v1753
  %v1882 = vsel %vm937, %v1683, %v1755
  %v1883 = vsel %vm937, %v1684, %v1757
  %v1884 = vsel %vm1497, %v1868, %v1776
  %v1885 = vsel %vm1497, %v1869, %v1778
  %v1886 = vsel %vm1497, %v1870, %v1780
  %v1887 = vsel %vm1497, %v1871, %v1782
  %v1888 = vsel %vm1497, %v1872, %v1784
  %v1889 = vsel %vm1497, %v1873, %v1786
  %v1890 = vsel %vm1497, %v1874, %v1788
  %v1891 = vsel %vm1497, %v1875, %v1790
  %v1892 = vsel %vm1497, %v1876, %v1792
  %v1893 = vsel %vm1497, %v1877, %v1794
  %v1894 = vsel %vm1497, %v1878, %v1796
  %v1895 = vsel %vm1497, %v1879, %v1798
  %v1896 = vsel %vm1497, %v1880, %v1800
  %v1897 = vsel %vm1497, %v1881, %v1802
  %v1898 = vsel %vm1497, %v1882, %v1804
  %v1899 = vsel %vm1497, %v1883, %v1804
  %v1900 = vsel %vm1503, %v1884, %v1821
  %v1901 = vsel %vm1503, %v1885, %v1823
  %v1902 = vsel %vm1503, %v1886, %v1825
  %v1903 = vsel %vm1503, %v1887, %v1827
  %v1904 = vsel %vm1503, %v1888, %v1829
  %v1905 = vsel %vm1503, %v1889, %v1831
  %v1906 = vsel %vm1503, %v1890, %v1833
  %v1907 = vsel %vm1503, %v1891, %v1835
  %v1908 = vsel %vm1503, %v1892, %v1837
  %v1909 = vsel %vm1503, %v1893, %v1839
  %v1910 = vsel %vm1503, %v1894, %v1841
  %v1911 = vsel %vm1503, %v1895, %v1843
  %v1912 = vsel %vm1503, %v1896, %v1845
  %v1913 = vsel %vm1503, %v1897, %v1847
  %v1914 = vsel %vm1503, %v1898, %v1849
  %v1915 = vsel %vm1503, %v1899, %v1851
  %v1917 = vperm.slane %v227, 0
  %vm1919 = vcmask 424960
  %v1921 = vsel %vm1919, %v1900, 0
  %v1924 = vsel %vm1919, %v1901, 0
  %v1927 = vsel %vm1919, %v1902, 0
  %v1930 = vsel %vm1919, %v1903, 0
  %v1933 = vsel %vm1919, %v1904, 0
  %v1936 = vsel %vm1919, %v1905, 0
  %v1939 = vsel %vm1919, %v1906, 0
  %v1942 = vsel %vm1919, %v1907, 0
  %v1945 = vsel %vm1919, %v1908, 0
  %v1948 = vsel %vm1919, %v1909, 0
  %v1951 = vsel %vm1919, %v1910, 0
  %v1954 = vsel %vm1919, %v1911, 0
  %v1957 = vsel %vm1919, %v1912, 0
  %v1960 = vsel %vm1919, %v1913, 0
  %v1963 = vsel %vm1919, %v1914, 0
  %v1966 = vsel %vm1919, %v1915, 0
  %v1969 = vsel %vm327, %v226, 0
  %1971 = vmatpush.msra.mxu0 0.0
  %1972 = vmatpush.msra.mxu0 0.0
  %1973 = vmatpush.msra.mxu0 0.0
  %1974 = vmatpush.msra.mxu0 0.0
  %1975 = vmatpush.msra.mxu0 0.0
  %1976 = vmatpush.msra.mxu0 0.0
  %1977 = vmatpush.msra.mxu0 0.0
  %1978 = vmatpush.msra.mxu0 0.0
  %1979 = vmatpush.msra.mxu0 0.0
  %1980 = vmatpush.msra.mxu0 %v1969
  %1981 = vmatpush.msra.mxu0 %v225
  %1982 = vmatpush.msra.mxu0 %v224
  %1983 = vmatpush.msra.mxu0 %v223
  %1984 = vmatpush.msra.mxu0 %v222
  %1985 = vmatpush.msra.mxu0 %v221
  %1986 = vmatpush.msra.mxu0 %v220
  %1987 = vmatmul.f32.gmra.mxu0 %v1921
  %v1988 = vpop.f32.mrf.mxu0
  %v1989 = vadd.f32 %v1917, %v1988
  %1990 = vmatmul.f32.gmra.mxu0 %v1924
  %v1991 = vpop.f32.mrf.mxu0
  %v1992 = vadd.f32 %v1917, %v1991
  %1993 = vmatmul.f32.gmra.mxu0 %v1927
  %v1994 = vpop.f32.mrf.mxu0
  %v1995 = vadd.f32 %v1917, %v1994
  %1996 = vmatmul.f32.gmra.mxu0 %v1930
  %v1997 = vpop.f32.mrf.mxu0
  %v1998 = vadd.f32 %v1917, %v1997
  %1999 = vmatmul.f32.gmra.mxu0 %v1933
  %v2000 = vpop.f32.mrf.mxu0
  %v2001 = vadd.f32 %v1917, %v2000
  %2002 = vmatmul.f32.gmra.mxu0 %v1936
  %v2003 = vpop.f32.mrf.mxu0
  %v2004 = vadd.f32 %v1917, %v2003
  %2005 = vmatmul.f32.gmra.mxu0 %v1939
  %v2006 = vpop.f32.mrf.mxu0
  %v2007 = vadd.f32 %v1917, %v2006
  %2008 = vmatmul.f32.gmra.mxu0 %v1942
  %v2009 = vpop.f32.mrf.mxu0
  %v2010 = vadd.f32 %v1917, %v2009
  %2011 = vmatmul.f32.gmra.mxu0 %v1945
  %v2012 = vpop.f32.mrf.mxu0
  %v2013 = vadd.f32 %v1917, %v2012
  %2014 = vmatmul.f32.gmra.mxu0 %v1948
  %v2015 = vpop.f32.mrf.mxu0
  %v2016 = vadd.f32 %v1917, %v2015
  %2017 = vmatmul.f32.gmra.mxu0 %v1951
  %v2018 = vpop.f32.mrf.mxu0
  %v2019 = vadd.f32 %v1917, %v2018
  %2020 = vmatmul.f32.gmra.mxu0 %v1954
  %v2021 = vpop.f32.mrf.mxu0
  %v2022 = vadd.f32 %v1917, %v2021
  %2023 = vmatmul.f32.gmra.mxu0 %v1957
  %v2024 = vpop.f32.mrf.mxu0
  %v2025 = vadd.f32 %v1917, %v2024
  %2026 = vmatmul.f32.gmra.mxu0 %v1960
  %v2027 = vpop.f32.mrf.mxu0
  %v2028 = vadd.f32 %v1917, %v2027
  %2029 = vmatmul.f32.gmra.mxu0 %v1963
  %v2030 = vpop.f32.mrf.mxu0
  %v2031 = vadd.f32 %v1917, %v2030
  %2032 = vmatmul.f32.gmra.mxu0 %v1966
  %v2033 = vpop.f32.mrf.mxu0
  %v2034 = vadd.f32 %v1917, %v2033
  %2035 = vdwg.mxu0
  %v2036 = vmax.f32 %v1989, 0.0
  %v2037 = vmax.f32 %v1992, 0.0
  %v2038 = vmax.f32 %v1995, 0.0
  %v2039 = vmax.f32 %v1998, 0.0
  %v2040 = vmax.f32 %v2001, 0.0
  %v2041 = vmax.f32 %v2004, 0.0
  %v2042 = vmax.f32 %v2007, 0.0
  %v2043 = vmax.f32 %v2010, 0.0
  %v2044 = vmax.f32 %v2013, 0.0
  %v2045 = vmax.f32 %v2016, 0.0
  %v2046 = vmax.f32 %v2019, 0.0
  %v2047 = vmax.f32 %v2022, 0.0
  %v2048 = vmax.f32 %v2025, 0.0
  %v2049 = vmax.f32 %v2028, 0.0
  %v2050 = vmax.f32 %v2031, 0.0
  %v2051 = vmax.f32 %v2034, 0.0
  %v2052 = vsel %vm937, %v2036, 0.0
  %2053 = vadd.xlane.f32.xlu0 %v2052
  %v2054 = vpop.xlane.xlu0 %2053
  %v2055 = vsel %vm937, %v2037, 0.0
  %2056 = vadd.xlane.f32.xlu0 %v2055
  %v2057 = vpop.xlane.xlu0 %2056
  %v2058 = vsel %vm937, %v2038, 0.0
  %2059 = vadd.xlane.f32.xlu0 %v2058
  %v2060 = vpop.xlane.xlu0 %2059
  %v2061 = vsel %vm937, %v2039, 0.0
  %2062 = vadd.xlane.f32.xlu0 %v2061
  %v2063 = vpop.xlane.xlu0 %2062
  %v2064 = vsel %vm937, %v2040, 0.0
  %2065 = vadd.xlane.f32.xlu0 %v2064
  %v2066 = vpop.xlane.xlu0 %2065
  %v2067 = vsel %vm937, %v2041, 0.0
  %2068 = vadd.xlane.f32.xlu0 %v2067
  %v2069 = vpop.xlane.xlu0 %2068
  %v2070 = vsel %vm937, %v2042, 0.0
  %2071 = vadd.xlane.f32.xlu0 %v2070
  %v2072 = vpop.xlane.xlu0 %2071
  %v2073 = vsel %vm937, %v2043, 0.0
  %2074 = vadd.xlane.f32.xlu0 %v2073
  %v2075 = vpop.xlane.xlu0 %2074
  %v2076 = vsel %vm937, %v2044, 0.0
  %2077 = vadd.xlane.f32.xlu0 %v2076
  %v2078 = vpop.xlane.xlu0 %2077
  %v2079 = vsel %vm937, %v2045, 0.0
  %2080 = vadd.xlane.f32.xlu0 %v2079
  %v2081 = vpop.xlane.xlu0 %2080
  %v2082 = vsel %vm937, %v2046, 0.0
  %2083 = vadd.xlane.f32.xlu0 %v2082
  %v2084 = vpop.xlane.xlu0 %2083
  %v2085 = vsel %vm937, %v2047, 0.0
  %2086 = vadd.xlane.f32.xlu0 %v2085
  %v2087 = vpop.xlane.xlu0 %2086
  %v2088 = vsel %vm937, %v2048, 0.0
  %2089 = vadd.xlane.f32.xlu0 %v2088
  %v2090 = vpop.xlane.xlu0 %2089
  %v2091 = vsel %vm937, %v2049, 0.0
  %2092 = vadd.xlane.f32.xlu0 %v2091
  %v2093 = vpop.xlane.xlu0 %2092
  %v2094 = vsel %vm937, %v2050, 0.0
  %2095 = vadd.xlane.f32.xlu0 %v2094
  %v2096 = vpop.xlane.xlu0 %2095
  %v2097 = vsel %vm937, %v2051, 0.0
  %2098 = vadd.xlane.f32.xlu0 %v2097
  %v2099 = vpop.xlane.xlu0 %2098
  %v2100 = vrcp.pop 16.0
  %v2101 = vmul.f32 16.0, %v2100
  %v2102 = vsub.f32 1.0, %v2101
  %v2103 = vmul.f32 %v2100, %v2102
  %v2104 = vadd.f32 %v2100, %v2103
  %vm2105 = vweird.f32 %v2100
  %v2106 = vsel %vm2105, %v2100, %v2104
  %v2107 = vmul.f32 %v2054, %v2106
  %v2108 = vmul.f32 %v2057, %v2106
  %v2109 = vmul.f32 %v2060, %v2106
  %v2110 = vmul.f32 %v2063, %v2106
  %v2111 = vmul.f32 %v2066, %v2106
  %v2112 = vmul.f32 %v2069, %v2106
  %v2113 = vmul.f32 %v2072, %v2106
  %v2114 = vmul.f32 %v2075, %v2106
  %v2115 = vmul.f32 %v2078, %v2106
  %v2116 = vmul.f32 %v2081, %v2106
  %v2117 = vmul.f32 %v2084, %v2106
  %v2118 = vmul.f32 %v2087, %v2106
  %v2119 = vmul.f32 %v2090, %v2106
  %v2120 = vmul.f32 %v2093, %v2106
  %v2121 = vmul.f32 %v2096, %v2106
  %v2122 = vmul.f32 %v2099, %v2106
  %v2123 = vsub.f32 %v2036, %v2107
  %v2124 = vsub.f32 %v2037, %v2108
  %v2125 = vsub.f32 %v2038, %v2109
  %v2126 = vsub.f32 %v2039, %v2110
  %v2127 = vsub.f32 %v2040, %v2111
  %v2128 = vsub.f32 %v2041, %v2112
  %v2129 = vsub.f32 %v2042, %v2113
  %v2130 = vsub.f32 %v2043, %v2114
  %v2131 = vsub.f32 %v2044, %v2115
  %v2132 = vsub.f32 %v2045, %v2116
  %v2133 = vsub.f32 %v2046, %v2117
  %v2134 = vsub.f32 %v2047, %v2118
  %v2135 = vsub.f32 %v2048, %v2119
  %v2136 = vsub.f32 %v2049, %v2120
  %v2137 = vsub.f32 %v2050, %v2121
  %v2138 = vsub.f32 %v2051, %v2122
  %v2139 = vmul.f32 %v2123, %v2123
  %v2140 = vmul.f32 %v2124, %v2124
  %v2141 = vmul.f32 %v2125, %v2125
  %v2142 = vmul.f32 %v2126, %v2126
  %v2143 = vmul.f32 %v2127, %v2127
  %v2144 = vmul.f32 %v2128, %v2128
  %v2145 = vmul.f32 %v2129, %v2129
  %v2146 = vmul.f32 %v2130, %v2130
  %v2147 = vmul.f32 %v2131, %v2131
  %v2148 = vmul.f32 %v2132, %v2132
  %v2149 = vmul.f32 %v2133, %v2133
  %v2150 = vmul.f32 %v2134, %v2134
  %v2151 = vmul.f32 %v2135, %v2135
  %v2152 = vmul.f32 %v2136, %v2136
  %v2153 = vmul.f32 %v2137, %v2137
  %v2154 = vmul.f32 %v2138, %v2138
  %v2155 = vsel %vm937, %v2139, 0.0
  %2156 = vadd.xlane.f32.xlu0 %v2155
  %v2157 = vpop.xlane.xlu0 %2156
  %v2158 = vsel %vm937, %v2140, 0.0
  %2159 = vadd.xlane.f32.xlu0 %v2158
  %v2160 = vpop.xlane.xlu0 %2159
  %v2161 = vsel %vm937, %v2141, 0.0
  %2162 = vadd.xlane.f32.xlu0 %v2161
  %v2163 = vpop.xlane.xlu0 %2162
  %v2164 = vsel %vm937, %v2142, 0.0
  %2165 = vadd.xlane.f32.xlu0 %v2164
  %v2166 = vpop.xlane.xlu0 %2165
  %v2167 = vsel %vm937, %v2143, 0.0
  %2168 = vadd.xlane.f32.xlu0 %v2167
  %v2169 = vpop.xlane.xlu0 %2168
  %v2170 = vsel %vm937, %v2144, 0.0
  %2171 = vadd.xlane.f32.xlu0 %v2170
  %v2172 = vpop.xlane.xlu0 %2171
  %v2173 = vsel %vm937, %v2145, 0.0
  %2174 = vadd.xlane.f32.xlu0 %v2173
  %v2175 = vpop.xlane.xlu0 %2174
  %v2176 = vsel %vm937, %v2146, 0.0
  %2177 = vadd.xlane.f32.xlu0 %v2176
  %v2178 = vpop.xlane.xlu0 %2177
  %v2179 = vsel %vm937, %v2147, 0.0
  %2180 = vadd.xlane.f32.xlu0 %v2179
  %v2181 = vpop.xlane.xlu0 %2180
  %v2182 = vsel %vm937, %v2148, 0.0
  %2183 = vadd.xlane.f32.xlu0 %v2182
  %v2184 = vpop.xlane.xlu0 %2183
  %v2185 = vsel %vm937, %v2149, 0.0
  %2186 = vadd.xlane.f32.xlu0 %v2185
  %v2187 = vpop.xlane.xlu0 %2186
  %v2188 = vsel %vm937, %v2150, 0.0
  %2189 = vadd.xlane.f32.xlu0 %v2188
  %v2190 = vpop.xlane.xlu0 %2189
  %v2191 = vsel %vm937, %v2151, 0.0
  %2192 = vadd.xlane.f32.xlu0 %v2191
  %v2193 = vpop.xlane.xlu0 %2192
  %v2194 = vsel %vm937, %v2152, 0.0
  %2195 = vadd.xlane.f32.xlu0 %v2194
  %v2196 = vpop.xlane.xlu0 %2195
  %v2197 = vsel %vm937, %v2153, 0.0
  %2198 = vadd.xlane.f32.xlu0 %v2197
  %v2199 = vpop.xlane.xlu0 %2198
  %v2200 = vsel %vm937, %v2154, 0.0
  %2201 = vadd.xlane.f32.xlu0 %v2200
  %v2202 = vpop.xlane.xlu0 %2201
  %v2203 = vmul.f32 %v2157, %v2106
  %v2204 = vmul.f32 %v2160, %v2106
  %v2205 = vmul.f32 %v2163, %v2106
  %v2206 = vmul.f32 %v2166, %v2106
  %v2207 = vmul.f32 %v2169, %v2106
  %v2208 = vmul.f32 %v2172, %v2106
  %v2209 = vmul.f32 %v2175, %v2106
  %v2210 = vmul.f32 %v2178, %v2106
  %v2211 = vmul.f32 %v2181, %v2106
  %v2212 = vmul.f32 %v2184, %v2106
  %v2213 = vmul.f32 %v2187, %v2106
  %v2214 = vmul.f32 %v2190, %v2106
  %v2215 = vmul.f32 %v2193, %v2106
  %v2216 = vmul.f32 %v2196, %v2106
  %v2217 = vmul.f32 %v2199, %v2106
  %v2218 = vmul.f32 %v2202, %v2106
  %v2219 = vadd.f32 %v2203, 1e-05
  %v2220 = vadd.f32 %v2204, 1e-05
  %v2221 = vadd.f32 %v2205, 1e-05
  %v2222 = vadd.f32 %v2206, 1e-05
  %v2223 = vadd.f32 %v2207, 1e-05
  %v2224 = vadd.f32 %v2208, 1e-05
  %v2225 = vadd.f32 %v2209, 1e-05
  %v2226 = vadd.f32 %v2210, 1e-05
  %v2227 = vadd.f32 %v2211, 1e-05
  %v2228 = vadd.f32 %v2212, 1e-05
  %v2229 = vadd.f32 %v2213, 1e-05
  %v2230 = vadd.f32 %v2214, 1e-05
  %v2231 = vadd.f32 %v2215, 1e-05
  %v2232 = vadd.f32 %v2216, 1e-05
  %v2233 = vadd.f32 %v2217, 1e-05
  %v2234 = vadd.f32 %v2218, 1e-05
  %v2235 = vrsqrt.pop %v2219
  %v2236 = vmul.f32 %v2235, %v2219
  %v2237 = vmul.f32 %v2236, %v2235
  %v2238 = vmul.f32 0.5, %v2237
  %v2239 = vsub.f32 1.5, %v2238
  %v2240 = vmul.f32 %v2235, %v2239
  %vm2241 = vweird.f32 %v2219
  %vm2242 = vweird.f32 %v2235
  %vm2243 = vmor %vm2241, %vm2242
  %v2244 = vsel %vm2243, %v2235, %v2240
  %v2245 = vrsqrt.pop %v2220
  %v2246 = vmul.f32 %v2245, %v2220
  %v2247 = vmul.f32 %v2246, %v2245
  %v2248 = vmul.f32 0.5, %v2247
  %v2249 = vsub.f32 1.5, %v2248
  %v2250 = vmul.f32 %v2245, %v2249
  %vm2251 = vweird.f32 %v2220
  %vm2252 = vweird.f32 %v2245
  %vm2253 = vmor %vm2251, %vm2252
  %v2254 = vsel %vm2253, %v2245, %v2250
  %v2255 = vrsqrt.pop %v2221
  %v2256 = vmul.f32 %v2255, %v2221
  %v2257 = vmul.f32 %v2256, %v2255
  %v2258 = vmul.f32 0.5, %v2257
  %v2259 = vsub.f32 1.5, %v2258
  %v2260 = vmul.f32 %v2255, %v2259
  %vm2261 = vweird.f32 %v2221
  %vm2262 = vweird.f32 %v2255
  %vm2263 = vmor %vm2261, %vm2262
  %v2264 = vsel %vm2263, %v2255, %v2260
  %v2265 = vrsqrt.pop %v2222
  %v2266 = vmul.f32 %v2265, %v2222
  %v2267 = vmul.f32 %v2266, %v2265
  %v2268 = vmul.f32 0.5, %v2267
  %v2269 = vsub.f32 1.5, %v2268
  %v2270 = vmul.f32 %v2265, %v2269
  %vm2271 = vweird.f32 %v2222
  %vm2272 = vweird.f32 %v2265
  %vm2273 = vmor %vm2271, %vm2272
  %v2274 = vsel %vm2273, %v2265, %v2270
  %v2275 = vrsqrt.pop %v2223
  %v2276 = vmul.f32 %v2275, %v2223
  %v2277 = vmul.f32 %v2276, %v2275
  %v2278 = vmul.f32 0.5, %v2277
  %v2279 = vsub.f32 1.5, %v2278
  %v2280 = vmul.f32 %v2275, %v2279
  %vm2281 = vweird.f32 %v2223
  %vm2282 = vweird.f32 %v2275
  %vm2283 = vmor %vm2281, %vm2282
  %v2284 = vsel %vm2283, %v2275, %v2280
  %v2285 = vrsqrt.pop %v2224
  %v2286 = vmul.f32 %v2285, %v2224
  %v2287 = vmul.f32 %v2286, %v2285
  %v2288 = vmul.f32 0.5, %v2287
  %v2289 = vsub.f32 1.5, %v2288
  %v2290 = vmul.f32 %v2285, %v2289
  %vm2291 = vweird.f32 %v2224
  %vm2292 = vweird.f32 %v2285
  %vm2293 = vmor %vm2291, %vm2292
  %v2294 = vsel %vm2293, %v2285, %v2290
  %v2295 = vrsqrt.pop %v2225
  %v2296 = vmul.f32 %v2295, %v2225
  %v2297 = vmul.f32 %v2296, %v2295
  %v2298 = vmul.f32 0.5, %v2297
  %v2299 = vsub.f32 1.5, %v2298
  %v2300 = vmul.f32 %v2295, %v2299
  %vm2301 = vweird.f32 %v2225
  %vm2302 = vweird.f32 %v2295
  %vm2303 = vmor %vm2301, %vm2302
  %v2304 = vsel %vm2303, %v2295, %v2300
  %v2305 = vrsqrt.pop %v2226
  %v2306 = vmul.f32 %v2305, %v2226
  %v2307 = vmul.f32 %v2306, %v2305
  %v2308 = vmul.f32 0.5, %v2307
  %v2309 = vsub.f32 1.5, %v2308
  %v2310 = vmul.f32 %v2305, %v2309
  %vm2311 = vweird.f32 %v2226
  %vm2312 = vweird.f32 %v2305
  %vm2313 = vmor %vm2311, %vm2312
  %v2314 = vsel %vm2313, %v2305, %v2310
  %v2315 = vrsqrt.pop %v2227
  %v2316 = vmul.f32 %v2315, %v2227
  %v2317 = vmul.f32 %v2316, %v2315
  %v2318 = vmul.f32 0.5, %v2317
  %v2319 = vsub.f32 1.5, %v2318
  %v2320 = vmul.f32 %v2315, %v2319
  %vm2321 = vweird.f32 %v2227
  %vm2322 = vweird.f32 %v2315
  %vm2323 = vmor %vm2321, %vm2322
  %v2324 = vsel %vm2323, %v2315, %v2320
  %v2325 = vrsqrt.pop %v2228
  %v2326 = vmul.f32 %v2325, %v2228
  %v2327 = vmul.f32 %v2326, %v2325
  %v2328 = vmul.f32 0.5, %v2327
  %v2329 = vsub.f32 1.5, %v2328
  %v2330 = vmul.f32 %v2325, %v2329
  %vm2331 = vweird.f32 %v2228
  %vm2332 = vweird.f32 %v2325
  %vm2333 = vmor %vm2331, %vm2332
  %v2334 = vsel %vm2333, %v2325, %v2330
  %v2335 = vrsqrt.pop %v2229
  %v2336 = vmul.f32 %v2335, %v2229
  %v2337 = vmul.f32 %v2336, %v2335
  %v2338 = vmul.f32 0.5, %v2337
  %v2339 = vsub.f32 1.5, %v2338
  %v2340 = vmul.f32 %v2335, %v2339
  %vm2341 = vweird.f32 %v2229
  %vm2342 = vweird.f32 %v2335
  %vm2343 = vmor %vm2341, %vm2342
  %v2344 = vsel %vm2343, %v2335, %v2340
  %v2345 = vrsqrt.pop %v2230
  %v2346 = vmul.f32 %v2345, %v2230
  %v2347 = vmul.f32 %v2346, %v2345
  %v2348 = vmul.f32 0.5, %v2347
  %v2349 = vsub.f32 1.5, %v2348
  %v2350 = vmul.f32 %v2345, %v2349
  %vm2351 = vweird.f32 %v2230
  %vm2352 = vweird.f32 %v2345
  %vm2353 = vmor %vm2351, %vm2352
  %v2354 = vsel %vm2353, %v2345, %v2350
  %v2355 = vrsqrt.pop %v2231
  %v2356 = vmul.f32 %v2355, %v2231
  %v2357 = vmul.f32 %v2356, %v2355
  %v2358 = vmul.f32 0.5, %v2357
  %v2359 = vsub.f32 1.5, %v2358
  %v2360 = vmul.f32 %v2355, %v2359
  %vm2361 = vweird.f32 %v2231
  %vm2362 = vweird.f32 %v2355
  %vm2363 = vmor %vm2361, %vm2362
  %v2364 = vsel %vm2363, %v2355, %v2360
  %v2365 = vrsqrt.pop %v2232
  %v2366 = vmul.f32 %v2365, %v2232
  %v2367 = vmul.f32 %v2366, %v2365
  %v2368 = vmul.f32 0.5, %v2367
  %v2369 = vsub.f32 1.5, %v2368
  %v2370 = vmul.f32 %v2365, %v2369
  %vm2371 = vweird.f32 %v2232
  %vm2372 = vweird.f32 %v2365
  %vm2373 = vmor %vm2371, %vm2372
  %v2374 = vsel %vm2373, %v2365, %v2370
  %v2375 = vrsqrt.pop %v2233
  %v2376 = vmul.f32 %v2375, %v2233
  %v2377 = vmul.f32 %v2376, %v2375
  %v2378 = vmul.f32 0.5, %v2377
  %v2379 = vsub.f32 1.5, %v2378
  %v2380 = vmul.f32 %v2375, %v2379
  %vm2381 = vweird.f32 %v2233
  %vm2382 = vweird.f32 %v2375
  %vm2383 = vmor %vm2381, %vm2382
  %v2384 = vsel %vm2383, %v2375, %v2380
  %v2385 = vrsqrt.pop %v2234
  %v2386 = vmul.f32 %v2385, %v2234
  %v2387 = vmul.f32 %v2386, %v2385
  %v2388 = vmul.f32 0.5, %v2387
  %v2389 = vsub.f32 1.5, %v2388
  %v2390 = vmul.f32 %v2385, %v2389
  %vm2391 = vweird.f32 %v2234
  %vm2392 = vweird.f32 %v2385
  %vm2393 = vmor %vm2391, %vm2392
  %v2394 = vsel %vm2393, %v2385, %v2390
  %v2395 = vmul.f32 %v2123, %v2244
  %v2396 = vmul.f32 %v2124, %v2254
  %v2397 = vmul.f32 %v2125, %v2264
  %v2398 = vmul.f32 %v2126, %v2274
  %v2399 = vmul.f32 %v2127, %v2284
  %v2400 = vmul.f32 %v2128, %v2294
  %v2401 = vmul.f32 %v2129, %v2304
  %v2402 = vmul.f32 %v2130, %v2314
  %v2403 = vmul.f32 %v2131, %v2324
  %v2404 = vmul.f32 %v2132, %v2334
  %v2405 = vmul.f32 %v2133, %v2344
  %v2406 = vmul.f32 %v2134, %v2354
  %v2407 = vmul.f32 %v2135, %v2364
  %v2408 = vmul.f32 %v2136, %v2374
  %v2409 = vmul.f32 %v2137, %v2384
  %v2410 = vmul.f32 %v2138, %v2394
  %v2412 = vperm.slane %v228, 0
  %v2414 = vmul.f32 %v2395, %v2412
  %v2415 = vmul.f32 %v2396, %v2412
  %v2416 = vmul.f32 %v2397, %v2412
  %v2417 = vmul.f32 %v2398, %v2412
  %v2418 = vmul.f32 %v2399, %v2412
  %v2419 = vmul.f32 %v2400, %v2412
  %v2420 = vmul.f32 %v2401, %v2412
  %v2421 = vmul.f32 %v2402, %v2412
  %v2422 = vmul.f32 %v2403, %v2412
  %v2423 = vmul.f32 %v2404, %v2412
  %v2424 = vmul.f32 %v2405, %v2412
  %v2425 = vmul.f32 %v2406, %v2412
  %v2426 = vmul.f32 %v2407, %v2412
  %v2427 = vmul.f32 %v2408, %v2412
  %v2428 = vmul.f32 %v2409, %v2412
  %v2429 = vmul.f32 %v2410, %v2412
  %v2431 = vperm.slane %v229, 0
  %v2433 = vadd.f32 %v2414, %v2431
  %v2434 = vadd.f32 %v2415, %v2431
  %v2435 = vadd.f32 %v2416, %v2431
  %v2436 = vadd.f32 %v2417, %v2431
  %v2437 = vadd.f32 %v2418, %v2431
  %v2438 = vadd.f32 %v2419, %v2431
  %v2439 = vadd.f32 %v2420, %v2431
  %v2440 = vadd.f32 %v2421, %v2431
  %v2441 = vadd.f32 %v2422, %v2431
  %v2442 = vadd.f32 %v2423, %v2431
  %v2443 = vadd.f32 %v2424, %v2431
  %v2444 = vadd.f32 %v2425, %v2431
  %v2445 = vadd.f32 %v2426, %v2431
  %v2446 = vadd.f32 %v2427, %v2431
  %v2447 = vadd.f32 %v2428, %v2431
  %v2448 = vadd.f32 %v2429, %v2431
  %v2449 = vmul.f32 %v187, %v679
  %v2450 = vmul.f32 %v188, %v684
  %v2451 = vmul.f32 %v189, %v679
  %v2452 = vmul.f32 %v190, %v684
  %v2453 = vmul.f32 %v191, %v679
  %v2454 = vmul.f32 %v192, %v684
  %v2455 = vmul.f32 %v193, %v679
  %v2456 = vmul.f32 %v194, %v684
  %v2457 = vmul.f32 %v195, %v679
  %v2458 = vmul.f32 %v196, %v684
  %v2459 = vmul.f32 %v197, %v679
  %v2460 = vmul.f32 %v198, %v684
  %v2461 = vmul.f32 %v199, %v679
  %v2462 = vmul.f32 %v200, %v684
  %v2463 = vmul.f32 %v201, %v679
  %v2464 = vmul.f32 %v202, %v684
  %v2465 = vsel %vm230, %v2449, 0.0
  %v2466 = vsel %vm230, %v2450, 0.0
  %v2467 = vadd.f32 %v2465, %v2466
  %v2468 = vrot.slane %v2467, 4
  %v2469 = vadd.f32 %v2467, %v2468
  %v2470 = vrot.slane %v2469, 2
  %v2471 = vadd.f32 %v2469, %v2470
  %v2472 = vrot.slane %v2471, 1
  %v2473 = vadd.f32 %v2471, %v2472
  %v2474 = vsel %vm230, %v2451, 0.0
  %v2475 = vsel %vm230, %v2452, 0.0
  %v2476 = vadd.f32 %v2474, %v2475
  %v2477 = vrot.slane %v2476, 4
  %v2478 = vadd.f32 %v2476, %v2477
  %v2479 = vrot.slane %v2478, 2
  %v2480 = vadd.f32 %v2478, %v2479
  %v2481 = vrot.slane %v2480, 1
  %v2482 = vadd.f32 %v2480, %v2481
  %v2483 = vsel %vm230, %v2453, 0.0
  %v2484 = vsel %vm230, %v2454, 0.0
  %v2485 = vadd.f32 %v2483, %v2484
  %v2486 = vrot.slane %v2485, 4
  %v2487 = vadd.f32 %v2485, %v2486
  %v2488 = vrot.slane %v2487, 2
  %v2489 = vadd.f32 %v2487, %v2488
  %v2490 = vrot.slane %v2489, 1
  %v2491 = vadd.f32 %v2489, %v2490
  %v2492 = vsel %vm230, %v2455, 0.0
  %v2493 = vsel %vm230, %v2456, 0.0
  %v2494 = vadd.f32 %v2492, %v2493
  %v2495 = vrot.slane %v2494, 4
  %v2496 = vadd.f32 %v2494, %v2495
  %v2497 = vrot.slane %v2496, 2
  %v2498 = vadd.f32 %v2496, %v2497
  %v2499 = vrot.slane %v2498, 1
  %v2500 = vadd.f32 %v2498, %v2499
  %v2501 = vsel %vm230, %v2457, 0.0
  %v2502 = vsel %vm230, %v2458, 0.0
  %v2503 = vadd.f32 %v2501, %v2502
  %v2504 = vrot.slane %v2503, 4
  %v2505 = vadd.f32 %v2503, %v2504
  %v2506 = vrot.slane %v2505, 2
  %v2507 = vadd.f32 %v2505, %v2506
  %v2508 = vrot.slane %v2507, 1
  %v2509 = vadd.f32 %v2507, %v2508
  %v2510 = vsel %vm230, %v2459, 0.0
  %v2511 = vsel %vm230, %v2460, 0.0
  %v2512 = vadd.f32 %v2510, %v2511
  %v2513 = vrot.slane %v2512, 4
  %v2514 = vadd.f32 %v2512, %v2513
  %v2515 = vrot.slane %v2514, 2
  %v2516 = vadd.f32 %v2514, %v2515
  %v2517 = vrot.slane %v2516, 1
  %v2518 = vadd.f32 %v2516, %v2517
  %v2519 = vsel %vm230, %v2461, 0.0
  %v2520 = vsel %vm230, %v2462, 0.0
  %v2521 = vadd.f32 %v2519, %v2520
  %v2522 = vrot.slane %v2521, 4
  %v2523 = vadd.f32 %v2521, %v2522
  %v2524 = vrot.slane %v2523, 2
  %v2525 = vadd.f32 %v2523, %v2524
  %v2526 = vrot.slane %v2525, 1
  %v2527 = vadd.f32 %v2525, %v2526
  %v2528 = vsel %vm230, %v2463, 0.0
  %v2529 = vsel %vm230, %v2464, 0.0
  %v2530 = vadd.f32 %v2528, %v2529
  %v2531 = vrot.slane %v2530, 4
  %v2532 = vadd.f32 %v2530, %v2531
  %v2533 = vrot.slane %v2532, 2
  %v2534 = vadd.f32 %v2532, %v2533
  %v2535 = vrot.slane %v2534, 1
  %v2536 = vadd.f32 %v2534, %v2535
  %v2545 = vsel %vm782, %v2482, %v2473
  %v2546 = vsel %vm784, %v2491, %v2545
  %v2547 = vsel %vm786, %v2500, %v2546
  %v2548 = vsel %vm788, %v2509, %v2547
  %v2549 = vsel %vm790, %v2518, %v2548
  %v2550 = vsel %vm792, %v2527, %v2549
  %v2551 = vsel %vm794, %v2536, %v2550
  %v2552 = vsel %vm230, %v2551, 0
  %2554 = vmatpush.msra.mxu0 0.0
  %2555 = vmatpush.msra.mxu0 0.0
  %2556 = vmatpush.msra.mxu0 0.0
  %2557 = vmatpush.msra.mxu0 0.0
  %2558 = vmatpush.msra.mxu0 0.0
  %2559 = vmatpush.msra.mxu0 0.0
  %2560 = vmatpush.msra.mxu0 0.0
  %2561 = vmatpush.msra.mxu0 0.0
  %2562 = vmatpush.msra.mxu0 0.0
  %2563 = vmatpush.msra.mxu0 0.0
  %2564 = vmatpush.msra.mxu0 0.0
  %2565 = vmatpush.msra.mxu0 0.0
  %2566 = vmatpush.msra.mxu0 0.0
  %2567 = vmatpush.msra.mxu0 0.0
  %2568 = vmatpush.msra.mxu0 0.0
  %2569 = vmatpush.msra.mxu0 %v799
  %2570 = vmatmul.f32.gmra.mxu0 %v2552
  %v2571 = vpop.f32.mrf.mxu0
  %v2572 = vadd.f32 0.0, %v2571
  %2573 = vdwg.mxu0
  %v2574 = vmul.f32 %v187, %v822
  %v2575 = vmul.f32 %v188, %v822
  %v2576 = vmul.f32 %v189, %v822
  %v2577 = vmul.f32 %v190, %v822
  %v2578 = vmul.f32 %v191, %v822
  %v2579 = vmul.f32 %v192, %v822
  %v2580 = vmul.f32 %v193, %v822
  %v2581 = vmul.f32 %v194, %v822
  %v2582 = vmul.f32 %v195, %v822
  %v2583 = vmul.f32 %v196, %v822
  %v2584 = vmul.f32 %v197, %v822
  %v2585 = vmul.f32 %v198, %v822
  %v2586 = vmul.f32 %v199, %v822
  %v2587 = vmul.f32 %v200, %v822
  %v2588 = vmul.f32 %v201, %v822
  %v2589 = vmul.f32 %v202, %v822
  %v2590 = vsel %vm230, %v2574, 0.0
  %2591 = vadd.xlane.f32.xlu0 %v2590
  %v2592 = vpop.xlane.xlu0 %2591
  %v2593 = vsel %vm230, %v2575, 0.0
  %2594 = vadd.xlane.f32.xlu0 %v2593
  %v2595 = vpop.xlane.xlu0 %2594
  %v2596 = vsel %vm230, %v2576, 0.0
  %2597 = vadd.xlane.f32.xlu0 %v2596
  %v2598 = vpop.xlane.xlu0 %2597
  %v2599 = vsel %vm230, %v2577, 0.0
  %2600 = vadd.xlane.f32.xlu0 %v2599
  %v2601 = vpop.xlane.xlu0 %2600
  %v2602 = vsel %vm230, %v2578, 0.0
  %2603 = vadd.xlane.f32.xlu0 %v2602
  %v2604 = vpop.xlane.xlu0 %2603
  %v2605 = vsel %vm230, %v2579, 0.0
  %2606 = vadd.xlane.f32.xlu0 %v2605
  %v2607 = vpop.xlane.xlu0 %2606
  %v2608 = vsel %vm230, %v2580, 0.0
  %2609 = vadd.xlane.f32.xlu0 %v2608
  %v2610 = vpop.xlane.xlu0 %2609
  %v2611 = vsel %vm230, %v2581, 0.0
  %2612 = vadd.xlane.f32.xlu0 %v2611
  %v2613 = vpop.xlane.xlu0 %2612
  %v2614 = vsel %vm230, %v2582, 0.0
  %2615 = vadd.xlane.f32.xlu0 %v2614
  %v2616 = vpop.xlane.xlu0 %2615
  %v2617 = vsel %vm230, %v2583, 0.0
  %2618 = vadd.xlane.f32.xlu0 %v2617
  %v2619 = vpop.xlane.xlu0 %2618
  %v2620 = vsel %vm230, %v2584, 0.0
  %2621 = vadd.xlane.f32.xlu0 %v2620
  %v2622 = vpop.xlane.xlu0 %2621
  %v2623 = vsel %vm230, %v2585, 0.0
  %2624 = vadd.xlane.f32.xlu0 %v2623
  %v2625 = vpop.xlane.xlu0 %2624
  %v2626 = vsel %vm230, %v2586, 0.0
  %2627 = vadd.xlane.f32.xlu0 %v2626
  %v2628 = vpop.xlane.xlu0 %2627
  %v2629 = vsel %vm230, %v2587, 0.0
  %2630 = vadd.xlane.f32.xlu0 %v2629
  %v2631 = vpop.xlane.xlu0 %2630
  %v2632 = vsel %vm230, %v2588, 0.0
  %2633 = vadd.xlane.f32.xlu0 %v2632
  %v2634 = vpop.xlane.xlu0 %2633
  %v2635 = vsel %vm230, %v2589, 0.0
  %2636 = vadd.xlane.f32.xlu0 %v2635
  %v2637 = vpop.xlane.xlu0 %2636
  %v2654 = vperm.slane %v2592, %v164
  %v2655 = vperm.slane %v2595, %v905
  %v2656 = vsel %vm907, %v2655, %v2654
  %v2657 = vperm.slane %v2598, %v164
  %v2658 = vperm.slane %v2601, %v905
  %v2659 = vsel %vm907, %v2658, %v2657
  %v2660 = vperm.slane %v2604, %v164
  %v2661 = vperm.slane %v2607, %v905
  %v2662 = vsel %vm907, %v2661, %v2660
  %v2663 = vperm.slane %v2610, %v164
  %v2664 = vperm.slane %v2613, %v905
  %v2665 = vsel %vm907, %v2664, %v2663
  %v2666 = vperm.slane %v2616, %v164
  %v2667 = vperm.slane %v2619, %v905
  %v2668 = vsel %vm907, %v2667, %v2666
  %v2669 = vperm.slane %v2622, %v164
  %v2670 = vperm.slane %v2625, %v905
  %v2671 = vsel %vm907, %v2670, %v2669
  %v2672 = vperm.slane %v2628, %v164
  %v2673 = vperm.slane %v2631, %v905
  %v2674 = vsel %vm907, %v2673, %v2672
  %v2675 = vperm.slane %v2634, %v164
  %v2676 = vperm.slane %v2637, %v905
  %v2677 = vsel %vm907, %v2676, %v2675
  %v2678 = vsel %vm782, %v2659, %v2656
  %v2679 = vsel %vm784, %v2662, %v2678
  %v2680 = vsel %vm786, %v2665, %v2679
  %v2681 = vsel %vm788, %v2668, %v2680
  %v2682 = vsel %vm790, %v2671, %v2681
  %v2683 = vsel %vm792, %v2674, %v2682
  %v2684 = vsel %vm794, %v2677, %v2683
  %v2686 = vsel %vm937, %v2572, 0
  %v2688 = vsel %vm937, %v2684, 0
  %2690 = vmatpush.xpose.msra.mxu0 0.0
  %2691 = vmatpush.xpose.msra.mxu0 0.0
  %2692 = vmatpush.xpose.msra.mxu0 0.0
  %2693 = vmatpush.xpose.msra.mxu0 0.0
  %2694 = vmatpush.xpose.msra.mxu0 0.0
  %2695 = vmatpush.xpose.msra.mxu0 0.0
  %2696 = vmatpush.xpose.msra.mxu0 0.0
  %2697 = vmatpush.xpose.msra.mxu0 0.0
  %2698 = vmatpush.xpose.msra.mxu0 0.0
  %2699 = vmatpush.xpose.msra.mxu0 0.0
  %2700 = vmatpush.xpose.msra.mxu0 0.0
  %2701 = vmatpush.xpose.msra.mxu0 0.0
  %2702 = vmatpush.xpose.msra.mxu0 0.0
  %2703 = vmatpush.xpose.msra.mxu0 0.0
  %2704 = vmatpush.xpose.msra.mxu0 0.0
  %2705 = vmatpush.xpose.msra.mxu0 %v2688
  %2706 = vmatmul.f32.gmra.mxu0 %v2686
  %v2707 = vpop.f32.mrf.mxu0
  %v2708 = vadd.f32 %v207, %v2707
  %2709 = vdwg.mxu0
  %v2710 = vxor.u32 %v2708, 2147483648
  %v2711 = vmul.f32 %v2710, 1.442695
  %v2712 = vpow.pop %v2711
  %v2713 = vadd.f32 %v2712, 1.0
  %v2714 = vrcp.pop %v2713
  %v2715 = vmul.f32 %v2713, %v2714
  %v2716 = vsub.f32 1.0, %v2715
  %v2717 = vmul.f32 %v2714, %v2716
  %v2718 = vadd.f32 %v2714, %v2717
  %vm2719 = vweird.f32 %v2713
  %vm2720 = vweird.f32 %v2714
  %vm2721 = vmor %vm2719, %vm2720
  %v2722 = vsel %vm2721, %v2714, %v2718
  %v2723 = vand.u32 2147483647, %v2713
  %vm2724 = vcmp.eq.f32.partialorder %v2723, 8.507059e+37
  %v2725 = vand.u32 %v2713, 2147483648
  %v2726 = vor.u32 1.1754944e-38, %v2725
  %v2727 = vsel %vm2724, %v2726, %v2722
  %v2728 = vmul.f32 1.0, %v2727
  %2729 = vmatpush.msra.mxu0 0.0
  %2730 = vmatpush.msra.mxu0 0.0
  %2731 = vmatpush.msra.mxu0 0.0
  %2732 = vmatpush.msra.mxu0 0.0
  %2733 = vmatpush.msra.mxu0 0.0
  %2734 = vmatpush.msra.mxu0 0.0
  %2735 = vmatpush.msra.mxu0 0.0
  %2736 = vmatpush.msra.mxu0 0.0
  %2737 = vmatpush.msra.mxu0 0.0
  %2738 = vmatpush.msra.mxu0 0.0
  %2739 = vmatpush.msra.mxu0 0.0
  %2740 = vmatpush.msra.mxu0 0.0
  %2741 = vmatpush.msra.mxu0 0.0
  %2742 = vmatpush.msra.mxu0 0.0
  %2743 = vmatpush.msra.mxu0 0.0
  %2744 = vmatpush.msra.mxu0 %v2728
  %2745 = vmatmul.f32.gmra.mxu0 %v984
  %v2746 = vpop.f32.mrf.mxu0
  %v2747 = vadd.f32 0.0, %v2746
  %2748 = vdwg.mxu0
  %v2749 = vsel %vm982, %v2747, -inf
  %v2750 = vrot.slane %v2749, 4
  %v2751 = vmax.f32 %v2749, %v2750
  %v2752 = vrot.slane %v2751, 2
  %v2753 = vmax.f32 %v2751, %v2752
  %v2754 = vrot.slane %v2753, 1
  %v2755 = vmax.f32 %v2753, %v2754
  %v2756 = vsub.f32 %v2747, %v2755
  %v2757 = vmul.f32 %v2756, 1.442695
  %v2758 = vpow.pop %v2757
  %v2759 = vsel %vm982, %v2758, 0.0
  %v2760 = vrot.slane %v2759, 4
  %v2761 = vadd.f32 %v2759, %v2760
  %v2762 = vrot.slane %v2761, 2
  %v2763 = vadd.f32 %v2761, %v2762
  %v2764 = vrot.slane %v2763, 1
  %v2765 = vadd.f32 %v2763, %v2764
  %v2766 = vrcp.pop %v2765
  %v2767 = vmul.f32 %v2758, %v2766
  %v2768 = vmul.f32 %v2767, %v1026
  %v2769 = vsel %vm982, %v2768, 0.0
  %2770 = vadd.xlane.f32.xlu0 %v2769
  %v2771 = vpop.xlane.xlu0 %2770
  %v2773 = vperm.slane %v2771, 0
  %v2774 = vperm.slane %v2771, 1
  %v2775 = vperm.slane %v2771, 2
  %v2776 = vperm.slane %v2771, 3
  %v2777 = vperm.slane %v2771, 4
  %v2778 = vperm.slane %v2771, 5
  %v2779 = vperm.slane %v2771, 6
  %v2780 = vperm.slane %v2771, 7
  %v2789 = vmul.f32 %v187, %v2773
  %v2790 = vmul.f32 %v188, %v2773
  %v2791 = vmul.f32 %v189, %v2774
  %v2792 = vmul.f32 %v190, %v2774
  %v2793 = vmul.f32 %v191, %v2775
  %v2794 = vmul.f32 %v192, %v2775
  %v2795 = vmul.f32 %v193, %v2776
  %v2796 = vmul.f32 %v194, %v2776
  %v2797 = vmul.f32 %v195, %v2777
  %v2798 = vmul.f32 %v196, %v2777
  %v2799 = vmul.f32 %v197, %v2778
  %v2800 = vmul.f32 %v198, %v2778
  %v2801 = vmul.f32 %v199, %v2779
  %v2802 = vmul.f32 %v200, %v2779
  %v2803 = vmul.f32 %v201, %v2780
  %v2804 = vmul.f32 %v202, %v2780
  %v2805 = vsel %vm230, %v2789, 0.0
  %v2806 = vsel %vm230, %v2791, 0.0
  %v2807 = vadd.f32 %v2805, %v2806
  %v2808 = vsel %vm230, %v2793, 0.0
  %v2809 = vadd.f32 %v2807, %v2808
  %v2810 = vsel %vm230, %v2795, 0.0
  %v2811 = vadd.f32 %v2809, %v2810
  %v2812 = vsel %vm230, %v2797, 0.0
  %v2813 = vadd.f32 %v2811, %v2812
  %v2814 = vsel %vm230, %v2799, 0.0
  %v2815 = vadd.f32 %v2813, %v2814
  %v2816 = vsel %vm230, %v2801, 0.0
  %v2817 = vadd.f32 %v2815, %v2816
  %v2818 = vsel %vm230, %v2803, 0.0
  %v2819 = vadd.f32 %v2817, %v2818
  %v2820 = vsel %vm230, %v2790, 0.0
  %v2821 = vsel %vm230, %v2792, 0.0
  %v2822 = vadd.f32 %v2820, %v2821
  %v2823 = vsel %vm230, %v2794, 0.0
  %v2824 = vadd.f32 %v2822, %v2823
  %v2825 = vsel %vm230, %v2796, 0.0
  %v2826 = vadd.f32 %v2824, %v2825
  %v2827 = vsel %vm230, %v2798, 0.0
  %v2828 = vadd.f32 %v2826, %v2827
  %v2829 = vsel %vm230, %v2800, 0.0
  %v2830 = vadd.f32 %v2828, %v2829
  %v2831 = vsel %vm230, %v2802, 0.0
  %v2832 = vadd.f32 %v2830, %v2831
  %v2833 = vsel %vm230, %v2804, 0.0
  %v2834 = vadd.f32 %v2832, %v2833
  %v2836 = vsel %vm230, %v2819, 0
  %v2839 = vsel %vm230, %v2834, 0
  %2841 = vmatpush.msra.mxu0 0.0
  %2842 = vmatpush.msra.mxu0 0.0
  %2843 = vmatpush.msra.mxu0 0.0
  %2844 = vmatpush.msra.mxu0 0.0
  %2845 = vmatpush.msra.mxu0 0.0
  %2846 = vmatpush.msra.mxu0 0.0
  %2847 = vmatpush.msra.mxu0 0.0
  %2848 = vmatpush.msra.mxu0 0.0
  %2849 = vmatpush.msra.mxu0 0.0
  %2850 = vmatpush.msra.mxu0 0.0
  %2851 = vmatpush.msra.mxu0 0.0
  %2852 = vmatpush.msra.mxu0 0.0
  %2853 = vmatpush.msra.mxu0 0.0
  %2854 = vmatpush.msra.mxu0 0.0
  %2855 = vmatpush.msra.mxu0 0.0
  %2856 = vmatpush.msra.mxu0 %v1102
  %2857 = vmatmul.f32.gmra.mxu0 %v2836
  %v2858 = vpop.f32.mrf.mxu0
  %v2859 = vadd.f32 0.0, %v2858
  %2860 = vmatmul.f32.gmra.mxu0 %v2839
  %v2861 = vpop.f32.mrf.mxu0
  %v2862 = vadd.f32 0.0, %v2861
  %2863 = vdwg.mxu0
  %v2864 = vmul.f32 %v187, %v1128
  %v2865 = vmul.f32 %v188, %v1128
  %v2866 = vmul.f32 %v189, %v1128
  %v2867 = vmul.f32 %v190, %v1128
  %v2868 = vmul.f32 %v191, %v1128
  %v2869 = vmul.f32 %v192, %v1128
  %v2870 = vmul.f32 %v193, %v1128
  %v2871 = vmul.f32 %v194, %v1128
  %v2872 = vmul.f32 %v195, %v1128
  %v2873 = vmul.f32 %v196, %v1128
  %v2874 = vmul.f32 %v197, %v1128
  %v2875 = vmul.f32 %v198, %v1128
  %v2876 = vmul.f32 %v199, %v1128
  %v2877 = vmul.f32 %v200, %v1128
  %v2878 = vmul.f32 %v201, %v1128
  %v2879 = vmul.f32 %v202, %v1128
  %v2880 = vsel %vm230, %v2864, 0.0
  %2881 = vadd.xlane.f32.xlu0 %v2880
  %v2882 = vpop.xlane.xlu0 %2881
  %v2883 = vsel %vm230, %v2865, 0.0
  %2884 = vadd.xlane.f32.xlu0 %v2883
  %v2885 = vpop.xlane.xlu0 %2884
  %v2886 = vsel %vm230, %v2866, 0.0
  %2887 = vadd.xlane.f32.xlu0 %v2886
  %v2888 = vpop.xlane.xlu0 %2887
  %v2889 = vsel %vm230, %v2867, 0.0
  %2890 = vadd.xlane.f32.xlu0 %v2889
  %v2891 = vpop.xlane.xlu0 %2890
  %v2892 = vsel %vm230, %v2868, 0.0
  %2893 = vadd.xlane.f32.xlu0 %v2892
  %v2894 = vpop.xlane.xlu0 %2893
  %v2895 = vsel %vm230, %v2869, 0.0
  %2896 = vadd.xlane.f32.xlu0 %v2895
  %v2897 = vpop.xlane.xlu0 %2896
  %v2898 = vsel %vm230, %v2870, 0.0
  %2899 = vadd.xlane.f32.xlu0 %v2898
  %v2900 = vpop.xlane.xlu0 %2899
  %v2901 = vsel %vm230, %v2871, 0.0
  %2902 = vadd.xlane.f32.xlu0 %v2901
  %v2903 = vpop.xlane.xlu0 %2902
  %v2904 = vsel %vm230, %v2872, 0.0
  %2905 = vadd.xlane.f32.xlu0 %v2904
  %v2906 = vpop.xlane.xlu0 %2905
  %v2907 = vsel %vm230, %v2873, 0.0
  %2908 = vadd.xlane.f32.xlu0 %v2907
  %v2909 = vpop.xlane.xlu0 %2908
  %v2910 = vsel %vm230, %v2874, 0.0
  %2911 = vadd.xlane.f32.xlu0 %v2910
  %v2912 = vpop.xlane.xlu0 %2911
  %v2913 = vsel %vm230, %v2875, 0.0
  %2914 = vadd.xlane.f32.xlu0 %v2913
  %v2915 = vpop.xlane.xlu0 %2914
  %v2916 = vsel %vm230, %v2876, 0.0
  %2917 = vadd.xlane.f32.xlu0 %v2916
  %v2918 = vpop.xlane.xlu0 %2917
  %v2919 = vsel %vm230, %v2877, 0.0
  %2920 = vadd.xlane.f32.xlu0 %v2919
  %v2921 = vpop.xlane.xlu0 %2920
  %v2922 = vsel %vm230, %v2878, 0.0
  %2923 = vadd.xlane.f32.xlu0 %v2922
  %v2924 = vpop.xlane.xlu0 %2923
  %v2925 = vsel %vm230, %v2879, 0.0
  %2926 = vadd.xlane.f32.xlu0 %v2925
  %v2927 = vpop.xlane.xlu0 %2926
  %v2929 = vsel %vm982, %v2859, 0
  %v2932 = vsel %vm982, %v2862, 0
  %v2935 = vsel %vm982, %v2767, 0
  %2937 = vmatpush.xpose.msra.mxu0 0.0
  %2938 = vmatpush.xpose.msra.mxu0 0.0
  %2939 = vmatpush.xpose.msra.mxu0 0.0
  %2940 = vmatpush.xpose.msra.mxu0 0.0
  %2941 = vmatpush.xpose.msra.mxu0 0.0
  %2942 = vmatpush.xpose.msra.mxu0 0.0
  %2943 = vmatpush.xpose.msra.mxu0 0.0
  %2944 = vmatpush.xpose.msra.mxu0 0.0
  %2945 = vmatpush.xpose.msra.mxu0 0.0
  %2946 = vmatpush.xpose.msra.mxu0 0.0
  %2947 = vmatpush.xpose.msra.mxu0 0.0
  %2948 = vmatpush.xpose.msra.mxu0 0.0
  %2949 = vmatpush.xpose.msra.mxu0 0.0
  %2950 = vmatpush.xpose.msra.mxu0 0.0
  %2951 = vmatpush.xpose.msra.mxu0 0.0
  %2952 = vmatpush.xpose.msra.mxu0 %v2935
  %2953 = vmatmul.f32.gmra.mxu0 %v2929
  %v2954 = vpop.f32.mrf.mxu0
  %v2955 = vadd.f32 0.0, %v2954
  %2956 = vmatmul.f32.gmra.mxu0 %v2932
  %v2957 = vpop.f32.mrf.mxu0
  %v2958 = vadd.f32 0.0, %v2957
  %2959 = vdwg.mxu0
  %v2976 = vperm.slane %v2882, %v164
  %v2977 = vperm.slane %v2885, %v905
  %v2978 = vsel %vm907, %v2977, %v2976
  %v2979 = vperm.slane %v2888, %v164
  %v2980 = vperm.slane %v2891, %v905
  %v2981 = vsel %vm907, %v2980, %v2979
  %v2982 = vperm.slane %v2894, %v164
  %v2983 = vperm.slane %v2897, %v905
  %v2984 = vsel %vm907, %v2983, %v2982
  %v2985 = vperm.slane %v2900, %v164
  %v2986 = vperm.slane %v2903, %v905
  %v2987 = vsel %vm907, %v2986, %v2985
  %v2988 = vperm.slane %v2906, %v164
  %v2989 = vperm.slane %v2909, %v905
  %v2990 = vsel %vm907, %v2989, %v2988
  %v2991 = vperm.slane %v2912, %v164
  %v2992 = vperm.slane %v2915, %v905
  %v2993 = vsel %vm907, %v2992, %v2991
  %v2994 = vperm.slane %v2918, %v164
  %v2995 = vperm.slane %v2921, %v905
  %v2996 = vsel %vm907, %v2995, %v2994
  %v2997 = vperm.slane %v2924, %v164
  %v2998 = vperm.slane %v2927, %v905
  %v2999 = vsel %vm907, %v2998, %v2997
  %v3000 = vsel %vm782, %v2981, %v2978
  %v3001 = vsel %vm784, %v2984, %v3000
  %v3002 = vsel %vm786, %v2987, %v3001
  %v3003 = vsel %vm788, %v2990, %v3002
  %v3004 = vsel %vm790, %v2993, %v3003
  %v3005 = vsel %vm792, %v2996, %v3004
  %v3006 = vsel %vm794, %v2999, %v3005
  %v3009 = vsel %vm982, %v2955, 0
  %v3012 = vsel %vm982, %v2958, 0
  %3014 = vmatpush.msra.mxu0 0.0
  %3015 = vmatpush.msra.mxu0 0.0
  %3016 = vmatpush.msra.mxu0 0.0
  %3017 = vmatpush.msra.mxu0 0.0
  %3018 = vmatpush.msra.mxu0 0.0
  %3019 = vmatpush.msra.mxu0 0.0
  %3020 = vmatpush.msra.mxu0 0.0
  %3021 = vmatpush.msra.mxu0 0.0
  %3022 = vmatpush.msra.mxu0 0.0
  %3023 = vmatpush.msra.mxu0 0.0
  %3024 = vmatpush.msra.mxu0 0.0
  %3025 = vmatpush.msra.mxu0 0.0
  %3026 = vmatpush.msra.mxu0 0.0
  %3027 = vmatpush.msra.mxu0 0.0
  %3028 = vmatpush.msra.mxu0 0.0
  %3029 = vmatpush.msra.mxu0 %v3006
  %3030 = vmatmul.f32.gmra.mxu0 %v3009
  %v3031 = vpop.f32.mrf.mxu0
  %v3032 = vadd.f32 %v212, %v3031
  %3033 = vmatmul.f32.gmra.mxu0 %v3012
  %v3034 = vpop.f32.mrf.mxu0
  %v3035 = vadd.f32 %v213, %v3034
  %3036 = vdwg.mxu0
  %v3037 = vxor.u32 %v3032, 2147483648
  %v3038 = vxor.u32 %v3035, 2147483648
  %v3039 = vmul.f32 %v3037, 1.442695
  %v3040 = vpow.pop %v3039
  %v3041 = vmul.f32 %v3038, 1.442695
  %v3042 = vpow.pop %v3041
  %v3043 = vadd.f32 %v3040, 1.0
  %v3044 = vadd.f32 %v3042, 1.0
  %v3045 = vrcp.pop %v3043
  %v3046 = vmul.f32 %v3043, %v3045
  %v3047 = vsub.f32 1.0, %v3046
  %v3048 = vmul.f32 %v3045, %v3047
  %v3049 = vadd.f32 %v3045, %v3048
  %vm3050 = vweird.f32 %v3043
  %vm3051 = vweird.f32 %v3045
  %vm3052 = vmor %vm3050, %vm3051
  %v3053 = vsel %vm3052, %v3045, %v3049
  %v3054 = vand.u32 2147483647, %v3043
  %vm3055 = vcmp.eq.f32.partialorder %v3054, 8.507059e+37
  %v3056 = vand.u32 %v3043, 2147483648
  %v3057 = vor.u32 1.1754944e-38, %v3056
  %v3058 = vsel %vm3055, %v3057, %v3053
  %v3059 = vmul.f32 1.0, %v3058
  %v3060 = vrcp.pop %v3044
  %v3061 = vmul.f32 %v3044, %v3060
  %v3062 = vsub.f32 1.0, %v3061
  %v3063 = vmul.f32 %v3060, %v3062
  %v3064 = vadd.f32 %v3060, %v3063
  %vm3065 = vweird.f32 %v3044
  %vm3066 = vweird.f32 %v3060
  %vm3067 = vmor %vm3065, %vm3066
  %v3068 = vsel %vm3067, %v3060, %v3064
  %v3069 = vand.u32 2147483647, %v3044
  %vm3070 = vcmp.eq.f32.partialorder %v3069, 8.507059e+37
  %v3071 = vand.u32 %v3044, 2147483648
  %v3072 = vor.u32 1.1754944e-38, %v3071
  %v3073 = vsel %vm3070, %v3072, %v3068
  %v3074 = vmul.f32 1.0, %v3073
  %3075 = vmatpush.msra.mxu0 0.0
  %3076 = vmatpush.msra.mxu0 0.0
  %3077 = vmatpush.msra.mxu0 0.0
  %3078 = vmatpush.msra.mxu0 0.0
  %3079 = vmatpush.msra.mxu0 0.0
  %3080 = vmatpush.msra.mxu0 0.0
  %3081 = vmatpush.msra.mxu0 0.0
  %3082 = vmatpush.msra.mxu0 0.0
  %3083 = vmatpush.msra.mxu0 0.0
  %3084 = vmatpush.msra.mxu0 0.0
  %3085 = vmatpush.msra.mxu0 0.0
  %3086 = vmatpush.msra.mxu0 0.0
  %3087 = vmatpush.msra.mxu0 0.0
  %3088 = vmatpush.msra.mxu0 0.0
  %3089 = vmatpush.msra.mxu0 %v3074
  %3090 = vmatpush.msra.mxu0 %v3059
  %3091 = vmatmul.f32.gmra.mxu0 %v1342
  %v3092 = vpop.f32.mrf.mxu0
  %v3093 = vadd.f32 0.0, %v3092
  %3094 = vmatmul.f32.gmra.mxu0 %v1345
  %v3095 = vpop.f32.mrf.mxu0
  %v3096 = vadd.f32 0.0, %v3095
  %3097 = vdwg.mxu0
  %v3098 = vsel %vm937, %v3093, -inf
  %v3099 = vsel %vm937, %v3096, -inf
  %v3100 = vmax.f32 %v3098, %v3099
  %v3101 = vrot.slane %v3100, 4
  %v3102 = vmax.f32 %v3100, %v3101
  %v3103 = vrot.slane %v3102, 2
  %v3104 = vmax.f32 %v3102, %v3103
  %v3105 = vrot.slane %v3104, 1
  %v3106 = vmax.f32 %v3104, %v3105
  %v3107 = vsub.f32 %v3093, %v3106
  %v3108 = vsub.f32 %v3096, %v3106
  %v3109 = vmul.f32 %v3107, 1.442695
  %v3110 = vpow.pop %v3109
  %v3111 = vmul.f32 %v3108, 1.442695
  %v3112 = vpow.pop %v3111
  %v3113 = vsel %vm937, %v3110, 0.0
  %v3114 = vsel %vm937, %v3112, 0.0
  %v3115 = vadd.f32 %v3113, %v3114
  %v3116 = vrot.slane %v3115, 4
  %v3117 = vadd.f32 %v3115, %v3116
  %v3118 = vrot.slane %v3117, 2
  %v3119 = vadd.f32 %v3117, %v3118
  %v3120 = vrot.slane %v3119, 1
  %v3121 = vadd.f32 %v3119, %v3120
  %v3122 = vrcp.pop %v3121
  %v3123 = vmul.f32 %v3110, %v3122
  %v3124 = vmul.f32 %v3112, %v3122
  %v3125 = vmul.f32 %v3123, %v169
  %v3126 = vmul.f32 %v3124, %v170
  %v3127 = vsel %vm937, %v3125, 0.0
  %v3128 = vsel %vm937, %v3126, 0.0
  %v3129 = vadd.f32 %v3127, %v3128
  %v3130 = vrot.slane %v3129, 4
  %v3131 = vadd.f32 %v3129, %v3130
  %v3132 = vrot.slane %v3131, 2
  %v3133 = vadd.f32 %v3131, %v3132
  %v3134 = vrot.slane %v3133, 1
  %v3135 = vadd.f32 %v3133, %v3134
  %v3136 = vmul.f32 %v169, %v3135
  %v3137 = vmul.f32 %v170, %v3135
  %3138 = vxpose.xlu0.b32.start [1/16] %v3123, 128
  %3139 = vxpose.xlu0.b32.cont [2/16] %v3124, 128
  %3140 = vxpose.xlu0.b32.cont [3/16] 0.0, 128
  %3141 = vxpose.xlu0.b32.cont [4/16] 0.0, 128
  %3142 = vxpose.xlu0.b32.cont [5/16] 0.0, 128
  %3143 = vxpose.xlu0.b32.cont [6/16] 0.0, 128
  %3144 = vxpose.xlu0.b32.cont [7/16] 0.0, 128
  %3145 = vxpose.xlu0.b32.cont [8/16] 0.0, 128
  %3146 = vxpose.xlu0.b32.cont [9/16] 0.0, 128
  %3147 = vxpose.xlu0.b32.cont [10/16] 0.0, 128
  %3148 = vxpose.xlu0.b32.cont [11/16] 0.0, 128
  %3149 = vxpose.xlu0.b32.cont [12/16] 0.0, 128
  %3150 = vxpose.xlu0.b32.cont [13/16] 0.0, 128
  %3151 = vxpose.xlu0.b32.cont [14/16] 0.0, 128
  %3152 = vxpose.xlu0.b32.cont [15/16] 0.0, 128
  %3153 = vxpose.xlu0.b32.end [16/16] 0.0, 128
  %v3154 = vpop.trf.xlu0
  %v3155 = vpop.trf.xlu0
  %v3156 = vpop.trf.xlu0
  %v3157 = vpop.trf.xlu0
  %v3158 = vpop.trf.xlu0
  %v3159 = vpop.trf.xlu0
  %v3160 = vpop.trf.xlu0
  %v3161 = vpop.trf.xlu0
  %v3162 = vpop.trf.xlu0
  %v3163 = vpop.trf.xlu0
  %v3164 = vpop.trf.xlu0
  %v3165 = vpop.trf.xlu0
  %v3166 = vpop.trf.xlu0
  %v3167 = vpop.trf.xlu0
  %v3168 = vpop.trf.xlu0
  %v3169 = vpop.trf.xlu0
  %v3170 = vmul.f32 %v158, %v3154
  %v3171 = vmul.f32 %v159, %v3155
  %v3172 = vmul.f32 %v3170, %v3135
  %v3173 = vmul.f32 %v3171, %v3135
  %3174 = vmatpush.msra.mxu0 0.0
  %3175 = vmatpush.msra.mxu0 0.0
  %3176 = vmatpush.msra.mxu0 0.0
  %3177 = vmatpush.msra.mxu0 0.0
  %3178 = vmatpush.msra.mxu0 0.0
  %3179 = vmatpush.msra.mxu0 0.0
  %3180 = vmatpush.msra.mxu0 0.0
  %3181 = vmatpush.msra.mxu0 0.0
  %3182 = vmatpush.msra.mxu0 0.0
  %3183 = vmatpush.msra.mxu0 0.0
  %3184 = vmatpush.msra.mxu0 0.0
  %3185 = vmatpush.msra.mxu0 0.0
  %3186 = vmatpush.msra.mxu0 0.0
  %3187 = vmatpush.msra.mxu0 0.0
  %3188 = vmatpush.msra.mxu0 %v3173
  %3189 = vmatpush.msra.mxu0 %v3172
  %3190 = vmatmul.f32.gmra.mxu0 %v1447
  %v3191 = vpop.f32.mrf.mxu0
  %v3192 = vadd.f32 0.0, %v3191
  %3193 = vmatmul.f32.gmra.mxu0 %v1450
  %v3194 = vpop.f32.mrf.mxu0
  %v3195 = vadd.f32 0.0, %v3194
  %3196 = vdwg.mxu0
  %v3197 = vmul.f32 %v3192, 2.0
  %v3198 = vmul.f32 %v3195, 2.0
  %v3199 = vsub.f32 %v3197, %v3136
  %v3200 = vsub.f32 %v3198, %v3137
  %3203 = vrot.lane.b32.xlu0 %v3172, 16
  %v3204 = vpop.permute.xlu0 %3203
  %3205 = vrot.lane.b32.xlu0 %v3173, 16
  %v3206 = vpop.permute.xlu0 %3205
  %3211 = vrot.lane.b32.xlu0 %v3199, 32
  %v3212 = vpop.permute.xlu0 %3211
  %3213 = vrot.lane.b32.xlu0 %v3200, 32
  %v3214 = vpop.permute.xlu0 %3213
  %v3217 = vsel %vm937, %v3136, %v3204
  %v3218 = vsel %vm937, %v3137, %v3206
  %v3219 = vsel %vm1497, %v3217, %v3212
  %v3220 = vsel %vm1497, %v3218, %v3214
  %v3222 = vsel %vm1503, %v3219, 0
  %v3225 = vsel %vm1503, %v3220, 0
  %3227 = vmatpush.msra.mxu0 0.0
  %3228 = vmatpush.msra.mxu0 0.0
  %3229 = vmatpush.msra.mxu0 0.0
  %3230 = vmatpush.msra.mxu0 0.0
  %3231 = vmatpush.msra.mxu0 0.0
  %3232 = vmatpush.msra.mxu0 0.0
  %3233 = vmatpush.msra.mxu0 0.0
  %3234 = vmatpush.msra.mxu0 0.0
  %3235 = vmatpush.msra.mxu0 0.0
  %3236 = vmatpush.msra.mxu0 0.0
  %3237 = vmatpush.msra.mxu0 %v632
  %3238 = vmatpush.msra.mxu0 %v629
  %3239 = vmatpush.msra.mxu0 %v516
  %3240 = vmatpush.msra.mxu0 %v513
  %3241 = vmatpush.msra.mxu0 %v400
  %3242 = vmatpush.msra.mxu0 %v397
  %3243 = vmatmul.f32.gmra.mxu0 %v3222
  %v3244 = vpop.f32.mrf.mxu0
  %v3245 = vadd.f32 %v1501, %v3244
  %3246 = vmatmul.f32.gmra.mxu0 %v3225
  %v3247 = vpop.f32.mrf.mxu0
  %v3248 = vadd.f32 %v1501, %v3247
  %3249 = vdwg.mxu0
  %v3250 = vmax.f32 %v3245, 0.0
  %v3251 = vmax.f32 %v3248, 0.0
  %3252 = vmatpush.msra.mxu0 0.0
  %3253 = vmatpush.msra.mxu0 0.0
  %3254 = vmatpush.msra.mxu0 0.0
  %3255 = vmatpush.msra.mxu0 0.0
  %3256 = vmatpush.msra.mxu0 0.0
  %3257 = vmatpush.msra.mxu0 0.0
  %3258 = vmatpush.msra.mxu0 0.0
  %3259 = vmatpush.msra.mxu0 0.0
  %3260 = vmatpush.msra.mxu0 0.0
  %3261 = vmatpush.msra.mxu0 0.0
  %3262 = vmatpush.msra.mxu0 %v638
  %3263 = vmatpush.msra.mxu0 %v635
  %3264 = vmatpush.msra.mxu0 %v522
  %3265 = vmatpush.msra.mxu0 %v519
  %3266 = vmatpush.msra.mxu0 %v406
  %3267 = vmatpush.msra.mxu0 %v403
  %3268 = vmatmul.f32.gmra.mxu0 %v3222
  %v3269 = vpop.f32.mrf.mxu0
  %v3270 = vadd.f32 %v1501, %v3269
  %3271 = vmatmul.f32.gmra.mxu0 %v3225
  %v3272 = vpop.f32.mrf.mxu0
  %v3273 = vadd.f32 %v1501, %v3272
  %3274 = vdwg.mxu0
  %v3275 = vmax.f32 %v3270, 0.0
  %v3276 = vmax.f32 %v3273, 0.0
  %3277 = vmatpush.msra.mxu0 0.0
  %3278 = vmatpush.msra.mxu0 0.0
  %3279 = vmatpush.msra.mxu0 0.0
  %3280 = vmatpush.msra.mxu0 0.0
  %3281 = vmatpush.msra.mxu0 0.0
  %3282 = vmatpush.msra.mxu0 0.0
  %3283 = vmatpush.msra.mxu0 0.0
  %3284 = vmatpush.msra.mxu0 0.0
  %3285 = vmatpush.msra.mxu0 0.0
  %3286 = vmatpush.msra.mxu0 0.0
  %3287 = vmatpush.msra.mxu0 %v644
  %3288 = vmatpush.msra.mxu0 %v641
  %3289 = vmatpush.msra.mxu0 %v528
  %3290 = vmatpush.msra.mxu0 %v525
  %3291 = vmatpush.msra.mxu0 %v412
  %3292 = vmatpush.msra.mxu0 %v409
  %3293 = vmatmul.f32.gmra.mxu0 %v3222
  %v3294 = vpop.f32.mrf.mxu0
  %v3295 = vadd.f32 %v1501, %v3294
  %3296 = vmatmul.f32.gmra.mxu0 %v3225
  %v3297 = vpop.f32.mrf.mxu0
  %v3298 = vadd.f32 %v1501, %v3297
  %3299 = vdwg.mxu0
  %v3300 = vmax.f32 %v3295, 0.0
  %v3301 = vmax.f32 %v3298, 0.0
  %3302 = vmatpush.msra.mxu0 0.0
  %3303 = vmatpush.msra.mxu0 0.0
  %3304 = vmatpush.msra.mxu0 0.0
  %3305 = vmatpush.msra.mxu0 0.0
  %3306 = vmatpush.msra.mxu0 0.0
  %3307 = vmatpush.msra.mxu0 0.0
  %3308 = vmatpush.msra.mxu0 0.0
  %3309 = vmatpush.msra.mxu0 0.0
  %3310 = vmatpush.msra.mxu0 0.0
  %3311 = vmatpush.msra.mxu0 0.0
  %3312 = vmatpush.msra.mxu0 %v650
  %3313 = vmatpush.msra.mxu0 %v647
  %3314 = vmatpush.msra.mxu0 %v534
  %3315 = vmatpush.msra.mxu0 %v531
  %3316 = vmatpush.msra.mxu0 %v418
  %3317 = vmatpush.msra.mxu0 %v415
  %3318 = vmatmul.f32.gmra.mxu0 %v3222
  %v3319 = vpop.f32.mrf.mxu0
  %v3320 = vadd.f32 %v1501, %v3319
  %3321 = vmatmul.f32.gmra.mxu0 %v3225
  %v3322 = vpop.f32.mrf.mxu0
  %v3323 = vadd.f32 %v1501, %v3322
  %3324 = vdwg.mxu0
  %v3325 = vmax.f32 %v3320, 0.0
  %v3326 = vmax.f32 %v3323, 0.0
  %3327 = vmatpush.msra.mxu0 0.0
  %3328 = vmatpush.msra.mxu0 0.0
  %3329 = vmatpush.msra.mxu0 0.0
  %3330 = vmatpush.msra.mxu0 0.0
  %3331 = vmatpush.msra.mxu0 0.0
  %3332 = vmatpush.msra.mxu0 0.0
  %3333 = vmatpush.msra.mxu0 0.0
  %3334 = vmatpush.msra.mxu0 0.0
  %3335 = vmatpush.msra.mxu0 0.0
  %3336 = vmatpush.msra.mxu0 0.0
  %3337 = vmatpush.msra.mxu0 %v656
  %3338 = vmatpush.msra.mxu0 %v653
  %3339 = vmatpush.msra.mxu0 %v540
  %3340 = vmatpush.msra.mxu0 %v537
  %3341 = vmatpush.msra.mxu0 %v424
  %3342 = vmatpush.msra.mxu0 %v421
  %3343 = vmatmul.f32.gmra.mxu0 %v3222
  %v3344 = vpop.f32.mrf.mxu0
  %v3345 = vadd.f32 %v1501, %v3344
  %3346 = vmatmul.f32.gmra.mxu0 %v3225
  %v3347 = vpop.f32.mrf.mxu0
  %v3348 = vadd.f32 %v1501, %v3347
  %3349 = vdwg.mxu0
  %v3350 = vmax.f32 %v3345, 0.0
  %v3351 = vmax.f32 %v3348, 0.0
  %3352 = vmatpush.msra.mxu0 0.0
  %3353 = vmatpush.msra.mxu0 0.0
  %3354 = vmatpush.msra.mxu0 0.0
  %3355 = vmatpush.msra.mxu0 0.0
  %3356 = vmatpush.msra.mxu0 0.0
  %3357 = vmatpush.msra.mxu0 0.0
  %3358 = vmatpush.msra.mxu0 0.0
  %3359 = vmatpush.msra.mxu0 0.0
  %3360 = vmatpush.msra.mxu0 0.0
  %3361 = vmatpush.msra.mxu0 0.0
  %3362 = vmatpush.msra.mxu0 %v662
  %3363 = vmatpush.msra.mxu0 %v659
  %3364 = vmatpush.msra.mxu0 %v546
  %3365 = vmatpush.msra.mxu0 %v543
  %3366 = vmatpush.msra.mxu0 %v430
  %3367 = vmatpush.msra.mxu0 %v427
  %3368 = vmatmul.f32.gmra.mxu0 %v3222
  %v3369 = vpop.f32.mrf.mxu0
  %v3370 = vadd.f32 %v1501, %v3369
  %3371 = vmatmul.f32.gmra.mxu0 %v3225
  %v3372 = vpop.f32.mrf.mxu0
  %v3373 = vadd.f32 %v1501, %v3372
  %3374 = vdwg.mxu0
  %v3375 = vmax.f32 %v3370, 0.0
  %v3376 = vmax.f32 %v3373, 0.0
  %3377 = vmatpush.msra.mxu0 0.0
  %3378 = vmatpush.msra.mxu0 0.0
  %3379 = vmatpush.msra.mxu0 0.0
  %3380 = vmatpush.msra.mxu0 0.0
  %3381 = vmatpush.msra.mxu0 0.0
  %3382 = vmatpush.msra.mxu0 0.0
  %3383 = vmatpush.msra.mxu0 0.0
  %3384 = vmatpush.msra.mxu0 0.0
  %3385 = vmatpush.msra.mxu0 0.0
  %3386 = vmatpush.msra.mxu0 0.0
  %3387 = vmatpush.msra.mxu0 %v668
  %3388 = vmatpush.msra.mxu0 %v665
  %3389 = vmatpush.msra.mxu0 %v552
  %3390 = vmatpush.msra.mxu0 %v549
  %3391 = vmatpush.msra.mxu0 %v436
  %3392 = vmatpush.msra.mxu0 %v433
  %3393 = vmatmul.f32.gmra.mxu0 %v3222
  %v3394 = vpop.f32.mrf.mxu0
  %v3395 = vadd.f32 %v1501, %v3394
  %3396 = vmatmul.f32.gmra.mxu0 %v3225
  %v3397 = vpop.f32.mrf.mxu0
  %v3398 = vadd.f32 %v1501, %v3397
  %3399 = vdwg.mxu0
  %v3400 = vmax.f32 %v3395, 0.0
  %v3401 = vmax.f32 %v3398, 0.0
  %3402 = vmatpush.msra.mxu0 0.0
  %3403 = vmatpush.msra.mxu0 0.0
  %3404 = vmatpush.msra.mxu0 0.0
  %3405 = vmatpush.msra.mxu0 0.0
  %3406 = vmatpush.msra.mxu0 0.0
  %3407 = vmatpush.msra.mxu0 0.0
  %3408 = vmatpush.msra.mxu0 0.0
  %3409 = vmatpush.msra.mxu0 0.0
  %3410 = vmatpush.msra.mxu0 0.0
  %3411 = vmatpush.msra.mxu0 0.0
  %3412 = vmatpush.msra.mxu0 %v674
  %3413 = vmatpush.msra.mxu0 %v671
  %3414 = vmatpush.msra.mxu0 %v558
  %3415 = vmatpush.msra.mxu0 %v555
  %3416 = vmatpush.msra.mxu0 %v442
  %3417 = vmatpush.msra.mxu0 %v439
  %3418 = vmatmul.f32.gmra.mxu0 %v3222
  %v3419 = vpop.f32.mrf.mxu0
  %v3420 = vadd.f32 %v1501, %v3419
  %3421 = vmatmul.f32.gmra.mxu0 %v3225
  %v3422 = vpop.f32.mrf.mxu0
  %v3423 = vadd.f32 %v1501, %v3422
  %3424 = vdwg.mxu0
  %v3425 = vmax.f32 %v3420, 0.0
  %v3426 = vmax.f32 %v3423, 0.0
  %3443 = vrot.lane.b32.xlu0 %v3250, 16
  %v3444 = vpop.permute.xlu0 %3443
  %3445 = vrot.lane.b32.xlu0 %v3251, 16
  %v3446 = vpop.permute.xlu0 %3445
  %3447 = vrot.lane.b32.xlu0 %v3275, 16
  %v3448 = vpop.permute.xlu0 %3447
  %3449 = vrot.lane.b32.xlu0 %v3276, 16
  %v3450 = vpop.permute.xlu0 %3449
  %3451 = vrot.lane.b32.xlu0 %v3300, 16
  %v3452 = vpop.permute.xlu0 %3451
  %3453 = vrot.lane.b32.xlu0 %v3301, 16
  %v3454 = vpop.permute.xlu0 %3453
  %3455 = vrot.lane.b32.xlu0 %v3325, 16
  %v3456 = vpop.permute.xlu0 %3455
  %3457 = vrot.lane.b32.xlu0 %v3326, 16
  %v3458 = vpop.permute.xlu0 %3457
  %3459 = vrot.lane.b32.xlu0 %v3350, 16
  %v3460 = vpop.permute.xlu0 %3459
  %3461 = vrot.lane.b32.xlu0 %v3351, 16
  %v3462 = vpop.permute.xlu0 %3461
  %3463 = vrot.lane.b32.xlu0 %v3375, 16
  %v3464 = vpop.permute.xlu0 %3463
  %3465 = vrot.lane.b32.xlu0 %v3376, 16
  %v3466 = vpop.permute.xlu0 %3465
  %3467 = vrot.lane.b32.xlu0 %v3400, 16
  %v3468 = vpop.permute.xlu0 %3467
  %3469 = vrot.lane.b32.xlu0 %v3401, 16
  %v3470 = vpop.permute.xlu0 %3469
  %3471 = vrot.lane.b32.xlu0 %v3425, 16
  %v3472 = vpop.permute.xlu0 %3471
  %3473 = vrot.lane.b32.xlu0 %v3426, 16
  %v3474 = vpop.permute.xlu0 %3473
  %3491 = vrot.lane.b32.xlu0 %v3275, 32
  %v3492 = vpop.permute.xlu0 %3491
  %3493 = vrot.lane.b32.xlu0 %v3276, 32
  %v3494 = vpop.permute.xlu0 %3493
  %3495 = vrot.lane.b32.xlu0 %v3300, 32
  %v3496 = vpop.permute.xlu0 %3495
  %3497 = vrot.lane.b32.xlu0 %v3301, 32
  %v3498 = vpop.permute.xlu0 %3497
  %3499 = vrot.lane.b32.xlu0 %v3325, 32
  %v3500 = vpop.permute.xlu0 %3499
  %3501 = vrot.lane.b32.xlu0 %v3326, 32
  %v3502 = vpop.permute.xlu0 %3501
  %3503 = vrot.lane.b32.xlu0 %v3350, 32
  %v3504 = vpop.permute.xlu0 %3503
  %3505 = vrot.lane.b32.xlu0 %v3351, 32
  %v3506 = vpop.permute.xlu0 %3505
  %3507 = vrot.lane.b32.xlu0 %v3375, 32
  %v3508 = vpop.permute.xlu0 %3507
  %3509 = vrot.lane.b32.xlu0 %v3376, 32
  %v3510 = vpop.permute.xlu0 %3509
  %3511 = vrot.lane.b32.xlu0 %v3400, 32
  %v3512 = vpop.permute.xlu0 %3511
  %3513 = vrot.lane.b32.xlu0 %v3401, 32
  %v3514 = vpop.permute.xlu0 %3513
  %3515 = vrot.lane.b32.xlu0 %v3425, 32
  %v3516 = vpop.permute.xlu0 %3515
  %3517 = vrot.lane.b32.xlu0 %v3426, 32
  %v3518 = vpop.permute.xlu0 %3517
  %3533 = vrot.lane.b32.xlu0 %v187, 48
  %v3534 = vpop.permute.xlu0 %3533
  %3535 = vrot.lane.b32.xlu0 %v188, 48
  %v3536 = vpop.permute.xlu0 %3535
  %3537 = vrot.lane.b32.xlu0 %v189, 48
  %v3538 = vpop.permute.xlu0 %3537
  %3539 = vrot.lane.b32.xlu0 %v190, 48
  %v3540 = vpop.permute.xlu0 %3539
  %3541 = vrot.lane.b32.xlu0 %v191, 48
  %v3542 = vpop.permute.xlu0 %3541
  %3543 = vrot.lane.b32.xlu0 %v192, 48
  %v3544 = vpop.permute.xlu0 %3543
  %3545 = vrot.lane.b32.xlu0 %v193, 48
  %v3546 = vpop.permute.xlu0 %3545
  %3547 = vrot.lane.b32.xlu0 %v194, 48
  %v3548 = vpop.permute.xlu0 %3547
  %3549 = vrot.lane.b32.xlu0 %v195, 48
  %v3550 = vpop.permute.xlu0 %3549
  %3551 = vrot.lane.b32.xlu0 %v196, 48
  %v3552 = vpop.permute.xlu0 %3551
  %3553 = vrot.lane.b32.xlu0 %v197, 48
  %v3554 = vpop.permute.xlu0 %3553
  %3555 = vrot.lane.b32.xlu0 %v198, 48
  %v3556 = vpop.permute.xlu0 %3555
  %3557 = vrot.lane.b32.xlu0 %v199, 48
  %v3558 = vpop.permute.xlu0 %3557
  %3559 = vrot.lane.b32.xlu0 %v200, 48
  %v3560 = vpop.permute.xlu0 %3559
  %3561 = vrot.lane.b32.xlu0 %v201, 48
  %v3562 = vpop.permute.xlu0 %3561
  %3563 = vrot.lane.b32.xlu0 %v202, 48
  %v3564 = vpop.permute.xlu0 %3563
  %v3581 = vsel %vm937, 0.0, %v3444
  %v3582 = vsel %vm937, 0.0, %v3446
  %v3583 = vsel %vm937, %v3250, %v3448
  %v3584 = vsel %vm937, %v3251, %v3450
  %v3585 = vsel %vm937, %v3275, %v3452
  %v3586 = vsel %vm937, %v3276, %v3454
  %v3587 = vsel %vm937, %v3300, %v3456
  %v3588 = vsel %vm937, %v3301, %v3458
  %v3589 = vsel %vm937, %v3325, %v3460
  %v3590 = vsel %vm937, %v3326, %v3462
  %v3591 = vsel %vm937, %v3350, %v3464
  %v3592 = vsel %vm937, %v3351, %v3466
  %v3593 = vsel %vm937, %v3375, %v3468
  %v3594 = vsel %vm937, %v3376, %v3470
  %v3595 = vsel %vm937, %v3400, %v3472
  %v3596 = vsel %vm937, %v3401, %v3474
  %v3597 = vsel %vm1497, %v3581, %v3492
  %v3598 = vsel %vm1497, %v3582, %v3494
  %v3599 = vsel %vm1497, %v3583, %v3496
  %v3600 = vsel %vm1497, %v3584, %v3498
  %v3601 = vsel %vm1497, %v3585, %v3500
  %v3602 = vsel %vm1497, %v3586, %v3502
  %v3603 = vsel %vm1497, %v3587, %v3504
  %v3604 = vsel %vm1497, %v3588, %v3506
  %v3605 = vsel %vm1497, %v3589, %v3508
  %v3606 = vsel %vm1497, %v3590, %v3510
  %v3607 = vsel %vm1497, %v3591, %v3512
  %v3608 = vsel %vm1497, %v3592, %v3514
  %v3609 = vsel %vm1497, %v3593, %v3516
  %v3610 = vsel %vm1497, %v3594, %v3518
  %v3611 = vsel %vm1497, %v3595, %v1804
  %v3612 = vsel %vm1497, %v3596, %v1804
  %v3613 = vsel %vm1503, %v3597, %v3534
  %v3614 = vsel %vm1503, %v3598, %v3536
  %v3615 = vsel %vm1503, %v3599, %v3538
  %v3616 = vsel %vm1503, %v3600, %v3540
  %v3617 = vsel %vm1503, %v3601, %v3542
  %v3618 = vsel %vm1503, %v3602, %v3544
  %v3619 = vsel %vm1503, %v3603, %v3546
  %v3620 = vsel %vm1503, %v3604, %v3548
  %v3621 = vsel %vm1503, %v3605, %v3550
  %v3622 = vsel %vm1503, %v3606, %v3552
  %v3623 = vsel %vm1503, %v3607, %v3554
  %v3624 = vsel %vm1503, %v3608, %v3556
  %v3625 = vsel %vm1503, %v3609, %v3558
  %v3626 = vsel %vm1503, %v3610, %v3560
  %v3627 = vsel %vm1503, %v3611, %v3562
  %v3628 = vsel %vm1503, %v3612, %v3564
  %v3630 = vsel %vm1919, %v3613, 0
  %v3633 = vsel %vm1919, %v3614, 0
  %v3636 = vsel %vm1919, %v3615, 0
  %v3639 = vsel %vm1919, %v3616, 0
  %v3642 = vsel %vm1919, %v3617, 0
  %v3645 = vsel %vm1919, %v3618, 0
  %v3648 = vsel %vm1919, %v3619, 0
  %v3651 = vsel %vm1919, %v3620, 0
  %v3654 = vsel %vm1919, %v3621, 0
  %v3657 = vsel %vm1919, %v3622, 0
  %v3660 = vsel %vm1919, %v3623, 0
  %v3663 = vsel %vm1919, %v3624, 0
  %v3666 = vsel %vm1919, %v3625, 0
  %v3669 = vsel %vm1919, %v3626, 0
  %v3672 = vsel %vm1919, %v3627, 0
  %v3675 = vsel %vm1919, %v3628, 0
  %3677 = vmatpush.msra.mxu0 0.0
  %3678 = vmatpush.msra.mxu0 0.0
  %3679 = vmatpush.msra.mxu0 0.0
  %3680 = vmatpush.msra.mxu0 0.0
  %3681 = vmatpush.msra.mxu0 0.0
  %3682 = vmatpush.msra.mxu0 0.0
  %3683 = vmatpush.msra.mxu0 0.0
  %3684 = vmatpush.msra.mxu0 0.0
  %3685 = vmatpush.msra.mxu0 0.0
  %3686 = vmatpush.msra.mxu0 %v1969
  %3687 = vmatpush.msra.mxu0 %v225
  %3688 = vmatpush.msra.mxu0 %v224
  %3689 = vmatpush.msra.mxu0 %v223
  %3690 = vmatpush.msra.mxu0 %v222
  %3691 = vmatpush.msra.mxu0 %v221
  %3692 = vmatpush.msra.mxu0 %v220
  %3693 = vmatmul.f32.gmra.mxu0 %v3630
  %v3694 = vpop.f32.mrf.mxu0
  %v3695 = vadd.f32 %v1917, %v3694
  %3696 = vmatmul.f32.gmra.mxu0 %v3633
  %v3697 = vpop.f32.mrf.mxu0
  %v3698 = vadd.f32 %v1917, %v3697
  %3699 = vmatmul.f32.gmra.mxu0 %v3636
  %v3700 = vpop.f32.mrf.mxu0
  %v3701 = vadd.f32 %v1917, %v3700
  %3702 = vmatmul.f32.gmra.mxu0 %v3639
  %v3703 = vpop.f32.mrf.mxu0
  %v3704 = vadd.f32 %v1917, %v3703
  %3705 = vmatmul.f32.gmra.mxu0 %v3642
  %v3706 = vpop.f32.mrf.mxu0
  %v3707 = vadd.f32 %v1917, %v3706
  %3708 = vmatmul.f32.gmra.mxu0 %v3645
  %v3709 = vpop.f32.mrf.mxu0
  %v3710 = vadd.f32 %v1917, %v3709
  %3711 = vmatmul.f32.gmra.mxu0 %v3648
  %v3712 = vpop.f32.mrf.mxu0
  %v3713 = vadd.f32 %v1917, %v3712
  %3714 = vmatmul.f32.gmra.mxu0 %v3651
  %v3715 = vpop.f32.mrf.mxu0
  %v3716 = vadd.f32 %v1917, %v3715
  %3717 = vmatmul.f32.gmra.mxu0 %v3654
  %v3718 = vpop.f32.mrf.mxu0
  %v3719 = vadd.f32 %v1917, %v3718
  %3720 = vmatmul.f32.gmra.mxu0 %v3657
  %v3721 = vpop.f32.mrf.mxu0
  %v3722 = vadd.f32 %v1917, %v3721
  %3723 = vmatmul.f32.gmra.mxu0 %v3660
  %v3724 = vpop.f32.mrf.mxu0
  %v3725 = vadd.f32 %v1917, %v3724
  %3726 = vmatmul.f32.gmra.mxu0 %v3663
  %v3727 = vpop.f32.mrf.mxu0
  %v3728 = vadd.f32 %v1917, %v3727
  %3729 = vmatmul.f32.gmra.mxu0 %v3666
  %v3730 = vpop.f32.mrf.mxu0
  %v3731 = vadd.f32 %v1917, %v3730
  %3732 = vmatmul.f32.gmra.mxu0 %v3669
  %v3733 = vpop.f32.mrf.mxu0
  %v3734 = vadd.f32 %v1917, %v3733
  %3735 = vmatmul.f32.gmra.mxu0 %v3672
  %v3736 = vpop.f32.mrf.mxu0
  %v3737 = vadd.f32 %v1917, %v3736
  %3738 = vmatmul.f32.gmra.mxu0 %v3675
  %v3739 = vpop.f32.mrf.mxu0
  %v3740 = vadd.f32 %v1917, %v3739
  %3741 = vdwg.mxu0
  %v3742 = vmax.f32 %v3695, 0.0
  %v3743 = vmax.f32 %v3698, 0.0
  %v3744 = vmax.f32 %v3701, 0.0
  %v3745 = vmax.f32 %v3704, 0.0
  %v3746 = vmax.f32 %v3707, 0.0
  %v3747 = vmax.f32 %v3710, 0.0
  %v3748 = vmax.f32 %v3713, 0.0
  %v3749 = vmax.f32 %v3716, 0.0
  %v3750 = vmax.f32 %v3719, 0.0
  %v3751 = vmax.f32 %v3722, 0.0
  %v3752 = vmax.f32 %v3725, 0.0
  %v3753 = vmax.f32 %v3728, 0.0
  %v3754 = vmax.f32 %v3731, 0.0
  %v3755 = vmax.f32 %v3734, 0.0
  %v3756 = vmax.f32 %v3737, 0.0
  %v3757 = vmax.f32 %v3740, 0.0
  %v3758 = vsel %vm937, %v3742, 0.0
  %3759 = vadd.xlane.f32.xlu0 %v3758
  %v3760 = vpop.xlane.xlu0 %3759
  %v3761 = vsel %vm937, %v3743, 0.0
  %3762 = vadd.xlane.f32.xlu0 %v3761
  %v3763 = vpop.xlane.xlu0 %3762
  %v3764 = vsel %vm937, %v3744, 0.0
  %3765 = vadd.xlane.f32.xlu0 %v3764
  %v3766 = vpop.xlane.xlu0 %3765
  %v3767 = vsel %vm937, %v3745, 0.0
  %3768 = vadd.xlane.f32.xlu0 %v3767
  %v3769 = vpop.xlane.xlu0 %3768
  %v3770 = vsel %vm937, %v3746, 0.0
  %3771 = vadd.xlane.f32.xlu0 %v3770
  %v3772 = vpop.xlane.xlu0 %3771
  %v3773 = vsel %vm937, %v3747, 0.0
  %3774 = vadd.xlane.f32.xlu0 %v3773
  %v3775 = vpop.xlane.xlu0 %3774
  %v3776 = vsel %vm937, %v3748, 0.0
  %3777 = vadd.xlane.f32.xlu0 %v3776
  %v3778 = vpop.xlane.xlu0 %3777
  %v3779 = vsel %vm937, %v3749, 0.0
  %3780 = vadd.xlane.f32.xlu0 %v3779
  %v3781 = vpop.xlane.xlu0 %3780
  %v3782 = vsel %vm937, %v3750, 0.0
  %3783 = vadd.xlane.f32.xlu0 %v3782
  %v3784 = vpop.xlane.xlu0 %3783
  %v3785 = vsel %vm937, %v3751, 0.0
  %3786 = vadd.xlane.f32.xlu0 %v3785
  %v3787 = vpop.xlane.xlu0 %3786
  %v3788 = vsel %vm937, %v3752, 0.0
  %3789 = vadd.xlane.f32.xlu0 %v3788
  %v3790 = vpop.xlane.xlu0 %3789
  %v3791 = vsel %vm937, %v3753, 0.0
  %3792 = vadd.xlane.f32.xlu0 %v3791
  %v3793 = vpop.xlane.xlu0 %3792
  %v3794 = vsel %vm937, %v3754, 0.0
  %3795 = vadd.xlane.f32.xlu0 %v3794
  %v3796 = vpop.xlane.xlu0 %3795
  %v3797 = vsel %vm937, %v3755, 0.0
  %3798 = vadd.xlane.f32.xlu0 %v3797
  %v3799 = vpop.xlane.xlu0 %3798
  %v3800 = vsel %vm937, %v3756, 0.0
  %3801 = vadd.xlane.f32.xlu0 %v3800
  %v3802 = vpop.xlane.xlu0 %3801
  %v3803 = vsel %vm937, %v3757, 0.0
  %3804 = vadd.xlane.f32.xlu0 %v3803
  %v3805 = vpop.xlane.xlu0 %3804
  %v3806 = vmul.f32 %v3760, %v2106
  %v3807 = vmul.f32 %v3763, %v2106
  %v3808 = vmul.f32 %v3766, %v2106
  %v3809 = vmul.f32 %v3769, %v2106
  %v3810 = vmul.f32 %v3772, %v2106
  %v3811 = vmul.f32 %v3775, %v2106
  %v3812 = vmul.f32 %v3778, %v2106
  %v3813 = vmul.f32 %v3781, %v2106
  %v3814 = vmul.f32 %v3784, %v2106
  %v3815 = vmul.f32 %v3787, %v2106
  %v3816 = vmul.f32 %v3790, %v2106
  %v3817 = vmul.f32 %v3793, %v2106
  %v3818 = vmul.f32 %v3796, %v2106
  %v3819 = vmul.f32 %v3799, %v2106
  %v3820 = vmul.f32 %v3802, %v2106
  %v3821 = vmul.f32 %v3805, %v2106
  %v3822 = vsub.f32 %v3742, %v3806
  %v3823 = vsub.f32 %v3743, %v3807
  %v3824 = vsub.f32 %v3744, %v3808
  %v3825 = vsub.f32 %v3745, %v3809
  %v3826 = vsub.f32 %v3746, %v3810
  %v3827 = vsub.f32 %v3747, %v3811
  %v3828 = vsub.f32 %v3748, %v3812
  %v3829 = vsub.f32 %v3749, %v3813
  %v3830 = vsub.f32 %v3750, %v3814
  %v3831 = vsub.f32 %v3751, %v3815
  %v3832 = vsub.f32 %v3752, %v3816
  %v3833 = vsub.f32 %v3753, %v3817
  %v3834 = vsub.f32 %v3754, %v3818
  %v3835 = vsub.f32 %v3755, %v3819
  %v3836 = vsub.f32 %v3756, %v3820
  %v3837 = vsub.f32 %v3757, %v3821
  %v3838 = vmul.f32 %v3822, %v3822
  %v3839 = vmul.f32 %v3823, %v3823
  %v3840 = vmul.f32 %v3824, %v3824
  %v3841 = vmul.f32 %v3825, %v3825
  %v3842 = vmul.f32 %v3826, %v3826
  %v3843 = vmul.f32 %v3827, %v3827
  %v3844 = vmul.f32 %v3828, %v3828
  %v3845 = vmul.f32 %v3829, %v3829
  %v3846 = vmul.f32 %v3830, %v3830
  %v3847 = vmul.f32 %v3831, %v3831
  %v3848 = vmul.f32 %v3832, %v3832
  %v3849 = vmul.f32 %v3833, %v3833
  %v3850 = vmul.f32 %v3834, %v3834
  %v3851 = vmul.f32 %v3835, %v3835
  %v3852 = vmul.f32 %v3836, %v3836
  %v3853 = vmul.f32 %v3837, %v3837
  %v3854 = vsel %vm937, %v3838, 0.0
  %3855 = vadd.xlane.f32.xlu0 %v3854
  %v3856 = vpop.xlane.xlu0 %3855
  %v3857 = vsel %vm937, %v3839, 0.0
  %3858 = vadd.xlane.f32.xlu0 %v3857
  %v3859 = vpop.xlane.xlu0 %3858
  %v3860 = vsel %vm937, %v3840, 0.0
  %3861 = vadd.xlane.f32.xlu0 %v3860
  %v3862 = vpop.xlane.xlu0 %3861
  %v3863 = vsel %vm937, %v3841, 0.0
  %3864 = vadd.xlane.f32.xlu0 %v3863
  %v3865 = vpop.xlane.xlu0 %3864
  %v3866 = vsel %vm937, %v3842, 0.0
  %3867 = vadd.xlane.f32.xlu0 %v3866
  %v3868 = vpop.xlane.xlu0 %3867
  %v3869 = vsel %vm937, %v3843, 0.0
  %3870 = vadd.xlane.f32.xlu0 %v3869
  %v3871 = vpop.xlane.xlu0 %3870
  %v3872 = vsel %vm937, %v3844, 0.0
  %3873 = vadd.xlane.f32.xlu0 %v3872
  %v3874 = vpop.xlane.xlu0 %3873
  %v3875 = vsel %vm937, %v3845, 0.0
  %3876 = vadd.xlane.f32.xlu0 %v3875
  %v3877 = vpop.xlane.xlu0 %3876
  %v3878 = vsel %vm937, %v3846, 0.0
  %3879 = vadd.xlane.f32.xlu0 %v3878
  %v3880 = vpop.xlane.xlu0 %3879
  %v3881 = vsel %vm937, %v3847, 0.0
  %3882 = vadd.xlane.f32.xlu0 %v3881
  %v3883 = vpop.xlane.xlu0 %3882
  %v3884 = vsel %vm937, %v3848, 0.0
  %3885 = vadd.xlane.f32.xlu0 %v3884
  %v3886 = vpop.xlane.xlu0 %3885
  %v3887 = vsel %vm937, %v3849, 0.0
  %3888 = vadd.xlane.f32.xlu0 %v3887
  %v3889 = vpop.xlane.xlu0 %3888
  %v3890 = vsel %vm937, %v3850, 0.0
  %3891 = vadd.xlane.f32.xlu0 %v3890
  %v3892 = vpop.xlane.xlu0 %3891
  %v3893 = vsel %vm937, %v3851, 0.0
  %3894 = vadd.xlane.f32.xlu0 %v3893
  %v3895 = vpop.xlane.xlu0 %3894
  %v3896 = vsel %vm937, %v3852, 0.0
  %3897 = vadd.xlane.f32.xlu0 %v3896
  %v3898 = vpop.xlane.xlu0 %3897
  %v3899 = vsel %vm937, %v3853, 0.0
  %3900 = vadd.xlane.f32.xlu0 %v3899
  %v3901 = vpop.xlane.xlu0 %3900
  %v3902 = vmul.f32 %v3856, %v2106
  %v3903 = vmul.f32 %v3859, %v2106
  %v3904 = vmul.f32 %v3862, %v2106
  %v3905 = vmul.f32 %v3865, %v2106
  %v3906 = vmul.f32 %v3868, %v2106
  %v3907 = vmul.f32 %v3871, %v2106
  %v3908 = vmul.f32 %v3874, %v2106
  %v3909 = vmul.f32 %v3877, %v2106
  %v3910 = vmul.f32 %v3880, %v2106
  %v3911 = vmul.f32 %v3883, %v2106
  %v3912 = vmul.f32 %v3886, %v2106
  %v3913 = vmul.f32 %v3889, %v2106
  %v3914 = vmul.f32 %v3892, %v2106
  %v3915 = vmul.f32 %v3895, %v2106
  %v3916 = vmul.f32 %v3898, %v2106
  %v3917 = vmul.f32 %v3901, %v2106
  %v3918 = vadd.f32 %v3902, 1e-05
  %v3919 = vadd.f32 %v3903, 1e-05
  %v3920 = vadd.f32 %v3904, 1e-05
  %v3921 = vadd.f32 %v3905, 1e-05
  %v3922 = vadd.f32 %v3906, 1e-05
  %v3923 = vadd.f32 %v3907, 1e-05
  %v3924 = vadd.f32 %v3908, 1e-05
  %v3925 = vadd.f32 %v3909, 1e-05
  %v3926 = vadd.f32 %v3910, 1e-05
  %v3927 = vadd.f32 %v3911, 1e-05
  %v3928 = vadd.f32 %v3912, 1e-05
  %v3929 = vadd.f32 %v3913, 1e-05
  %v3930 = vadd.f32 %v3914, 1e-05
  %v3931 = vadd.f32 %v3915, 1e-05
  %v3932 = vadd.f32 %v3916, 1e-05
  %v3933 = vadd.f32 %v3917, 1e-05
  %v3934 = vrsqrt.pop %v3918
  %v3935 = vmul.f32 %v3934, %v3918
  %v3936 = vmul.f32 %v3935, %v3934
  %v3937 = vmul.f32 0.5, %v3936
  %v3938 = vsub.f32 1.5, %v3937
  %v3939 = vmul.f32 %v3934, %v3938
  %vm3940 = vweird.f32 %v3918
  %vm3941 = vweird.f32 %v3934
  %vm3942 = vmor %vm3940, %vm3941
  %v3943 = vsel %vm3942, %v3934, %v3939
  %v3944 = vrsqrt.pop %v3919
  %v3945 = vmul.f32 %v3944, %v3919
  %v3946 = vmul.f32 %v3945, %v3944
  %v3947 = vmul.f32 0.5, %v3946
  %v3948 = vsub.f32 1.5, %v3947
  %v3949 = vmul.f32 %v3944, %v3948
  %vm3950 = vweird.f32 %v3919
  %vm3951 = vweird.f32 %v3944
  %vm3952 = vmor %vm3950, %vm3951
  %v3953 = vsel %vm3952, %v3944, %v3949
  %v3954 = vrsqrt.pop %v3920
  %v3955 = vmul.f32 %v3954, %v3920
  %v3956 = vmul.f32 %v3955, %v3954
  %v3957 = vmul.f32 0.5, %v3956
  %v3958 = vsub.f32 1.5, %v3957
  %v3959 = vmul.f32 %v3954, %v3958
  %vm3960 = vweird.f32 %v3920
  %vm3961 = vweird.f32 %v3954
  %vm3962 = vmor %vm3960, %vm3961
  %v3963 = vsel %vm3962, %v3954, %v3959
  %v3964 = vrsqrt.pop %v3921
  %v3965 = vmul.f32 %v3964, %v3921
  %v3966 = vmul.f32 %v3965, %v3964
  %v3967 = vmul.f32 0.5, %v3966
  %v3968 = vsub.f32 1.5, %v3967
  %v3969 = vmul.f32 %v3964, %v3968
  %vm3970 = vweird.f32 %v3921
  %vm3971 = vweird.f32 %v3964
  %vm3972 = vmor %vm3970, %vm3971
  %v3973 = vsel %vm3972, %v3964, %v3969
  %v3974 = vrsqrt.pop %v3922
  %v3975 = vmul.f32 %v3974, %v3922
  %v3976 = vmul.f32 %v3975, %v3974
  %v3977 = vmul.f32 0.5, %v3976
  %v3978 = vsub.f32 1.5, %v3977
  %v3979 = vmul.f32 %v3974, %v3978
  %vm3980 = vweird.f32 %v3922
  %vm3981 = vweird.f32 %v3974
  %vm3982 = vmor %vm3980, %vm3981
  %v3983 = vsel %vm3982, %v3974, %v3979
  %v3984 = vrsqrt.pop %v3923
  %v3985 = vmul.f32 %v3984, %v3923
  %v3986 = vmul.f32 %v3985, %v3984
  %v3987 = vmul.f32 0.5, %v3986
  %v3988 = vsub.f32 1.5, %v3987
  %v3989 = vmul.f32 %v3984, %v3988
  %vm3990 = vweird.f32 %v3923
  %vm3991 = vweird.f32 %v3984
  %vm3992 = vmor %vm3990, %vm3991
  %v3993 = vsel %vm3992, %v3984, %v3989
  %v3994 = vrsqrt.pop %v3924
  %v3995 = vmul.f32 %v3994, %v3924
  %v3996 = vmul.f32 %v3995, %v3994
  %v3997 = vmul.f32 0.5, %v3996
  %v3998 = vsub.f32 1.5, %v3997
  %v3999 = vmul.f32 %v3994, %v3998
  %vm4000 = vweird.f32 %v3924
  %vm4001 = vweird.f32 %v3994
  %vm4002 = vmor %vm4000, %vm4001
  %v4003 = vsel %vm4002, %v3994, %v3999
  %v4004 = vrsqrt.pop %v3925
  %v4005 = vmul.f32 %v4004, %v3925
  %v4006 = vmul.f32 %v4005, %v4004
  %v4007 = vmul.f32 0.5, %v4006
  %v4008 = vsub.f32 1.5, %v4007
  %v4009 = vmul.f32 %v4004, %v4008
  %vm4010 = vweird.f32 %v3925
  %vm4011 = vweird.f32 %v4004
  %vm4012 = vmor %vm4010, %vm4011
  %v4013 = vsel %vm4012, %v4004, %v4009
  %v4014 = vrsqrt.pop %v3926
  %v4015 = vmul.f32 %v4014, %v3926
  %v4016 = vmul.f32 %v4015, %v4014
  %v4017 = vmul.f32 0.5, %v4016
  %v4018 = vsub.f32 1.5, %v4017
  %v4019 = vmul.f32 %v4014, %v4018
  %vm4020 = vweird.f32 %v3926
  %vm4021 = vweird.f32 %v4014
  %vm4022 = vmor %vm4020, %vm4021
  %v4023 = vsel %vm4022, %v4014, %v4019
  %v4024 = vrsqrt.pop %v3927
  %v4025 = vmul.f32 %v4024, %v3927
  %v4026 = vmul.f32 %v4025, %v4024
  %v4027 = vmul.f32 0.5, %v4026
  %v4028 = vsub.f32 1.5, %v4027
  %v4029 = vmul.f32 %v4024, %v4028
  %vm4030 = vweird.f32 %v3927
  %vm4031 = vweird.f32 %v4024
  %vm4032 = vmor %vm4030, %vm4031
  %v4033 = vsel %vm4032, %v4024, %v4029
  %v4034 = vrsqrt.pop %v3928
  %v4035 = vmul.f32 %v4034, %v3928
  %v4036 = vmul.f32 %v4035, %v4034
  %v4037 = vmul.f32 0.5, %v4036
  %v4038 = vsub.f32 1.5, %v4037
  %v4039 = vmul.f32 %v4034, %v4038
  %vm4040 = vweird.f32 %v3928
  %vm4041 = vweird.f32 %v4034
  %vm4042 = vmor %vm4040, %vm4041
  %v4043 = vsel %vm4042, %v4034, %v4039
  %v4044 = vrsqrt.pop %v3929
  %v4045 = vmul.f32 %v4044, %v3929
  %v4046 = vmul.f32 %v4045, %v4044
  %v4047 = vmul.f32 0.5, %v4046
  %v4048 = vsub.f32 1.5, %v4047
  %v4049 = vmul.f32 %v4044, %v4048
  %vm4050 = vweird.f32 %v3929
  %vm4051 = vweird.f32 %v4044
  %vm4052 = vmor %vm4050, %vm4051
  %v4053 = vsel %vm4052, %v4044, %v4049
  %v4054 = vrsqrt.pop %v3930
  %v4055 = vmul.f32 %v4054, %v3930
  %v4056 = vmul.f32 %v4055, %v4054
  %v4057 = vmul.f32 0.5, %v4056
  %v4058 = vsub.f32 1.5, %v4057
  %v4059 = vmul.f32 %v4054, %v4058
  %vm4060 = vweird.f32 %v3930
  %vm4061 = vweird.f32 %v4054
  %vm4062 = vmor %vm4060, %vm4061
  %v4063 = vsel %vm4062, %v4054, %v4059
  %v4064 = vrsqrt.pop %v3931
  %v4065 = vmul.f32 %v4064, %v3931
  %v4066 = vmul.f32 %v4065, %v4064
  %v4067 = vmul.f32 0.5, %v4066
  %v4068 = vsub.f32 1.5, %v4067
  %v4069 = vmul.f32 %v4064, %v4068
  %vm4070 = vweird.f32 %v3931
  %vm4071 = vweird.f32 %v4064
  %vm4072 = vmor %vm4070, %vm4071
  %v4073 = vsel %vm4072, %v4064, %v4069
  %v4074 = vrsqrt.pop %v3932
  %v4075 = vmul.f32 %v4074, %v3932
  %v4076 = vmul.f32 %v4075, %v4074
  %v4077 = vmul.f32 0.5, %v4076
  %v4078 = vsub.f32 1.5, %v4077
  %v4079 = vmul.f32 %v4074, %v4078
  %vm4080 = vweird.f32 %v3932
  %vm4081 = vweird.f32 %v4074
  %vm4082 = vmor %vm4080, %vm4081
  %v4083 = vsel %vm4082, %v4074, %v4079
  %v4084 = vrsqrt.pop %v3933
  %v4085 = vmul.f32 %v4084, %v3933
  %v4086 = vmul.f32 %v4085, %v4084
  %v4087 = vmul.f32 0.5, %v4086
  %v4088 = vsub.f32 1.5, %v4087
  %v4089 = vmul.f32 %v4084, %v4088
  %vm4090 = vweird.f32 %v3933
  %vm4091 = vweird.f32 %v4084
  %vm4092 = vmor %vm4090, %vm4091
  %v4093 = vsel %vm4092, %v4084, %v4089
  %v4094 = vmul.f32 %v3822, %v3943
  %v4095 = vmul.f32 %v3823, %v3953
  %v4096 = vmul.f32 %v3824, %v3963
  %v4097 = vmul.f32 %v3825, %v3973
  %v4098 = vmul.f32 %v3826, %v3983
  %v4099 = vmul.f32 %v3827, %v3993
  %v4100 = vmul.f32 %v3828, %v4003
  %v4101 = vmul.f32 %v3829, %v4013
  %v4102 = vmul.f32 %v3830, %v4023
  %v4103 = vmul.f32 %v3831, %v4033
  %v4104 = vmul.f32 %v3832, %v4043
  %v4105 = vmul.f32 %v3833, %v4053
  %v4106 = vmul.f32 %v3834, %v4063
  %v4107 = vmul.f32 %v3835, %v4073
  %v4108 = vmul.f32 %v3836, %v4083
  %v4109 = vmul.f32 %v3837, %v4093
  %v4110 = vmul.f32 %v4094, %v2412
  %v4111 = vmul.f32 %v4095, %v2412
  %v4112 = vmul.f32 %v4096, %v2412
  %v4113 = vmul.f32 %v4097, %v2412
  %v4114 = vmul.f32 %v4098, %v2412
  %v4115 = vmul.f32 %v4099, %v2412
  %v4116 = vmul.f32 %v4100, %v2412
  %v4117 = vmul.f32 %v4101, %v2412
  %v4118 = vmul.f32 %v4102, %v2412
  %v4119 = vmul.f32 %v4103, %v2412
  %v4120 = vmul.f32 %v4104, %v2412
  %v4121 = vmul.f32 %v4105, %v2412
  %v4122 = vmul.f32 %v4106, %v2412
  %v4123 = vmul.f32 %v4107, %v2412
  %v4124 = vmul.f32 %v4108, %v2412
  %v4125 = vmul.f32 %v4109, %v2412
  %v4126 = vadd.f32 %v4110, %v2431
  %v4127 = vadd.f32 %v4111, %v2431
  %v4128 = vadd.f32 %v4112, %v2431
  %v4129 = vadd.f32 %v4113, %v2431
  %v4130 = vadd.f32 %v4114, %v2431
  %v4131 = vadd.f32 %v4115, %v2431
  %v4132 = vadd.f32 %v4116, %v2431
  %v4133 = vadd.f32 %v4117, %v2431
  %v4134 = vadd.f32 %v4118, %v2431
  %v4135 = vadd.f32 %v4119, %v2431
  %v4136 = vadd.f32 %v4120, %v2431
  %v4137 = vadd.f32 %v4121, %v2431
  %v4138 = vadd.f32 %v4122, %v2431
  %v4139 = vadd.f32 %v4123, %v2431
  %v4140 = vadd.f32 %v4124, %v2431
  %v4141 = vadd.f32 %v4125, %v2431
  %v4142 = vld [vmem:[%s37] sm:$0xff]
  %v4143 = vld [vmem:[%s37 + $0x8] sm:$0xff]
  %v4144 = vld [vmem:[%s39] sm:$0xff]
  %v4145 = vld [vmem:[%s39 + $0x8] sm:$0xff]
  %v4146 = vld [vmem:[%s41] sm:$0x1]
  %v4147 = vld [vmem:[%s43] sm:$0xff]
  %v4148 = vld [vmem:[%s45] sm:$0xff]
  %v4149 = vld [vmem:[%s47] sm:$0x1]
  %v4150 = vld [vmem:[%s49] sm:$0xff]
  %v4151 = vld [vmem:[%s49 + $0x8] sm:$0xff]
  %v4152 = vld [vmem:[%s51] sm:$0x1]
  %v4153 = vld [vmem:[%s53] sm:$0xff]
  %v4154 = vld [vmem:[%s53 + $0x8] sm:$0xff]
  %v4155 = vld [vmem:[%s55] sm:$0xff]
  %v4156 = vld [vmem:[%s55 + $0x8] sm:$0xff]
  %v4157 = vld [vmem:[%s57] sm:$0xff]
  %v4158 = vld [vmem:[%s57 + $0x8] sm:$0xff]
  %v4159 = vld [vmem:[%s57 + $0x10] sm:$0xff]
  %v4160 = vld [vmem:[%s57 + $0x18] sm:$0xff]
  %v4161 = vld [vmem:[%s57 + $0x20] sm:$0xff]
  %v4162 = vld [vmem:[%s57 + $0x28] sm:$0xff]
  %v4163 = vld [vmem:[%s59] sm:$0x1]
  %v4164 = vld [vmem:[%s61] sm:$0xff]
  %v4165 = vld [vmem:[%s61 + $0x8] sm:$0xff]
  %v4166 = vld [vmem:[%s61 + $0x10] sm:$0xff]
  %v4167 = vld [vmem:[%s61 + $0x18] sm:$0xff]
  %v4168 = vld [vmem:[%s61 + $0x20] sm:$0xff]
  %v4169 = vld [vmem:[%s61 + $0x28] sm:$0xff]
  %v4170 = vld [vmem:[%s61 + $0x30] sm:$0xff]
  %v4171 = vld [vmem:[%s61 + $0x38] sm:$0xff]
  %v4172 = vld [vmem:[%s63] sm:$0x1]
  %v4173 = vld [vmem:[%s65] sm:$0x1]
  %v4174 = vld [vmem:[%s67] sm:$0x1]
  %v4176 = vsel %vm937, %v2433, 0
  %v4179 = vsel %vm937, %v2434, 0
  %v4182 = vsel %vm937, %v2435, 0
  %v4185 = vsel %vm937, %v2436, 0
  %v4188 = vsel %vm937, %v2437, 0
  %v4191 = vsel %vm937, %v2438, 0
  %v4194 = vsel %vm937, %v2439, 0
  %v4197 = vsel %vm937, %v2440, 0
  %v4200 = vsel %vm937, %v2441, 0
  %v4203 = vsel %vm937, %v2442, 0
  %v4206 = vsel %vm937, %v2443, 0
  %v4209 = vsel %vm937, %v2444, 0
  %v4212 = vsel %vm937, %v2445, 0
  %v4215 = vsel %vm937, %v2446, 0
  %v4218 = vsel %vm937, %v2447, 0
  %v4221 = vsel %vm937, %v2448, 0
  %v4224 = vsel %vm937, %v4126, 0
  %v4227 = vsel %vm937, %v4127, 0
  %v4230 = vsel %vm937, %v4128, 0
  %v4233 = vsel %vm937, %v4129, 0
  %v4236 = vsel %vm937, %v4130, 0
  %v4239 = vsel %vm937, %v4131, 0
  %v4242 = vsel %vm937, %v4132, 0
  %v4245 = vsel %vm937, %v4133, 0
  %v4248 = vsel %vm937, %v4134, 0
  %v4251 = vsel %vm937, %v4135, 0
  %v4254 = vsel %vm937, %v4136, 0
  %v4257 = vsel %vm937, %v4137, 0
  %v4260 = vsel %vm937, %v4138, 0
  %v4263 = vsel %vm937, %v4139, 0
  %v4266 = vsel %vm937, %v4140, 0
  %v4269 = vsel %vm937, %v4141, 0
  %4271 = vmatpush.msra.mxu0 0.0
  %4272 = vmatpush.msra.mxu0 0.0
  %4273 = vmatpush.msra.mxu0 0.0
  %4274 = vmatpush.msra.mxu0 0.0
  %4275 = vmatpush.msra.mxu0 0.0
  %4276 = vmatpush.msra.mxu0 0.0
  %4277 = vmatpush.msra.mxu0 0.0
  %4278 = vmatpush.msra.mxu0 0.0
  %4279 = vmatpush.msra.mxu0 0.0
  %4280 = vmatpush.msra.mxu0 0.0
  %4281 = vmatpush.msra.mxu0 0.0
  %4282 = vmatpush.msra.mxu0 0.0
  %4283 = vmatpush.msra.mxu0 0.0
  %4284 = vmatpush.msra.mxu0 0.0
  %4285 = vmatpush.msra.mxu0 %v4158
  %4286 = vmatpush.msra.mxu0 %v4157
  %4287 = vmatmul.f32.gmra.mxu0 %v4176
  %v4288 = vpop.f32.mrf.mxu0
  %v4289 = vadd.f32 0.0, %v4288
  %4290 = vmatmul.f32.gmra.mxu0 %v4179
  %v4291 = vpop.f32.mrf.mxu0
  %v4292 = vadd.f32 0.0, %v4291
  %4293 = vmatmul.f32.gmra.mxu0 %v4182
  %v4294 = vpop.f32.mrf.mxu0
  %v4295 = vadd.f32 0.0, %v4294
  %4296 = vmatmul.f32.gmra.mxu0 %v4185
  %v4297 = vpop.f32.mrf.mxu0
  %v4298 = vadd.f32 0.0, %v4297
  %4299 = vmatmul.f32.gmra.mxu0 %v4188
  %v4300 = vpop.f32.mrf.mxu0
  %v4301 = vadd.f32 0.0, %v4300
  %4302 = vmatmul.f32.gmra.mxu0 %v4191
  %v4303 = vpop.f32.mrf.mxu0
  %v4304 = vadd.f32 0.0, %v4303
  %4305 = vmatmul.f32.gmra.mxu0 %v4194
  %v4306 = vpop.f32.mrf.mxu0
  %v4307 = vadd.f32 0.0, %v4306
  %4308 = vmatmul.f32.gmra.mxu0 %v4197
  %v4309 = vpop.f32.mrf.mxu0
  %v4310 = vadd.f32 0.0, %v4309
  %4311 = vmatmul.f32.gmra.mxu0 %v4200
  %v4312 = vpop.f32.mrf.mxu0
  %v4313 = vadd.f32 0.0, %v4312
  %4314 = vmatmul.f32.gmra.mxu0 %v4203
  %v4315 = vpop.f32.mrf.mxu0
  %v4316 = vadd.f32 0.0, %v4315
  %4317 = vmatmul.f32.gmra.mxu0 %v4206
  %v4318 = vpop.f32.mrf.mxu0
  %v4319 = vadd.f32 0.0, %v4318
  %4320 = vmatmul.f32.gmra.mxu0 %v4209
  %v4321 = vpop.f32.mrf.mxu0
  %v4322 = vadd.f32 0.0, %v4321
  %4323 = vmatmul.f32.gmra.mxu0 %v4212
  %v4324 = vpop.f32.mrf.mxu0
  %v4325 = vadd.f32 0.0, %v4324
  %4326 = vmatmul.f32.gmra.mxu0 %v4215
  %v4327 = vpop.f32.mrf.mxu0
  %v4328 = vadd.f32 0.0, %v4327
  %4329 = vmatmul.f32.gmra.mxu0 %v4218
  %v4330 = vpop.f32.mrf.mxu0
  %v4331 = vadd.f32 0.0, %v4330
  %4332 = vmatmul.f32.gmra.mxu0 %v4221
  %v4333 = vpop.f32.mrf.mxu0
  %v4334 = vadd.f32 0.0, %v4333
  %4335 = vmatmul.f32.gmra.mxu0 %v4224
  %v4336 = vpop.f32.mrf.mxu0
  %v4337 = vadd.f32 0.0, %v4336
  %4338 = vmatmul.f32.gmra.mxu0 %v4227
  %v4339 = vpop.f32.mrf.mxu0
  %v4340 = vadd.f32 0.0, %v4339
  %4341 = vmatmul.f32.gmra.mxu0 %v4230
  %v4342 = vpop.f32.mrf.mxu0
  %v4343 = vadd.f32 0.0, %v4342
  %4344 = vmatmul.f32.gmra.mxu0 %v4233
  %v4345 = vpop.f32.mrf.mxu0
  %v4346 = vadd.f32 0.0, %v4345
  %4347 = vmatmul.f32.gmra.mxu0 %v4236
  %v4348 = vpop.f32.mrf.mxu0
  %v4349 = vadd.f32 0.0, %v4348
  %4350 = vmatmul.f32.gmra.mxu0 %v4239
  %v4351 = vpop.f32.mrf.mxu0
  %v4352 = vadd.f32 0.0, %v4351
  %4353 = vmatmul.f32.gmra.mxu0 %v4242
  %v4354 = vpop.f32.mrf.mxu0
  %v4355 = vadd.f32 0.0, %v4354
  %4356 = vmatmul.f32.gmra.mxu0 %v4245
  %v4357 = vpop.f32.mrf.mxu0
  %v4358 = vadd.f32 0.0, %v4357
  %4359 = vmatmul.f32.gmra.mxu0 %v4248
  %v4360 = vpop.f32.mrf.mxu0
  %v4361 = vadd.f32 0.0, %v4360
  %4362 = vmatmul.f32.gmra.mxu0 %v4251
  %v4363 = vpop.f32.mrf.mxu0
  %v4364 = vadd.f32 0.0, %v4363
  %4365 = vmatmul.f32.gmra.mxu0 %v4254
  %v4366 = vpop.f32.mrf.mxu0
  %v4367 = vadd.f32 0.0, %v4366
  %4368 = vmatmul.f32.gmra.mxu0 %v4257
  %v4369 = vpop.f32.mrf.mxu0
  %v4370 = vadd.f32 0.0, %v4369
  %4371 = vmatmul.f32.gmra.mxu0 %v4260
  %v4372 = vpop.f32.mrf.mxu0
  %v4373 = vadd.f32 0.0, %v4372
  %4374 = vmatmul.f32.gmra.mxu0 %v4263
  %v4375 = vpop.f32.mrf.mxu0
  %v4376 = vadd.f32 0.0, %v4375
  %4377 = vmatmul.f32.gmra.mxu0 %v4266
  %v4378 = vpop.f32.mrf.mxu0
  %v4379 = vadd.f32 0.0, %v4378
  %4380 = vmatmul.f32.gmra.mxu0 %v4269
  %v4381 = vpop.f32.mrf.mxu0
  %v4382 = vadd.f32 0.0, %v4381
  %4383 = vdwg.mxu0
  %4384 = vmatpush.msra.mxu0 0.0
  %4385 = vmatpush.msra.mxu0 0.0
  %4386 = vmatpush.msra.mxu0 0.0
  %4387 = vmatpush.msra.mxu0 0.0
  %4388 = vmatpush.msra.mxu0 0.0
  %4389 = vmatpush.msra.mxu0 0.0
  %4390 = vmatpush.msra.mxu0 0.0
  %4391 = vmatpush.msra.mxu0 0.0
  %4392 = vmatpush.msra.mxu0 0.0
  %4393 = vmatpush.msra.mxu0 0.0
  %4394 = vmatpush.msra.mxu0 0.0
  %4395 = vmatpush.msra.mxu0 0.0
  %4396 = vmatpush.msra.mxu0 0.0
  %4397 = vmatpush.msra.mxu0 0.0
  %4398 = vmatpush.msra.mxu0 %v4160
  %4399 = vmatpush.msra.mxu0 %v4159
  %4400 = vmatmul.f32.gmra.mxu0 %v4176
  %v4401 = vpop.f32.mrf.mxu0
  %v4402 = vadd.f32 0.0, %v4401
  %4403 = vmatmul.f32.gmra.mxu0 %v4179
  %v4404 = vpop.f32.mrf.mxu0
  %v4405 = vadd.f32 0.0, %v4404
  %4406 = vmatmul.f32.gmra.mxu0 %v4182
  %v4407 = vpop.f32.mrf.mxu0
  %v4408 = vadd.f32 0.0, %v4407
  %4409 = vmatmul.f32.gmra.mxu0 %v4185
  %v4410 = vpop.f32.mrf.mxu0
  %v4411 = vadd.f32 0.0, %v4410
  %4412 = vmatmul.f32.gmra.mxu0 %v4188
  %v4413 = vpop.f32.mrf.mxu0
  %v4414 = vadd.f32 0.0, %v4413
  %4415 = vmatmul.f32.gmra.mxu0 %v4191
  %v4416 = vpop.f32.mrf.mxu0
  %v4417 = vadd.f32 0.0, %v4416
  %4418 = vmatmul.f32.gmra.mxu0 %v4194
  %v4419 = vpop.f32.mrf.mxu0
  %v4420 = vadd.f32 0.0, %v4419
  %4421 = vmatmul.f32.gmra.mxu0 %v4197
  %v4422 = vpop.f32.mrf.mxu0
  %v4423 = vadd.f32 0.0, %v4422
  %4424 = vmatmul.f32.gmra.mxu0 %v4200
  %v4425 = vpop.f32.mrf.mxu0
  %v4426 = vadd.f32 0.0, %v4425
  %4427 = vmatmul.f32.gmra.mxu0 %v4203
  %v4428 = vpop.f32.mrf.mxu0
  %v4429 = vadd.f32 0.0, %v4428
  %4430 = vmatmul.f32.gmra.mxu0 %v4206
  %v4431 = vpop.f32.mrf.mxu0
  %v4432 = vadd.f32 0.0, %v4431
  %4433 = vmatmul.f32.gmra.mxu0 %v4209
  %v4434 = vpop.f32.mrf.mxu0
  %v4435 = vadd.f32 0.0, %v4434
  %4436 = vmatmul.f32.gmra.mxu0 %v4212
  %v4437 = vpop.f32.mrf.mxu0
  %v4438 = vadd.f32 0.0, %v4437
  %4439 = vmatmul.f32.gmra.mxu0 %v4215
  %v4440 = vpop.f32.mrf.mxu0
  %v4441 = vadd.f32 0.0, %v4440
  %4442 = vmatmul.f32.gmra.mxu0 %v4218
  %v4443 = vpop.f32.mrf.mxu0
  %v4444 = vadd.f32 0.0, %v4443
  %4445 = vmatmul.f32.gmra.mxu0 %v4221
  %v4446 = vpop.f32.mrf.mxu0
  %v4447 = vadd.f32 0.0, %v4446
  %4448 = vmatmul.f32.gmra.mxu0 %v4224
  %v4449 = vpop.f32.mrf.mxu0
  %v4450 = vadd.f32 0.0, %v4449
  %4451 = vmatmul.f32.gmra.mxu0 %v4227
  %v4452 = vpop.f32.mrf.mxu0
  %v4453 = vadd.f32 0.0, %v4452
  %4454 = vmatmul.f32.gmra.mxu0 %v4230
  %v4455 = vpop.f32.mrf.mxu0
  %v4456 = vadd.f32 0.0, %v4455
  %4457 = vmatmul.f32.gmra.mxu0 %v4233
  %v4458 = vpop.f32.mrf.mxu0
  %v4459 = vadd.f32 0.0, %v4458
  %4460 = vmatmul.f32.gmra.mxu0 %v4236
  %v4461 = vpop.f32.mrf.mxu0
  %v4462 = vadd.f32 0.0, %v4461
  %4463 = vmatmul.f32.gmra.mxu0 %v4239
  %v4464 = vpop.f32.mrf.mxu0
  %v4465 = vadd.f32 0.0, %v4464
  %4466 = vmatmul.f32.gmra.mxu0 %v4242
  %v4467 = vpop.f32.mrf.mxu0
  %v4468 = vadd.f32 0.0, %v4467
  %4469 = vmatmul.f32.gmra.mxu0 %v4245
  %v4470 = vpop.f32.mrf.mxu0
  %v4471 = vadd.f32 0.0, %v4470
  %4472 = vmatmul.f32.gmra.mxu0 %v4248
  %v4473 = vpop.f32.mrf.mxu0
  %v4474 = vadd.f32 0.0, %v4473
  %4475 = vmatmul.f32.gmra.mxu0 %v4251
  %v4476 = vpop.f32.mrf.mxu0
  %v4477 = vadd.f32 0.0, %v4476
  %4478 = vmatmul.f32.gmra.mxu0 %v4254
  %v4479 = vpop.f32.mrf.mxu0
  %v4480 = vadd.f32 0.0, %v4479
  %4481 = vmatmul.f32.gmra.mxu0 %v4257
  %v4482 = vpop.f32.mrf.mxu0
  %v4483 = vadd.f32 0.0, %v4482
  %4484 = vmatmul.f32.gmra.mxu0 %v4260
  %v4485 = vpop.f32.mrf.mxu0
  %v4486 = vadd.f32 0.0, %v4485
  %4487 = vmatmul.f32.gmra.mxu0 %v4263
  %v4488 = vpop.f32.mrf.mxu0
  %v4489 = vadd.f32 0.0, %v4488
  %4490 = vmatmul.f32.gmra.mxu0 %v4266
  %v4491 = vpop.f32.mrf.mxu0
  %v4492 = vadd.f32 0.0, %v4491
  %4493 = vmatmul.f32.gmra.mxu0 %v4269
  %v4494 = vpop.f32.mrf.mxu0
  %v4495 = vadd.f32 0.0, %v4494
  %4496 = vdwg.mxu0
  %4497 = vmatpush.msra.mxu0 0.0
  %4498 = vmatpush.msra.mxu0 0.0
  %4499 = vmatpush.msra.mxu0 0.0
  %4500 = vmatpush.msra.mxu0 0.0
  %4501 = vmatpush.msra.mxu0 0.0
  %4502 = vmatpush.msra.mxu0 0.0
  %4503 = vmatpush.msra.mxu0 0.0
  %4504 = vmatpush.msra.mxu0 0.0
  %4505 = vmatpush.msra.mxu0 0.0
  %4506 = vmatpush.msra.mxu0 0.0
  %4507 = vmatpush.msra.mxu0 0.0
  %4508 = vmatpush.msra.mxu0 0.0
  %4509 = vmatpush.msra.mxu0 0.0
  %4510 = vmatpush.msra.mxu0 0.0
  %4511 = vmatpush.msra.mxu0 %v4162
  %4512 = vmatpush.msra.mxu0 %v4161
  %4513 = vmatmul.f32.gmra.mxu0 %v4176
  %v4514 = vpop.f32.mrf.mxu0
  %v4515 = vadd.f32 0.0, %v4514
  %4516 = vmatmul.f32.gmra.mxu0 %v4179
  %v4517 = vpop.f32.mrf.mxu0
  %v4518 = vadd.f32 0.0, %v4517
  %4519 = vmatmul.f32.gmra.mxu0 %v4182
  %v4520 = vpop.f32.mrf.mxu0
  %v4521 = vadd.f32 0.0, %v4520
  %4522 = vmatmul.f32.gmra.mxu0 %v4185
  %v4523 = vpop.f32.mrf.mxu0
  %v4524 = vadd.f32 0.0, %v4523
  %4525 = vmatmul.f32.gmra.mxu0 %v4188
  %v4526 = vpop.f32.mrf.mxu0
  %v4527 = vadd.f32 0.0, %v4526
  %4528 = vmatmul.f32.gmra.mxu0 %v4191
  %v4529 = vpop.f32.mrf.mxu0
  %v4530 = vadd.f32 0.0, %v4529
  %4531 = vmatmul.f32.gmra.mxu0 %v4194
  %v4532 = vpop.f32.mrf.mxu0
  %v4533 = vadd.f32 0.0, %v4532
  %4534 = vmatmul.f32.gmra.mxu0 %v4197
  %v4535 = vpop.f32.mrf.mxu0
  %v4536 = vadd.f32 0.0, %v4535
  %4537 = vmatmul.f32.gmra.mxu0 %v4200
  %v4538 = vpop.f32.mrf.mxu0
  %v4539 = vadd.f32 0.0, %v4538
  %4540 = vmatmul.f32.gmra.mxu0 %v4203
  %v4541 = vpop.f32.mrf.mxu0
  %v4542 = vadd.f32 0.0, %v4541
  %4543 = vmatmul.f32.gmra.mxu0 %v4206
  %v4544 = vpop.f32.mrf.mxu0
  %v4545 = vadd.f32 0.0, %v4544
  %4546 = vmatmul.f32.gmra.mxu0 %v4209
  %v4547 = vpop.f32.mrf.mxu0
  %v4548 = vadd.f32 0.0, %v4547
  %4549 = vmatmul.f32.gmra.mxu0 %v4212
  %v4550 = vpop.f32.mrf.mxu0
  %v4551 = vadd.f32 0.0, %v4550
  %4552 = vmatmul.f32.gmra.mxu0 %v4215
  %v4553 = vpop.f32.mrf.mxu0
  %v4554 = vadd.f32 0.0, %v4553
  %4555 = vmatmul.f32.gmra.mxu0 %v4218
  %v4556 = vpop.f32.mrf.mxu0
  %v4557 = vadd.f32 0.0, %v4556
  %4558 = vmatmul.f32.gmra.mxu0 %v4221
  %v4559 = vpop.f32.mrf.mxu0
  %v4560 = vadd.f32 0.0, %v4559
  %4561 = vmatmul.f32.gmra.mxu0 %v4224
  %v4562 = vpop.f32.mrf.mxu0
  %v4563 = vadd.f32 0.0, %v4562
  %4564 = vmatmul.f32.gmra.mxu0 %v4227
  %v4565 = vpop.f32.mrf.mxu0
  %v4566 = vadd.f32 0.0, %v4565
  %4567 = vmatmul.f32.gmra.mxu0 %v4230
  %v4568 = vpop.f32.mrf.mxu0
  %v4569 = vadd.f32 0.0, %v4568
  %4570 = vmatmul.f32.gmra.mxu0 %v4233
  %v4571 = vpop.f32.mrf.mxu0
  %v4572 = vadd.f32 0.0, %v4571
  %4573 = vmatmul.f32.gmra.mxu0 %v4236
  %v4574 = vpop.f32.mrf.mxu0
  %v4575 = vadd.f32 0.0, %v4574
  %4576 = vmatmul.f32.gmra.mxu0 %v4239
  %v4577 = vpop.f32.mrf.mxu0
  %v4578 = vadd.f32 0.0, %v4577
  %4579 = vmatmul.f32.gmra.mxu0 %v4242
  %v4580 = vpop.f32.mrf.mxu0
  %v4581 = vadd.f32 0.0, %v4580
  %4582 = vmatmul.f32.gmra.mxu0 %v4245
  %v4583 = vpop.f32.mrf.mxu0
  %v4584 = vadd.f32 0.0, %v4583
  %4585 = vmatmul.f32.gmra.mxu0 %v4248
  %v4586 = vpop.f32.mrf.mxu0
  %v4587 = vadd.f32 0.0, %v4586
  %4588 = vmatmul.f32.gmra.mxu0 %v4251
  %v4589 = vpop.f32.mrf.mxu0
  %v4590 = vadd.f32 0.0, %v4589
  %4591 = vmatmul.f32.gmra.mxu0 %v4254
  %v4592 = vpop.f32.mrf.mxu0
  %v4593 = vadd.f32 0.0, %v4592
  %4594 = vmatmul.f32.gmra.mxu0 %v4257
  %v4595 = vpop.f32.mrf.mxu0
  %v4596 = vadd.f32 0.0, %v4595
  %4597 = vmatmul.f32.gmra.mxu0 %v4260
  %v4598 = vpop.f32.mrf.mxu0
  %v4599 = vadd.f32 0.0, %v4598
  %4600 = vmatmul.f32.gmra.mxu0 %v4263
  %v4601 = vpop.f32.mrf.mxu0
  %v4602 = vadd.f32 0.0, %v4601
  %4603 = vmatmul.f32.gmra.mxu0 %v4266
  %v4604 = vpop.f32.mrf.mxu0
  %v4605 = vadd.f32 0.0, %v4604
  %4606 = vmatmul.f32.gmra.mxu0 %v4269
  %v4607 = vpop.f32.mrf.mxu0
  %v4608 = vadd.f32 0.0, %v4607
  %4609 = vdwg.mxu0
  %4611 = vset.pattern.permute.xlu0 0
  %4612 = vperm.xlu0 %4611, %v4142
  %v4613 = vpop.permute.xlu0 %4612
  %4616 = vset.pattern.permute.xlu0 0
  %4617 = vperm.xlu0 %4616, %v4143
  %v4618 = vpop.permute.xlu0 %4617
  %v4620 = vmul.f32 %v2433, %v4613
  %v4621 = vmul.f32 %v2434, %v4618
  %v4622 = vmul.f32 %v2435, %v4613
  %v4623 = vmul.f32 %v2436, %v4618
  %v4624 = vmul.f32 %v2437, %v4613
  %v4625 = vmul.f32 %v2438, %v4618
  %v4626 = vmul.f32 %v2439, %v4613
  %v4627 = vmul.f32 %v2440, %v4618
  %v4628 = vmul.f32 %v2441, %v4613
  %v4629 = vmul.f32 %v2442, %v4618
  %v4630 = vmul.f32 %v2443, %v4613
  %v4631 = vmul.f32 %v2444, %v4618
  %v4632 = vmul.f32 %v2445, %v4613
  %v4633 = vmul.f32 %v2446, %v4618
  %v4634 = vmul.f32 %v2447, %v4613
  %v4635 = vmul.f32 %v2448, %v4618
  %v4636 = vsel %vm937, %v4620, 0.0
  %v4637 = vsel %vm937, %v4621, 0.0
  %v4638 = vadd.f32 %v4636, %v4637
  %v4639 = vrot.slane %v4638, 4
  %v4640 = vadd.f32 %v4638, %v4639
  %v4641 = vrot.slane %v4640, 2
  %v4642 = vadd.f32 %v4640, %v4641
  %v4643 = vrot.slane %v4642, 1
  %v4644 = vadd.f32 %v4642, %v4643
  %v4645 = vsel %vm937, %v4622, 0.0
  %v4646 = vsel %vm937, %v4623, 0.0
  %v4647 = vadd.f32 %v4645, %v4646
  %v4648 = vrot.slane %v4647, 4
  %v4649 = vadd.f32 %v4647, %v4648
  %v4650 = vrot.slane %v4649, 2
  %v4651 = vadd.f32 %v4649, %v4650
  %v4652 = vrot.slane %v4651, 1
  %v4653 = vadd.f32 %v4651, %v4652
  %v4654 = vsel %vm937, %v4624, 0.0
  %v4655 = vsel %vm937, %v4625, 0.0
  %v4656 = vadd.f32 %v4654, %v4655
  %v4657 = vrot.slane %v4656, 4
  %v4658 = vadd.f32 %v4656, %v4657
  %v4659 = vrot.slane %v4658, 2
  %v4660 = vadd.f32 %v4658, %v4659
  %v4661 = vrot.slane %v4660, 1
  %v4662 = vadd.f32 %v4660, %v4661
  %v4663 = vsel %vm937, %v4626, 0.0
  %v4664 = vsel %vm937, %v4627, 0.0
  %v4665 = vadd.f32 %v4663, %v4664
  %v4666 = vrot.slane %v4665, 4
  %v4667 = vadd.f32 %v4665, %v4666
  %v4668 = vrot.slane %v4667, 2
  %v4669 = vadd.f32 %v4667, %v4668
  %v4670 = vrot.slane %v4669, 1
  %v4671 = vadd.f32 %v4669, %v4670
  %v4672 = vsel %vm937, %v4628, 0.0
  %v4673 = vsel %vm937, %v4629, 0.0
  %v4674 = vadd.f32 %v4672, %v4673
  %v4675 = vrot.slane %v4674, 4
  %v4676 = vadd.f32 %v4674, %v4675
  %v4677 = vrot.slane %v4676, 2
  %v4678 = vadd.f32 %v4676, %v4677
  %v4679 = vrot.slane %v4678, 1
  %v4680 = vadd.f32 %v4678, %v4679
  %v4681 = vsel %vm937, %v4630, 0.0
  %v4682 = vsel %vm937, %v4631, 0.0
  %v4683 = vadd.f32 %v4681, %v4682
  %v4684 = vrot.slane %v4683, 4
  %v4685 = vadd.f32 %v4683, %v4684
  %v4686 = vrot.slane %v4685, 2
  %v4687 = vadd.f32 %v4685, %v4686
  %v4688 = vrot.slane %v4687, 1
  %v4689 = vadd.f32 %v4687, %v4688
  %v4690 = vsel %vm937, %v4632, 0.0
  %v4691 = vsel %vm937, %v4633, 0.0
  %v4692 = vadd.f32 %v4690, %v4691
  %v4693 = vrot.slane %v4692, 4
  %v4694 = vadd.f32 %v4692, %v4693
  %v4695 = vrot.slane %v4694, 2
  %v4696 = vadd.f32 %v4694, %v4695
  %v4697 = vrot.slane %v4696, 1
  %v4698 = vadd.f32 %v4696, %v4697
  %v4699 = vsel %vm937, %v4634, 0.0
  %v4700 = vsel %vm937, %v4635, 0.0
  %v4701 = vadd.f32 %v4699, %v4700
  %v4702 = vrot.slane %v4701, 4
  %v4703 = vadd.f32 %v4701, %v4702
  %v4704 = vrot.slane %v4703, 2
  %v4705 = vadd.f32 %v4703, %v4704
  %v4706 = vrot.slane %v4705, 1
  %v4707 = vadd.f32 %v4705, %v4706
  %v4716 = vsel %vm782, %v4653, %v4644
  %v4717 = vsel %vm784, %v4662, %v4716
  %v4718 = vsel %vm786, %v4671, %v4717
  %v4719 = vsel %vm788, %v4680, %v4718
  %v4720 = vsel %vm790, %v4689, %v4719
  %v4721 = vsel %vm792, %v4698, %v4720
  %v4722 = vsel %vm794, %v4707, %v4721
  %v4723 = vsel %vm937, %v4722, 0
  %4725 = vmatpush.msra.mxu0 0.0
  %4726 = vmatpush.msra.mxu0 0.0
  %4727 = vmatpush.msra.mxu0 0.0
  %4728 = vmatpush.msra.mxu0 0.0
  %4729 = vmatpush.msra.mxu0 0.0
  %4730 = vmatpush.msra.mxu0 0.0
  %4731 = vmatpush.msra.mxu0 0.0
  %4732 = vmatpush.msra.mxu0 0.0
  %4733 = vmatpush.msra.mxu0 0.0
  %4734 = vmatpush.msra.mxu0 0.0
  %4735 = vmatpush.msra.mxu0 0.0
  %4736 = vmatpush.msra.mxu0 0.0
  %4737 = vmatpush.msra.mxu0 0.0
  %4738 = vmatpush.msra.mxu0 0.0
  %4739 = vmatpush.msra.mxu0 %v4145
  %4740 = vmatpush.msra.mxu0 %v4144
  %4741 = vmatmul.f32.gmra.mxu0 %v4723
  %v4742 = vpop.f32.mrf.mxu0
  %v4743 = vadd.f32 0.0, %v4742
  %4744 = vdwg.mxu0
  %v4746 = vperm.slane %v4146, 0
  %v4748 = vmul.f32 %v2433, %v4746
  %v4749 = vmul.f32 %v2434, %v4746
  %v4750 = vmul.f32 %v2435, %v4746
  %v4751 = vmul.f32 %v2436, %v4746
  %v4752 = vmul.f32 %v2437, %v4746
  %v4753 = vmul.f32 %v2438, %v4746
  %v4754 = vmul.f32 %v2439, %v4746
  %v4755 = vmul.f32 %v2440, %v4746
  %v4756 = vmul.f32 %v2441, %v4746
  %v4757 = vmul.f32 %v2442, %v4746
  %v4758 = vmul.f32 %v2443, %v4746
  %v4759 = vmul.f32 %v2444, %v4746
  %v4760 = vmul.f32 %v2445, %v4746
  %v4761 = vmul.f32 %v2446, %v4746
  %v4762 = vmul.f32 %v2447, %v4746
  %v4763 = vmul.f32 %v2448, %v4746
  %v4764 = vsel %vm937, %v4748, 0.0
  %4765 = vadd.xlane.f32.xlu0 %v4764
  %v4766 = vpop.xlane.xlu0 %4765
  %v4767 = vsel %vm937, %v4749, 0.0
  %4768 = vadd.xlane.f32.xlu0 %v4767
  %v4769 = vpop.xlane.xlu0 %4768
  %v4770 = vsel %vm937, %v4750, 0.0
  %4771 = vadd.xlane.f32.xlu0 %v4770
  %v4772 = vpop.xlane.xlu0 %4771
  %v4773 = vsel %vm937, %v4751, 0.0
  %4774 = vadd.xlane.f32.xlu0 %v4773
  %v4775 = vpop.xlane.xlu0 %4774
  %v4776 = vsel %vm937, %v4752, 0.0
  %4777 = vadd.xlane.f32.xlu0 %v4776
  %v4778 = vpop.xlane.xlu0 %4777
  %v4779 = vsel %vm937, %v4753, 0.0
  %4780 = vadd.xlane.f32.xlu0 %v4779
  %v4781 = vpop.xlane.xlu0 %4780
  %v4782 = vsel %vm937, %v4754, 0.0
  %4783 = vadd.xlane.f32.xlu0 %v4782
  %v4784 = vpop.xlane.xlu0 %4783
  %v4785 = vsel %vm937, %v4755, 0.0
  %4786 = vadd.xlane.f32.xlu0 %v4785
  %v4787 = vpop.xlane.xlu0 %4786
  %v4788 = vsel %vm937, %v4756, 0.0
  %4789 = vadd.xlane.f32.xlu0 %v4788
  %v4790 = vpop.xlane.xlu0 %4789
  %v4791 = vsel %vm937, %v4757, 0.0
  %4792 = vadd.xlane.f32.xlu0 %v4791
  %v4793 = vpop.xlane.xlu0 %4792
  %v4794 = vsel %vm937, %v4758, 0.0
  %4795 = vadd.xlane.f32.xlu0 %v4794
  %v4796 = vpop.xlane.xlu0 %4795
  %v4797 = vsel %vm937, %v4759, 0.0
  %4798 = vadd.xlane.f32.xlu0 %v4797
  %v4799 = vpop.xlane.xlu0 %4798
  %v4800 = vsel %vm937, %v4760, 0.0
  %4801 = vadd.xlane.f32.xlu0 %v4800
  %v4802 = vpop.xlane.xlu0 %4801
  %v4803 = vsel %vm937, %v4761, 0.0
  %4804 = vadd.xlane.f32.xlu0 %v4803
  %v4805 = vpop.xlane.xlu0 %4804
  %v4806 = vsel %vm937, %v4762, 0.0
  %4807 = vadd.xlane.f32.xlu0 %v4806
  %v4808 = vpop.xlane.xlu0 %4807
  %v4809 = vsel %vm937, %v4763, 0.0
  %4810 = vadd.xlane.f32.xlu0 %v4809
  %v4811 = vpop.xlane.xlu0 %4810
  %v4828 = vperm.slane %v4766, %v164
  %v4829 = vperm.slane %v4769, %v905
  %v4830 = vsel %vm907, %v4829, %v4828
  %v4831 = vperm.slane %v4772, %v164
  %v4832 = vperm.slane %v4775, %v905
  %v4833 = vsel %vm907, %v4832, %v4831
  %v4834 = vperm.slane %v4778, %v164
  %v4835 = vperm.slane %v4781, %v905
  %v4836 = vsel %vm907, %v4835, %v4834
  %v4837 = vperm.slane %v4784, %v164
  %v4838 = vperm.slane %v4787, %v905
  %v4839 = vsel %vm907, %v4838, %v4837
  %v4840 = vperm.slane %v4790, %v164
  %v4841 = vperm.slane %v4793, %v905
  %v4842 = vsel %vm907, %v4841, %v4840
  %v4843 = vperm.slane %v4796, %v164
  %v4844 = vperm.slane %v4799, %v905
  %v4845 = vsel %vm907, %v4844, %v4843
  %v4846 = vperm.slane %v4802, %v164
  %v4847 = vperm.slane %v4805, %v905
  %v4848 = vsel %vm907, %v4847, %v4846
  %v4849 = vperm.slane %v4808, %v164
  %v4850 = vperm.slane %v4811, %v905
  %v4851 = vsel %vm907, %v4850, %v4849
  %v4852 = vsel %vm782, %v4833, %v4830
  %v4853 = vsel %vm784, %v4836, %v4852
  %v4854 = vsel %vm786, %v4839, %v4853
  %v4855 = vsel %vm788, %v4842, %v4854
  %v4856 = vsel %vm790, %v4845, %v4855
  %v4857 = vsel %vm792, %v4848, %v4856
  %v4858 = vsel %vm794, %v4851, %v4857
  %v4860 = vsel %vm937, %v4743, 0
  %v4862 = vsel %vm937, %v4858, 0
  %4864 = vmatpush.xpose.msra.mxu0 0.0
  %4865 = vmatpush.xpose.msra.mxu0 0.0
  %4866 = vmatpush.xpose.msra.mxu0 0.0
  %4867 = vmatpush.xpose.msra.mxu0 0.0
  %4868 = vmatpush.xpose.msra.mxu0 0.0
  %4869 = vmatpush.xpose.msra.mxu0 0.0
  %4870 = vmatpush.xpose.msra.mxu0 0.0
  %4871 = vmatpush.xpose.msra.mxu0 0.0
  %4872 = vmatpush.xpose.msra.mxu0 0.0
  %4873 = vmatpush.xpose.msra.mxu0 0.0
  %4874 = vmatpush.xpose.msra.mxu0 0.0
  %4875 = vmatpush.xpose.msra.mxu0 0.0
  %4876 = vmatpush.xpose.msra.mxu0 0.0
  %4877 = vmatpush.xpose.msra.mxu0 0.0
  %4878 = vmatpush.xpose.msra.mxu0 0.0
  %4879 = vmatpush.xpose.msra.mxu0 %v4862
  %4880 = vmatmul.f32.gmra.mxu0 %v4860
  %v4881 = vpop.f32.mrf.mxu0
  %v4882 = vadd.f32 %v4147, %v4881
  %4883 = vdwg.mxu0
  %v4884 = vxor.u32 %v4882, 2147483648
  %v4885 = vmul.f32 %v4884, 1.442695
  %v4886 = vpow.pop %v4885
  %v4887 = vadd.f32 %v4886, 1.0
  %v4888 = vrcp.pop %v4887
  %v4889 = vmul.f32 %v4887, %v4888
  %v4890 = vsub.f32 1.0, %v4889
  %v4891 = vmul.f32 %v4888, %v4890
  %v4892 = vadd.f32 %v4888, %v4891
  %vm4893 = vweird.f32 %v4887
  %vm4894 = vweird.f32 %v4888
  %vm4895 = vmor %vm4893, %vm4894
  %v4896 = vsel %vm4895, %v4888, %v4892
  %v4897 = vand.u32 2147483647, %v4887
  %vm4898 = vcmp.eq.f32.partialorder %v4897, 8.507059e+37
  %v4899 = vand.u32 %v4887, 2147483648
  %v4900 = vor.u32 1.1754944e-38, %v4899
  %v4901 = vsel %vm4898, %v4900, %v4896
  %v4902 = vmul.f32 1.0, %v4901
  %v4904 = vsel %vm982, %v4148, 0
  %4906 = vmatpush.msra.mxu0 0.0
  %4907 = vmatpush.msra.mxu0 0.0
  %4908 = vmatpush.msra.mxu0 0.0
  %4909 = vmatpush.msra.mxu0 0.0
  %4910 = vmatpush.msra.mxu0 0.0
  %4911 = vmatpush.msra.mxu0 0.0
  %4912 = vmatpush.msra.mxu0 0.0
  %4913 = vmatpush.msra.mxu0 0.0
  %4914 = vmatpush.msra.mxu0 0.0
  %4915 = vmatpush.msra.mxu0 0.0
  %4916 = vmatpush.msra.mxu0 0.0
  %4917 = vmatpush.msra.mxu0 0.0
  %4918 = vmatpush.msra.mxu0 0.0
  %4919 = vmatpush.msra.mxu0 0.0
  %4920 = vmatpush.msra.mxu0 0.0
  %4921 = vmatpush.msra.mxu0 %v4902
  %4922 = vmatmul.f32.gmra.mxu0 %v4904
  %v4923 = vpop.f32.mrf.mxu0
  %v4924 = vadd.f32 0.0, %v4923
  %4925 = vdwg.mxu0
  %v4926 = vsel %vm982, %v4924, -inf
  %v4927 = vrot.slane %v4926, 4
  %v4928 = vmax.f32 %v4926, %v4927
  %v4929 = vrot.slane %v4928, 2
  %v4930 = vmax.f32 %v4928, %v4929
  %v4931 = vrot.slane %v4930, 1
  %v4932 = vmax.f32 %v4930, %v4931
  %v4933 = vsub.f32 %v4924, %v4932
  %v4934 = vmul.f32 %v4933, 1.442695
  %v4935 = vpow.pop %v4934
  %v4936 = vsel %vm982, %v4935, 0.0
  %v4937 = vrot.slane %v4936, 4
  %v4938 = vadd.f32 %v4936, %v4937
  %v4939 = vrot.slane %v4938, 2
  %v4940 = vadd.f32 %v4938, %v4939
  %v4941 = vrot.slane %v4940, 1
  %v4942 = vadd.f32 %v4940, %v4941
  %v4943 = vrcp.pop %v4942
  %v4944 = vmul.f32 %v4935, %v4943
  %v4946 = vperm.slane %v4149, 0
  %v4948 = vmul.f32 %v4944, %v4946
  %v4949 = vsel %vm982, %v4948, 0.0
  %4950 = vadd.xlane.f32.xlu0 %v4949
  %v4951 = vpop.xlane.xlu0 %4950
  %v4953 = vperm.slane %v4951, 0
  %v4954 = vperm.slane %v4951, 1
  %v4955 = vperm.slane %v4951, 2
  %v4956 = vperm.slane %v4951, 3
  %v4957 = vperm.slane %v4951, 4
  %v4958 = vperm.slane %v4951, 5
  %v4959 = vperm.slane %v4951, 6
  %v4960 = vperm.slane %v4951, 7
  %v4969 = vmul.f32 %v2433, %v4953
  %v4970 = vmul.f32 %v2434, %v4953
  %v4971 = vmul.f32 %v2435, %v4954
  %v4972 = vmul.f32 %v2436, %v4954
  %v4973 = vmul.f32 %v2437, %v4955
  %v4974 = vmul.f32 %v2438, %v4955
  %v4975 = vmul.f32 %v2439, %v4956
  %v4976 = vmul.f32 %v2440, %v4956
  %v4977 = vmul.f32 %v2441, %v4957
  %v4978 = vmul.f32 %v2442, %v4957
  %v4979 = vmul.f32 %v2443, %v4958
  %v4980 = vmul.f32 %v2444, %v4958
  %v4981 = vmul.f32 %v2445, %v4959
  %v4982 = vmul.f32 %v2446, %v4959
  %v4983 = vmul.f32 %v2447, %v4960
  %v4984 = vmul.f32 %v2448, %v4960
  %v4985 = vsel %vm937, %v4969, 0.0
  %v4986 = vsel %vm937, %v4971, 0.0
  %v4987 = vadd.f32 %v4985, %v4986
  %v4988 = vsel %vm937, %v4973, 0.0
  %v4989 = vadd.f32 %v4987, %v4988
  %v4990 = vsel %vm937, %v4975, 0.0
  %v4991 = vadd.f32 %v4989, %v4990
  %v4992 = vsel %vm937, %v4977, 0.0
  %v4993 = vadd.f32 %v4991, %v4992
  %v4994 = vsel %vm937, %v4979, 0.0
  %v4995 = vadd.f32 %v4993, %v4994
  %v4996 = vsel %vm937, %v4981, 0.0
  %v4997 = vadd.f32 %v4995, %v4996
  %v4998 = vsel %vm937, %v4983, 0.0
  %v4999 = vadd.f32 %v4997, %v4998
  %v5000 = vsel %vm937, %v4970, 0.0
  %v5001 = vsel %vm937, %v4972, 0.0
  %v5002 = vadd.f32 %v5000, %v5001
  %v5003 = vsel %vm937, %v4974, 0.0
  %v5004 = vadd.f32 %v5002, %v5003
  %v5005 = vsel %vm937, %v4976, 0.0
  %v5006 = vadd.f32 %v5004, %v5005
  %v5007 = vsel %vm937, %v4978, 0.0
  %v5008 = vadd.f32 %v5006, %v5007
  %v5009 = vsel %vm937, %v4980, 0.0
  %v5010 = vadd.f32 %v5008, %v5009
  %v5011 = vsel %vm937, %v4982, 0.0
  %v5012 = vadd.f32 %v5010, %v5011
  %v5013 = vsel %vm937, %v4984, 0.0
  %v5014 = vadd.f32 %v5012, %v5013
  %v5016 = vsel %vm937, %v4999, 0
  %v5019 = vsel %vm937, %v5014, 0
  %5021 = vmatpush.msra.mxu0 0.0
  %5022 = vmatpush.msra.mxu0 0.0
  %5023 = vmatpush.msra.mxu0 0.0
  %5024 = vmatpush.msra.mxu0 0.0
  %5025 = vmatpush.msra.mxu0 0.0
  %5026 = vmatpush.msra.mxu0 0.0
  %5027 = vmatpush.msra.mxu0 0.0
  %5028 = vmatpush.msra.mxu0 0.0
  %5029 = vmatpush.msra.mxu0 0.0
  %5030 = vmatpush.msra.mxu0 0.0
  %5031 = vmatpush.msra.mxu0 0.0
  %5032 = vmatpush.msra.mxu0 0.0
  %5033 = vmatpush.msra.mxu0 0.0
  %5034 = vmatpush.msra.mxu0 0.0
  %5035 = vmatpush.msra.mxu0 %v4151
  %5036 = vmatpush.msra.mxu0 %v4150
  %5037 = vmatmul.f32.gmra.mxu0 %v5016
  %v5038 = vpop.f32.mrf.mxu0
  %v5039 = vadd.f32 0.0, %v5038
  %5040 = vmatmul.f32.gmra.mxu0 %v5019
  %v5041 = vpop.f32.mrf.mxu0
  %v5042 = vadd.f32 0.0, %v5041
  %5043 = vdwg.mxu0
  %v5045 = vperm.slane %v4152, 0
  %v5047 = vmul.f32 %v2433, %v5045
  %v5048 = vmul.f32 %v2434, %v5045
  %v5049 = vmul.f32 %v2435, %v5045
  %v5050 = vmul.f32 %v2436, %v5045
  %v5051 = vmul.f32 %v2437, %v5045
  %v5052 = vmul.f32 %v2438, %v5045
  %v5053 = vmul.f32 %v2439, %v5045
  %v5054 = vmul.f32 %v2440, %v5045
  %v5055 = vmul.f32 %v2441, %v5045
  %v5056 = vmul.f32 %v2442, %v5045
  %v5057 = vmul.f32 %v2443, %v5045
  %v5058 = vmul.f32 %v2444, %v5045
  %v5059 = vmul.f32 %v2445, %v5045
  %v5060 = vmul.f32 %v2446, %v5045
  %v5061 = vmul.f32 %v2447, %v5045
  %v5062 = vmul.f32 %v2448, %v5045
  %v5063 = vsel %vm937, %v5047, 0.0
  %5064 = vadd.xlane.f32.xlu0 %v5063
  %v5065 = vpop.xlane.xlu0 %5064
  %v5066 = vsel %vm937, %v5048, 0.0
  %5067 = vadd.xlane.f32.xlu0 %v5066
  %v5068 = vpop.xlane.xlu0 %5067
  %v5069 = vsel %vm937, %v5049, 0.0
  %5070 = vadd.xlane.f32.xlu0 %v5069
  %v5071 = vpop.xlane.xlu0 %5070
  %v5072 = vsel %vm937, %v5050, 0.0
  %5073 = vadd.xlane.f32.xlu0 %v5072
  %v5074 = vpop.xlane.xlu0 %5073
  %v5075 = vsel %vm937, %v5051, 0.0
  %5076 = vadd.xlane.f32.xlu0 %v5075
  %v5077 = vpop.xlane.xlu0 %5076
  %v5078 = vsel %vm937, %v5052, 0.0
  %5079 = vadd.xlane.f32.xlu0 %v5078
  %v5080 = vpop.xlane.xlu0 %5079
  %v5081 = vsel %vm937, %v5053, 0.0
  %5082 = vadd.xlane.f32.xlu0 %v5081
  %v5083 = vpop.xlane.xlu0 %5082
  %v5084 = vsel %vm937, %v5054, 0.0
  %5085 = vadd.xlane.f32.xlu0 %v5084
  %v5086 = vpop.xlane.xlu0 %5085
  %v5087 = vsel %vm937, %v5055, 0.0
  %5088 = vadd.xlane.f32.xlu0 %v5087
  %v5089 = vpop.xlane.xlu0 %5088
  %v5090 = vsel %vm937, %v5056, 0.0
  %5091 = vadd.xlane.f32.xlu0 %v5090
  %v5092 = vpop.xlane.xlu0 %5091
  %v5093 = vsel %vm937, %v5057, 0.0
  %5094 = vadd.xlane.f32.xlu0 %v5093
  %v5095 = vpop.xlane.xlu0 %5094
  %v5096 = vsel %vm937, %v5058, 0.0
  %5097 = vadd.xlane.f32.xlu0 %v5096
  %v5098 = vpop.xlane.xlu0 %5097
  %v5099 = vsel %vm937, %v5059, 0.0
  %5100 = vadd.xlane.f32.xlu0 %v5099
  %v5101 = vpop.xlane.xlu0 %5100
  %v5102 = vsel %vm937, %v5060, 0.0
  %5103 = vadd.xlane.f32.xlu0 %v5102
  %v5104 = vpop.xlane.xlu0 %5103
  %v5105 = vsel %vm937, %v5061, 0.0
  %5106 = vadd.xlane.f32.xlu0 %v5105
  %v5107 = vpop.xlane.xlu0 %5106
  %v5108 = vsel %vm937, %v5062, 0.0
  %5109 = vadd.xlane.f32.xlu0 %v5108
  %v5110 = vpop.xlane.xlu0 %5109
  %v5112 = vsel %vm982, %v5039, 0
  %v5115 = vsel %vm982, %v5042, 0
  %v5118 = vsel %vm982, %v4944, 0
  %5120 = vmatpush.xpose.msra.mxu0 0.0
  %5121 = vmatpush.xpose.msra.mxu0 0.0
  %5122 = vmatpush.xpose.msra.mxu0 0.0
  %5123 = vmatpush.xpose.msra.mxu0 0.0
  %5124 = vmatpush.xpose.msra.mxu0 0.0
  %5125 = vmatpush.xpose.msra.mxu0 0.0
  %5126 = vmatpush.xpose.msra.mxu0 0.0
  %5127 = vmatpush.xpose.msra.mxu0 0.0
  %5128 = vmatpush.xpose.msra.mxu0 0.0
  %5129 = vmatpush.xpose.msra.mxu0 0.0
  %5130 = vmatpush.xpose.msra.mxu0 0.0
  %5131 = vmatpush.xpose.msra.mxu0 0.0
  %5132 = vmatpush.xpose.msra.mxu0 0.0
  %5133 = vmatpush.xpose.msra.mxu0 0.0
  %5134 = vmatpush.xpose.msra.mxu0 0.0
  %5135 = vmatpush.xpose.msra.mxu0 %v5118
  %5136 = vmatmul.f32.gmra.mxu0 %v5112
  %v5137 = vpop.f32.mrf.mxu0
  %v5138 = vadd.f32 0.0, %v5137
  %5139 = vmatmul.f32.gmra.mxu0 %v5115
  %v5140 = vpop.f32.mrf.mxu0
  %v5141 = vadd.f32 0.0, %v5140
  %5142 = vdwg.mxu0
  %v5159 = vperm.slane %v5065, %v164
  %v5160 = vperm.slane %v5068, %v905
  %v5161 = vsel %vm907, %v5160, %v5159
  %v5162 = vperm.slane %v5071, %v164
  %v5163 = vperm.slane %v5074, %v905
  %v5164 = vsel %vm907, %v5163, %v5162
  %v5165 = vperm.slane %v5077, %v164
  %v5166 = vperm.slane %v5080, %v905
  %v5167 = vsel %vm907, %v5166, %v5165
  %v5168 = vperm.slane %v5083, %v164
  %v5169 = vperm.slane %v5086, %v905
  %v5170 = vsel %vm907, %v5169, %v5168
  %v5171 = vperm.slane %v5089, %v164
  %v5172 = vperm.slane %v5092, %v905
  %v5173 = vsel %vm907, %v5172, %v5171
  %v5174 = vperm.slane %v5095, %v164
  %v5175 = vperm.slane %v5098, %v905
  %v5176 = vsel %vm907, %v5175, %v5174
  %v5177 = vperm.slane %v5101, %v164
  %v5178 = vperm.slane %v5104, %v905
  %v5179 = vsel %vm907, %v5178, %v5177
  %v5180 = vperm.slane %v5107, %v164
  %v5181 = vperm.slane %v5110, %v905
  %v5182 = vsel %vm907, %v5181, %v5180
  %v5183 = vsel %vm782, %v5164, %v5161
  %v5184 = vsel %vm784, %v5167, %v5183
  %v5185 = vsel %vm786, %v5170, %v5184
  %v5186 = vsel %vm788, %v5173, %v5185
  %v5187 = vsel %vm790, %v5176, %v5186
  %v5188 = vsel %vm792, %v5179, %v5187
  %v5189 = vsel %vm794, %v5182, %v5188
  %v5192 = vsel %vm982, %v5138, 0
  %v5195 = vsel %vm982, %v5141, 0
  %5197 = vmatpush.msra.mxu0 0.0
  %5198 = vmatpush.msra.mxu0 0.0
  %5199 = vmatpush.msra.mxu0 0.0
  %5200 = vmatpush.msra.mxu0 0.0
  %5201 = vmatpush.msra.mxu0 0.0
  %5202 = vmatpush.msra.mxu0 0.0
  %5203 = vmatpush.msra.mxu0 0.0
  %5204 = vmatpush.msra.mxu0 0.0
  %5205 = vmatpush.msra.mxu0 0.0
  %5206 = vmatpush.msra.mxu0 0.0
  %5207 = vmatpush.msra.mxu0 0.0
  %5208 = vmatpush.msra.mxu0 0.0
  %5209 = vmatpush.msra.mxu0 0.0
  %5210 = vmatpush.msra.mxu0 0.0
  %5211 = vmatpush.msra.mxu0 0.0
  %5212 = vmatpush.msra.mxu0 %v5189
  %5213 = vmatmul.f32.gmra.mxu0 %v5192
  %v5214 = vpop.f32.mrf.mxu0
  %v5215 = vadd.f32 %v4153, %v5214
  %5216 = vmatmul.f32.gmra.mxu0 %v5195
  %v5217 = vpop.f32.mrf.mxu0
  %v5218 = vadd.f32 %v4154, %v5217
  %5219 = vdwg.mxu0
  %v5220 = vxor.u32 %v5215, 2147483648
  %v5221 = vxor.u32 %v5218, 2147483648
  %v5222 = vmul.f32 %v5220, 1.442695
  %v5223 = vpow.pop %v5222
  %v5224 = vmul.f32 %v5221, 1.442695
  %v5225 = vpow.pop %v5224
  %v5226 = vadd.f32 %v5223, 1.0
  %v5227 = vadd.f32 %v5225, 1.0
  %v5228 = vrcp.pop %v5226
  %v5229 = vmul.f32 %v5226, %v5228
  %v5230 = vsub.f32 1.0, %v5229
  %v5231 = vmul.f32 %v5228, %v5230
  %v5232 = vadd.f32 %v5228, %v5231
  %vm5233 = vweird.f32 %v5226
  %vm5234 = vweird.f32 %v5228
  %vm5235 = vmor %vm5233, %vm5234
  %v5236 = vsel %vm5235, %v5228, %v5232
  %v5237 = vand.u32 2147483647, %v5226
  %vm5238 = vcmp.eq.f32.partialorder %v5237, 8.507059e+37
  %v5239 = vand.u32 %v5226, 2147483648
  %v5240 = vor.u32 1.1754944e-38, %v5239
  %v5241 = vsel %vm5238, %v5240, %v5236
  %v5242 = vmul.f32 1.0, %v5241
  %v5243 = vrcp.pop %v5227
  %v5244 = vmul.f32 %v5227, %v5243
  %v5245 = vsub.f32 1.0, %v5244
  %v5246 = vmul.f32 %v5243, %v5245
  %v5247 = vadd.f32 %v5243, %v5246
  %vm5248 = vweird.f32 %v5227
  %vm5249 = vweird.f32 %v5243
  %vm5250 = vmor %vm5248, %vm5249
  %v5251 = vsel %vm5250, %v5243, %v5247
  %v5252 = vand.u32 2147483647, %v5227
  %vm5253 = vcmp.eq.f32.partialorder %v5252, 8.507059e+37
  %v5254 = vand.u32 %v5227, 2147483648
  %v5255 = vor.u32 1.1754944e-38, %v5254
  %v5256 = vsel %vm5253, %v5255, %v5251
  %v5257 = vmul.f32 1.0, %v5256
  %v5259 = vsel %vm937, %v4155, 0
  %v5262 = vsel %vm937, %v4156, 0
  %5264 = vmatpush.msra.mxu0 0.0
  %5265 = vmatpush.msra.mxu0 0.0
  %5266 = vmatpush.msra.mxu0 0.0
  %5267 = vmatpush.msra.mxu0 0.0
  %5268 = vmatpush.msra.mxu0 0.0
  %5269 = vmatpush.msra.mxu0 0.0
  %5270 = vmatpush.msra.mxu0 0.0
  %5271 = vmatpush.msra.mxu0 0.0
  %5272 = vmatpush.msra.mxu0 0.0
  %5273 = vmatpush.msra.mxu0 0.0
  %5274 = vmatpush.msra.mxu0 0.0
  %5275 = vmatpush.msra.mxu0 0.0
  %5276 = vmatpush.msra.mxu0 0.0
  %5277 = vmatpush.msra.mxu0 0.0
  %5278 = vmatpush.msra.mxu0 %v5257
  %5279 = vmatpush.msra.mxu0 %v5242
  %5280 = vmatmul.f32.gmra.mxu0 %v5259
  %v5281 = vpop.f32.mrf.mxu0
  %v5282 = vadd.f32 0.0, %v5281
  %5283 = vmatmul.f32.gmra.mxu0 %v5262
  %v5284 = vpop.f32.mrf.mxu0
  %v5285 = vadd.f32 0.0, %v5284
  %5286 = vdwg.mxu0
  %v5287 = vsel %vm937, %v5282, -inf
  %v5288 = vsel %vm937, %v5285, -inf
  %v5289 = vmax.f32 %v5287, %v5288
  %v5290 = vrot.slane %v5289, 4
  %v5291 = vmax.f32 %v5289, %v5290
  %v5292 = vrot.slane %v5291, 2
  %v5293 = vmax.f32 %v5291, %v5292
  %v5294 = vrot.slane %v5293, 1
  %v5295 = vmax.f32 %v5293, %v5294
  %v5296 = vsub.f32 %v5282, %v5295
  %v5297 = vsub.f32 %v5285, %v5295
  %v5298 = vmul.f32 %v5296, 1.442695
  %v5299 = vpow.pop %v5298
  %v5300 = vmul.f32 %v5297, 1.442695
  %v5301 = vpow.pop %v5300
  %v5302 = vsel %vm937, %v5299, 0.0
  %v5303 = vsel %vm937, %v5301, 0.0
  %v5304 = vadd.f32 %v5302, %v5303
  %v5305 = vrot.slane %v5304, 4
  %v5306 = vadd.f32 %v5304, %v5305
  %v5307 = vrot.slane %v5306, 2
  %v5308 = vadd.f32 %v5306, %v5307
  %v5309 = vrot.slane %v5308, 1
  %v5310 = vadd.f32 %v5308, %v5309
  %v5311 = vrcp.pop %v5310
  %v5312 = vmul.f32 %v5299, %v5311
  %v5313 = vmul.f32 %v5301, %v5311
  %v5314 = vmul.f32 %v5312, %v169
  %v5315 = vmul.f32 %v5313, %v170
  %v5316 = vsel %vm937, %v5314, 0.0
  %v5317 = vsel %vm937, %v5315, 0.0
  %v5318 = vadd.f32 %v5316, %v5317
  %v5319 = vrot.slane %v5318, 4
  %v5320 = vadd.f32 %v5318, %v5319
  %v5321 = vrot.slane %v5320, 2
  %v5322 = vadd.f32 %v5320, %v5321
  %v5323 = vrot.slane %v5322, 1
  %v5324 = vadd.f32 %v5322, %v5323
  %v5325 = vmul.f32 %v169, %v5324
  %v5326 = vmul.f32 %v170, %v5324
  %5327 = vxpose.xlu0.b32.start [1/16] %v5312, 128
  %5328 = vxpose.xlu0.b32.cont [2/16] %v5313, 128
  %5329 = vxpose.xlu0.b32.cont [3/16] 0.0, 128
  %5330 = vxpose.xlu0.b32.cont [4/16] 0.0, 128
  %5331 = vxpose.xlu0.b32.cont [5/16] 0.0, 128
  %5332 = vxpose.xlu0.b32.cont [6/16] 0.0, 128
  %5333 = vxpose.xlu0.b32.cont [7/16] 0.0, 128
  %5334 = vxpose.xlu0.b32.cont [8/16] 0.0, 128
  %5335 = vxpose.xlu0.b32.cont [9/16] 0.0, 128
  %5336 = vxpose.xlu0.b32.cont [10/16] 0.0, 128
  %5337 = vxpose.xlu0.b32.cont [11/16] 0.0, 128
  %5338 = vxpose.xlu0.b32.cont [12/16] 0.0, 128
  %5339 = vxpose.xlu0.b32.cont [13/16] 0.0, 128
  %5340 = vxpose.xlu0.b32.cont [14/16] 0.0, 128
  %5341 = vxpose.xlu0.b32.cont [15/16] 0.0, 128
  %5342 = vxpose.xlu0.b32.end [16/16] 0.0, 128
  %v5343 = vpop.trf.xlu0
  %v5344 = vpop.trf.xlu0
  %v5345 = vpop.trf.xlu0
  %v5346 = vpop.trf.xlu0
  %v5347 = vpop.trf.xlu0
  %v5348 = vpop.trf.xlu0
  %v5349 = vpop.trf.xlu0
  %v5350 = vpop.trf.xlu0
  %v5351 = vpop.trf.xlu0
  %v5352 = vpop.trf.xlu0
  %v5353 = vpop.trf.xlu0
  %v5354 = vpop.trf.xlu0
  %v5355 = vpop.trf.xlu0
  %v5356 = vpop.trf.xlu0
  %v5357 = vpop.trf.xlu0
  %v5358 = vpop.trf.xlu0
  %v5359 = vmul.f32 %v158, %v5343
  %v5360 = vmul.f32 %v159, %v5344
  %v5361 = vmul.f32 %v5359, %v5324
  %v5362 = vmul.f32 %v5360, %v5324
  %5363 = vmatpush.msra.mxu0 0.0
  %5364 = vmatpush.msra.mxu0 0.0
  %5365 = vmatpush.msra.mxu0 0.0
  %5366 = vmatpush.msra.mxu0 0.0
  %5367 = vmatpush.msra.mxu0 0.0
  %5368 = vmatpush.msra.mxu0 0.0
  %5369 = vmatpush.msra.mxu0 0.0
  %5370 = vmatpush.msra.mxu0 0.0
  %5371 = vmatpush.msra.mxu0 0.0
  %5372 = vmatpush.msra.mxu0 0.0
  %5373 = vmatpush.msra.mxu0 0.0
  %5374 = vmatpush.msra.mxu0 0.0
  %5375 = vmatpush.msra.mxu0 0.0
  %5376 = vmatpush.msra.mxu0 0.0
  %5377 = vmatpush.msra.mxu0 %v5362
  %5378 = vmatpush.msra.mxu0 %v5361
  %5379 = vmatmul.f32.gmra.mxu0 %v1447
  %v5380 = vpop.f32.mrf.mxu0
  %v5381 = vadd.f32 0.0, %v5380
  %5382 = vmatmul.f32.gmra.mxu0 %v1450
  %v5383 = vpop.f32.mrf.mxu0
  %v5384 = vadd.f32 0.0, %v5383
  %5385 = vdwg.mxu0
  %v5386 = vmul.f32 %v5381, 2.0
  %v5387 = vmul.f32 %v5384, 2.0
  %v5388 = vsub.f32 %v5386, %v5325
  %v5389 = vsub.f32 %v5387, %v5326
  %5392 = vrot.lane.b32.xlu0 %v5361, 16
  %v5393 = vpop.permute.xlu0 %5392
  %5394 = vrot.lane.b32.xlu0 %v5362, 16
  %v5395 = vpop.permute.xlu0 %5394
  %5400 = vrot.lane.b32.xlu0 %v5388, 32
  %v5401 = vpop.permute.xlu0 %5400
  %5402 = vrot.lane.b32.xlu0 %v5389, 32
  %v5403 = vpop.permute.xlu0 %5402
  %v5406 = vsel %vm937, %v5325, %v5393
  %v5407 = vsel %vm937, %v5326, %v5395
  %v5408 = vsel %vm1497, %v5406, %v5401
  %v5409 = vsel %vm1497, %v5407, %v5403
  %v5411 = vperm.slane %v4163, 0
  %v5414 = vsel %vm1503, %v5408, 0
  %v5417 = vsel %vm1503, %v5409, 0
  %5419 = vmatpush.msra.mxu0 0.0
  %5420 = vmatpush.msra.mxu0 0.0
  %5421 = vmatpush.msra.mxu0 0.0
  %5422 = vmatpush.msra.mxu0 0.0
  %5423 = vmatpush.msra.mxu0 0.0
  %5424 = vmatpush.msra.mxu0 0.0
  %5425 = vmatpush.msra.mxu0 0.0
  %5426 = vmatpush.msra.mxu0 0.0
  %5427 = vmatpush.msra.mxu0 0.0
  %5428 = vmatpush.msra.mxu0 0.0
  %5429 = vmatpush.msra.mxu0 %v4518
  %5430 = vmatpush.msra.mxu0 %v4515
  %5431 = vmatpush.msra.mxu0 %v4405
  %5432 = vmatpush.msra.mxu0 %v4402
  %5433 = vmatpush.msra.mxu0 %v4292
  %5434 = vmatpush.msra.mxu0 %v4289
  %5435 = vmatmul.f32.gmra.mxu0 %v5414
  %v5436 = vpop.f32.mrf.mxu0
  %v5437 = vadd.f32 %v5411, %v5436
  %5438 = vmatmul.f32.gmra.mxu0 %v5417
  %v5439 = vpop.f32.mrf.mxu0
  %v5440 = vadd.f32 %v5411, %v5439
  %5441 = vdwg.mxu0
  %v5442 = vmax.f32 %v5437, 0.0
  %v5443 = vmax.f32 %v5440, 0.0
  %5444 = vmatpush.msra.mxu0 0.0
  %5445 = vmatpush.msra.mxu0 0.0
  %5446 = vmatpush.msra.mxu0 0.0
  %5447 = vmatpush.msra.mxu0 0.0
  %5448 = vmatpush.msra.mxu0 0.0
  %5449 = vmatpush.msra.mxu0 0.0
  %5450 = vmatpush.msra.mxu0 0.0
  %5451 = vmatpush.msra.mxu0 0.0
  %5452 = vmatpush.msra.mxu0 0.0
  %5453 = vmatpush.msra.mxu0 0.0
  %5454 = vmatpush.msra.mxu0 %v4524
  %5455 = vmatpush.msra.mxu0 %v4521
  %5456 = vmatpush.msra.mxu0 %v4411
  %5457 = vmatpush.msra.mxu0 %v4408
  %5458 = vmatpush.msra.mxu0 %v4298
  %5459 = vmatpush.msra.mxu0 %v4295
  %5460 = vmatmul.f32.gmra.mxu0 %v5414
  %v5461 = vpop.f32.mrf.mxu0
  %v5462 = vadd.f32 %v5411, %v5461
  %5463 = vmatmul.f32.gmra.mxu0 %v5417
  %v5464 = vpop.f32.mrf.mxu0
  %v5465 = vadd.f32 %v5411, %v5464
  %5466 = vdwg.mxu0
  %v5467 = vmax.f32 %v5462, 0.0
  %v5468 = vmax.f32 %v5465, 0.0
  %5469 = vmatpush.msra.mxu0 0.0
  %5470 = vmatpush.msra.mxu0 0.0
  %5471 = vmatpush.msra.mxu0 0.0
  %5472 = vmatpush.msra.mxu0 0.0
  %5473 = vmatpush.msra.mxu0 0.0
  %5474 = vmatpush.msra.mxu0 0.0
  %5475 = vmatpush.msra.mxu0 0.0
  %5476 = vmatpush.msra.mxu0 0.0
  %5477 = vmatpush.msra.mxu0 0.0
  %5478 = vmatpush.msra.mxu0 0.0
  %5479 = vmatpush.msra.mxu0 %v4530
  %5480 = vmatpush.msra.mxu0 %v4527
  %5481 = vmatpush.msra.mxu0 %v4417
  %5482 = vmatpush.msra.mxu0 %v4414
  %5483 = vmatpush.msra.mxu0 %v4304
  %5484 = vmatpush.msra.mxu0 %v4301
  %5485 = vmatmul.f32.gmra.mxu0 %v5414
  %v5486 = vpop.f32.mrf.mxu0
  %v5487 = vadd.f32 %v5411, %v5486
  %5488 = vmatmul.f32.gmra.mxu0 %v5417
  %v5489 = vpop.f32.mrf.mxu0
  %v5490 = vadd.f32 %v5411, %v5489
  %5491 = vdwg.mxu0
  %v5492 = vmax.f32 %v5487, 0.0
  %v5493 = vmax.f32 %v5490, 0.0
  %5494 = vmatpush.msra.mxu0 0.0
  %5495 = vmatpush.msra.mxu0 0.0
  %5496 = vmatpush.msra.mxu0 0.0
  %5497 = vmatpush.msra.mxu0 0.0
  %5498 = vmatpush.msra.mxu0 0.0
  %5499 = vmatpush.msra.mxu0 0.0
  %5500 = vmatpush.msra.mxu0 0.0
  %5501 = vmatpush.msra.mxu0 0.0
  %5502 = vmatpush.msra.mxu0 0.0
  %5503 = vmatpush.msra.mxu0 0.0
  %5504 = vmatpush.msra.mxu0 %v4536
  %5505 = vmatpush.msra.mxu0 %v4533
  %5506 = vmatpush.msra.mxu0 %v4423
  %5507 = vmatpush.msra.mxu0 %v4420
  %5508 = vmatpush.msra.mxu0 %v4310
  %5509 = vmatpush.msra.mxu0 %v4307
  %5510 = vmatmul.f32.gmra.mxu0 %v5414
  %v5511 = vpop.f32.mrf.mxu0
  %v5512 = vadd.f32 %v5411, %v5511
  %5513 = vmatmul.f32.gmra.mxu0 %v5417
  %v5514 = vpop.f32.mrf.mxu0
  %v5515 = vadd.f32 %v5411, %v5514
  %5516 = vdwg.mxu0
  %v5517 = vmax.f32 %v5512, 0.0
  %v5518 = vmax.f32 %v5515, 0.0
  %5519 = vmatpush.msra.mxu0 0.0
  %5520 = vmatpush.msra.mxu0 0.0
  %5521 = vmatpush.msra.mxu0 0.0
  %5522 = vmatpush.msra.mxu0 0.0
  %5523 = vmatpush.msra.mxu0 0.0
  %5524 = vmatpush.msra.mxu0 0.0
  %5525 = vmatpush.msra.mxu0 0.0
  %5526 = vmatpush.msra.mxu0 0.0
  %5527 = vmatpush.msra.mxu0 0.0
  %5528 = vmatpush.msra.mxu0 0.0
  %5529 = vmatpush.msra.mxu0 %v4542
  %5530 = vmatpush.msra.mxu0 %v4539
  %5531 = vmatpush.msra.mxu0 %v4429
  %5532 = vmatpush.msra.mxu0 %v4426
  %5533 = vmatpush.msra.mxu0 %v4316
  %5534 = vmatpush.msra.mxu0 %v4313
  %5535 = vmatmul.f32.gmra.mxu0 %v5414
  %v5536 = vpop.f32.mrf.mxu0
  %v5537 = vadd.f32 %v5411, %v5536
  %5538 = vmatmul.f32.gmra.mxu0 %v5417
  %v5539 = vpop.f32.mrf.mxu0
  %v5540 = vadd.f32 %v5411, %v5539
  %5541 = vdwg.mxu0
  %v5542 = vmax.f32 %v5537, 0.0
  %v5543 = vmax.f32 %v5540, 0.0
  %5544 = vmatpush.msra.mxu0 0.0
  %5545 = vmatpush.msra.mxu0 0.0
  %5546 = vmatpush.msra.mxu0 0.0
  %5547 = vmatpush.msra.mxu0 0.0
  %5548 = vmatpush.msra.mxu0 0.0
  %5549 = vmatpush.msra.mxu0 0.0
  %5550 = vmatpush.msra.mxu0 0.0
  %5551 = vmatpush.msra.mxu0 0.0
  %5552 = vmatpush.msra.mxu0 0.0
  %5553 = vmatpush.msra.mxu0 0.0
  %5554 = vmatpush.msra.mxu0 %v4548
  %5555 = vmatpush.msra.mxu0 %v4545
  %5556 = vmatpush.msra.mxu0 %v4435
  %5557 = vmatpush.msra.mxu0 %v4432
  %5558 = vmatpush.msra.mxu0 %v4322
  %5559 = vmatpush.msra.mxu0 %v4319
  %5560 = vmatmul.f32.gmra.mxu0 %v5414
  %v5561 = vpop.f32.mrf.mxu0
  %v5562 = vadd.f32 %v5411, %v5561
  %5563 = vmatmul.f32.gmra.mxu0 %v5417
  %v5564 = vpop.f32.mrf.mxu0
  %v5565 = vadd.f32 %v5411, %v5564
  %5566 = vdwg.mxu0
  %v5567 = vmax.f32 %v5562, 0.0
  %v5568 = vmax.f32 %v5565, 0.0
  %5569 = vmatpush.msra.mxu0 0.0
  %5570 = vmatpush.msra.mxu0 0.0
  %5571 = vmatpush.msra.mxu0 0.0
  %5572 = vmatpush.msra.mxu0 0.0
  %5573 = vmatpush.msra.mxu0 0.0
  %5574 = vmatpush.msra.mxu0 0.0
  %5575 = vmatpush.msra.mxu0 0.0
  %5576 = vmatpush.msra.mxu0 0.0
  %5577 = vmatpush.msra.mxu0 0.0
  %5578 = vmatpush.msra.mxu0 0.0
  %5579 = vmatpush.msra.mxu0 %v4554
  %5580 = vmatpush.msra.mxu0 %v4551
  %5581 = vmatpush.msra.mxu0 %v4441
  %5582 = vmatpush.msra.mxu0 %v4438
  %5583 = vmatpush.msra.mxu0 %v4328
  %5584 = vmatpush.msra.mxu0 %v4325
  %5585 = vmatmul.f32.gmra.mxu0 %v5414
  %v5586 = vpop.f32.mrf.mxu0
  %v5587 = vadd.f32 %v5411, %v5586
  %5588 = vmatmul.f32.gmra.mxu0 %v5417
  %v5589 = vpop.f32.mrf.mxu0
  %v5590 = vadd.f32 %v5411, %v5589
  %5591 = vdwg.mxu0
  %v5592 = vmax.f32 %v5587, 0.0
  %v5593 = vmax.f32 %v5590, 0.0
  %5594 = vmatpush.msra.mxu0 0.0
  %5595 = vmatpush.msra.mxu0 0.0
  %5596 = vmatpush.msra.mxu0 0.0
  %5597 = vmatpush.msra.mxu0 0.0
  %5598 = vmatpush.msra.mxu0 0.0
  %5599 = vmatpush.msra.mxu0 0.0
  %5600 = vmatpush.msra.mxu0 0.0
  %5601 = vmatpush.msra.mxu0 0.0
  %5602 = vmatpush.msra.mxu0 0.0
  %5603 = vmatpush.msra.mxu0 0.0
  %5604 = vmatpush.msra.mxu0 %v4560
  %5605 = vmatpush.msra.mxu0 %v4557
  %5606 = vmatpush.msra.mxu0 %v4447
  %5607 = vmatpush.msra.mxu0 %v4444
  %5608 = vmatpush.msra.mxu0 %v4334
  %5609 = vmatpush.msra.mxu0 %v4331
  %5610 = vmatmul.f32.gmra.mxu0 %v5414
  %v5611 = vpop.f32.mrf.mxu0
  %v5612 = vadd.f32 %v5411, %v5611
  %5613 = vmatmul.f32.gmra.mxu0 %v5417
  %v5614 = vpop.f32.mrf.mxu0
  %v5615 = vadd.f32 %v5411, %v5614
  %5616 = vdwg.mxu0
  %v5617 = vmax.f32 %v5612, 0.0
  %v5618 = vmax.f32 %v5615, 0.0
  %5635 = vrot.lane.b32.xlu0 %v5442, 16
  %v5636 = vpop.permute.xlu0 %5635
  %5637 = vrot.lane.b32.xlu0 %v5443, 16
  %v5638 = vpop.permute.xlu0 %5637
  %5639 = vrot.lane.b32.xlu0 %v5467, 16
  %v5640 = vpop.permute.xlu0 %5639
  %5641 = vrot.lane.b32.xlu0 %v5468, 16
  %v5642 = vpop.permute.xlu0 %5641
  %5643 = vrot.lane.b32.xlu0 %v5492, 16
  %v5644 = vpop.permute.xlu0 %5643
  %5645 = vrot.lane.b32.xlu0 %v5493, 16
  %v5646 = vpop.permute.xlu0 %5645
  %5647 = vrot.lane.b32.xlu0 %v5517, 16
  %v5648 = vpop.permute.xlu0 %5647
  %5649 = vrot.lane.b32.xlu0 %v5518, 16
  %v5650 = vpop.permute.xlu0 %5649
  %5651 = vrot.lane.b32.xlu0 %v5542, 16
  %v5652 = vpop.permute.xlu0 %5651
  %5653 = vrot.lane.b32.xlu0 %v5543, 16
  %v5654 = vpop.permute.xlu0 %5653
  %5655 = vrot.lane.b32.xlu0 %v5567, 16
  %v5656 = vpop.permute.xlu0 %5655
  %5657 = vrot.lane.b32.xlu0 %v5568, 16
  %v5658 = vpop.permute.xlu0 %5657
  %5659 = vrot.lane.b32.xlu0 %v5592, 16
  %v5660 = vpop.permute.xlu0 %5659
  %5661 = vrot.lane.b32.xlu0 %v5593, 16
  %v5662 = vpop.permute.xlu0 %5661
  %5663 = vrot.lane.b32.xlu0 %v5617, 16
  %v5664 = vpop.permute.xlu0 %5663
  %5665 = vrot.lane.b32.xlu0 %v5618, 16
  %v5666 = vpop.permute.xlu0 %5665
  %5683 = vrot.lane.b32.xlu0 %v5467, 32
  %v5684 = vpop.permute.xlu0 %5683
  %5685 = vrot.lane.b32.xlu0 %v5468, 32
  %v5686 = vpop.permute.xlu0 %5685
  %5687 = vrot.lane.b32.xlu0 %v5492, 32
  %v5688 = vpop.permute.xlu0 %5687
  %5689 = vrot.lane.b32.xlu0 %v5493, 32
  %v5690 = vpop.permute.xlu0 %5689
  %5691 = vrot.lane.b32.xlu0 %v5517, 32
  %v5692 = vpop.permute.xlu0 %5691
  %5693 = vrot.lane.b32.xlu0 %v5518, 32
  %v5694 = vpop.permute.xlu0 %5693
  %5695 = vrot.lane.b32.xlu0 %v5542, 32
  %v5696 = vpop.permute.xlu0 %5695
  %5697 = vrot.lane.b32.xlu0 %v5543, 32
  %v5698 = vpop.permute.xlu0 %5697
  %5699 = vrot.lane.b32.xlu0 %v5567, 32
  %v5700 = vpop.permute.xlu0 %5699
  %5701 = vrot.lane.b32.xlu0 %v5568, 32
  %v5702 = vpop.permute.xlu0 %5701
  %5703 = vrot.lane.b32.xlu0 %v5592, 32
  %v5704 = vpop.permute.xlu0 %5703
  %5705 = vrot.lane.b32.xlu0 %v5593, 32
  %v5706 = vpop.permute.xlu0 %5705
  %5707 = vrot.lane.b32.xlu0 %v5617, 32
  %v5708 = vpop.permute.xlu0 %5707
  %5709 = vrot.lane.b32.xlu0 %v5618, 32
  %v5710 = vpop.permute.xlu0 %5709
  %5725 = vrot.lane.b32.xlu0 %v2433, 48
  %v5726 = vpop.permute.xlu0 %5725
  %5727 = vrot.lane.b32.xlu0 %v2434, 48
  %v5728 = vpop.permute.xlu0 %5727
  %5729 = vrot.lane.b32.xlu0 %v2435, 48
  %v5730 = vpop.permute.xlu0 %5729
  %5731 = vrot.lane.b32.xlu0 %v2436, 48
  %v5732 = vpop.permute.xlu0 %5731
  %5733 = vrot.lane.b32.xlu0 %v2437, 48
  %v5734 = vpop.permute.xlu0 %5733
  %5735 = vrot.lane.b32.xlu0 %v2438, 48
  %v5736 = vpop.permute.xlu0 %5735
  %5737 = vrot.lane.b32.xlu0 %v2439, 48
  %v5738 = vpop.permute.xlu0 %5737
  %5739 = vrot.lane.b32.xlu0 %v2440, 48
  %v5740 = vpop.permute.xlu0 %5739
  %5741 = vrot.lane.b32.xlu0 %v2441, 48
  %v5742 = vpop.permute.xlu0 %5741
  %5743 = vrot.lane.b32.xlu0 %v2442, 48
  %v5744 = vpop.permute.xlu0 %5743
  %5745 = vrot.lane.b32.xlu0 %v2443, 48
  %v5746 = vpop.permute.xlu0 %5745
  %5747 = vrot.lane.b32.xlu0 %v2444, 48
  %v5748 = vpop.permute.xlu0 %5747
  %5749 = vrot.lane.b32.xlu0 %v2445, 48
  %v5750 = vpop.permute.xlu0 %5749
  %5751 = vrot.lane.b32.xlu0 %v2446, 48
  %v5752 = vpop.permute.xlu0 %5751
  %5753 = vrot.lane.b32.xlu0 %v2447, 48
  %v5754 = vpop.permute.xlu0 %5753
  %5755 = vrot.lane.b32.xlu0 %v2448, 48
  %v5756 = vpop.permute.xlu0 %5755
  %v5773 = vsel %vm937, 0.0, %v5636
  %v5774 = vsel %vm937, 0.0, %v5638
  %v5775 = vsel %vm937, %v5442, %v5640
  %v5776 = vsel %vm937, %v5443, %v5642
  %v5777 = vsel %vm937, %v5467, %v5644
  %v5778 = vsel %vm937, %v5468, %v5646
  %v5779 = vsel %vm937, %v5492, %v5648
  %v5780 = vsel %vm937, %v5493, %v5650
  %v5781 = vsel %vm937, %v5517, %v5652
  %v5782 = vsel %vm937, %v5518, %v5654
  %v5783 = vsel %vm937, %v5542, %v5656
  %v5784 = vsel %vm937, %v5543, %v5658
  %v5785 = vsel %vm937, %v5567, %v5660
  %v5786 = vsel %vm937, %v5568, %v5662
  %v5787 = vsel %vm937, %v5592, %v5664
  %v5788 = vsel %vm937, %v5593, %v5666
  %v5789 = vsel %vm1497, %v5773, %v5684
  %v5790 = vsel %vm1497, %v5774, %v5686
  %v5791 = vsel %vm1497, %v5775, %v5688
  %v5792 = vsel %vm1497, %v5776, %v5690
  %v5793 = vsel %vm1497, %v5777, %v5692
  %v5794 = vsel %vm1497, %v5778, %v5694
  %v5795 = vsel %vm1497, %v5779, %v5696
  %v5796 = vsel %vm1497, %v5780, %v5698
  %v5797 = vsel %vm1497, %v5781, %v5700
  %v5798 = vsel %vm1497, %v5782, %v5702
  %v5799 = vsel %vm1497, %v5783, %v5704
  %v5800 = vsel %vm1497, %v5784, %v5706
  %v5801 = vsel %vm1497, %v5785, %v5708
  %v5802 = vsel %vm1497, %v5786, %v5710
  %v5803 = vsel %vm1497, %v5787, %v1804
  %v5804 = vsel %vm1497, %v5788, %v1804
  %v5805 = vsel %vm1503, %v5789, %v5726
  %v5806 = vsel %vm1503, %v5790, %v5728
  %v5807 = vsel %vm1503, %v5791, %v5730
  %v5808 = vsel %vm1503, %v5792, %v5732
  %v5809 = vsel %vm1503, %v5793, %v5734
  %v5810 = vsel %vm1503, %v5794, %v5736
  %v5811 = vsel %vm1503, %v5795, %v5738
  %v5812 = vsel %vm1503, %v5796, %v5740
  %v5813 = vsel %vm1503, %v5797, %v5742
  %v5814 = vsel %vm1503, %v5798, %v5744
  %v5815 = vsel %vm1503, %v5799, %v5746
  %v5816 = vsel %vm1503, %v5800, %v5748
  %v5817 = vsel %vm1503, %v5801, %v5750
  %v5818 = vsel %vm1503, %v5802, %v5752
  %v5819 = vsel %vm1503, %v5803, %v5754
  %v5820 = vsel %vm1503, %v5804, %v5756
  %v5822 = vperm.slane %v4172, 0
  %vm5824 = vcmask 523264
  %v5826 = vsel %vm5824, %v5805, 0
  %v5829 = vsel %vm5824, %v5806, 0
  %v5832 = vsel %vm5824, %v5807, 0
  %v5835 = vsel %vm5824, %v5808, 0
  %v5838 = vsel %vm5824, %v5809, 0
  %v5841 = vsel %vm5824, %v5810, 0
  %v5844 = vsel %vm5824, %v5811, 0
  %v5847 = vsel %vm5824, %v5812, 0
  %v5850 = vsel %vm5824, %v5813, 0
  %v5853 = vsel %vm5824, %v5814, 0
  %v5856 = vsel %vm5824, %v5815, 0
  %v5859 = vsel %vm5824, %v5816, 0
  %v5862 = vsel %vm5824, %v5817, 0
  %v5865 = vsel %vm5824, %v5818, 0
  %v5868 = vsel %vm5824, %v5819, 0
  %v5871 = vsel %vm5824, %v5820, 0
  %5873 = vmatpush.msra.mxu0 0.0
  %5874 = vmatpush.msra.mxu0 0.0
  %5875 = vmatpush.msra.mxu0 0.0
  %5876 = vmatpush.msra.mxu0 0.0
  %5877 = vmatpush.msra.mxu0 0.0
  %5878 = vmatpush.msra.mxu0 0.0
  %5879 = vmatpush.msra.mxu0 0.0
  %5880 = vmatpush.msra.mxu0 0.0
  %5881 = vmatpush.msra.mxu0 %v4171
  %5882 = vmatpush.msra.mxu0 %v4170
  %5883 = vmatpush.msra.mxu0 %v4169
  %5884 = vmatpush.msra.mxu0 %v4168
  %5885 = vmatpush.msra.mxu0 %v4167
  %5886 = vmatpush.msra.mxu0 %v4166
  %5887 = vmatpush.msra.mxu0 %v4165
  %5888 = vmatpush.msra.mxu0 %v4164
  %5889 = vmatmul.f32.gmra.mxu0 %v5826
  %v5890 = vpop.f32.mrf.mxu0
  %v5891 = vadd.f32 %v5822, %v5890
  %5892 = vmatmul.f32.gmra.mxu0 %v5829
  %v5893 = vpop.f32.mrf.mxu0
  %v5894 = vadd.f32 %v5822, %v5893
  %5895 = vmatmul.f32.gmra.mxu0 %v5832
  %v5896 = vpop.f32.mrf.mxu0
  %v5897 = vadd.f32 %v5822, %v5896
  %5898 = vmatmul.f32.gmra.mxu0 %v5835
  %v5899 = vpop.f32.mrf.mxu0
  %v5900 = vadd.f32 %v5822, %v5899
  %5901 = vmatmul.f32.gmra.mxu0 %v5838
  %v5902 = vpop.f32.mrf.mxu0
  %v5903 = vadd.f32 %v5822, %v5902
  %5904 = vmatmul.f32.gmra.mxu0 %v5841
  %v5905 = vpop.f32.mrf.mxu0
  %v5906 = vadd.f32 %v5822, %v5905
  %5907 = vmatmul.f32.gmra.mxu0 %v5844
  %v5908 = vpop.f32.mrf.mxu0
  %v5909 = vadd.f32 %v5822, %v5908
  %5910 = vmatmul.f32.gmra.mxu0 %v5847
  %v5911 = vpop.f32.mrf.mxu0
  %v5912 = vadd.f32 %v5822, %v5911
  %5913 = vmatmul.f32.gmra.mxu0 %v5850
  %v5914 = vpop.f32.mrf.mxu0
  %v5915 = vadd.f32 %v5822, %v5914
  %5916 = vmatmul.f32.gmra.mxu0 %v5853
  %v5917 = vpop.f32.mrf.mxu0
  %v5918 = vadd.f32 %v5822, %v5917
  %5919 = vmatmul.f32.gmra.mxu0 %v5856
  %v5920 = vpop.f32.mrf.mxu0
  %v5921 = vadd.f32 %v5822, %v5920
  %5922 = vmatmul.f32.gmra.mxu0 %v5859
  %v5923 = vpop.f32.mrf.mxu0
  %v5924 = vadd.f32 %v5822, %v5923
  %5925 = vmatmul.f32.gmra.mxu0 %v5862
  %v5926 = vpop.f32.mrf.mxu0
  %v5927 = vadd.f32 %v5822, %v5926
  %5928 = vmatmul.f32.gmra.mxu0 %v5865
  %v5929 = vpop.f32.mrf.mxu0
  %v5930 = vadd.f32 %v5822, %v5929
  %5931 = vmatmul.f32.gmra.mxu0 %v5868
  %v5932 = vpop.f32.mrf.mxu0
  %v5933 = vadd.f32 %v5822, %v5932
  %5934 = vmatmul.f32.gmra.mxu0 %v5871
  %v5935 = vpop.f32.mrf.mxu0
  %v5936 = vadd.f32 %v5822, %v5935
  %5937 = vdwg.mxu0
  %v5938 = vmax.f32 %v5891, 0.0
  %v5939 = vmax.f32 %v5894, 0.0
  %v5940 = vmax.f32 %v5897, 0.0
  %v5941 = vmax.f32 %v5900, 0.0
  %v5942 = vmax.f32 %v5903, 0.0
  %v5943 = vmax.f32 %v5906, 0.0
  %v5944 = vmax.f32 %v5909, 0.0
  %v5945 = vmax.f32 %v5912, 0.0
  %v5946 = vmax.f32 %v5915, 0.0
  %v5947 = vmax.f32 %v5918, 0.0
  %v5948 = vmax.f32 %v5921, 0.0
  %v5949 = vmax.f32 %v5924, 0.0
  %v5950 = vmax.f32 %v5927, 0.0
  %v5951 = vmax.f32 %v5930, 0.0
  %v5952 = vmax.f32 %v5933, 0.0
  %v5953 = vmax.f32 %v5936, 0.0
  %v5954 = vsel %vm937, %v5938, 0.0
  %5955 = vadd.xlane.f32.xlu0 %v5954
  %v5956 = vpop.xlane.xlu0 %5955
  %v5957 = vsel %vm937, %v5939, 0.0
  %5958 = vadd.xlane.f32.xlu0 %v5957
  %v5959 = vpop.xlane.xlu0 %5958
  %v5960 = vsel %vm937, %v5940, 0.0
  %5961 = vadd.xlane.f32.xlu0 %v5960
  %v5962 = vpop.xlane.xlu0 %5961
  %v5963 = vsel %vm937, %v5941, 0.0
  %5964 = vadd.xlane.f32.xlu0 %v5963
  %v5965 = vpop.xlane.xlu0 %5964
  %v5966 = vsel %vm937, %v5942, 0.0
  %5967 = vadd.xlane.f32.xlu0 %v5966
  %v5968 = vpop.xlane.xlu0 %5967
  %v5969 = vsel %vm937, %v5943, 0.0
  %5970 = vadd.xlane.f32.xlu0 %v5969
  %v5971 = vpop.xlane.xlu0 %5970
  %v5972 = vsel %vm937, %v5944, 0.0
  %5973 = vadd.xlane.f32.xlu0 %v5972
  %v5974 = vpop.xlane.xlu0 %5973
  %v5975 = vsel %vm937, %v5945, 0.0
  %5976 = vadd.xlane.f32.xlu0 %v5975
  %v5977 = vpop.xlane.xlu0 %5976
  %v5978 = vsel %vm937, %v5946, 0.0
  %5979 = vadd.xlane.f32.xlu0 %v5978
  %v5980 = vpop.xlane.xlu0 %5979
  %v5981 = vsel %vm937, %v5947, 0.0
  %5982 = vadd.xlane.f32.xlu0 %v5981
  %v5983 = vpop.xlane.xlu0 %5982
  %v5984 = vsel %vm937, %v5948, 0.0
  %5985 = vadd.xlane.f32.xlu0 %v5984
  %v5986 = vpop.xlane.xlu0 %5985
  %v5987 = vsel %vm937, %v5949, 0.0
  %5988 = vadd.xlane.f32.xlu0 %v5987
  %v5989 = vpop.xlane.xlu0 %5988
  %v5990 = vsel %vm937, %v5950, 0.0
  %5991 = vadd.xlane.f32.xlu0 %v5990
  %v5992 = vpop.xlane.xlu0 %5991
  %v5993 = vsel %vm937, %v5951, 0.0
  %5994 = vadd.xlane.f32.xlu0 %v5993
  %v5995 = vpop.xlane.xlu0 %5994
  %v5996 = vsel %vm937, %v5952, 0.0
  %5997 = vadd.xlane.f32.xlu0 %v5996
  %v5998 = vpop.xlane.xlu0 %5997
  %v5999 = vsel %vm937, %v5953, 0.0
  %6000 = vadd.xlane.f32.xlu0 %v5999
  %v6001 = vpop.xlane.xlu0 %6000
  %v6002 = vmul.f32 %v5956, %v2106
  %v6003 = vmul.f32 %v5959, %v2106
  %v6004 = vmul.f32 %v5962, %v2106
  %v6005 = vmul.f32 %v5965, %v2106
  %v6006 = vmul.f32 %v5968, %v2106
  %v6007 = vmul.f32 %v5971, %v2106
  %v6008 = vmul.f32 %v5974, %v2106
  %v6009 = vmul.f32 %v5977, %v2106
  %v6010 = vmul.f32 %v5980, %v2106
  %v6011 = vmul.f32 %v5983, %v2106
  %v6012 = vmul.f32 %v5986, %v2106
  %v6013 = vmul.f32 %v5989, %v2106
  %v6014 = vmul.f32 %v5992, %v2106
  %v6015 = vmul.f32 %v5995, %v2106
  %v6016 = vmul.f32 %v5998, %v2106
  %v6017 = vmul.f32 %v6001, %v2106
  %v6018 = vsub.f32 %v5938, %v6002
  %v6019 = vsub.f32 %v5939, %v6003
  %v6020 = vsub.f32 %v5940, %v6004
  %v6021 = vsub.f32 %v5941, %v6005
  %v6022 = vsub.f32 %v5942, %v6006
  %v6023 = vsub.f32 %v5943, %v6007
  %v6024 = vsub.f32 %v5944, %v6008
  %v6025 = vsub.f32 %v5945, %v6009
  %v6026 = vsub.f32 %v5946, %v6010
  %v6027 = vsub.f32 %v5947, %v6011
  %v6028 = vsub.f32 %v5948, %v6012
  %v6029 = vsub.f32 %v5949, %v6013
  %v6030 = vsub.f32 %v5950, %v6014
  %v6031 = vsub.f32 %v5951, %v6015
  %v6032 = vsub.f32 %v5952, %v6016
  %v6033 = vsub.f32 %v5953, %v6017
  %v6034 = vmul.f32 %v6018, %v6018
  %v6035 = vmul.f32 %v6019, %v6019
  %v6036 = vmul.f32 %v6020, %v6020
  %v6037 = vmul.f32 %v6021, %v6021
  %v6038 = vmul.f32 %v6022, %v6022
  %v6039 = vmul.f32 %v6023, %v6023
  %v6040 = vmul.f32 %v6024, %v6024
  %v6041 = vmul.f32 %v6025, %v6025
  %v6042 = vmul.f32 %v6026, %v6026
  %v6043 = vmul.f32 %v6027, %v6027
  %v6044 = vmul.f32 %v6028, %v6028
  %v6045 = vmul.f32 %v6029, %v6029
  %v6046 = vmul.f32 %v6030, %v6030
  %v6047 = vmul.f32 %v6031, %v6031
  %v6048 = vmul.f32 %v6032, %v6032
  %v6049 = vmul.f32 %v6033, %v6033
  %v6050 = vsel %vm937, %v6034, 0.0
  %6051 = vadd.xlane.f32.xlu0 %v6050
  %v6052 = vpop.xlane.xlu0 %6051
  %v6053 = vsel %vm937, %v6035, 0.0
  %6054 = vadd.xlane.f32.xlu0 %v6053
  %v6055 = vpop.xlane.xlu0 %6054
  %v6056 = vsel %vm937, %v6036, 0.0
  %6057 = vadd.xlane.f32.xlu0 %v6056
  %v6058 = vpop.xlane.xlu0 %6057
  %v6059 = vsel %vm937, %v6037, 0.0
  %6060 = vadd.xlane.f32.xlu0 %v6059
  %v6061 = vpop.xlane.xlu0 %6060
  %v6062 = vsel %vm937, %v6038, 0.0
  %6063 = vadd.xlane.f32.xlu0 %v6062
  %v6064 = vpop.xlane.xlu0 %6063
  %v6065 = vsel %vm937, %v6039, 0.0
  %6066 = vadd.xlane.f32.xlu0 %v6065
  %v6067 = vpop.xlane.xlu0 %6066
  %v6068 = vsel %vm937, %v6040, 0.0
  %6069 = vadd.xlane.f32.xlu0 %v6068
  %v6070 = vpop.xlane.xlu0 %6069
  %v6071 = vsel %vm937, %v6041, 0.0
  %6072 = vadd.xlane.f32.xlu0 %v6071
  %v6073 = vpop.xlane.xlu0 %6072
  %v6074 = vsel %vm937, %v6042, 0.0
  %6075 = vadd.xlane.f32.xlu0 %v6074
  %v6076 = vpop.xlane.xlu0 %6075
  %v6077 = vsel %vm937, %v6043, 0.0
  %6078 = vadd.xlane.f32.xlu0 %v6077
  %v6079 = vpop.xlane.xlu0 %6078
  %v6080 = vsel %vm937, %v6044, 0.0
  %6081 = vadd.xlane.f32.xlu0 %v6080
  %v6082 = vpop.xlane.xlu0 %6081
  %v6083 = vsel %vm937, %v6045, 0.0
  %6084 = vadd.xlane.f32.xlu0 %v6083
  %v6085 = vpop.xlane.xlu0 %6084
  %v6086 = vsel %vm937, %v6046, 0.0
  %6087 = vadd.xlane.f32.xlu0 %v6086
  %v6088 = vpop.xlane.xlu0 %6087
  %v6089 = vsel %vm937, %v6047, 0.0
  %6090 = vadd.xlane.f32.xlu0 %v6089
  %v6091 = vpop.xlane.xlu0 %6090
  %v6092 = vsel %vm937, %v6048, 0.0
  %6093 = vadd.xlane.f32.xlu0 %v6092
  %v6094 = vpop.xlane.xlu0 %6093
  %v6095 = vsel %vm937, %v6049, 0.0
  %6096 = vadd.xlane.f32.xlu0 %v6095
  %v6097 = vpop.xlane.xlu0 %6096
  %v6098 = vmul.f32 %v6052, %v2106
  %v6099 = vmul.f32 %v6055, %v2106
  %v6100 = vmul.f32 %v6058, %v2106
  %v6101 = vmul.f32 %v6061, %v2106
  %v6102 = vmul.f32 %v6064, %v2106
  %v6103 = vmul.f32 %v6067, %v2106
  %v6104 = vmul.f32 %v6070, %v2106
  %v6105 = vmul.f32 %v6073, %v2106
  %v6106 = vmul.f32 %v6076, %v2106
  %v6107 = vmul.f32 %v6079, %v2106
  %v6108 = vmul.f32 %v6082, %v2106
  %v6109 = vmul.f32 %v6085, %v2106
  %v6110 = vmul.f32 %v6088, %v2106
  %v6111 = vmul.f32 %v6091, %v2106
  %v6112 = vmul.f32 %v6094, %v2106
  %v6113 = vmul.f32 %v6097, %v2106
  %v6114 = vadd.f32 %v6098, 1e-05
  %v6115 = vadd.f32 %v6099, 1e-05
  %v6116 = vadd.f32 %v6100, 1e-05
  %v6117 = vadd.f32 %v6101, 1e-05
  %v6118 = vadd.f32 %v6102, 1e-05
  %v6119 = vadd.f32 %v6103, 1e-05
  %v6120 = vadd.f32 %v6104, 1e-05
  %v6121 = vadd.f32 %v6105, 1e-05
  %v6122 = vadd.f32 %v6106, 1e-05
  %v6123 = vadd.f32 %v6107, 1e-05
  %v6124 = vadd.f32 %v6108, 1e-05
  %v6125 = vadd.f32 %v6109, 1e-05
  %v6126 = vadd.f32 %v6110, 1e-05
  %v6127 = vadd.f32 %v6111, 1e-05
  %v6128 = vadd.f32 %v6112, 1e-05
  %v6129 = vadd.f32 %v6113, 1e-05
  %v6130 = vrsqrt.pop %v6114
  %v6131 = vmul.f32 %v6130, %v6114
  %v6132 = vmul.f32 %v6131, %v6130
  %v6133 = vmul.f32 0.5, %v6132
  %v6134 = vsub.f32 1.5, %v6133
  %v6135 = vmul.f32 %v6130, %v6134
  %vm6136 = vweird.f32 %v6114
  %vm6137 = vweird.f32 %v6130
  %vm6138 = vmor %vm6136, %vm6137
  %v6139 = vsel %vm6138, %v6130, %v6135
  %v6140 = vrsqrt.pop %v6115
  %v6141 = vmul.f32 %v6140, %v6115
  %v6142 = vmul.f32 %v6141, %v6140
  %v6143 = vmul.f32 0.5, %v6142
  %v6144 = vsub.f32 1.5, %v6143
  %v6145 = vmul.f32 %v6140, %v6144
  %vm6146 = vweird.f32 %v6115
  %vm6147 = vweird.f32 %v6140
  %vm6148 = vmor %vm6146, %vm6147
  %v6149 = vsel %vm6148, %v6140, %v6145
  %v6150 = vrsqrt.pop %v6116
  %v6151 = vmul.f32 %v6150, %v6116
  %v6152 = vmul.f32 %v6151, %v6150
  %v6153 = vmul.f32 0.5, %v6152
  %v6154 = vsub.f32 1.5, %v6153
  %v6155 = vmul.f32 %v6150, %v6154
  %vm6156 = vweird.f32 %v6116
  %vm6157 = vweird.f32 %v6150
  %vm6158 = vmor %vm6156, %vm6157
  %v6159 = vsel %vm6158, %v6150, %v6155
  %v6160 = vrsqrt.pop %v6117
  %v6161 = vmul.f32 %v6160, %v6117
  %v6162 = vmul.f32 %v6161, %v6160
  %v6163 = vmul.f32 0.5, %v6162
  %v6164 = vsub.f32 1.5, %v6163
  %v6165 = vmul.f32 %v6160, %v6164
  %vm6166 = vweird.f32 %v6117
  %vm6167 = vweird.f32 %v6160
  %vm6168 = vmor %vm6166, %vm6167
  %v6169 = vsel %vm6168, %v6160, %v6165
  %v6170 = vrsqrt.pop %v6118
  %v6171 = vmul.f32 %v6170, %v6118
  %v6172 = vmul.f32 %v6171, %v6170
  %v6173 = vmul.f32 0.5, %v6172
  %v6174 = vsub.f32 1.5, %v6173
  %v6175 = vmul.f32 %v6170, %v6174
  %vm6176 = vweird.f32 %v6118
  %vm6177 = vweird.f32 %v6170
  %vm6178 = vmor %vm6176, %vm6177
  %v6179 = vsel %vm6178, %v6170, %v6175
  %v6180 = vrsqrt.pop %v6119
  %v6181 = vmul.f32 %v6180, %v6119
  %v6182 = vmul.f32 %v6181, %v6180
  %v6183 = vmul.f32 0.5, %v6182
  %v6184 = vsub.f32 1.5, %v6183
  %v6185 = vmul.f32 %v6180, %v6184
  %vm6186 = vweird.f32 %v6119
  %vm6187 = vweird.f32 %v6180
  %vm6188 = vmor %vm6186, %vm6187
  %v6189 = vsel %vm6188, %v6180, %v6185
  %v6190 = vrsqrt.pop %v6120
  %v6191 = vmul.f32 %v6190, %v6120
  %v6192 = vmul.f32 %v6191, %v6190
  %v6193 = vmul.f32 0.5, %v6192
  %v6194 = vsub.f32 1.5, %v6193
  %v6195 = vmul.f32 %v6190, %v6194
  %vm6196 = vweird.f32 %v6120
  %vm6197 = vweird.f32 %v6190
  %vm6198 = vmor %vm6196, %vm6197
  %v6199 = vsel %vm6198, %v6190, %v6195
  %v6200 = vrsqrt.pop %v6121
  %v6201 = vmul.f32 %v6200, %v6121
  %v6202 = vmul.f32 %v6201, %v6200
  %v6203 = vmul.f32 0.5, %v6202
  %v6204 = vsub.f32 1.5, %v6203
  %v6205 = vmul.f32 %v6200, %v6204
  %vm6206 = vweird.f32 %v6121
  %vm6207 = vweird.f32 %v6200
  %vm6208 = vmor %vm6206, %vm6207
  %v6209 = vsel %vm6208, %v6200, %v6205
  %v6210 = vrsqrt.pop %v6122
  %v6211 = vmul.f32 %v6210, %v6122
  %v6212 = vmul.f32 %v6211, %v6210
  %v6213 = vmul.f32 0.5, %v6212
  %v6214 = vsub.f32 1.5, %v6213
  %v6215 = vmul.f32 %v6210, %v6214
  %vm6216 = vweird.f32 %v6122
  %vm6217 = vweird.f32 %v6210
  %vm6218 = vmor %vm6216, %vm6217
  %v6219 = vsel %vm6218, %v6210, %v6215
  %v6220 = vrsqrt.pop %v6123
  %v6221 = vmul.f32 %v6220, %v6123
  %v6222 = vmul.f32 %v6221, %v6220
  %v6223 = vmul.f32 0.5, %v6222
  %v6224 = vsub.f32 1.5, %v6223
  %v6225 = vmul.f32 %v6220, %v6224
  %vm6226 = vweird.f32 %v6123
  %vm6227 = vweird.f32 %v6220
  %vm6228 = vmor %vm6226, %vm6227
  %v6229 = vsel %vm6228, %v6220, %v6225
  %v6230 = vrsqrt.pop %v6124
  %v6231 = vmul.f32 %v6230, %v6124
  %v6232 = vmul.f32 %v6231, %v6230
  %v6233 = vmul.f32 0.5, %v6232
  %v6234 = vsub.f32 1.5, %v6233
  %v6235 = vmul.f32 %v6230, %v6234
  %vm6236 = vweird.f32 %v6124
  %vm6237 = vweird.f32 %v6230
  %vm6238 = vmor %vm6236, %vm6237
  %v6239 = vsel %vm6238, %v6230, %v6235
  %v6240 = vrsqrt.pop %v6125
  %v6241 = vmul.f32 %v6240, %v6125
  %v6242 = vmul.f32 %v6241, %v6240
  %v6243 = vmul.f32 0.5, %v6242
  %v6244 = vsub.f32 1.5, %v6243
  %v6245 = vmul.f32 %v6240, %v6244
  %vm6246 = vweird.f32 %v6125
  %vm6247 = vweird.f32 %v6240
  %vm6248 = vmor %vm6246, %vm6247
  %v6249 = vsel %vm6248, %v6240, %v6245
  %v6250 = vrsqrt.pop %v6126
  %v6251 = vmul.f32 %v6250, %v6126
  %v6252 = vmul.f32 %v6251, %v6250
  %v6253 = vmul.f32 0.5, %v6252
  %v6254 = vsub.f32 1.5, %v6253
  %v6255 = vmul.f32 %v6250, %v6254
  %vm6256 = vweird.f32 %v6126
  %vm6257 = vweird.f32 %v6250
  %vm6258 = vmor %vm6256, %vm6257
  %v6259 = vsel %vm6258, %v6250, %v6255
  %v6260 = vrsqrt.pop %v6127
  %v6261 = vmul.f32 %v6260, %v6127
  %v6262 = vmul.f32 %v6261, %v6260
  %v6263 = vmul.f32 0.5, %v6262
  %v6264 = vsub.f32 1.5, %v6263
  %v6265 = vmul.f32 %v6260, %v6264
  %vm6266 = vweird.f32 %v6127
  %vm6267 = vweird.f32 %v6260
  %vm6268 = vmor %vm6266, %vm6267
  %v6269 = vsel %vm6268, %v6260, %v6265
  %v6270 = vrsqrt.pop %v6128
  %v6271 = vmul.f32 %v6270, %v6128
  %v6272 = vmul.f32 %v6271, %v6270
  %v6273 = vmul.f32 0.5, %v6272
  %v6274 = vsub.f32 1.5, %v6273
  %v6275 = vmul.f32 %v6270, %v6274
  %vm6276 = vweird.f32 %v6128
  %vm6277 = vweird.f32 %v6270
  %vm6278 = vmor %vm6276, %vm6277
  %v6279 = vsel %vm6278, %v6270, %v6275
  %v6280 = vrsqrt.pop %v6129
  %v6281 = vmul.f32 %v6280, %v6129
  %v6282 = vmul.f32 %v6281, %v6280
  %v6283 = vmul.f32 0.5, %v6282
  %v6284 = vsub.f32 1.5, %v6283
  %v6285 = vmul.f32 %v6280, %v6284
  %vm6286 = vweird.f32 %v6129
  %vm6287 = vweird.f32 %v6280
  %vm6288 = vmor %vm6286, %vm6287
  %v6289 = vsel %vm6288, %v6280, %v6285
  %v6290 = vmul.f32 %v6018, %v6139
  %v6291 = vmul.f32 %v6019, %v6149
  %v6292 = vmul.f32 %v6020, %v6159
  %v6293 = vmul.f32 %v6021, %v6169
  %v6294 = vmul.f32 %v6022, %v6179
  %v6295 = vmul.f32 %v6023, %v6189
  %v6296 = vmul.f32 %v6024, %v6199
  %v6297 = vmul.f32 %v6025, %v6209
  %v6298 = vmul.f32 %v6026, %v6219
  %v6299 = vmul.f32 %v6027, %v6229
  %v6300 = vmul.f32 %v6028, %v6239
  %v6301 = vmul.f32 %v6029, %v6249
  %v6302 = vmul.f32 %v6030, %v6259
  %v6303 = vmul.f32 %v6031, %v6269
  %v6304 = vmul.f32 %v6032, %v6279
  %v6305 = vmul.f32 %v6033, %v6289
  %v6307 = vperm.slane %v4173, 0
  %v6309 = vmul.f32 %v6290, %v6307
  %v6310 = vmul.f32 %v6291, %v6307
  %v6311 = vmul.f32 %v6292, %v6307
  %v6312 = vmul.f32 %v6293, %v6307
  %v6313 = vmul.f32 %v6294, %v6307
  %v6314 = vmul.f32 %v6295, %v6307
  %v6315 = vmul.f32 %v6296, %v6307
  %v6316 = vmul.f32 %v6297, %v6307
  %v6317 = vmul.f32 %v6298, %v6307
  %v6318 = vmul.f32 %v6299, %v6307
  %v6319 = vmul.f32 %v6300, %v6307
  %v6320 = vmul.f32 %v6301, %v6307
  %v6321 = vmul.f32 %v6302, %v6307
  %v6322 = vmul.f32 %v6303, %v6307
  %v6323 = vmul.f32 %v6304, %v6307
  %v6324 = vmul.f32 %v6305, %v6307
  %v6326 = vperm.slane %v4174, 0
  %v6328 = vadd.f32 %v6309, %v6326
  %v6329 = vadd.f32 %v6310, %v6326
  %v6330 = vadd.f32 %v6311, %v6326
  %v6331 = vadd.f32 %v6312, %v6326
  %v6332 = vadd.f32 %v6313, %v6326
  %v6333 = vadd.f32 %v6314, %v6326
  %v6334 = vadd.f32 %v6315, %v6326
  %v6335 = vadd.f32 %v6316, %v6326
  %v6336 = vadd.f32 %v6317, %v6326
  %v6337 = vadd.f32 %v6318, %v6326
  %v6338 = vadd.f32 %v6319, %v6326
  %v6339 = vadd.f32 %v6320, %v6326
  %v6340 = vadd.f32 %v6321, %v6326
  %v6341 = vadd.f32 %v6322, %v6326
  %v6342 = vadd.f32 %v6323, %v6326
  %v6343 = vadd.f32 %v6324, %v6326
  %v6344 = vmul.f32 %v4126, %v4613
  %v6345 = vmul.f32 %v4127, %v4618
  %v6346 = vmul.f32 %v4128, %v4613
  %v6347 = vmul.f32 %v4129, %v4618
  %v6348 = vmul.f32 %v4130, %v4613
  %v6349 = vmul.f32 %v4131, %v4618
  %v6350 = vmul.f32 %v4132, %v4613
  %v6351 = vmul.f32 %v4133, %v4618
  %v6352 = vmul.f32 %v4134, %v4613
  %v6353 = vmul.f32 %v4135, %v4618
  %v6354 = vmul.f32 %v4136, %v4613
  %v6355 = vmul.f32 %v4137, %v4618
  %v6356 = vmul.f32 %v4138, %v4613
  %v6357 = vmul.f32 %v4139, %v4618
  %v6358 = vmul.f32 %v4140, %v4613
  %v6359 = vmul.f32 %v4141, %v4618
  %v6360 = vsel %vm937, %v6344, 0.0
  %v6361 = vsel %vm937, %v6345, 0.0
  %v6362 = vadd.f32 %v6360, %v6361
  %v6363 = vrot.slane %v6362, 4
  %v6364 = vadd.f32 %v6362, %v6363
  %v6365 = vrot.slane %v6364, 2
  %v6366 = vadd.f32 %v6364, %v6365
  %v6367 = vrot.slane %v6366, 1
  %v6368 = vadd.f32 %v6366, %v6367
  %v6369 = vsel %vm937, %v6346, 0.0
  %v6370 = vsel %vm937, %v6347, 0.0
  %v6371 = vadd.f32 %v6369, %v6370
  %v6372 = vrot.slane %v6371, 4
  %v6373 = vadd.f32 %v6371, %v6372
  %v6374 = vrot.slane %v6373, 2
  %v6375 = vadd.f32 %v6373, %v6374
  %v6376 = vrot.slane %v6375, 1
  %v6377 = vadd.f32 %v6375, %v6376
  %v6378 = vsel %vm937, %v6348, 0.0
  %v6379 = vsel %vm937, %v6349, 0.0
  %v6380 = vadd.f32 %v6378, %v6379
  %v6381 = vrot.slane %v6380, 4
  %v6382 = vadd.f32 %v6380, %v6381
  %v6383 = vrot.slane %v6382, 2
  %v6384 = vadd.f32 %v6382, %v6383
  %v6385 = vrot.slane %v6384, 1
  %v6386 = vadd.f32 %v6384, %v6385
  %v6387 = vsel %vm937, %v6350, 0.0
  %v6388 = vsel %vm937, %v6351, 0.0
  %v6389 = vadd.f32 %v6387, %v6388
  %v6390 = vrot.slane %v6389, 4
  %v6391 = vadd.f32 %v6389, %v6390
  %v6392 = vrot.slane %v6391, 2
  %v6393 = vadd.f32 %v6391, %v6392
  %v6394 = vrot.slane %v6393, 1
  %v6395 = vadd.f32 %v6393, %v6394
  %v6396 = vsel %vm937, %v6352, 0.0
  %v6397 = vsel %vm937, %v6353, 0.0
  %v6398 = vadd.f32 %v6396, %v6397
  %v6399 = vrot.slane %v6398, 4
  %v6400 = vadd.f32 %v6398, %v6399
  %v6401 = vrot.slane %v6400, 2
  %v6402 = vadd.f32 %v6400, %v6401
  %v6403 = vrot.slane %v6402, 1
  %v6404 = vadd.f32 %v6402, %v6403
  %v6405 = vsel %vm937, %v6354, 0.0
  %v6406 = vsel %vm937, %v6355, 0.0
  %v6407 = vadd.f32 %v6405, %v6406
  %v6408 = vrot.slane %v6407, 4
  %v6409 = vadd.f32 %v6407, %v6408
  %v6410 = vrot.slane %v6409, 2
  %v6411 = vadd.f32 %v6409, %v6410
  %v6412 = vrot.slane %v6411, 1
  %v6413 = vadd.f32 %v6411, %v6412
  %v6414 = vsel %vm937, %v6356, 0.0
  %v6415 = vsel %vm937, %v6357, 0.0
  %v6416 = vadd.f32 %v6414, %v6415
  %v6417 = vrot.slane %v6416, 4
  %v6418 = vadd.f32 %v6416, %v6417
  %v6419 = vrot.slane %v6418, 2
  %v6420 = vadd.f32 %v6418, %v6419
  %v6421 = vrot.slane %v6420, 1
  %v6422 = vadd.f32 %v6420, %v6421
  %v6423 = vsel %vm937, %v6358, 0.0
  %v6424 = vsel %vm937, %v6359, 0.0
  %v6425 = vadd.f32 %v6423, %v6424
  %v6426 = vrot.slane %v6425, 4
  %v6427 = vadd.f32 %v6425, %v6426
  %v6428 = vrot.slane %v6427, 2
  %v6429 = vadd.f32 %v6427, %v6428
  %v6430 = vrot.slane %v6429, 1
  %v6431 = vadd.f32 %v6429, %v6430
  %v6440 = vsel %vm782, %v6377, %v6368
  %v6441 = vsel %vm784, %v6386, %v6440
  %v6442 = vsel %vm786, %v6395, %v6441
  %v6443 = vsel %vm788, %v6404, %v6442
  %v6444 = vsel %vm790, %v6413, %v6443
  %v6445 = vsel %vm792, %v6422, %v6444
  %v6446 = vsel %vm794, %v6431, %v6445
  %v6447 = vsel %vm937, %v6446, 0
  %6449 = vmatpush.msra.mxu0 0.0
  %6450 = vmatpush.msra.mxu0 0.0
  %6451 = vmatpush.msra.mxu0 0.0
  %6452 = vmatpush.msra.mxu0 0.0
  %6453 = vmatpush.msra.mxu0 0.0
  %6454 = vmatpush.msra.mxu0 0.0
  %6455 = vmatpush.msra.mxu0 0.0
  %6456 = vmatpush.msra.mxu0 0.0
  %6457 = vmatpush.msra.mxu0 0.0
  %6458 = vmatpush.msra.mxu0 0.0
  %6459 = vmatpush.msra.mxu0 0.0
  %6460 = vmatpush.msra.mxu0 0.0
  %6461 = vmatpush.msra.mxu0 0.0
  %6462 = vmatpush.msra.mxu0 0.0
  %6463 = vmatpush.msra.mxu0 %v4145
  %6464 = vmatpush.msra.mxu0 %v4144
  %6465 = vmatmul.f32.gmra.mxu0 %v6447
  %v6466 = vpop.f32.mrf.mxu0
  %v6467 = vadd.f32 0.0, %v6466
  %6468 = vdwg.mxu0
  %v6469 = vmul.f32 %v4126, %v4746
  %v6470 = vmul.f32 %v4127, %v4746
  %v6471 = vmul.f32 %v4128, %v4746
  %v6472 = vmul.f32 %v4129, %v4746
  %v6473 = vmul.f32 %v4130, %v4746
  %v6474 = vmul.f32 %v4131, %v4746
  %v6475 = vmul.f32 %v4132, %v4746
  %v6476 = vmul.f32 %v4133, %v4746
  %v6477 = vmul.f32 %v4134, %v4746
  %v6478 = vmul.f32 %v4135, %v4746
  %v6479 = vmul.f32 %v4136, %v4746
  %v6480 = vmul.f32 %v4137, %v4746
  %v6481 = vmul.f32 %v4138, %v4746
  %v6482 = vmul.f32 %v4139, %v4746
  %v6483 = vmul.f32 %v4140, %v4746
  %v6484 = vmul.f32 %v4141, %v4746
  %v6485 = vsel %vm937, %v6469, 0.0
  %6486 = vadd.xlane.f32.xlu0 %v6485
  %v6487 = vpop.xlane.xlu0 %6486
  %v6488 = vsel %vm937, %v6470, 0.0
  %6489 = vadd.xlane.f32.xlu0 %v6488
  %v6490 = vpop.xlane.xlu0 %6489
  %v6491 = vsel %vm937, %v6471, 0.0
  %6492 = vadd.xlane.f32.xlu0 %v6491
  %v6493 = vpop.xlane.xlu0 %6492
  %v6494 = vsel %vm937, %v6472, 0.0
  %6495 = vadd.xlane.f32.xlu0 %v6494
  %v6496 = vpop.xlane.xlu0 %6495
  %v6497 = vsel %vm937, %v6473, 0.0
  %6498 = vadd.xlane.f32.xlu0 %v6497
  %v6499 = vpop.xlane.xlu0 %6498
  %v6500 = vsel %vm937, %v6474, 0.0
  %6501 = vadd.xlane.f32.xlu0 %v6500
  %v6502 = vpop.xlane.xlu0 %6501
  %v6503 = vsel %vm937, %v6475, 0.0
  %6504 = vadd.xlane.f32.xlu0 %v6503
  %v6505 = vpop.xlane.xlu0 %6504
  %v6506 = vsel %vm937, %v6476, 0.0
  %6507 = vadd.xlane.f32.xlu0 %v6506
  %v6508 = vpop.xlane.xlu0 %6507
  %v6509 = vsel %vm937, %v6477, 0.0
  %6510 = vadd.xlane.f32.xlu0 %v6509
  %v6511 = vpop.xlane.xlu0 %6510
  %v6512 = vsel %vm937, %v6478, 0.0
  %6513 = vadd.xlane.f32.xlu0 %v6512
  %v6514 = vpop.xlane.xlu0 %6513
  %v6515 = vsel %vm937, %v6479, 0.0
  %6516 = vadd.xlane.f32.xlu0 %v6515
  %v6517 = vpop.xlane.xlu0 %6516
  %v6518 = vsel %vm937, %v6480, 0.0
  %6519 = vadd.xlane.f32.xlu0 %v6518
  %v6520 = vpop.xlane.xlu0 %6519
  %v6521 = vsel %vm937, %v6481, 0.0
  %6522 = vadd.xlane.f32.xlu0 %v6521
  %v6523 = vpop.xlane.xlu0 %6522
  %v6524 = vsel %vm937, %v6482, 0.0
  %6525 = vadd.xlane.f32.xlu0 %v6524
  %v6526 = vpop.xlane.xlu0 %6525
  %v6527 = vsel %vm937, %v6483, 0.0
  %6528 = vadd.xlane.f32.xlu0 %v6527
  %v6529 = vpop.xlane.xlu0 %6528
  %v6530 = vsel %vm937, %v6484, 0.0
  %6531 = vadd.xlane.f32.xlu0 %v6530
  %v6532 = vpop.xlane.xlu0 %6531
  %v6549 = vperm.slane %v6487, %v164
  %v6550 = vperm.slane %v6490, %v905
  %v6551 = vsel %vm907, %v6550, %v6549
  %v6552 = vperm.slane %v6493, %v164
  %v6553 = vperm.slane %v6496, %v905
  %v6554 = vsel %vm907, %v6553, %v6552
  %v6555 = vperm.slane %v6499, %v164
  %v6556 = vperm.slane %v6502, %v905
  %v6557 = vsel %vm907, %v6556, %v6555
  %v6558 = vperm.slane %v6505, %v164
  %v6559 = vperm.slane %v6508, %v905
  %v6560 = vsel %vm907, %v6559, %v6558
  %v6561 = vperm.slane %v6511, %v164
  %v6562 = vperm.slane %v6514, %v905
  %v6563 = vsel %vm907, %v6562, %v6561
  %v6564 = vperm.slane %v6517, %v164
  %v6565 = vperm.slane %v6520, %v905
  %v6566 = vsel %vm907, %v6565, %v6564
  %v6567 = vperm.slane %v6523, %v164
  %v6568 = vperm.slane %v6526, %v905
  %v6569 = vsel %vm907, %v6568, %v6567
  %v6570 = vperm.slane %v6529, %v164
  %v6571 = vperm.slane %v6532, %v905
  %v6572 = vsel %vm907, %v6571, %v6570
  %v6573 = vsel %vm782, %v6554, %v6551
  %v6574 = vsel %vm784, %v6557, %v6573
  %v6575 = vsel %vm786, %v6560, %v6574
  %v6576 = vsel %vm788, %v6563, %v6575
  %v6577 = vsel %vm790, %v6566, %v6576
  %v6578 = vsel %vm792, %v6569, %v6577
  %v6579 = vsel %vm794, %v6572, %v6578
  %v6581 = vsel %vm937, %v6467, 0
  %v6583 = vsel %vm937, %v6579, 0
  %6585 = vmatpush.xpose.msra.mxu0 0.0
  %6586 = vmatpush.xpose.msra.mxu0 0.0
  %6587 = vmatpush.xpose.msra.mxu0 0.0
  %6588 = vmatpush.xpose.msra.mxu0 0.0
  %6589 = vmatpush.xpose.msra.mxu0 0.0
  %6590 = vmatpush.xpose.msra.mxu0 0.0
  %6591 = vmatpush.xpose.msra.mxu0 0.0
  %6592 = vmatpush.xpose.msra.mxu0 0.0
  %6593 = vmatpush.xpose.msra.mxu0 0.0
  %6594 = vmatpush.xpose.msra.mxu0 0.0
  %6595 = vmatpush.xpose.msra.mxu0 0.0
  %6596 = vmatpush.xpose.msra.mxu0 0.0
  %6597 = vmatpush.xpose.msra.mxu0 0.0
  %6598 = vmatpush.xpose.msra.mxu0 0.0
  %6599 = vmatpush.xpose.msra.mxu0 0.0
  %6600 = vmatpush.xpose.msra.mxu0 %v6583
  %6601 = vmatmul.f32.gmra.mxu0 %v6581
  %v6602 = vpop.f32.mrf.mxu0
  %v6603 = vadd.f32 %v4147, %v6602
  %6604 = vdwg.mxu0
  %v6605 = vxor.u32 %v6603, 2147483648
  %v6606 = vmul.f32 %v6605, 1.442695
  %v6607 = vpow.pop %v6606
  %v6608 = vadd.f32 %v6607, 1.0
  %v6609 = vrcp.pop %v6608
  %v6610 = vmul.f32 %v6608, %v6609
  %v6611 = vsub.f32 1.0, %v6610
  %v6612 = vmul.f32 %v6609, %v6611
  %v6613 = vadd.f32 %v6609, %v6612
  %vm6614 = vweird.f32 %v6608
  %vm6615 = vweird.f32 %v6609
  %vm6616 = vmor %vm6614, %vm6615
  %v6617 = vsel %vm6616, %v6609, %v6613
  %v6618 = vand.u32 2147483647, %v6608
  %vm6619 = vcmp.eq.f32.partialorder %v6618, 8.507059e+37
  %v6620 = vand.u32 %v6608, 2147483648
  %v6621 = vor.u32 1.1754944e-38, %v6620
  %v6622 = vsel %vm6619, %v6621, %v6617
  %v6623 = vmul.f32 1.0, %v6622
  %6624 = vmatpush.msra.mxu0 0.0
  %6625 = vmatpush.msra.mxu0 0.0
  %6626 = vmatpush.msra.mxu0 0.0
  %6627 = vmatpush.msra.mxu0 0.0
  %6628 = vmatpush.msra.mxu0 0.0
  %6629 = vmatpush.msra.mxu0 0.0
  %6630 = vmatpush.msra.mxu0 0.0
  %6631 = vmatpush.msra.mxu0 0.0
  %6632 = vmatpush.msra.mxu0 0.0
  %6633 = vmatpush.msra.mxu0 0.0
  %6634 = vmatpush.msra.mxu0 0.0
  %6635 = vmatpush.msra.mxu0 0.0
  %6636 = vmatpush.msra.mxu0 0.0
  %6637 = vmatpush.msra.mxu0 0.0
  %6638 = vmatpush.msra.mxu0 0.0
  %6639 = vmatpush.msra.mxu0 %v6623
  %6640 = vmatmul.f32.gmra.mxu0 %v4904
  %v6641 = vpop.f32.mrf.mxu0
  %v6642 = vadd.f32 0.0, %v6641
  %6643 = vdwg.mxu0
  %v6644 = vsel %vm982, %v6642, -inf
  %v6645 = vrot.slane %v6644, 4
  %v6646 = vmax.f32 %v6644, %v6645
  %v6647 = vrot.slane %v6646, 2
  %v6648 = vmax.f32 %v6646, %v6647
  %v6649 = vrot.slane %v6648, 1
  %v6650 = vmax.f32 %v6648, %v6649
  %v6651 = vsub.f32 %v6642, %v6650
  %v6652 = vmul.f32 %v6651, 1.442695
  %v6653 = vpow.pop %v6652
  %v6654 = vsel %vm982, %v6653, 0.0
  %v6655 = vrot.slane %v6654, 4
  %v6656 = vadd.f32 %v6654, %v6655
  %v6657 = vrot.slane %v6656, 2
  %v6658 = vadd.f32 %v6656, %v6657
  %v6659 = vrot.slane %v6658, 1
  %v6660 = vadd.f32 %v6658, %v6659
  %v6661 = vrcp.pop %v6660
  %v6662 = vmul.f32 %v6653, %v6661
  %v6663 = vmul.f32 %v6662, %v4946
  %v6664 = vsel %vm982, %v6663, 0.0
  %6665 = vadd.xlane.f32.xlu0 %v6664
  %v6666 = vpop.xlane.xlu0 %6665
  %v6668 = vperm.slane %v6666, 0
  %v6669 = vperm.slane %v6666, 1
  %v6670 = vperm.slane %v6666, 2
  %v6671 = vperm.slane %v6666, 3
  %v6672 = vperm.slane %v6666, 4
  %v6673 = vperm.slane %v6666, 5
  %v6674 = vperm.slane %v6666, 6
  %v6675 = vperm.slane %v6666, 7
  %v6684 = vmul.f32 %v4126, %v6668
  %v6685 = vmul.f32 %v4127, %v6668
  %v6686 = vmul.f32 %v4128, %v6669
  %v6687 = vmul.f32 %v4129, %v6669
  %v6688 = vmul.f32 %v4130, %v6670
  %v6689 = vmul.f32 %v4131, %v6670
  %v6690 = vmul.f32 %v4132, %v6671
  %v6691 = vmul.f32 %v4133, %v6671
  %v6692 = vmul.f32 %v4134, %v6672
  %v6693 = vmul.f32 %v4135, %v6672
  %v6694 = vmul.f32 %v4136, %v6673
  %v6695 = vmul.f32 %v4137, %v6673
  %v6696 = vmul.f32 %v4138, %v6674
  %v6697 = vmul.f32 %v4139, %v6674
  %v6698 = vmul.f32 %v4140, %v6675
  %v6699 = vmul.f32 %v4141, %v6675
  %v6700 = vsel %vm937, %v6684, 0.0
  %v6701 = vsel %vm937, %v6686, 0.0
  %v6702 = vadd.f32 %v6700, %v6701
  %v6703 = vsel %vm937, %v6688, 0.0
  %v6704 = vadd.f32 %v6702, %v6703
  %v6705 = vsel %vm937, %v6690, 0.0
  %v6706 = vadd.f32 %v6704, %v6705
  %v6707 = vsel %vm937, %v6692, 0.0
  %v6708 = vadd.f32 %v6706, %v6707
  %v6709 = vsel %vm937, %v6694, 0.0
  %v6710 = vadd.f32 %v6708, %v6709
  %v6711 = vsel %vm937, %v6696, 0.0
  %v6712 = vadd.f32 %v6710, %v6711
  %v6713 = vsel %vm937, %v6698, 0.0
  %v6714 = vadd.f32 %v6712, %v6713
  %v6715 = vsel %vm937, %v6685, 0.0
  %v6716 = vsel %vm937, %v6687, 0.0
  %v6717 = vadd.f32 %v6715, %v6716
  %v6718 = vsel %vm937, %v6689, 0.0
  %v6719 = vadd.f32 %v6717, %v6718
  %v6720 = vsel %vm937, %v6691, 0.0
  %v6721 = vadd.f32 %v6719, %v6720
  %v6722 = vsel %vm937, %v6693, 0.0
  %v6723 = vadd.f32 %v6721, %v6722
  %v6724 = vsel %vm937, %v6695, 0.0
  %v6725 = vadd.f32 %v6723, %v6724
  %v6726 = vsel %vm937, %v6697, 0.0
  %v6727 = vadd.f32 %v6725, %v6726
  %v6728 = vsel %vm937, %v6699, 0.0
  %v6729 = vadd.f32 %v6727, %v6728
  %v6731 = vsel %vm937, %v6714, 0
  %v6734 = vsel %vm937, %v6729, 0
  %6736 = vmatpush.msra.mxu0 0.0
  %6737 = vmatpush.msra.mxu0 0.0
  %6738 = vmatpush.msra.mxu0 0.0
  %6739 = vmatpush.msra.mxu0 0.0
  %6740 = vmatpush.msra.mxu0 0.0
  %6741 = vmatpush.msra.mxu0 0.0
  %6742 = vmatpush.msra.mxu0 0.0
  %6743 = vmatpush.msra.mxu0 0.0
  %6744 = vmatpush.msra.mxu0 0.0
  %6745 = vmatpush.msra.mxu0 0.0
  %6746 = vmatpush.msra.mxu0 0.0
  %6747 = vmatpush.msra.mxu0 0.0
  %6748 = vmatpush.msra.mxu0 0.0
  %6749 = vmatpush.msra.mxu0 0.0
  %6750 = vmatpush.msra.mxu0 %v4151
  %6751 = vmatpush.msra.mxu0 %v4150
  %6752 = vmatmul.f32.gmra.mxu0 %v6731
  %v6753 = vpop.f32.mrf.mxu0
  %v6754 = vadd.f32 0.0, %v6753
  %6755 = vmatmul.f32.gmra.mxu0 %v6734
  %v6756 = vpop.f32.mrf.mxu0
  %v6757 = vadd.f32 0.0, %v6756
  %6758 = vdwg.mxu0
  %v6759 = vmul.f32 %v4126, %v5045
  %v6760 = vmul.f32 %v4127, %v5045
  %v6761 = vmul.f32 %v4128, %v5045
  %v6762 = vmul.f32 %v4129, %v5045
  %v6763 = vmul.f32 %v4130, %v5045
  %v6764 = vmul.f32 %v4131, %v5045
  %v6765 = vmul.f32 %v4132, %v5045
  %v6766 = vmul.f32 %v4133, %v5045
  %v6767 = vmul.f32 %v4134, %v5045
  %v6768 = vmul.f32 %v4135, %v5045
  %v6769 = vmul.f32 %v4136, %v5045
  %v6770 = vmul.f32 %v4137, %v5045
  %v6771 = vmul.f32 %v4138, %v5045
  %v6772 = vmul.f32 %v4139, %v5045
  %v6773 = vmul.f32 %v4140, %v5045
  %v6774 = vmul.f32 %v4141, %v5045
  %v6775 = vsel %vm937, %v6759, 0.0
  %6776 = vadd.xlane.f32.xlu0 %v6775
  %v6777 = vpop.xlane.xlu0 %6776
  %v6778 = vsel %vm937, %v6760, 0.0
  %6779 = vadd.xlane.f32.xlu0 %v6778
  %v6780 = vpop.xlane.xlu0 %6779
  %v6781 = vsel %vm937, %v6761, 0.0
  %6782 = vadd.xlane.f32.xlu0 %v6781
  %v6783 = vpop.xlane.xlu0 %6782
  %v6784 = vsel %vm937, %v6762, 0.0
  %6785 = vadd.xlane.f32.xlu0 %v6784
  %v6786 = vpop.xlane.xlu0 %6785
  %v6787 = vsel %vm937, %v6763, 0.0
  %6788 = vadd.xlane.f32.xlu0 %v6787
  %v6789 = vpop.xlane.xlu0 %6788
  %v6790 = vsel %vm937, %v6764, 0.0
  %6791 = vadd.xlane.f32.xlu0 %v6790
  %v6792 = vpop.xlane.xlu0 %6791
  %v6793 = vsel %vm937, %v6765, 0.0
  %6794 = vadd.xlane.f32.xlu0 %v6793
  %v6795 = vpop.xlane.xlu0 %6794
  %v6796 = vsel %vm937, %v6766, 0.0
  %6797 = vadd.xlane.f32.xlu0 %v6796
  %v6798 = vpop.xlane.xlu0 %6797
  %v6799 = vsel %vm937, %v6767, 0.0
  %6800 = vadd.xlane.f32.xlu0 %v6799
  %v6801 = vpop.xlane.xlu0 %6800
  %v6802 = vsel %vm937, %v6768, 0.0
  %6803 = vadd.xlane.f32.xlu0 %v6802
  %v6804 = vpop.xlane.xlu0 %6803
  %v6805 = vsel %vm937, %v6769, 0.0
  %6806 = vadd.xlane.f32.xlu0 %v6805
  %v6807 = vpop.xlane.xlu0 %6806
  %v6808 = vsel %vm937, %v6770, 0.0
  %6809 = vadd.xlane.f32.xlu0 %v6808
  %v6810 = vpop.xlane.xlu0 %6809
  %v6811 = vsel %vm937, %v6771, 0.0
  %6812 = vadd.xlane.f32.xlu0 %v6811
  %v6813 = vpop.xlane.xlu0 %6812
  %v6814 = vsel %vm937, %v6772, 0.0
  %6815 = vadd.xlane.f32.xlu0 %v6814
  %v6816 = vpop.xlane.xlu0 %6815
  %v6817 = vsel %vm937, %v6773, 0.0
  %6818 = vadd.xlane.f32.xlu0 %v6817
  %v6819 = vpop.xlane.xlu0 %6818
  %v6820 = vsel %vm937, %v6774, 0.0
  %6821 = vadd.xlane.f32.xlu0 %v6820
  %v6822 = vpop.xlane.xlu0 %6821
  %v6824 = vsel %vm982, %v6754, 0
  %v6827 = vsel %vm982, %v6757, 0
  %v6830 = vsel %vm982, %v6662, 0
  %6832 = vmatpush.xpose.msra.mxu0 0.0
  %6833 = vmatpush.xpose.msra.mxu0 0.0
  %6834 = vmatpush.xpose.msra.mxu0 0.0
  %6835 = vmatpush.xpose.msra.mxu0 0.0
  %6836 = vmatpush.xpose.msra.mxu0 0.0
  %6837 = vmatpush.xpose.msra.mxu0 0.0
  %6838 = vmatpush.xpose.msra.mxu0 0.0
  %6839 = vmatpush.xpose.msra.mxu0 0.0
  %6840 = vmatpush.xpose.msra.mxu0 0.0
  %6841 = vmatpush.xpose.msra.mxu0 0.0
  %6842 = vmatpush.xpose.msra.mxu0 0.0
  %6843 = vmatpush.xpose.msra.mxu0 0.0
  %6844 = vmatpush.xpose.msra.mxu0 0.0
  %6845 = vmatpush.xpose.msra.mxu0 0.0
  %6846 = vmatpush.xpose.msra.mxu0 0.0
  %6847 = vmatpush.xpose.msra.mxu0 %v6830
  %6848 = vmatmul.f32.gmra.mxu0 %v6824
  %v6849 = vpop.f32.mrf.mxu0
  %v6850 = vadd.f32 0.0, %v6849
  %6851 = vmatmul.f32.gmra.mxu0 %v6827
  %v6852 = vpop.f32.mrf.mxu0
  %v6853 = vadd.f32 0.0, %v6852
  %6854 = vdwg.mxu0
  %v6871 = vperm.slane %v6777, %v164
  %v6872 = vperm.slane %v6780, %v905
  %v6873 = vsel %vm907, %v6872, %v6871
  %v6874 = vperm.slane %v6783, %v164
  %v6875 = vperm.slane %v6786, %v905
  %v6876 = vsel %vm907, %v6875, %v6874
  %v6877 = vperm.slane %v6789, %v164
  %v6878 = vperm.slane %v6792, %v905
  %v6879 = vsel %vm907, %v6878, %v6877
  %v6880 = vperm.slane %v6795, %v164
  %v6881 = vperm.slane %v6798, %v905
  %v6882 = vsel %vm907, %v6881, %v6880
  %v6883 = vperm.slane %v6801, %v164
  %v6884 = vperm.slane %v6804, %v905
  %v6885 = vsel %vm907, %v6884, %v6883
  %v6886 = vperm.slane %v6807, %v164
  %v6887 = vperm.slane %v6810, %v905
  %v6888 = vsel %vm907, %v6887, %v6886
  %v6889 = vperm.slane %v6813, %v164
  %v6890 = vperm.slane %v6816, %v905
  %v6891 = vsel %vm907, %v6890, %v6889
  %v6892 = vperm.slane %v6819, %v164
  %v6893 = vperm.slane %v6822, %v905
  %v6894 = vsel %vm907, %v6893, %v6892
  %v6895 = vsel %vm782, %v6876, %v6873
  %v6896 = vsel %vm784, %v6879, %v6895
  %v6897 = vsel %vm786, %v6882, %v6896
  %v6898 = vsel %vm788, %v6885, %v6897
  %v6899 = vsel %vm790, %v6888, %v6898
  %v6900 = vsel %vm792, %v6891, %v6899
  %v6901 = vsel %vm794, %v6894, %v6900
  %v6904 = vsel %vm982, %v6850, 0
  %v6907 = vsel %vm982, %v6853, 0
  %6909 = vmatpush.msra.mxu0 0.0
  %6910 = vmatpush.msra.mxu0 0.0
  %6911 = vmatpush.msra.mxu0 0.0
  %6912 = vmatpush.msra.mxu0 0.0
  %6913 = vmatpush.msra.mxu0 0.0
  %6914 = vmatpush.msra.mxu0 0.0
  %6915 = vmatpush.msra.mxu0 0.0
  %6916 = vmatpush.msra.mxu0 0.0
  %6917 = vmatpush.msra.mxu0 0.0
  %6918 = vmatpush.msra.mxu0 0.0
  %6919 = vmatpush.msra.mxu0 0.0
  %6920 = vmatpush.msra.mxu0 0.0
  %6921 = vmatpush.msra.mxu0 0.0
  %6922 = vmatpush.msra.mxu0 0.0
  %6923 = vmatpush.msra.mxu0 0.0
  %6924 = vmatpush.msra.mxu0 %v6901
  %6925 = vmatmul.f32.gmra.mxu0 %v6904
  %v6926 = vpop.f32.mrf.mxu0
  %v6927 = vadd.f32 %v4153, %v6926
  %6928 = vmatmul.f32.gmra.mxu0 %v6907
  %v6929 = vpop.f32.mrf.mxu0
  %v6930 = vadd.f32 %v4154, %v6929
  %6931 = vdwg.mxu0
  %v6932 = vxor.u32 %v6927, 2147483648
  %v6933 = vxor.u32 %v6930, 2147483648
  %v6934 = vmul.f32 %v6932, 1.442695
  %v6935 = vpow.pop %v6934
  %v6936 = vmul.f32 %v6933, 1.442695
  %v6937 = vpow.pop %v6936
  %v6938 = vadd.f32 %v6935, 1.0
  %v6939 = vadd.f32 %v6937, 1.0
  %v6940 = vrcp.pop %v6938
  %v6941 = vmul.f32 %v6938, %v6940
  %v6942 = vsub.f32 1.0, %v6941
  %v6943 = vmul.f32 %v6940, %v6942
  %v6944 = vadd.f32 %v6940, %v6943
  %vm6945 = vweird.f32 %v6938
  %vm6946 = vweird.f32 %v6940
  %vm6947 = vmor %vm6945, %vm6946
  %v6948 = vsel %vm6947, %v6940, %v6944
  %v6949 = vand.u32 2147483647, %v6938
  %vm6950 = vcmp.eq.f32.partialorder %v6949, 8.507059e+37
  %v6951 = vand.u32 %v6938, 2147483648
  %v6952 = vor.u32 1.1754944e-38, %v6951
  %v6953 = vsel %vm6950, %v6952, %v6948
  %v6954 = vmul.f32 1.0, %v6953
  %v6955 = vrcp.pop %v6939
  %v6956 = vmul.f32 %v6939, %v6955
  %v6957 = vsub.f32 1.0, %v6956
  %v6958 = vmul.f32 %v6955, %v6957
  %v6959 = vadd.f32 %v6955, %v6958
  %vm6960 = vweird.f32 %v6939
  %vm6961 = vweird.f32 %v6955
  %vm6962 = vmor %vm6960, %vm6961
  %v6963 = vsel %vm6962, %v6955, %v6959
  %v6964 = vand.u32 2147483647, %v6939
  %vm6965 = vcmp.eq.f32.partialorder %v6964, 8.507059e+37
  %v6966 = vand.u32 %v6939, 2147483648
  %v6967 = vor.u32 1.1754944e-38, %v6966
  %v6968 = vsel %vm6965, %v6967, %v6963
  %v6969 = vmul.f32 1.0, %v6968
  %6970 = vmatpush.msra.mxu0 0.0
  %6971 = vmatpush.msra.mxu0 0.0
  %6972 = vmatpush.msra.mxu0 0.0
  %6973 = vmatpush.msra.mxu0 0.0
  %6974 = vmatpush.msra.mxu0 0.0
  %6975 = vmatpush.msra.mxu0 0.0
  %6976 = vmatpush.msra.mxu0 0.0
  %6977 = vmatpush.msra.mxu0 0.0
  %6978 = vmatpush.msra.mxu0 0.0
  %6979 = vmatpush.msra.mxu0 0.0
  %6980 = vmatpush.msra.mxu0 0.0
  %6981 = vmatpush.msra.mxu0 0.0
  %6982 = vmatpush.msra.mxu0 0.0
  %6983 = vmatpush.msra.mxu0 0.0
  %6984 = vmatpush.msra.mxu0 %v6969
  %6985 = vmatpush.msra.mxu0 %v6954
  %6986 = vmatmul.f32.gmra.mxu0 %v5259
  %v6987 = vpop.f32.mrf.mxu0
  %v6988 = vadd.f32 0.0, %v6987
  %6989 = vmatmul.f32.gmra.mxu0 %v5262
  %v6990 = vpop.f32.mrf.mxu0
  %v6991 = vadd.f32 0.0, %v6990
  %6992 = vdwg.mxu0
  %v6993 = vsel %vm937, %v6988, -inf
  %v6994 = vsel %vm937, %v6991, -inf
  %v6995 = vmax.f32 %v6993, %v6994
  %v6996 = vrot.slane %v6995, 4
  %v6997 = vmax.f32 %v6995, %v6996
  %v6998 = vrot.slane %v6997, 2
  %v6999 = vmax.f32 %v6997, %v6998
  %v7000 = vrot.slane %v6999, 1
  %v7001 = vmax.f32 %v6999, %v7000
  %v7002 = vsub.f32 %v6988, %v7001
  %v7003 = vsub.f32 %v6991, %v7001
  %v7004 = vmul.f32 %v7002, 1.442695
  %v7005 = vpow.pop %v7004
  %v7006 = vmul.f32 %v7003, 1.442695
  %v7007 = vpow.pop %v7006
  %v7008 = vsel %vm937, %v7005, 0.0
  %v7009 = vsel %vm937, %v7007, 0.0
  %v7010 = vadd.f32 %v7008, %v7009
  %v7011 = vrot.slane %v7010, 4
  %v7012 = vadd.f32 %v7010, %v7011
  %v7013 = vrot.slane %v7012, 2
  %v7014 = vadd.f32 %v7012, %v7013
  %v7015 = vrot.slane %v7014, 1
  %v7016 = vadd.f32 %v7014, %v7015
  %v7017 = vrcp.pop %v7016
  %v7018 = vmul.f32 %v7005, %v7017
  %v7019 = vmul.f32 %v7007, %v7017
  %v7020 = vmul.f32 %v7018, %v169
  %v7021 = vmul.f32 %v7019, %v170
  %v7022 = vsel %vm937, %v7020, 0.0
  %v7023 = vsel %vm937, %v7021, 0.0
  %v7024 = vadd.f32 %v7022, %v7023
  %v7025 = vrot.slane %v7024, 4
  %v7026 = vadd.f32 %v7024, %v7025
  %v7027 = vrot.slane %v7026, 2
  %v7028 = vadd.f32 %v7026, %v7027
  %v7029 = vrot.slane %v7028, 1
  %v7030 = vadd.f32 %v7028, %v7029
  %v7031 = vmul.f32 %v169, %v7030
  %v7032 = vmul.f32 %v170, %v7030
  %7033 = vxpose.xlu0.b32.start [1/16] %v7018, 128
  %7034 = vxpose.xlu0.b32.cont [2/16] %v7019, 128
  %7035 = vxpose.xlu0.b32.cont [3/16] 0.0, 128
  %7036 = vxpose.xlu0.b32.cont [4/16] 0.0, 128
  %7037 = vxpose.xlu0.b32.cont [5/16] 0.0, 128
  %7038 = vxpose.xlu0.b32.cont [6/16] 0.0, 128
  %7039 = vxpose.xlu0.b32.cont [7/16] 0.0, 128
  %7040 = vxpose.xlu0.b32.cont [8/16] 0.0, 128
  %7041 = vxpose.xlu0.b32.cont [9/16] 0.0, 128
  %7042 = vxpose.xlu0.b32.cont [10/16] 0.0, 128
  %7043 = vxpose.xlu0.b32.cont [11/16] 0.0, 128
  %7044 = vxpose.xlu0.b32.cont [12/16] 0.0, 128
  %7045 = vxpose.xlu0.b32.cont [13/16] 0.0, 128
  %7046 = vxpose.xlu0.b32.cont [14/16] 0.0, 128
  %7047 = vxpose.xlu0.b32.cont [15/16] 0.0, 128
  %7048 = vxpose.xlu0.b32.end [16/16] 0.0, 128
  %v7049 = vpop.trf.xlu0
  %v7050 = vpop.trf.xlu0
  %v7051 = vpop.trf.xlu0
  %v7052 = vpop.trf.xlu0
  %v7053 = vpop.trf.xlu0
  %v7054 = vpop.trf.xlu0
  %v7055 = vpop.trf.xlu0
  %v7056 = vpop.trf.xlu0
  %v7057 = vpop.trf.xlu0
  %v7058 = vpop.trf.xlu0
  %v7059 = vpop.trf.xlu0
  %v7060 = vpop.trf.xlu0
  %v7061 = vpop.trf.xlu0
  %v7062 = vpop.trf.xlu0
  %v7063 = vpop.trf.xlu0
  %v7064 = vpop.trf.xlu0
  %v7065 = vmul.f32 %v158, %v7049
  %v7066 = vmul.f32 %v159, %v7050
  %v7067 = vmul.f32 %v7065, %v7030
  %v7068 = vmul.f32 %v7066, %v7030
  %7069 = vmatpush.msra.mxu0 0.0
  %7070 = vmatpush.msra.mxu0 0.0
  %7071 = vmatpush.msra.mxu0 0.0
  %7072 = vmatpush.msra.mxu0 0.0
  %7073 = vmatpush.msra.mxu0 0.0
  %7074 = vmatpush.msra.mxu0 0.0
  %7075 = vmatpush.msra.mxu0 0.0
  %7076 = vmatpush.msra.mxu0 0.0
  %7077 = vmatpush.msra.mxu0 0.0
  %7078 = vmatpush.msra.mxu0 0.0
  %7079 = vmatpush.msra.mxu0 0.0
  %7080 = vmatpush.msra.mxu0 0.0
  %7081 = vmatpush.msra.mxu0 0.0
  %7082 = vmatpush.msra.mxu0 0.0
  %7083 = vmatpush.msra.mxu0 %v7068
  %7084 = vmatpush.msra.mxu0 %v7067
  %7085 = vmatmul.f32.gmra.mxu0 %v1447
  %v7086 = vpop.f32.mrf.mxu0
  %v7087 = vadd.f32 0.0, %v7086
  %7088 = vmatmul.f32.gmra.mxu0 %v1450
  %v7089 = vpop.f32.mrf.mxu0
  %v7090 = vadd.f32 0.0, %v7089
  %7091 = vdwg.mxu0
  %v7092 = vmul.f32 %v7087, 2.0
  %v7093 = vmul.f32 %v7090, 2.0
  %v7094 = vsub.f32 %v7092, %v7031
  %v7095 = vsub.f32 %v7093, %v7032
  %7098 = vrot.lane.b32.xlu0 %v7067, 16
  %v7099 = vpop.permute.xlu0 %7098
  %7100 = vrot.lane.b32.xlu0 %v7068, 16
  %v7101 = vpop.permute.xlu0 %7100
  %7106 = vrot.lane.b32.xlu0 %v7094, 32
  %v7107 = vpop.permute.xlu0 %7106
  %7108 = vrot.lane.b32.xlu0 %v7095, 32
  %v7109 = vpop.permute.xlu0 %7108
  %v7112 = vsel %vm937, %v7031, %v7099
  %v7113 = vsel %vm937, %v7032, %v7101
  %v7114 = vsel %vm1497, %v7112, %v7107
  %v7115 = vsel %vm1497, %v7113, %v7109
  %v7117 = vsel %vm1503, %v7114, 0
  %v7120 = vsel %vm1503, %v7115, 0
  %7122 = vmatpush.msra.mxu0 0.0
  %7123 = vmatpush.msra.mxu0 0.0
  %7124 = vmatpush.msra.mxu0 0.0
  %7125 = vmatpush.msra.mxu0 0.0
  %7126 = vmatpush.msra.mxu0 0.0
  %7127 = vmatpush.msra.mxu0 0.0
  %7128 = vmatpush.msra.mxu0 0.0
  %7129 = vmatpush.msra.mxu0 0.0
  %7130 = vmatpush.msra.mxu0 0.0
  %7131 = vmatpush.msra.mxu0 0.0
  %7132 = vmatpush.msra.mxu0 %v4566
  %7133 = vmatpush.msra.mxu0 %v4563
  %7134 = vmatpush.msra.mxu0 %v4453
  %7135 = vmatpush.msra.mxu0 %v4450
  %7136 = vmatpush.msra.mxu0 %v4340
  %7137 = vmatpush.msra.mxu0 %v4337
  %7138 = vmatmul.f32.gmra.mxu0 %v7117
  %v7139 = vpop.f32.mrf.mxu0
  %v7140 = vadd.f32 %v5411, %v7139
  %7141 = vmatmul.f32.gmra.mxu0 %v7120
  %v7142 = vpop.f32.mrf.mxu0
  %v7143 = vadd.f32 %v5411, %v7142
  %7144 = vdwg.mxu0
  %v7145 = vmax.f32 %v7140, 0.0
  %v7146 = vmax.f32 %v7143, 0.0
  %7147 = vmatpush.msra.mxu0 0.0
  %7148 = vmatpush.msra.mxu0 0.0
  %7149 = vmatpush.msra.mxu0 0.0
  %7150 = vmatpush.msra.mxu0 0.0
  %7151 = vmatpush.msra.mxu0 0.0
  %7152 = vmatpush.msra.mxu0 0.0
  %7153 = vmatpush.msra.mxu0 0.0
  %7154 = vmatpush.msra.mxu0 0.0
  %7155 = vmatpush.msra.mxu0 0.0
  %7156 = vmatpush.msra.mxu0 0.0
  %7157 = vmatpush.msra.mxu0 %v4572
  %7158 = vmatpush.msra.mxu0 %v4569
  %7159 = vmatpush.msra.mxu0 %v4459
  %7160 = vmatpush.msra.mxu0 %v4456
  %7161 = vmatpush.msra.mxu0 %v4346
  %7162 = vmatpush.msra.mxu0 %v4343
  %7163 = vmatmul.f32.gmra.mxu0 %v7117
  %v7164 = vpop.f32.mrf.mxu0
  %v7165 = vadd.f32 %v5411, %v7164
  %7166 = vmatmul.f32.gmra.mxu0 %v7120
  %v7167 = vpop.f32.mrf.mxu0
  %v7168 = vadd.f32 %v5411, %v7167
  %7169 = vdwg.mxu0
  %v7170 = vmax.f32 %v7165, 0.0
  %v7171 = vmax.f32 %v7168, 0.0
  %7172 = vmatpush.msra.mxu0 0.0
  %7173 = vmatpush.msra.mxu0 0.0
  %7174 = vmatpush.msra.mxu0 0.0
  %7175 = vmatpush.msra.mxu0 0.0
  %7176 = vmatpush.msra.mxu0 0.0
  %7177 = vmatpush.msra.mxu0 0.0
  %7178 = vmatpush.msra.mxu0 0.0
  %7179 = vmatpush.msra.mxu0 0.0
  %7180 = vmatpush.msra.mxu0 0.0
  %7181 = vmatpush.msra.mxu0 0.0
  %7182 = vmatpush.msra.mxu0 %v4578
  %7183 = vmatpush.msra.mxu0 %v4575
  %7184 = vmatpush.msra.mxu0 %v4465
  %7185 = vmatpush.msra.mxu0 %v4462
  %7186 = vmatpush.msra.mxu0 %v4352
  %7187 = vmatpush.msra.mxu0 %v4349
  %7188 = vmatmul.f32.gmra.mxu0 %v7117
  %v7189 = vpop.f32.mrf.mxu0
  %v7190 = vadd.f32 %v5411, %v7189
  %7191 = vmatmul.f32.gmra.mxu0 %v7120
  %v7192 = vpop.f32.mrf.mxu0
  %v7193 = vadd.f32 %v5411, %v7192
  %7194 = vdwg.mxu0
  %v7195 = vmax.f32 %v7190, 0.0
  %v7196 = vmax.f32 %v7193, 0.0
  %7197 = vmatpush.msra.mxu0 0.0
  %7198 = vmatpush.msra.mxu0 0.0
  %7199 = vmatpush.msra.mxu0 0.0
  %7200 = vmatpush.msra.mxu0 0.0
  %7201 = vmatpush.msra.mxu0 0.0
  %7202 = vmatpush.msra.mxu0 0.0
  %7203 = vmatpush.msra.mxu0 0.0
  %7204 = vmatpush.msra.mxu0 0.0
  %7205 = vmatpush.msra.mxu0 0.0
  %7206 = vmatpush.msra.mxu0 0.0
  %7207 = vmatpush.msra.mxu0 %v4584
  %7208 = vmatpush.msra.mxu0 %v4581
  %7209 = vmatpush.msra.mxu0 %v4471
  %7210 = vmatpush.msra.mxu0 %v4468
  %7211 = vmatpush.msra.mxu0 %v4358
  %7212 = vmatpush.msra.mxu0 %v4355
  %7213 = vmatmul.f32.gmra.mxu0 %v7117
  %v7214 = vpop.f32.mrf.mxu0
  %v7215 = vadd.f32 %v5411, %v7214
  %7216 = vmatmul.f32.gmra.mxu0 %v7120
  %v7217 = vpop.f32.mrf.mxu0
  %v7218 = vadd.f32 %v5411, %v7217
  %7219 = vdwg.mxu0
  %v7220 = vmax.f32 %v7215, 0.0
  %v7221 = vmax.f32 %v7218, 0.0
  %7222 = vmatpush.msra.mxu0 0.0
  %7223 = vmatpush.msra.mxu0 0.0
  %7224 = vmatpush.msra.mxu0 0.0
  %7225 = vmatpush.msra.mxu0 0.0
  %7226 = vmatpush.msra.mxu0 0.0
  %7227 = vmatpush.msra.mxu0 0.0
  %7228 = vmatpush.msra.mxu0 0.0
  %7229 = vmatpush.msra.mxu0 0.0
  %7230 = vmatpush.msra.mxu0 0.0
  %7231 = vmatpush.msra.mxu0 0.0
  %7232 = vmatpush.msra.mxu0 %v4590
  %7233 = vmatpush.msra.mxu0 %v4587
  %7234 = vmatpush.msra.mxu0 %v4477
  %7235 = vmatpush.msra.mxu0 %v4474
  %7236 = vmatpush.msra.mxu0 %v4364
  %7237 = vmatpush.msra.mxu0 %v4361
  %7238 = vmatmul.f32.gmra.mxu0 %v7117
  %v7239 = vpop.f32.mrf.mxu0
  %v7240 = vadd.f32 %v5411, %v7239
  %7241 = vmatmul.f32.gmra.mxu0 %v7120
  %v7242 = vpop.f32.mrf.mxu0
  %v7243 = vadd.f32 %v5411, %v7242
  %7244 = vdwg.mxu0
  %v7245 = vmax.f32 %v7240, 0.0
  %v7246 = vmax.f32 %v7243, 0.0
  %7247 = vmatpush.msra.mxu0 0.0
  %7248 = vmatpush.msra.mxu0 0.0
  %7249 = vmatpush.msra.mxu0 0.0
  %7250 = vmatpush.msra.mxu0 0.0
  %7251 = vmatpush.msra.mxu0 0.0
  %7252 = vmatpush.msra.mxu0 0.0
  %7253 = vmatpush.msra.mxu0 0.0
  %7254 = vmatpush.msra.mxu0 0.0
  %7255 = vmatpush.msra.mxu0 0.0
  %7256 = vmatpush.msra.mxu0 0.0
  %7257 = vmatpush.msra.mxu0 %v4596
  %7258 = vmatpush.msra.mxu0 %v4593
  %7259 = vmatpush.msra.mxu0 %v4483
  %7260 = vmatpush.msra.mxu0 %v4480
  %7261 = vmatpush.msra.mxu0 %v4370
  %7262 = vmatpush.msra.mxu0 %v4367
  %7263 = vmatmul.f32.gmra.mxu0 %v7117
  %v7264 = vpop.f32.mrf.mxu0
  %v7265 = vadd.f32 %v5411, %v7264
  %7266 = vmatmul.f32.gmra.mxu0 %v7120
  %v7267 = vpop.f32.mrf.mxu0
  %v7268 = vadd.f32 %v5411, %v7267
  %7269 = vdwg.mxu0
  %v7270 = vmax.f32 %v7265, 0.0
  %v7271 = vmax.f32 %v7268, 0.0
  %7272 = vmatpush.msra.mxu0 0.0
  %7273 = vmatpush.msra.mxu0 0.0
  %7274 = vmatpush.msra.mxu0 0.0
  %7275 = vmatpush.msra.mxu0 0.0
  %7276 = vmatpush.msra.mxu0 0.0
  %7277 = vmatpush.msra.mxu0 0.0
  %7278 = vmatpush.msra.mxu0 0.0
  %7279 = vmatpush.msra.mxu0 0.0
  %7280 = vmatpush.msra.mxu0 0.0
  %7281 = vmatpush.msra.mxu0 0.0
  %7282 = vmatpush.msra.mxu0 %v4602
  %7283 = vmatpush.msra.mxu0 %v4599
  %7284 = vmatpush.msra.mxu0 %v4489
  %7285 = vmatpush.msra.mxu0 %v4486
  %7286 = vmatpush.msra.mxu0 %v4376
  %7287 = vmatpush.msra.mxu0 %v4373
  %7288 = vmatmul.f32.gmra.mxu0 %v7117
  %v7289 = vpop.f32.mrf.mxu0
  %v7290 = vadd.f32 %v5411, %v7289
  %7291 = vmatmul.f32.gmra.mxu0 %v7120
  %v7292 = vpop.f32.mrf.mxu0
  %v7293 = vadd.f32 %v5411, %v7292
  %7294 = vdwg.mxu0
  %v7295 = vmax.f32 %v7290, 0.0
  %v7296 = vmax.f32 %v7293, 0.0
  %7297 = vmatpush.msra.mxu0 0.0
  %7298 = vmatpush.msra.mxu0 0.0
  %7299 = vmatpush.msra.mxu0 0.0
  %7300 = vmatpush.msra.mxu0 0.0
  %7301 = vmatpush.msra.mxu0 0.0
  %7302 = vmatpush.msra.mxu0 0.0
  %7303 = vmatpush.msra.mxu0 0.0
  %7304 = vmatpush.msra.mxu0 0.0
  %7305 = vmatpush.msra.mxu0 0.0
  %7306 = vmatpush.msra.mxu0 0.0
  %7307 = vmatpush.msra.mxu0 %v4608
  %7308 = vmatpush.msra.mxu0 %v4605
  %7309 = vmatpush.msra.mxu0 %v4495
  %7310 = vmatpush.msra.mxu0 %v4492
  %7311 = vmatpush.msra.mxu0 %v4382
  %7312 = vmatpush.msra.mxu0 %v4379
  %7313 = vmatmul.f32.gmra.mxu0 %v7117
  %v7314 = vpop.f32.mrf.mxu0
  %v7315 = vadd.f32 %v5411, %v7314
  %7316 = vmatmul.f32.gmra.mxu0 %v7120
  %v7317 = vpop.f32.mrf.mxu0
  %v7318 = vadd.f32 %v5411, %v7317
  %7319 = vdwg.mxu0
  %v7320 = vmax.f32 %v7315, 0.0
  %v7321 = vmax.f32 %v7318, 0.0
  %7338 = vrot.lane.b32.xlu0 %v7145, 16
  %v7339 = vpop.permute.xlu0 %7338
  %7340 = vrot.lane.b32.xlu0 %v7146, 16
  %v7341 = vpop.permute.xlu0 %7340
  %7342 = vrot.lane.b32.xlu0 %v7170, 16
  %v7343 = vpop.permute.xlu0 %7342
  %7344 = vrot.lane.b32.xlu0 %v7171, 16
  %v7345 = vpop.permute.xlu0 %7344
  %7346 = vrot.lane.b32.xlu0 %v7195, 16
  %v7347 = vpop.permute.xlu0 %7346
  %7348 = vrot.lane.b32.xlu0 %v7196, 16
  %v7349 = vpop.permute.xlu0 %7348
  %7350 = vrot.lane.b32.xlu0 %v7220, 16
  %v7351 = vpop.permute.xlu0 %7350
  %7352 = vrot.lane.b32.xlu0 %v7221, 16
  %v7353 = vpop.permute.xlu0 %7352
  %7354 = vrot.lane.b32.xlu0 %v7245, 16
  %v7355 = vpop.permute.xlu0 %7354
  %7356 = vrot.lane.b32.xlu0 %v7246, 16
  %v7357 = vpop.permute.xlu0 %7356
  %7358 = vrot.lane.b32.xlu0 %v7270, 16
  %v7359 = vpop.permute.xlu0 %7358
  %7360 = vrot.lane.b32.xlu0 %v7271, 16
  %v7361 = vpop.permute.xlu0 %7360
  %7362 = vrot.lane.b32.xlu0 %v7295, 16
  %v7363 = vpop.permute.xlu0 %7362
  %7364 = vrot.lane.b32.xlu0 %v7296, 16
  %v7365 = vpop.permute.xlu0 %7364
  %7366 = vrot.lane.b32.xlu0 %v7320, 16
  %v7367 = vpop.permute.xlu0 %7366
  %7368 = vrot.lane.b32.xlu0 %v7321, 16
  %v7369 = vpop.permute.xlu0 %7368
  %7386 = vrot.lane.b32.xlu0 %v7170, 32
  %v7387 = vpop.permute.xlu0 %7386
  %7388 = vrot.lane.b32.xlu0 %v7171, 32
  %v7389 = vpop.permute.xlu0 %7388
  %7390 = vrot.lane.b32.xlu0 %v7195, 32
  %v7391 = vpop.permute.xlu0 %7390
  %7392 = vrot.lane.b32.xlu0 %v7196, 32
  %v7393 = vpop.permute.xlu0 %7392
  %7394 = vrot.lane.b32.xlu0 %v7220, 32
  %v7395 = vpop.permute.xlu0 %7394
  %7396 = vrot.lane.b32.xlu0 %v7221, 32
  %v7397 = vpop.permute.xlu0 %7396
  %7398 = vrot.lane.b32.xlu0 %v7245, 32
  %v7399 = vpop.permute.xlu0 %7398
  %7400 = vrot.lane.b32.xlu0 %v7246, 32
  %v7401 = vpop.permute.xlu0 %7400
  %7402 = vrot.lane.b32.xlu0 %v7270, 32
  %v7403 = vpop.permute.xlu0 %7402
  %7404 = vrot.lane.b32.xlu0 %v7271, 32
  %v7405 = vpop.permute.xlu0 %7404
  %7406 = vrot.lane.b32.xlu0 %v7295, 32
  %v7407 = vpop.permute.xlu0 %7406
  %7408 = vrot.lane.b32.xlu0 %v7296, 32
  %v7409 = vpop.permute.xlu0 %7408
  %7410 = vrot.lane.b32.xlu0 %v7320, 32
  %v7411 = vpop.permute.xlu0 %7410
  %7412 = vrot.lane.b32.xlu0 %v7321, 32
  %v7413 = vpop.permute.xlu0 %7412
  %7428 = vrot.lane.b32.xlu0 %v4126, 48
  %v7429 = vpop.permute.xlu0 %7428
  %7430 = vrot.lane.b32.xlu0 %v4127, 48
  %v7431 = vpop.permute.xlu0 %7430
  %7432 = vrot.lane.b32.xlu0 %v4128, 48
  %v7433 = vpop.permute.xlu0 %7432
  %7434 = vrot.lane.b32.xlu0 %v4129, 48
  %v7435 = vpop.permute.xlu0 %7434
  %7436 = vrot.lane.b32.xlu0 %v4130, 48
  %v7437 = vpop.permute.xlu0 %7436
  %7438 = vrot.lane.b32.xlu0 %v4131, 48
  %v7439 = vpop.permute.xlu0 %7438
  %7440 = vrot.lane.b32.xlu0 %v4132, 48
  %v7441 = vpop.permute.xlu0 %7440
  %7442 = vrot.lane.b32.xlu0 %v4133, 48
  %v7443 = vpop.permute.xlu0 %7442
  %7444 = vrot.lane.b32.xlu0 %v4134, 48
  %v7445 = vpop.permute.xlu0 %7444
  %7446 = vrot.lane.b32.xlu0 %v4135, 48
  %v7447 = vpop.permute.xlu0 %7446
  %7448 = vrot.lane.b32.xlu0 %v4136, 48
  %v7449 = vpop.permute.xlu0 %7448
  %7450 = vrot.lane.b32.xlu0 %v4137, 48
  %v7451 = vpop.permute.xlu0 %7450
  %7452 = vrot.lane.b32.xlu0 %v4138, 48
  %v7453 = vpop.permute.xlu0 %7452
  %7454 = vrot.lane.b32.xlu0 %v4139, 48
  %v7455 = vpop.permute.xlu0 %7454
  %7456 = vrot.lane.b32.xlu0 %v4140, 48
  %v7457 = vpop.permute.xlu0 %7456
  %7458 = vrot.lane.b32.xlu0 %v4141, 48
  %v7459 = vpop.permute.xlu0 %7458
  %v7476 = vsel %vm937, 0.0, %v7339
  %v7477 = vsel %vm937, 0.0, %v7341
  %v7478 = vsel %vm937, %v7145, %v7343
  %v7479 = vsel %vm937, %v7146, %v7345
  %v7480 = vsel %vm937, %v7170, %v7347
  %v7481 = vsel %vm937, %v7171, %v7349
  %v7482 = vsel %vm937, %v7195, %v7351
  %v7483 = vsel %vm937, %v7196, %v7353
  %v7484 = vsel %vm937, %v7220, %v7355
  %v7485 = vsel %vm937, %v7221, %v7357
  %v7486 = vsel %vm937, %v7245, %v7359
  %v7487 = vsel %vm937, %v7246, %v7361
  %v7488 = vsel %vm937, %v7270, %v7363
  %v7489 = vsel %vm937, %v7271, %v7365
  %v7490 = vsel %vm937, %v7295, %v7367
  %v7491 = vsel %vm937, %v7296, %v7369
  %v7492 = vsel %vm1497, %v7476, %v7387
  %v7493 = vsel %vm1497, %v7477, %v7389
  %v7494 = vsel %vm1497, %v7478, %v7391
  %v7495 = vsel %vm1497, %v7479, %v7393
  %v7496 = vsel %vm1497, %v7480, %v7395
  %v7497 = vsel %vm1497, %v7481, %v7397
  %v7498 = vsel %vm1497, %v7482, %v7399
  %v7499 = vsel %vm1497, %v7483, %v7401
  %v7500 = vsel %vm1497, %v7484, %v7403
  %v7501 = vsel %vm1497, %v7485, %v7405
  %v7502 = vsel %vm1497, %v7486, %v7407
  %v7503 = vsel %vm1497, %v7487, %v7409
  %v7504 = vsel %vm1497, %v7488, %v7411
  %v7505 = vsel %vm1497, %v7489, %v7413
  %v7506 = vsel %vm1497, %v7490, %v1804
  %v7507 = vsel %vm1497, %v7491, %v1804
  %v7508 = vsel %vm1503, %v7492, %v7429
  %v7509 = vsel %vm1503, %v7493, %v7431
  %v7510 = vsel %vm1503, %v7494, %v7433
  %v7511 = vsel %vm1503, %v7495, %v7435
  %v7512 = vsel %vm1503, %v7496, %v7437
  %v7513 = vsel %vm1503, %v7497, %v7439
  %v7514 = vsel %vm1503, %v7498, %v7441
  %v7515 = vsel %vm1503, %v7499, %v7443
  %v7516 = vsel %vm1503, %v7500, %v7445
  %v7517 = vsel %vm1503, %v7501, %v7447
  %v7518 = vsel %vm1503, %v7502, %v7449
  %v7519 = vsel %vm1503, %v7503, %v7451
  %v7520 = vsel %vm1503, %v7504, %v7453
  %v7521 = vsel %vm1503, %v7505, %v7455
  %v7522 = vsel %vm1503, %v7506, %v7457
  %v7523 = vsel %vm1503, %v7507, %v7459
  %v7525 = vsel %vm5824, %v7508, 0
  %v7528 = vsel %vm5824, %v7509, 0
  %v7531 = vsel %vm5824, %v7510, 0
  %v7534 = vsel %vm5824, %v7511, 0
  %v7537 = vsel %vm5824, %v7512, 0
  %v7540 = vsel %vm5824, %v7513, 0
  %v7543 = vsel %vm5824, %v7514, 0
  %v7546 = vsel %vm5824, %v7515, 0
  %v7549 = vsel %vm5824, %v7516, 0
  %v7552 = vsel %vm5824, %v7517, 0
  %v7555 = vsel %vm5824, %v7518, 0
  %v7558 = vsel %vm5824, %v7519, 0
  %v7561 = vsel %vm5824, %v7520, 0
  %v7564 = vsel %vm5824, %v7521, 0
  %v7567 = vsel %vm5824, %v7522, 0
  %v7570 = vsel %vm5824, %v7523, 0
  %7572 = vmatpush.msra.mxu0 0.0
  %7573 = vmatpush.msra.mxu0 0.0
  %7574 = vmatpush.msra.mxu0 0.0
  %7575 = vmatpush.msra.mxu0 0.0
  %7576 = vmatpush.msra.mxu0 0.0
  %7577 = vmatpush.msra.mxu0 0.0
  %7578 = vmatpush.msra.mxu0 0.0
  %7579 = vmatpush.msra.mxu0 0.0
  %7580 = vmatpush.msra.mxu0 %v4171
  %7581 = vmatpush.msra.mxu0 %v4170
  %7582 = vmatpush.msra.mxu0 %v4169
  %7583 = vmatpush.msra.mxu0 %v4168
  %7584 = vmatpush.msra.mxu0 %v4167
  %7585 = vmatpush.msra.mxu0 %v4166
  %7586 = vmatpush.msra.mxu0 %v4165
  %7587 = vmatpush.msra.mxu0 %v4164
  %7588 = vmatmul.f32.gmra.mxu0 %v7525
  %v7589 = vpop.f32.mrf.mxu0
  %v7590 = vadd.f32 %v5822, %v7589
  %7591 = vmatmul.f32.gmra.mxu0 %v7528
  %v7592 = vpop.f32.mrf.mxu0
  %v7593 = vadd.f32 %v5822, %v7592
  %7594 = vmatmul.f32.gmra.mxu0 %v7531
  %v7595 = vpop.f32.mrf.mxu0
  %v7596 = vadd.f32 %v5822, %v7595
  %7597 = vmatmul.f32.gmra.mxu0 %v7534
  %v7598 = vpop.f32.mrf.mxu0
  %v7599 = vadd.f32 %v5822, %v7598
  %7600 = vmatmul.f32.gmra.mxu0 %v7537
  %v7601 = vpop.f32.mrf.mxu0
  %v7602 = vadd.f32 %v5822, %v7601
  %7603 = vmatmul.f32.gmra.mxu0 %v7540
  %v7604 = vpop.f32.mrf.mxu0
  %v7605 = vadd.f32 %v5822, %v7604
  %7606 = vmatmul.f32.gmra.mxu0 %v7543
  %v7607 = vpop.f32.mrf.mxu0
  %v7608 = vadd.f32 %v5822, %v7607
  %7609 = vmatmul.f32.gmra.mxu0 %v7546
  %v7610 = vpop.f32.mrf.mxu0
  %v7611 = vadd.f32 %v5822, %v7610
  %7612 = vmatmul.f32.gmra.mxu0 %v7549
  %v7613 = vpop.f32.mrf.mxu0
  %v7614 = vadd.f32 %v5822, %v7613
  %7615 = vmatmul.f32.gmra.mxu0 %v7552
  %v7616 = vpop.f32.mrf.mxu0
  %v7617 = vadd.f32 %v5822, %v7616
  %7618 = vmatmul.f32.gmra.mxu0 %v7555
  %v7619 = vpop.f32.mrf.mxu0
  %v7620 = vadd.f32 %v5822, %v7619
  %7621 = vmatmul.f32.gmra.mxu0 %v7558
  %v7622 = vpop.f32.mrf.mxu0
  %v7623 = vadd.f32 %v5822, %v7622
  %7624 = vmatmul.f32.gmra.mxu0 %v7561
  %v7625 = vpop.f32.mrf.mxu0
  %v7626 = vadd.f32 %v5822, %v7625
  %7627 = vmatmul.f32.gmra.mxu0 %v7564
  %v7628 = vpop.f32.mrf.mxu0
  %v7629 = vadd.f32 %v5822, %v7628
  %7630 = vmatmul.f32.gmra.mxu0 %v7567
  %v7631 = vpop.f32.mrf.mxu0
  %v7632 = vadd.f32 %v5822, %v7631
  %7633 = vmatmul.f32.gmra.mxu0 %v7570
  %v7634 = vpop.f32.mrf.mxu0
  %v7635 = vadd.f32 %v5822, %v7634
  %7636 = vdwg.mxu0
  %v7637 = vmax.f32 %v7590, 0.0
  %v7638 = vmax.f32 %v7593, 0.0
  %v7639 = vmax.f32 %v7596, 0.0
  %v7640 = vmax.f32 %v7599, 0.0
  %v7641 = vmax.f32 %v7602, 0.0
  %v7642 = vmax.f32 %v7605, 0.0
  %v7643 = vmax.f32 %v7608, 0.0
  %v7644 = vmax.f32 %v7611, 0.0
  %v7645 = vmax.f32 %v7614, 0.0
  %v7646 = vmax.f32 %v7617, 0.0
  %v7647 = vmax.f32 %v7620, 0.0
  %v7648 = vmax.f32 %v7623, 0.0
  %v7649 = vmax.f32 %v7626, 0.0
  %v7650 = vmax.f32 %v7629, 0.0
  %v7651 = vmax.f32 %v7632, 0.0
  %v7652 = vmax.f32 %v7635, 0.0
  %v7653 = vsel %vm937, %v7637, 0.0
  %7654 = vadd.xlane.f32.xlu0 %v7653
  %v7655 = vpop.xlane.xlu0 %7654
  %v7656 = vsel %vm937, %v7638, 0.0
  %7657 = vadd.xlane.f32.xlu0 %v7656
  %v7658 = vpop.xlane.xlu0 %7657
  %v7659 = vsel %vm937, %v7639, 0.0
  %7660 = vadd.xlane.f32.xlu0 %v7659
  %v7661 = vpop.xlane.xlu0 %7660
  %v7662 = vsel %vm937, %v7640, 0.0
  %7663 = vadd.xlane.f32.xlu0 %v7662
  %v7664 = vpop.xlane.xlu0 %7663
  %v7665 = vsel %vm937, %v7641, 0.0
  %7666 = vadd.xlane.f32.xlu0 %v7665
  %v7667 = vpop.xlane.xlu0 %7666
  %v7668 = vsel %vm937, %v7642, 0.0
  %7669 = vadd.xlane.f32.xlu0 %v7668
  %v7670 = vpop.xlane.xlu0 %7669
  %v7671 = vsel %vm937, %v7643, 0.0
  %7672 = vadd.xlane.f32.xlu0 %v7671
  %v7673 = vpop.xlane.xlu0 %7672
  %v7674 = vsel %vm937, %v7644, 0.0
  %7675 = vadd.xlane.f32.xlu0 %v7674
  %v7676 = vpop.xlane.xlu0 %7675
  %v7677 = vsel %vm937, %v7645, 0.0
  %7678 = vadd.xlane.f32.xlu0 %v7677
  %v7679 = vpop.xlane.xlu0 %7678
  %v7680 = vsel %vm937, %v7646, 0.0
  %7681 = vadd.xlane.f32.xlu0 %v7680
  %v7682 = vpop.xlane.xlu0 %7681
  %v7683 = vsel %vm937, %v7647, 0.0
  %7684 = vadd.xlane.f32.xlu0 %v7683
  %v7685 = vpop.xlane.xlu0 %7684
  %v7686 = vsel %vm937, %v7648, 0.0
  %7687 = vadd.xlane.f32.xlu0 %v7686
  %v7688 = vpop.xlane.xlu0 %7687
  %v7689 = vsel %vm937, %v7649, 0.0
  %7690 = vadd.xlane.f32.xlu0 %v7689
  %v7691 = vpop.xlane.xlu0 %7690
  %v7692 = vsel %vm937, %v7650, 0.0
  %7693 = vadd.xlane.f32.xlu0 %v7692
  %v7694 = vpop.xlane.xlu0 %7693
  %v7695 = vsel %vm937, %v7651, 0.0
  %7696 = vadd.xlane.f32.xlu0 %v7695
  %v7697 = vpop.xlane.xlu0 %7696
  %v7698 = vsel %vm937, %v7652, 0.0
  %7699 = vadd.xlane.f32.xlu0 %v7698
  %v7700 = vpop.xlane.xlu0 %7699
  %v7701 = vmul.f32 %v7655, %v2106
  %v7702 = vmul.f32 %v7658, %v2106
  %v7703 = vmul.f32 %v7661, %v2106
  %v7704 = vmul.f32 %v7664, %v2106
  %v7705 = vmul.f32 %v7667, %v2106
  %v7706 = vmul.f32 %v7670, %v2106
  %v7707 = vmul.f32 %v7673, %v2106
  %v7708 = vmul.f32 %v7676, %v2106
  %v7709 = vmul.f32 %v7679, %v2106
  %v7710 = vmul.f32 %v7682, %v2106
  %v7711 = vmul.f32 %v7685, %v2106
  %v7712 = vmul.f32 %v7688, %v2106
  %v7713 = vmul.f32 %v7691, %v2106
  %v7714 = vmul.f32 %v7694, %v2106
  %v7715 = vmul.f32 %v7697, %v2106
  %v7716 = vmul.f32 %v7700, %v2106
  %v7717 = vsub.f32 %v7637, %v7701
  %v7718 = vsub.f32 %v7638, %v7702
  %v7719 = vsub.f32 %v7639, %v7703
  %v7720 = vsub.f32 %v7640, %v7704
  %v7721 = vsub.f32 %v7641, %v7705
  %v7722 = vsub.f32 %v7642, %v7706
  %v7723 = vsub.f32 %v7643, %v7707
  %v7724 = vsub.f32 %v7644, %v7708
  %v7725 = vsub.f32 %v7645, %v7709
  %v7726 = vsub.f32 %v7646, %v7710
  %v7727 = vsub.f32 %v7647, %v7711
  %v7728 = vsub.f32 %v7648, %v7712
  %v7729 = vsub.f32 %v7649, %v7713
  %v7730 = vsub.f32 %v7650, %v7714
  %v7731 = vsub.f32 %v7651, %v7715
  %v7732 = vsub.f32 %v7652, %v7716
  %v7733 = vmul.f32 %v7717, %v7717
  %v7734 = vmul.f32 %v7718, %v7718
  %v7735 = vmul.f32 %v7719, %v7719
  %v7736 = vmul.f32 %v7720, %v7720
  %v7737 = vmul.f32 %v7721, %v7721
  %v7738 = vmul.f32 %v7722, %v7722
  %v7739 = vmul.f32 %v7723, %v7723
  %v7740 = vmul.f32 %v7724, %v7724
  %v7741 = vmul.f32 %v7725, %v7725
  %v7742 = vmul.f32 %v7726, %v7726
  %v7743 = vmul.f32 %v7727, %v7727
  %v7744 = vmul.f32 %v7728, %v7728
  %v7745 = vmul.f32 %v7729, %v7729
  %v7746 = vmul.f32 %v7730, %v7730
  %v7747 = vmul.f32 %v7731, %v7731
  %v7748 = vmul.f32 %v7732, %v7732
  %v7749 = vsel %vm937, %v7733, 0.0
  %7750 = vadd.xlane.f32.xlu0 %v7749
  %v7751 = vpop.xlane.xlu0 %7750
  %v7752 = vsel %vm937, %v7734, 0.0
  %7753 = vadd.xlane.f32.xlu0 %v7752
  %v7754 = vpop.xlane.xlu0 %7753
  %v7755 = vsel %vm937, %v7735, 0.0
  %7756 = vadd.xlane.f32.xlu0 %v7755
  %v7757 = vpop.xlane.xlu0 %7756
  %v7758 = vsel %vm937, %v7736, 0.0
  %7759 = vadd.xlane.f32.xlu0 %v7758
  %v7760 = vpop.xlane.xlu0 %7759
  %v7761 = vsel %vm937, %v7737, 0.0
  %7762 = vadd.xlane.f32.xlu0 %v7761
  %v7763 = vpop.xlane.xlu0 %7762
  %v7764 = vsel %vm937, %v7738, 0.0
  %7765 = vadd.xlane.f32.xlu0 %v7764
  %v7766 = vpop.xlane.xlu0 %7765
  %v7767 = vsel %vm937, %v7739, 0.0
  %7768 = vadd.xlane.f32.xlu0 %v7767
  %v7769 = vpop.xlane.xlu0 %7768
  %v7770 = vsel %vm937, %v7740, 0.0
  %7771 = vadd.xlane.f32.xlu0 %v7770
  %v7772 = vpop.xlane.xlu0 %7771
  %v7773 = vsel %vm937, %v7741, 0.0
  %7774 = vadd.xlane.f32.xlu0 %v7773
  %v7775 = vpop.xlane.xlu0 %7774
  %v7776 = vsel %vm937, %v7742, 0.0
  %7777 = vadd.xlane.f32.xlu0 %v7776
  %v7778 = vpop.xlane.xlu0 %7777
  %v7779 = vsel %vm937, %v7743, 0.0
  %7780 = vadd.xlane.f32.xlu0 %v7779
  %v7781 = vpop.xlane.xlu0 %7780
  %v7782 = vsel %vm937, %v7744, 0.0
  %7783 = vadd.xlane.f32.xlu0 %v7782
  %v7784 = vpop.xlane.xlu0 %7783
  %v7785 = vsel %vm937, %v7745, 0.0
  %7786 = vadd.xlane.f32.xlu0 %v7785
  %v7787 = vpop.xlane.xlu0 %7786
  %v7788 = vsel %vm937, %v7746, 0.0
  %7789 = vadd.xlane.f32.xlu0 %v7788
  %v7790 = vpop.xlane.xlu0 %7789
  %v7791 = vsel %vm937, %v7747, 0.0
  %7792 = vadd.xlane.f32.xlu0 %v7791
  %v7793 = vpop.xlane.xlu0 %7792
  %v7794 = vsel %vm937, %v7748, 0.0
  %7795 = vadd.xlane.f32.xlu0 %v7794
  %v7796 = vpop.xlane.xlu0 %7795
  %v7797 = vmul.f32 %v7751, %v2106
  %v7798 = vmul.f32 %v7754, %v2106
  %v7799 = vmul.f32 %v7757, %v2106
  %v7800 = vmul.f32 %v7760, %v2106
  %v7801 = vmul.f32 %v7763, %v2106
  %v7802 = vmul.f32 %v7766, %v2106
  %v7803 = vmul.f32 %v7769, %v2106
  %v7804 = vmul.f32 %v7772, %v2106
  %v7805 = vmul.f32 %v7775, %v2106
  %v7806 = vmul.f32 %v7778, %v2106
  %v7807 = vmul.f32 %v7781, %v2106
  %v7808 = vmul.f32 %v7784, %v2106
  %v7809 = vmul.f32 %v7787, %v2106
  %v7810 = vmul.f32 %v7790, %v2106
  %v7811 = vmul.f32 %v7793, %v2106
  %v7812 = vmul.f32 %v7796, %v2106
  %v7813 = vadd.f32 %v7797, 1e-05
  %v7814 = vadd.f32 %v7798, 1e-05
  %v7815 = vadd.f32 %v7799, 1e-05
  %v7816 = vadd.f32 %v7800, 1e-05
  %v7817 = vadd.f32 %v7801, 1e-05
  %v7818 = vadd.f32 %v7802, 1e-05
  %v7819 = vadd.f32 %v7803, 1e-05
  %v7820 = vadd.f32 %v7804, 1e-05
  %v7821 = vadd.f32 %v7805, 1e-05
  %v7822 = vadd.f32 %v7806, 1e-05
  %v7823 = vadd.f32 %v7807, 1e-05
  %v7824 = vadd.f32 %v7808, 1e-05
  %v7825 = vadd.f32 %v7809, 1e-05
  %v7826 = vadd.f32 %v7810, 1e-05
  %v7827 = vadd.f32 %v7811, 1e-05
  %v7828 = vadd.f32 %v7812, 1e-05
  %v7829 = vrsqrt.pop %v7813
  %v7830 = vmul.f32 %v7829, %v7813
  %v7831 = vmul.f32 %v7830, %v7829
  %v7832 = vmul.f32 0.5, %v7831
  %v7833 = vsub.f32 1.5, %v7832
  %v7834 = vmul.f32 %v7829, %v7833
  %vm7835 = vweird.f32 %v7813
  %vm7836 = vweird.f32 %v7829
  %vm7837 = vmor %vm7835, %vm7836
  %v7838 = vsel %vm7837, %v7829, %v7834
  %v7839 = vrsqrt.pop %v7814
  %v7840 = vmul.f32 %v7839, %v7814
  %v7841 = vmul.f32 %v7840, %v7839
  %v7842 = vmul.f32 0.5, %v7841
  %v7843 = vsub.f32 1.5, %v7842
  %v7844 = vmul.f32 %v7839, %v7843
  %vm7845 = vweird.f32 %v7814
  %vm7846 = vweird.f32 %v7839
  %vm7847 = vmor %vm7845, %vm7846
  %v7848 = vsel %vm7847, %v7839, %v7844
  %v7849 = vrsqrt.pop %v7815
  %v7850 = vmul.f32 %v7849, %v7815
  %v7851 = vmul.f32 %v7850, %v7849
  %v7852 = vmul.f32 0.5, %v7851
  %v7853 = vsub.f32 1.5, %v7852
  %v7854 = vmul.f32 %v7849, %v7853
  %vm7855 = vweird.f32 %v7815
  %vm7856 = vweird.f32 %v7849
  %vm7857 = vmor %vm7855, %vm7856
  %v7858 = vsel %vm7857, %v7849, %v7854
  %v7859 = vrsqrt.pop %v7816
  %v7860 = vmul.f32 %v7859, %v7816
  %v7861 = vmul.f32 %v7860, %v7859
  %v7862 = vmul.f32 0.5, %v7861
  %v7863 = vsub.f32 1.5, %v7862
  %v7864 = vmul.f32 %v7859, %v7863
  %vm7865 = vweird.f32 %v7816
  %vm7866 = vweird.f32 %v7859
  %vm7867 = vmor %vm7865, %vm7866
  %v7868 = vsel %vm7867, %v7859, %v7864
  %v7869 = vrsqrt.pop %v7817
  %v7870 = vmul.f32 %v7869, %v7817
  %v7871 = vmul.f32 %v7870, %v7869
  %v7872 = vmul.f32 0.5, %v7871
  %v7873 = vsub.f32 1.5, %v7872
  %v7874 = vmul.f32 %v7869, %v7873
  %vm7875 = vweird.f32 %v7817
  %vm7876 = vweird.f32 %v7869
  %vm7877 = vmor %vm7875, %vm7876
  %v7878 = vsel %vm7877, %v7869, %v7874
  %v7879 = vrsqrt.pop %v7818
  %v7880 = vmul.f32 %v7879, %v7818
  %v7881 = vmul.f32 %v7880, %v7879
  %v7882 = vmul.f32 0.5, %v7881
  %v7883 = vsub.f32 1.5, %v7882
  %v7884 = vmul.f32 %v7879, %v7883
  %vm7885 = vweird.f32 %v7818
  %vm7886 = vweird.f32 %v7879
  %vm7887 = vmor %vm7885, %vm7886
  %v7888 = vsel %vm7887, %v7879, %v7884
  %v7889 = vrsqrt.pop %v7819
  %v7890 = vmul.f32 %v7889, %v7819
  %v7891 = vmul.f32 %v7890, %v7889
  %v7892 = vmul.f32 0.5, %v7891
  %v7893 = vsub.f32 1.5, %v7892
  %v7894 = vmul.f32 %v7889, %v7893
  %vm7895 = vweird.f32 %v7819
  %vm7896 = vweird.f32 %v7889
  %vm7897 = vmor %vm7895, %vm7896
  %v7898 = vsel %vm7897, %v7889, %v7894
  %v7899 = vrsqrt.pop %v7820
  %v7900 = vmul.f32 %v7899, %v7820
  %v7901 = vmul.f32 %v7900, %v7899
  %v7902 = vmul.f32 0.5, %v7901
  %v7903 = vsub.f32 1.5, %v7902
  %v7904 = vmul.f32 %v7899, %v7903
  %vm7905 = vweird.f32 %v7820
  %vm7906 = vweird.f32 %v7899
  %vm7907 = vmor %vm7905, %vm7906
  %v7908 = vsel %vm7907, %v7899, %v7904
  %v7909 = vrsqrt.pop %v7821
  %v7910 = vmul.f32 %v7909, %v7821
  %v7911 = vmul.f32 %v7910, %v7909
  %v7912 = vmul.f32 0.5, %v7911
  %v7913 = vsub.f32 1.5, %v7912
  %v7914 = vmul.f32 %v7909, %v7913
  %vm7915 = vweird.f32 %v7821
  %vm7916 = vweird.f32 %v7909
  %vm7917 = vmor %vm7915, %vm7916
  %v7918 = vsel %vm7917, %v7909, %v7914
  %v7919 = vrsqrt.pop %v7822
  %v7920 = vmul.f32 %v7919, %v7822
  %v7921 = vmul.f32 %v7920, %v7919
  %v7922 = vmul.f32 0.5, %v7921
  %v7923 = vsub.f32 1.5, %v7922
  %v7924 = vmul.f32 %v7919, %v7923
  %vm7925 = vweird.f32 %v7822
  %vm7926 = vweird.f32 %v7919
  %vm7927 = vmor %vm7925, %vm7926
  %v7928 = vsel %vm7927, %v7919, %v7924
  %v7929 = vrsqrt.pop %v7823
  %v7930 = vmul.f32 %v7929, %v7823
  %v7931 = vmul.f32 %v7930, %v7929
  %v7932 = vmul.f32 0.5, %v7931
  %v7933 = vsub.f32 1.5, %v7932
  %v7934 = vmul.f32 %v7929, %v7933
  %vm7935 = vweird.f32 %v7823
  %vm7936 = vweird.f32 %v7929
  %vm7937 = vmor %vm7935, %vm7936
  %v7938 = vsel %vm7937, %v7929, %v7934
  %v7939 = vrsqrt.pop %v7824
  %v7940 = vmul.f32 %v7939, %v7824
  %v7941 = vmul.f32 %v7940, %v7939
  %v7942 = vmul.f32 0.5, %v7941
  %v7943 = vsub.f32 1.5, %v7942
  %v7944 = vmul.f32 %v7939, %v7943
  %vm7945 = vweird.f32 %v7824
  %vm7946 = vweird.f32 %v7939
  %vm7947 = vmor %vm7945, %vm7946
  %v7948 = vsel %vm7947, %v7939, %v7944
  %v7949 = vrsqrt.pop %v7825
  %v7950 = vmul.f32 %v7949, %v7825
  %v7951 = vmul.f32 %v7950, %v7949
  %v7952 = vmul.f32 0.5, %v7951
  %v7953 = vsub.f32 1.5, %v7952
  %v7954 = vmul.f32 %v7949, %v7953
  %vm7955 = vweird.f32 %v7825
  %vm7956 = vweird.f32 %v7949
  %vm7957 = vmor %vm7955, %vm7956
  %v7958 = vsel %vm7957, %v7949, %v7954
  %v7959 = vrsqrt.pop %v7826
  %v7960 = vmul.f32 %v7959, %v7826
  %v7961 = vmul.f32 %v7960, %v7959
  %v7962 = vmul.f32 0.5, %v7961
  %v7963 = vsub.f32 1.5, %v7962
  %v7964 = vmul.f32 %v7959, %v7963
  %vm7965 = vweird.f32 %v7826
  %vm7966 = vweird.f32 %v7959
  %vm7967 = vmor %vm7965, %vm7966
  %v7968 = vsel %vm7967, %v7959, %v7964
  %v7969 = vrsqrt.pop %v7827
  %v7970 = vmul.f32 %v7969, %v7827
  %v7971 = vmul.f32 %v7970, %v7969
  %v7972 = vmul.f32 0.5, %v7971
  %v7973 = vsub.f32 1.5, %v7972
  %v7974 = vmul.f32 %v7969, %v7973
  %vm7975 = vweird.f32 %v7827
  %vm7976 = vweird.f32 %v7969
  %vm7977 = vmor %vm7975, %vm7976
  %v7978 = vsel %vm7977, %v7969, %v7974
  %v7979 = vrsqrt.pop %v7828
  %v7980 = vmul.f32 %v7979, %v7828
  %v7981 = vmul.f32 %v7980, %v7979
  %v7982 = vmul.f32 0.5, %v7981
  %v7983 = vsub.f32 1.5, %v7982
  %v7984 = vmul.f32 %v7979, %v7983
  %vm7985 = vweird.f32 %v7828
  %vm7986 = vweird.f32 %v7979
  %vm7987 = vmor %vm7985, %vm7986
  %v7988 = vsel %vm7987, %v7979, %v7984
  %v7989 = vmul.f32 %v7717, %v7838
  %v7990 = vmul.f32 %v7718, %v7848
  %v7991 = vmul.f32 %v7719, %v7858
  %v7992 = vmul.f32 %v7720, %v7868
  %v7993 = vmul.f32 %v7721, %v7878
  %v7994 = vmul.f32 %v7722, %v7888
  %v7995 = vmul.f32 %v7723, %v7898
  %v7996 = vmul.f32 %v7724, %v7908
  %v7997 = vmul.f32 %v7725, %v7918
  %v7998 = vmul.f32 %v7726, %v7928
  %v7999 = vmul.f32 %v7727, %v7938
  %v8000 = vmul.f32 %v7728, %v7948
  %v8001 = vmul.f32 %v7729, %v7958
  %v8002 = vmul.f32 %v7730, %v7968
  %v8003 = vmul.f32 %v7731, %v7978
  %v8004 = vmul.f32 %v7732, %v7988
  %v8005 = vmul.f32 %v7989, %v6307
  %v8006 = vmul.f32 %v7990, %v6307
  %v8007 = vmul.f32 %v7991, %v6307
  %v8008 = vmul.f32 %v7992, %v6307
  %v8009 = vmul.f32 %v7993, %v6307
  %v8010 = vmul.f32 %v7994, %v6307
  %v8011 = vmul.f32 %v7995, %v6307
  %v8012 = vmul.f32 %v7996, %v6307
  %v8013 = vmul.f32 %v7997, %v6307
  %v8014 = vmul.f32 %v7998, %v6307
  %v8015 = vmul.f32 %v7999, %v6307
  %v8016 = vmul.f32 %v8000, %v6307
  %v8017 = vmul.f32 %v8001, %v6307
  %v8018 = vmul.f32 %v8002, %v6307
  %v8019 = vmul.f32 %v8003, %v6307
  %v8020 = vmul.f32 %v8004, %v6307
  %v8021 = vadd.f32 %v8005, %v6326
  %v8022 = vadd.f32 %v8006, %v6326
  %v8023 = vadd.f32 %v8007, %v6326
  %v8024 = vadd.f32 %v8008, %v6326
  %v8025 = vadd.f32 %v8009, %v6326
  %v8026 = vadd.f32 %v8010, %v6326
  %v8027 = vadd.f32 %v8011, %v6326
  %v8028 = vadd.f32 %v8012, %v6326
  %v8029 = vadd.f32 %v8013, %v6326
  %v8030 = vadd.f32 %v8014, %v6326
  %v8031 = vadd.f32 %v8015, %v6326
  %v8032 = vadd.f32 %v8016, %v6326
  %v8033 = vadd.f32 %v8017, %v6326
  %v8034 = vadd.f32 %v8018, %v6326
  %v8035 = vadd.f32 %v8019, %v6326
  %v8036 = vadd.f32 %v8020, %v6326
  %v8037 = vld [vmem:[%s69] sm:$0xff]
  %v8038 = vld [vmem:[%s69 + $0x8] sm:$0xff]
  %v8039 = vld [vmem:[%s71] sm:$0x1]
  %v8040 = vld [vmem:[%s71 + $0x1] sm:$0x1]
  %v8041 = vld [vmem:[%s71 + $0x2] sm:$0x1]
  %v8042 = vld [vmem:[%s71 + $0x3] sm:$0x1]
  %v8043 = vld [vmem:[%s71 + $0x4] sm:$0x1]
  %v8044 = vld [vmem:[%s71 + $0x5] sm:$0x1]
  %v8045 = vld [vmem:[%s71 + $0x6] sm:$0x1]
  %v8046 = vld [vmem:[%s71 + $0x7] sm:$0x1]
  %v8047 = vld [vmem:[%s73] sm:$0xff]
  %v8048 = vld [vmem:[%s73 + $0x8] sm:$0xff]
  %v8049 = vld [vmem:[%s73 + $0x10] sm:$0xff]
  %v8050 = vld [vmem:[%s73 + $0x18] sm:$0xff]
  %v8051 = vld [vmem:[%s73 + $0x20] sm:$0xff]
  %v8052 = vld [vmem:[%s73 + $0x28] sm:$0xff]
  %v8053 = vld [vmem:[%s73 + $0x30] sm:$0xff]
  %v8054 = vld [vmem:[%s73 + $0x38] sm:$0xff]
  %v8055 = vld [vmem:[%s75] sm:$0x1]
  %v8057 = vsel %vm937, %v6328, 0
  %v8060 = vsel %vm937, %v6329, 0
  %v8063 = vsel %vm937, %v6330, 0
  %v8066 = vsel %vm937, %v6331, 0
  %v8069 = vsel %vm937, %v6332, 0
  %v8072 = vsel %vm937, %v6333, 0
  %v8075 = vsel %vm937, %v6334, 0
  %v8078 = vsel %vm937, %v6335, 0
  %v8081 = vsel %vm937, %v6336, 0
  %v8084 = vsel %vm937, %v6337, 0
  %v8087 = vsel %vm937, %v6338, 0
  %v8090 = vsel %vm937, %v6339, 0
  %v8093 = vsel %vm937, %v6340, 0
  %v8096 = vsel %vm937, %v6341, 0
  %v8099 = vsel %vm937, %v6342, 0
  %v8102 = vsel %vm937, %v6343, 0
  %v8105 = vsel %vm937, %v8021, 0
  %v8108 = vsel %vm937, %v8022, 0
  %v8111 = vsel %vm937, %v8023, 0
  %v8114 = vsel %vm937, %v8024, 0
  %v8117 = vsel %vm937, %v8025, 0
  %v8120 = vsel %vm937, %v8026, 0
  %v8123 = vsel %vm937, %v8027, 0
  %v8126 = vsel %vm937, %v8028, 0
  %v8129 = vsel %vm937, %v8029, 0
  %v8132 = vsel %vm937, %v8030, 0
  %v8135 = vsel %vm937, %v8031, 0
  %v8138 = vsel %vm937, %v8032, 0
  %v8141 = vsel %vm937, %v8033, 0
  %v8144 = vsel %vm937, %v8034, 0
  %v8147 = vsel %vm937, %v8035, 0
  %v8150 = vsel %vm937, %v8036, 0
  %8152 = vmatpush.msra.mxu0 0.0
  %8153 = vmatpush.msra.mxu0 0.0
  %8154 = vmatpush.msra.mxu0 0.0
  %8155 = vmatpush.msra.mxu0 0.0
  %8156 = vmatpush.msra.mxu0 0.0
  %8157 = vmatpush.msra.mxu0 0.0
  %8158 = vmatpush.msra.mxu0 0.0
  %8159 = vmatpush.msra.mxu0 0.0
  %8160 = vmatpush.msra.mxu0 0.0
  %8161 = vmatpush.msra.mxu0 0.0
  %8162 = vmatpush.msra.mxu0 0.0
  %8163 = vmatpush.msra.mxu0 0.0
  %8164 = vmatpush.msra.mxu0 0.0
  %8165 = vmatpush.msra.mxu0 0.0
  %8166 = vmatpush.msra.mxu0 %v8038
  %8167 = vmatpush.msra.mxu0 %v8037
  %8168 = vmatmul.f32.gmra.mxu0 %v8057
  %v8169 = vpop.f32.mrf.mxu0
  %v8170 = vadd.f32 0.0, %v8169
  %8171 = vmatmul.f32.gmra.mxu0 %v8060
  %v8172 = vpop.f32.mrf.mxu0
  %v8173 = vadd.f32 0.0, %v8172
  %8174 = vmatmul.f32.gmra.mxu0 %v8063
  %v8175 = vpop.f32.mrf.mxu0
  %v8176 = vadd.f32 0.0, %v8175
  %8177 = vmatmul.f32.gmra.mxu0 %v8066
  %v8178 = vpop.f32.mrf.mxu0
  %v8179 = vadd.f32 0.0, %v8178
  %8180 = vmatmul.f32.gmra.mxu0 %v8069
  %v8181 = vpop.f32.mrf.mxu0
  %v8182 = vadd.f32 0.0, %v8181
  %8183 = vmatmul.f32.gmra.mxu0 %v8072
  %v8184 = vpop.f32.mrf.mxu0
  %v8185 = vadd.f32 0.0, %v8184
  %8186 = vmatmul.f32.gmra.mxu0 %v8075
  %v8187 = vpop.f32.mrf.mxu0
  %v8188 = vadd.f32 0.0, %v8187
  %8189 = vmatmul.f32.gmra.mxu0 %v8078
  %v8190 = vpop.f32.mrf.mxu0
  %v8191 = vadd.f32 0.0, %v8190
  %8192 = vmatmul.f32.gmra.mxu0 %v8081
  %v8193 = vpop.f32.mrf.mxu0
  %v8194 = vadd.f32 0.0, %v8193
  %8195 = vmatmul.f32.gmra.mxu0 %v8084
  %v8196 = vpop.f32.mrf.mxu0
  %v8197 = vadd.f32 0.0, %v8196
  %8198 = vmatmul.f32.gmra.mxu0 %v8087
  %v8199 = vpop.f32.mrf.mxu0
  %v8200 = vadd.f32 0.0, %v8199
  %8201 = vmatmul.f32.gmra.mxu0 %v8090
  %v8202 = vpop.f32.mrf.mxu0
  %v8203 = vadd.f32 0.0, %v8202
  %8204 = vmatmul.f32.gmra.mxu0 %v8093
  %v8205 = vpop.f32.mrf.mxu0
  %v8206 = vadd.f32 0.0, %v8205
  %8207 = vmatmul.f32.gmra.mxu0 %v8096
  %v8208 = vpop.f32.mrf.mxu0
  %v8209 = vadd.f32 0.0, %v8208
  %8210 = vmatmul.f32.gmra.mxu0 %v8099
  %v8211 = vpop.f32.mrf.mxu0
  %v8212 = vadd.f32 0.0, %v8211
  %8213 = vmatmul.f32.gmra.mxu0 %v8102
  %v8214 = vpop.f32.mrf.mxu0
  %v8215 = vadd.f32 0.0, %v8214
  %8216 = vmatmul.f32.gmra.mxu0 %v8105
  %v8217 = vpop.f32.mrf.mxu0
  %v8218 = vadd.f32 0.0, %v8217
  %8219 = vmatmul.f32.gmra.mxu0 %v8108
  %v8220 = vpop.f32.mrf.mxu0
  %v8221 = vadd.f32 0.0, %v8220
  %8222 = vmatmul.f32.gmra.mxu0 %v8111
  %v8223 = vpop.f32.mrf.mxu0
  %v8224 = vadd.f32 0.0, %v8223
  %8225 = vmatmul.f32.gmra.mxu0 %v8114
  %v8226 = vpop.f32.mrf.mxu0
  %v8227 = vadd.f32 0.0, %v8226
  %8228 = vmatmul.f32.gmra.mxu0 %v8117
  %v8229 = vpop.f32.mrf.mxu0
  %v8230 = vadd.f32 0.0, %v8229
  %8231 = vmatmul.f32.gmra.mxu0 %v8120
  %v8232 = vpop.f32.mrf.mxu0
  %v8233 = vadd.f32 0.0, %v8232
  %8234 = vmatmul.f32.gmra.mxu0 %v8123
  %v8235 = vpop.f32.mrf.mxu0
  %v8236 = vadd.f32 0.0, %v8235
  %8237 = vmatmul.f32.gmra.mxu0 %v8126
  %v8238 = vpop.f32.mrf.mxu0
  %v8239 = vadd.f32 0.0, %v8238
  %8240 = vmatmul.f32.gmra.mxu0 %v8129
  %v8241 = vpop.f32.mrf.mxu0
  %v8242 = vadd.f32 0.0, %v8241
  %8243 = vmatmul.f32.gmra.mxu0 %v8132
  %v8244 = vpop.f32.mrf.mxu0
  %v8245 = vadd.f32 0.0, %v8244
  %8246 = vmatmul.f32.gmra.mxu0 %v8135
  %v8247 = vpop.f32.mrf.mxu0
  %v8248 = vadd.f32 0.0, %v8247
  %8249 = vmatmul.f32.gmra.mxu0 %v8138
  %v8250 = vpop.f32.mrf.mxu0
  %v8251 = vadd.f32 0.0, %v8250
  %8252 = vmatmul.f32.gmra.mxu0 %v8141
  %v8253 = vpop.f32.mrf.mxu0
  %v8254 = vadd.f32 0.0, %v8253
  %8255 = vmatmul.f32.gmra.mxu0 %v8144
  %v8256 = vpop.f32.mrf.mxu0
  %v8257 = vadd.f32 0.0, %v8256
  %8258 = vmatmul.f32.gmra.mxu0 %v8147
  %v8259 = vpop.f32.mrf.mxu0
  %v8260 = vadd.f32 0.0, %v8259
  %8261 = vmatmul.f32.gmra.mxu0 %v8150
  %v8262 = vpop.f32.mrf.mxu0
  %v8263 = vadd.f32 0.0, %v8262
  %8264 = vdwg.mxu0
  %v8273 = vperm.slane %v8039, 0
  %v8274 = vperm.slane %v8040, 0
  %v8275 = vperm.slane %v8041, 0
  %v8276 = vperm.slane %v8042, 0
  %v8277 = vperm.slane %v8043, 0
  %v8278 = vperm.slane %v8044, 0
  %v8279 = vperm.slane %v8045, 0
  %v8280 = vperm.slane %v8046, 0
  %v8289 = vmul.f32 %v8170, %v8273
  %v8290 = vmul.f32 %v8173, %v8273
  %v8291 = vmul.f32 %v8176, %v8274
  %v8292 = vmul.f32 %v8179, %v8274
  %v8293 = vmul.f32 %v8182, %v8275
  %v8294 = vmul.f32 %v8185, %v8275
  %v8295 = vmul.f32 %v8188, %v8276
  %v8296 = vmul.f32 %v8191, %v8276
  %v8297 = vmul.f32 %v8194, %v8277
  %v8298 = vmul.f32 %v8197, %v8277
  %v8299 = vmul.f32 %v8200, %v8278
  %v8300 = vmul.f32 %v8203, %v8278
  %v8301 = vmul.f32 %v8206, %v8279
  %v8302 = vmul.f32 %v8209, %v8279
  %v8303 = vmul.f32 %v8212, %v8280
  %v8304 = vmul.f32 %v8215, %v8280
  %v8305 = vmul.f32 %v8218, %v8273
  %v8306 = vmul.f32 %v8221, %v8273
  %v8307 = vmul.f32 %v8224, %v8274
  %v8308 = vmul.f32 %v8227, %v8274
  %v8309 = vmul.f32 %v8230, %v8275
  %v8310 = vmul.f32 %v8233, %v8275
  %v8311 = vmul.f32 %v8236, %v8276
  %v8312 = vmul.f32 %v8239, %v8276
  %v8313 = vmul.f32 %v8242, %v8277
  %v8314 = vmul.f32 %v8245, %v8277
  %v8315 = vmul.f32 %v8248, %v8278
  %v8316 = vmul.f32 %v8251, %v8278
  %v8317 = vmul.f32 %v8254, %v8279
  %v8318 = vmul.f32 %v8257, %v8279
  %v8319 = vmul.f32 %v8260, %v8280
  %v8320 = vmul.f32 %v8263, %v8280
  %v8321 = vsel %vm5824, %v8289, 0.0
  %v8322 = vsel %vm5824, %v8291, 0.0
  %v8323 = vadd.f32 %v8321, %v8322
  %v8324 = vsel %vm5824, %v8293, 0.0
  %v8325 = vadd.f32 %v8323, %v8324
  %v8326 = vsel %vm5824, %v8295, 0.0
  %v8327 = vadd.f32 %v8325, %v8326
  %v8328 = vsel %vm5824, %v8297, 0.0
  %v8329 = vadd.f32 %v8327, %v8328
  %v8330 = vsel %vm5824, %v8299, 0.0
  %v8331 = vadd.f32 %v8329, %v8330
  %v8332 = vsel %vm5824, %v8301, 0.0
  %v8333 = vadd.f32 %v8331, %v8332
  %v8334 = vsel %vm5824, %v8303, 0.0
  %v8335 = vadd.f32 %v8333, %v8334
  %v8336 = vsel %vm5824, %v8290, 0.0
  %v8337 = vsel %vm5824, %v8292, 0.0
  %v8338 = vadd.f32 %v8336, %v8337
  %v8339 = vsel %vm5824, %v8294, 0.0
  %v8340 = vadd.f32 %v8338, %v8339
  %v8341 = vsel %vm5824, %v8296, 0.0
  %v8342 = vadd.f32 %v8340, %v8341
  %v8343 = vsel %vm5824, %v8298, 0.0
  %v8344 = vadd.f32 %v8342, %v8343
  %v8345 = vsel %vm5824, %v8300, 0.0
  %v8346 = vadd.f32 %v8344, %v8345
  %v8347 = vsel %vm5824, %v8302, 0.0
  %v8348 = vadd.f32 %v8346, %v8347
  %v8349 = vsel %vm5824, %v8304, 0.0
  %v8350 = vadd.f32 %v8348, %v8349
  %v8351 = vsel %vm5824, %v8305, 0.0
  %v8352 = vsel %vm5824, %v8307, 0.0
  %v8353 = vadd.f32 %v8351, %v8352
  %v8354 = vsel %vm5824, %v8309, 0.0
  %v8355 = vadd.f32 %v8353, %v8354
  %v8356 = vsel %vm5824, %v8311, 0.0
  %v8357 = vadd.f32 %v8355, %v8356
  %v8358 = vsel %vm5824, %v8313, 0.0
  %v8359 = vadd.f32 %v8357, %v8358
  %v8360 = vsel %vm5824, %v8315, 0.0
  %v8361 = vadd.f32 %v8359, %v8360
  %v8362 = vsel %vm5824, %v8317, 0.0
  %v8363 = vadd.f32 %v8361, %v8362
  %v8364 = vsel %vm5824, %v8319, 0.0
  %v8365 = vadd.f32 %v8363, %v8364
  %v8366 = vsel %vm5824, %v8306, 0.0
  %v8367 = vsel %vm5824, %v8308, 0.0
  %v8368 = vadd.f32 %v8366, %v8367
  %v8369 = vsel %vm5824, %v8310, 0.0
  %v8370 = vadd.f32 %v8368, %v8369
  %v8371 = vsel %vm5824, %v8312, 0.0
  %v8372 = vadd.f32 %v8370, %v8371
  %v8373 = vsel %vm5824, %v8314, 0.0
  %v8374 = vadd.f32 %v8372, %v8373
  %v8375 = vsel %vm5824, %v8316, 0.0
  %v8376 = vadd.f32 %v8374, %v8375
  %v8377 = vsel %vm5824, %v8318, 0.0
  %v8378 = vadd.f32 %v8376, %v8377
  %v8379 = vsel %vm5824, %v8320, 0.0
  %v8380 = vadd.f32 %v8378, %v8379
  %v8382 = vperm.slane %v8055, 0
  %v8385 = vsel %vm5824, %v8335, 0
  %v8388 = vsel %vm5824, %v8350, 0
  %v8391 = vsel %vm5824, %v8365, 0
  %v8394 = vsel %vm5824, %v8380, 0
  %8396 = vmatpush.msra.mxu0 0.0
  %8397 = vmatpush.msra.mxu0 0.0
  %8398 = vmatpush.msra.mxu0 0.0
  %8399 = vmatpush.msra.mxu0 0.0
  %8400 = vmatpush.msra.mxu0 0.0
  %8401 = vmatpush.msra.mxu0 0.0
  %8402 = vmatpush.msra.mxu0 0.0
  %8403 = vmatpush.msra.mxu0 0.0
  %8404 = vmatpush.msra.mxu0 %v8054
  %8405 = vmatpush.msra.mxu0 %v8053
  %8406 = vmatpush.msra.mxu0 %v8052
  %8407 = vmatpush.msra.mxu0 %v8051
  %8408 = vmatpush.msra.mxu0 %v8050
  %8409 = vmatpush.msra.mxu0 %v8049
  %8410 = vmatpush.msra.mxu0 %v8048
  %8411 = vmatpush.msra.mxu0 %v8047
  %8412 = vmatmul.f32.gmra.mxu0 %v8385
  %v8413 = vpop.f32.mrf.mxu0
  %v8414 = vadd.f32 %v8382, %v8413
  %8415 = vmatmul.f32.gmra.mxu0 %v8388
  %v8416 = vpop.f32.mrf.mxu0
  %v8417 = vadd.f32 %v8382, %v8416
  %8418 = vmatmul.f32.gmra.mxu0 %v8391
  %v8419 = vpop.f32.mrf.mxu0
  %v8420 = vadd.f32 %v8382, %v8419
  %8421 = vmatmul.f32.gmra.mxu0 %v8394
  %v8422 = vpop.f32.mrf.mxu0
  %v8423 = vadd.f32 %v8382, %v8422
  %8424 = vdwg.mxu0
  %8425 = vst.msk [vmem:[%s77] sm:$0xff] %vm982, %v8414
  %8426 = vst.msk [vmem:[%s77 + $0x8] sm:$0xff] %vm982, %v8417
  %8427 = vst.msk [vmem:[%s77 + $0x10] sm:$0xff] %vm982, %v8420
  %8428 = vst.msk [vmem:[%s77 + $0x18] sm:$0xff] %vm982, %v8423
  // Predicated region
  $region154: #{_lambda_.1} parent=0 // pred_check
    _
  $region155: #{_lambda_.1} parent=0 // pred_check_branch
    %8430 = sbr.rel (0) target = $region157
  $region156: #{_lambda_.1} parent=0 // pred_region
    _
  $region157: #{_lambda_.1} parent=0 // pred_fallthru
    _
  // Predicated region
  $region158: #{_lambda_.1} parent=0 // pred_check
    _
  $region159: #{_lambda_.1} parent=0 // pred_check_branch
    %8432 = sbr.rel (0) target = $region161
  $region160: #{_lambda_.1} parent=0 // pred_region
    _
  $region161: #{_lambda_.1} parent=0 // pred_fallthru
    _

</llo_original>
